<compile_context>
chip_gen: v5e
topology: v5e:2x2
jax: 0.10.0
libtpu: 0.0.40
codegen_flags: <defaults>
</compile_context>

<pallas_src>
import functools

import jax
import jax.numpy as jnp
from jax import lax
from jax.experimental import pallas as pl
from jax.experimental.pallas import tpu as pltpu


def _round_up(x, m):
    return ((x + m - 1) // m) * m


_VMEM_CAP_CACHE = [None]


def _vmem_capacity_bytes():
    """Physical VMEM per core (trace-time query, cached, safe fallback)."""
    if _VMEM_CAP_CACHE[0] is None:
        try:
            _VMEM_CAP_CACHE[0] = int(pltpu.get_tpu_info().vmem_capacity_bytes)
        except Exception:
            _VMEM_CAP_CACHE[0] = 64 * 1024 * 1024   # v7x-sized conservative default
        _VMEM_CAP_CACHE[0] = max(_VMEM_CAP_CACHE[0], 32 * 1024 * 1024)
    return _VMEM_CAP_CACHE[0]


# ----------------------------------------------------------------------------
# Fused 3-layer LSTM kernel: grid = (batch slabs [parallel], time chunks
# [arbitrary]); per-chunk layer loop + per-step recurrence inside.
# ----------------------------------------------------------------------------
def _fused_lstm_kernel(x_ref, h0_ref, c0_ref, wih_ref, whh_ref, b_ref,
                       y_ref, hT_ref, cT_ref,
                       h_sc, c_sc, gx_sc, y_sc,
                       *, seq_len, needs_mask, unroll):
    ci = pl.program_id(1)                      # time-chunk index
    tc, bslab, H = x_ref.shape
    n_layers = h_sc.shape[0]

    @pl.when(ci == 0)
    def _():
        h_sc[...] = h0_ref[...]
        c_sc[...] = c0_ref[...]

    for l in range(n_layers):
        # ---- Prologue: hoisted input projection for the whole chunk --------
        # Layer 0 reads the (bf16) embedded chunk; layers >0 read the previous
        # layer's chunk output, which never leaves VMEM.
        xin = x_ref[...] if l == 0 else y_sc[...]          # (tc, bslab, H) bf16
        x2d = xin.reshape(tc * bslab, H)
        gx = jnp.dot(x2d, wih_ref[l], preferred_element_type=jnp.float32)
        gx = gx + b_ref[l]                                  # bias folded here
        gx_sc[...] = gx.reshape(tc, bslab, 4 * H).astype(gx_sc.dtype)

        whh = whh_ref[l]                                    # (H, 4H) bf16

        # ---- Recurrence over the chunk --------------------------------------
        def step(t, carry):
            h, c = carry
            gates = gx_sc[t].astype(jnp.float32) + jnp.dot(
                h.astype(jnp.bfloat16), whh,
                preferred_element_type=jnp.float32)
            # Gate columns are pre-permuted to [i, f, o, g]:
            # one sigmoid over a 3H-wide slab + one tanh over H.
            sig = jax.nn.sigmoid(gates[:, :3 * H])
            i_g = sig[:, 0 * H:1 * H]
            f_g = sig[:, 1 * H:2 * H]
            o_g = sig[:, 2 * H:3 * H]
            g_g = jnp.tanh(gates[:, 3 * H:])
            c_new = f_g * c + i_g * g_g
            h_new = o_g * jnp.tanh(c_new)
            if needs_mask:
                # Padded (beyond seq_len) timesteps must not disturb h/c.
                valid = (ci * tc + t) < seq_len
                h_new = jnp.where(valid, h_new, h)
                c_new = jnp.where(valid, c_new, c)
            y_sc[t] = h_new.astype(y_sc.dtype)
            return h_new, c_new

        h_last, c_last = lax.fori_loop(0, tc, step, (h_sc[l], c_sc[l]),
                                       unroll=unroll)
        h_sc[l] = h_last
        c_sc[l] = c_last

    # Emit the last layer's chunk batch-major (bslab, tc, H) so the FC kernel
    # (and the caller) never need an XLA transpose of the activations.
    y_ref[...] = pltpu.einshape(
        "tbh->bth", y_sc[...].astype(jnp.float32)).astype(y_ref.dtype)

    @pl.when(ci == pl.num_programs(1) - 1)
    def _():
        hT_ref[...] = h_sc[...]
        cT_ref[...] = c_sc[...]


def lstm_stack(x, h0, c0, w_ih, w_hh, b):
    """Fused multi-layer LSTM.

    x:      (T, Bp, H)  bf16   (Bp padded to a multiple of 8)
    h0, c0: (L, Bp, H)  f32
    w_ih:   (L, H, 4H)  bf16   (gate columns permuted to [i, f, o, g])
    w_hh:   (L, H, 4H)  bf16
    b:      (L, 1, 4H)  f32    (b_ih + b_hh, permuted)
    returns y (Bp, T_pad, H) bf16, hT (L, Bp, H) f32, cT (L, Bp, H) f32
    """
    T, Bp, H = x.shape
    L = h0.shape[0]
    assert w_ih.shape == (L, H, 4 * H), "requires input_size == n_embed"

    # Batch slabs: gives v7x's second TensorCore a parallel axis when the
    # padded batch allows it (no effect on v5e/v6e single-core).
    if Bp >= 32 and Bp % 16 == 0:
        nb = 2
    else:
        nb = 1
    bslab = Bp // nb

    # ---- VMEM-budget-aware time chunk --------------------------------------
    cap = _vmem_capacity_bytes()
    budget = cap // 4                               # leave room for pipelining
    fixed = (2 * 2 * (L * H * 4 * H * 2)            # W_ih + W_hh (bf16, dbl-buf)
             + 8 * (L * bslab * H * 4)              # h0/c0/hT/cT blocks + carries
             + (1 << 20))
    per_t = bslab * H * 2 * (2 + 2 + 4 + 1)         # x(db) + y(db) + gx + y_sc, bf16
    tc_budget = max(1, (budget - fixed) // per_t)

    if T <= 8:
        tc = T                                      # single chunk, full-dim block
    else:
        t_cap = _round_up(T, 16)                    # bf16 sublane granule
        tc = int(min(tc_budget, t_cap, 256))
        tc = max(16, (tc // 16) * 16)
    num_chunks = -(-T // tc)
    T_pad = num_chunks * tc
    if T_pad != T:
        x = jnp.pad(x, ((0, T_pad - T), (0, 0), (0, 0)))
    needs_mask = (T_pad != T)

    unroll = int(min(tc, 8))                        # partial unroll of the step loop
    est = fixed + per_t * tc
    vmem_limit = int(min(cap - (4 << 20), max(2 * est, 32 << 20)))

    kernel = functools.partial(_fused_lstm_kernel, seq_len=T,
                               needs_mask=needs_mask, unroll=unroll)

    grid_spec = pltpu.PrefetchScalarGridSpec(
        num_scalar_prefetch=0,
        grid=(nb, num_chunks),
        in_specs=[
            pl.BlockSpec((tc, bslab, H), lambda bi, ci: (ci, bi, 0)),
            pl.BlockSpec((L, bslab, H), lambda bi, ci: (0, bi, 0)),
            pl.BlockSpec((L, bslab, H), lambda bi, ci: (0, bi, 0)),
            pl.BlockSpec((L, H, 4 * H), lambda bi, ci: (0, 0, 0)),
            pl.BlockSpec((L, H, 4 * H), lambda bi, ci: (0, 0, 0)),
            pl.BlockSpec((L, 1, 4 * H), lambda bi, ci: (0, 0, 0)),
        ],
        out_specs=[
            pl.BlockSpec((bslab, tc, H), lambda bi, ci: (bi, ci, 0)),
            pl.BlockSpec((L, bslab, H), lambda bi, ci: (0, bi, 0)),
            pl.BlockSpec((L, bslab, H), lambda bi, ci: (0, bi, 0)),
        ],
        scratch_shapes=[
            pltpu.VMEM((L, bslab, H), jnp.float32),           # h carry (all layers)
            pltpu.VMEM((L, bslab, H), jnp.float32),           # c carry (all layers)
            pltpu.VMEM((tc, bslab, 4 * H), jnp.bfloat16),     # chunk input proj
            pltpu.VMEM((tc, bslab, H), jnp.bfloat16),         # inter-layer chunk
        ],
    )

    y, hT, cT = pl.pallas_call(
        kernel,
        out_shape=(
            jax.ShapeDtypeStruct((Bp, T_pad, H), jnp.bfloat16),
            jax.ShapeDtypeStruct((L, Bp, H), jnp.float32),
            jax.ShapeDtypeStruct((L, Bp, H), jnp.float32),
        ),
        grid_spec=grid_spec,
        compiler_params=pltpu.CompilerParams(
            dimension_semantics=("parallel", "arbitrary"),
            vmem_limit_bytes=vmem_limit),
    )(x, h0, c0, w_ih, w_hh, b)
    return y, hT, cT


# ----------------------------------------------------------------------------
# Final Linear: reads (1, T_tile, H) blocks straight from the batch-major LSTM
# output, writes lane-dense (1, T_tile, V_tile) blocks of (B, T, V).
# ----------------------------------------------------------------------------
def _fc_kernel(y_ref, w_ref, b_ref, o_ref):
    x = y_ref[0]                                       # (tt, H) bf16
    o_ref[0] = (jnp.dot(x, w_ref[...], preferred_element_type=jnp.float32)
                + b_ref[...])


def fc_layer(y_bth, w_t, b, batch):
    """y_bth: (Bp, T_pad, H) bf16, w_t: (H, V) bf16, b: (1, V) f32
    -> logits (batch, T_pad, V) f32."""
    Bp, T_pad, H = y_bth.shape
    V = w_t.shape[-1]

    tt = T_pad if T_pad <= 256 else 256                # multiple of 16 when tiled
    tv = V if V <= 2048 else 2048                      # full V or multiple of 128

    grid = (batch, pl.cdiv(T_pad, tt), pl.cdiv(V, tv))
    return pl.pallas_call(
        _fc_kernel,
        out_shape=jax.ShapeDtypeStruct((batch, T_pad, V), jnp.float32),
        grid_spec=pltpu.PrefetchScalarGridSpec(
            num_scalar_prefetch=0,
            grid=grid,
            in_specs=[
                pl.BlockSpec((1, tt, H), lambda bi, ti, vi: (bi, ti, 0)),
                pl.BlockSpec((H, tv), lambda bi, ti, vi: (0, vi)),
                pl.BlockSpec((1, tv), lambda bi, ti, vi: (0, vi)),
            ],
            out_specs=pl.BlockSpec((1, tt, tv), lambda bi, ti, vi: (bi, ti, vi)),
        ),
        compiler_params=pltpu.CompilerParams(
            dimension_semantics=("parallel", "parallel", "parallel")),
    )(y_bth, w_t, b)


# ----------------------------------------------------------------------------
# Full forward pass (glue in plain JAX).
# ----------------------------------------------------------------------------
@jax.jit
def word_lstm_forward(tokens, h0, c0, params):
    """tokens: (B, T) int32; h0, c0: (n_layers, B, H).
    Returns (logits (B, T, V), (h_n, c_n))."""
    B, T = tokens.shape
    L, _, H = h0.shape
    Bp = max(8, _round_up(B, 8))                      # f32 sublane granule
    pad_b = Bp - B

    # Embedding gather directly in time-major, batch-padded layout: pad the
    # tiny int token array (not the activations), then a single bf16 gather.
    # TODO(synk): fusing the gather into the LSTM kernel (scalar-prefetched ids
    # + DMA gather) is possible but a data-dependent gather is left to XLA here.
    tok = jnp.pad(tokens.T, ((0, 0), (0, pad_b)))     # (T, Bp)
    x = jnp.take(params["embedding"], tok, axis=0)    # (T, Bp, H) bf16
    h0p = jnp.pad(h0, ((0, 0), (0, pad_b), (0, 0)))   # (L, Bp, H)
    c0p = jnp.pad(c0, ((0, 0), (0, pad_b), (0, 0)))

    y, hT, cT = lstm_stack(x, h0p, c0p,
                           params["w_ih"], params["w_hh"], params["b"])

    logits = fc_layer(y, params["fc_w_t"], params["fc_b"], B)   # (B, T_pad, V)
    if logits.shape[1] != T:
        logits = logits[:, :T]

    h_n = hT[:, :B]
    c_n = cT[:, :B]
    return logits, (h_n, c_n)


# ----------------------------------------------------------------------------
# Parameters (synthetic, shapes match the torch module).
# ----------------------------------------------------------------------------
def init_params(key, vocab_size, n_embed, input_size, n_layers):
    """Matmul weights are pre-transposed, gate-permuted to [i, f, o, g] and
    stored in bf16 (MXU-native); biases stay f32."""
    assert input_size == n_embed, (
        "WordLSTM applies fc(input_size) to LSTM(hidden=n_embed) output; "
        "this requires input_size == n_embed.")
    H = n_embed
    ks = jax.random.split(key, 2 + n_layers)

    params = {}
    params["embedding"] = (
        0.1 * jax.random.normal(ks[0], (vocab_size, n_embed), jnp.float32)
    ).astype(jnp.bfloat16)

    # PyTorch packs gates as (i, f, g, o); permute columns to (i, f, o, g) so
    # the kernel does one sigmoid over [:, :3H] and one tanh over [:, 3H:].
    perm = jnp.concatenate([jnp.arange(0, H), jnp.arange(H, 2 * H),
                            jnp.arange(3 * H, 4 * H), jnp.arange(2 * H, 3 * H)])

    w_ih_l, w_hh_l, b_l = [], [], []
    for layer in range(n_layers):
        d_in = input_size if layer == 0 else H
        k_wih, k_whh, k_bih, k_bhh = jax.random.split(ks[1 + layer], 4)
        w_ih = 0.05 * jax.random.normal(k_wih, (4 * H, d_in), jnp.float32)
        w_hh = 0.05 * jax.random.normal(k_whh, (4 * H, H), jnp.float32)
        b_ih = 0.05 * jax.random.normal(k_bih, (4 * H,), jnp.float32)
        b_hh = 0.05 * jax.random.normal(k_bhh, (4 * H,), jnp.float32)
        w_ih_l.append(w_ih.T[:, perm].astype(jnp.bfloat16))      # (d_in, 4H)
        w_hh_l.append(w_hh.T[:, perm].astype(jnp.bfloat16))      # (H, 4H)
        b_l.append((b_ih + b_hh)[perm].reshape(1, 4 * H))        # f32
    params["w_ih"] = jnp.stack(w_ih_l)        # (L, H, 4H) bf16
    params["w_hh"] = jnp.stack(w_hh_l)        # (L, H, 4H) bf16
    params["b"] = jnp.stack(b_l)              # (L, 1, 4H) f32

    k_fw, k_fb = jax.random.split(ks[-1], 2)
    fc_w = 0.05 * jax.random.normal(k_fw, (vocab_size, input_size), jnp.float32)
    fc_b = 0.05 * jax.random.normal(k_fb, (vocab_size,), jnp.float32)
    params["fc_w_t"] = fc_w.T.astype(jnp.bfloat16)               # (H, V)
    params["fc_b"] = fc_b.reshape(1, vocab_size)                 # f32
    return params


# ----------------------------------------------------------------------------
# Pure-JAX reference (uses the same bf16 params) for a correctness sanity check.
# ----------------------------------------------------------------------------
def _reference_forward(tokens, h0, c0, params):
    B, T = tokens.shape
    L, _, H = h0.shape
    x = jnp.take(params["embedding"].astype(jnp.float32), tokens, axis=0)
    h_fin, c_fin = [], []
    for l in range(L):
        w_ih = params["w_ih"][l].astype(jnp.float32)
        w_hh = params["w_hh"][l].astype(jnp.float32)
        bias = params["b"][l].astype(jnp.float32)
        h, c = h0[l], c0[l]
        ys = []
        for t in range(T):
            g = x[:, t, :] @ w_ih + h @ w_hh + bias
            i_g = jax.nn.sigmoid(g[:, :H])
            f_g = jax.nn.sigmoid(g[:, H:2 * H])
            o_g = jax.nn.sigmoid(g[:, 2 * H:3 * H])
            g_g = jnp.tanh(g[:, 3 * H:])
            c = f_g * c + i_g * g_g
            h = o_g * jnp.tanh(c)
            ys.append(h)
        x = jnp.stack(ys, axis=1)
        h_fin.append(h)
        c_fin.append(c)
    logits = x @ params["fc_w_t"].astype(jnp.float32) + params["fc_b"]
    return logits, (jnp.stack(h_fin), jnp.stack(c_fin))


if __name__ == "__main__":
    # Small shapes consistent with the module defaults (hidden=embed=128).
    B, T = 2, 8
    input_size = 128
    n_embed = 128
    n_layers = 3
    vocab_size = 256

    key = jax.random.PRNGKey(0)
    k_tok, k_param = jax.random.split(key)

    params = init_params(k_param, vocab_size, n_embed, input_size, n_layers)
    tokens = jax.random.randint(k_tok, (B, T), 0, vocab_size, dtype=jnp.int32)
    h0 = jnp.zeros((n_layers, B, n_embed), jnp.float32)
    c0 = jnp.zeros((n_layers, B, n_embed), jnp.float32)

    logits, (h_n, c_n) = word_lstm_forward(tokens, h0, c0, params)
    jax.block_until_ready((logits, h_n, c_n))

    assert logits.shape == (B, T, vocab_size)
    assert h_n.shape == (n_layers, B, n_embed)
    assert c_n.shape == (n_layers, B, n_embed)
    assert bool(jnp.all(jnp.isfinite(logits)))

    # Numerical sanity check against the pure-JAX reference (same bf16 params;
    # residual differences only from bf16 intermediates inside the kernel).
    ref_logits, (ref_h, ref_c) = _reference_forward(tokens, h0, c0, params)
    assert bool(jnp.allclose(logits, ref_logits, atol=5e-2, rtol=5e-2))
    assert bool(jnp.allclose(h_n, ref_h, atol=5e-2, rtol=5e-2))
    assert bool(jnp.allclose(c_n, ref_c, atol=5e-2, rtol=5e-2))

    print("KERNEL_OK")
</pallas_src>

<mosaic_0001>
module attributes {stable_mosaic.version = 11 : i64} {
  func.func @_fused_lstm_kernel(%arg0: i32, %arg1: i32, %arg2: memref<8x8x128xbf16, #tpu.memory_space<vmem>>, %arg3: memref<3x8x128xf32, #tpu.memory_space<vmem>>, %arg4: memref<3x8x128xf32, #tpu.memory_space<vmem>>, %arg5: memref<3x128x512xbf16, #tpu.memory_space<vmem>>, %arg6: memref<3x128x512xbf16, #tpu.memory_space<vmem>>, %arg7: memref<3x1x512xf32, #tpu.memory_space<vmem>>, %arg8: memref<8x8x128xbf16, #tpu.memory_space<vmem>>, %arg9: memref<3x8x128xf32, #tpu.memory_space<vmem>>, %arg10: memref<3x8x128xf32, #tpu.memory_space<vmem>>, %arg11: memref<3x8x128xf32, #tpu.memory_space<vmem>>, %arg12: memref<3x8x128xf32, #tpu.memory_space<vmem>>, %arg13: memref<8x8x512xbf16, #tpu.memory_space<vmem>>, %arg14: memref<8x8x128xbf16, #tpu.memory_space<vmem>>) attributes {dimension_semantics = [#tpu.dimension_semantics<parallel>, #tpu.dimension_semantics<arbitrary>], iteration_bounds = array<i64: 1, 1>, scalar_prefetch = 0 : i64, scratch_operands = 4 : i64, tpu.core_type = #tpu.core_type<tc>, window_params = [{transform_indices = @transform_0, window_bounds = array<i64: 8, 8, 128>}, {transform_indices = @transform_1, window_bounds = array<i64: 3, 8, 128>}, {transform_indices = @transform_2, window_bounds = array<i64: 3, 8, 128>}, {pipeline_mode = #tpu.pipeline_mode<synchronous>, transform_indices = @transform_3, window_bounds = array<i64: 3, 128, 512>}, {pipeline_mode = #tpu.pipeline_mode<synchronous>, transform_indices = @transform_4, window_bounds = array<i64: 3, 128, 512>}, {pipeline_mode = #tpu.pipeline_mode<synchronous>, transform_indices = @transform_5, window_bounds = array<i64: 3, 1, 512>}, {transform_indices = @transform_6, window_bounds = array<i64: 8, 8, 128>}, {transform_indices = @transform_7, window_bounds = array<i64: 3, 8, 128>}, {transform_indices = @transform_8, window_bounds = array<i64: 3, 8, 128>}]} {
    %c0_i32 = arith.constant 0 : i32
    %0 = arith.cmpi eq, %arg1, %c0_i32 : i32
    %1 = arith.extui %0 : i1 to i32
    %c0_i32_0 = arith.constant 0 : i32
    %2 = arith.cmpi ne, %1, %c0_i32_0 : i32
    scf.if %2 {
      %c0_252 = arith.constant 0 : index
      %c0_253 = arith.constant 0 : index
      %c0_254 = arith.constant 0 : index
      %755 = vector.load %arg3[%c0_252, %c0_253, %c0_254] : memref<3x8x128xf32, #tpu.memory_space<vmem>>, vector<3x8x128xf32>
      %c0_255 = arith.constant 0 : index
      %c0_256 = arith.constant 0 : index
      %c0_257 = arith.constant 0 : index
      %756 = vector.load %arg11[%c0_255, %c0_256, %c0_257] : memref<3x8x128xf32, #tpu.memory_space<vmem>>, vector<3x8x128xf32>
      tpu.vector_store %arg11[%c0_255, %c0_256, %c0_257], %755 {strides = array<i32>} : memref<3x8x128xf32, #tpu.memory_space<vmem>>, vector<3x8x128xf32>,
      %c0_258 = arith.constant 0 : index
      %c0_259 = arith.constant 0 : index
      %c0_260 = arith.constant 0 : index
      %757 = vector.load %arg4[%c0_258, %c0_259, %c0_260] : memref<3x8x128xf32, #tpu.memory_space<vmem>>, vector<3x8x128xf32>
      %c0_261 = arith.constant 0 : index
      %c0_262 = arith.constant 0 : index
      %c0_263 = arith.constant 0 : index
      %758 = vector.load %arg12[%c0_261, %c0_262, %c0_263] : memref<3x8x128xf32, #tpu.memory_space<vmem>>, vector<3x8x128xf32>
      tpu.vector_store %arg12[%c0_261, %c0_262, %c0_263], %757 {strides = array<i32>} : memref<3x8x128xf32, #tpu.memory_space<vmem>>, vector<3x8x128xf32>,
    } else {
    }
    %c0 = arith.constant 0 : index
    %c0_1 = arith.constant 0 : index
    %c0_2 = arith.constant 0 : index
    %3 = vector.load %arg2[%c0, %c0_1, %c0_2] : memref<8x8x128xbf16, #tpu.memory_space<vmem>>, vector<8x8x128xbf16>
    %4 = vector.shape_cast %3 : vector<8x8x128xbf16> to vector<64x128xbf16>
    %c0_3 = arith.constant 0 : index
    %c0_4 = arith.constant 0 : index
    %c0_5 = arith.constant 0 : index
    %5 = vector.load %arg5[%c0_3, %c0_4, %c0_5] : memref<3x128x512xbf16, #tpu.memory_space<vmem>>, vector<1x128x512xbf16>
    %6 = vector.shape_cast %5 : vector<1x128x512xbf16> to vector<128x512xbf16>
    %cst = arith.constant dense<0.000000e+00> : vector<64x512xf32>
    %7 = tpu.matmul %4, %6, %cst {dimension_numbers = #tpu.dot_dimension_numbers<[1], [0], [0], [1], [0, 0, 1, 1], [], []>} : vector<64x128xbf16>, vector<128x512xbf16>, vector<64x512xf32> -> vector<64x512xf32>
    %c0_6 = arith.constant 0 : index
    %c0_7 = arith.constant 0 : index
    %c0_8 = arith.constant 0 : index
    %8 = vector.load %arg7[%c0_6, %c0_7, %c0_8] : memref<3x1x512xf32, #tpu.memory_space<vmem>>, vector<1x1x512xf32>
    %9 = vector.shape_cast %8 : vector<1x1x512xf32> to vector<1x512xf32>
    %10 = vector.broadcast %9 : vector<1x512xf32> to vector<64x512xf32>
    %11 = arith.addf %7, %10 : vector<64x512xf32>
    %12 = vector.shape_cast %11 : vector<64x512xf32> to vector<8x8x512xf32>
    %13 = arith.truncf %12 : vector<8x8x512xf32> to vector<8x8x512xbf16>
    %c0_9 = arith.constant 0 : index
    %c0_10 = arith.constant 0 : index
    %c0_11 = arith.constant 0 : index
    %14 = vector.load %arg13[%c0_9, %c0_10, %c0_11] : memref<8x8x512xbf16, #tpu.memory_space<vmem>>, vector<8x8x512xbf16>
    tpu.vector_store %arg13[%c0_9, %c0_10, %c0_11], %13 {strides = array<i32>} : memref<8x8x512xbf16, #tpu.memory_space<vmem>>, vector<8x8x512xbf16>,
    %c0_12 = arith.constant 0 : index
    %c0_13 = arith.constant 0 : index
    %c0_14 = arith.constant 0 : index
    %15 = vector.load %arg6[%c0_12, %c0_13, %c0_14] : memref<3x128x512xbf16, #tpu.memory_space<vmem>>, vector<1x128x512xbf16>
    %16 = vector.shape_cast %15 : vector<1x128x512xbf16> to vector<128x512xbf16>
    %c0_15 = arith.constant 0 : index
    %c0_16 = arith.constant 0 : index
    %c0_17 = arith.constant 0 : index
    %17 = vector.load %arg11[%c0_15, %c0_16, %c0_17] : memref<3x8x128xf32, #tpu.memory_space<vmem>>, vector<1x8x128xf32>
    %18 = vector.shape_cast %17 : vector<1x8x128xf32> to vector<8x128xf32>
    %c0_18 = arith.constant 0 : index
    %c0_19 = arith.constant 0 : index
    %c0_20 = arith.constant 0 : index
    %19 = vector.load %arg12[%c0_18, %c0_19, %c0_20] : memref<3x8x128xf32, #tpu.memory_space<vmem>>, vector<1x8x128xf32>
    %20 = vector.shape_cast %19 : vector<1x8x128xf32> to vector<8x128xf32>
    %c0_i32_21 = arith.constant 0 : i32
    %21 = arith.index_cast %c0_i32_21 : i32 to index
    %c0_22 = arith.constant 0 : index
    %c0_23 = arith.constant 0 : index
    %22 = vector.load %arg13[%21, %c0_22, %c0_23] : memref<8x8x512xbf16, #tpu.memory_space<vmem>>, vector<1x8x512xbf16>
    %23 = vector.shape_cast %22 : vector<1x8x512xbf16> to vector<8x512xbf16>
    %24 = arith.extf %23 : vector<8x512xbf16> to vector<8x512xf32>
    %25 = arith.truncf %18 : vector<8x128xf32> to vector<8x128xbf16>
    %cst_24 = arith.constant dense<0.000000e+00> : vector<8x512xf32>
    %26 = tpu.matmul %25, %16, %cst_24 {dimension_numbers = #tpu.dot_dimension_numbers<[1], [0], [0], [1], [0, 0, 1, 1], [], []>} : vector<8x128xbf16>, vector<128x512xbf16>, vector<8x512xf32> -> vector<8x512xf32>
    %27 = arith.addf %24, %26 : vector<8x512xf32>
    %28 = vector.extract_strided_slice %27 {offsets = [0, 0], sizes = [8, 384], strides = [1, 1]} : vector<8x512xf32> to vector<8x384xf32>
    %29 = arith.negf %28 : vector<8x384xf32>
    %30 = math.exp %29 : vector<8x384xf32>
    %cst_25 = arith.constant 1.000000e+00 : f32
    %31 = vector.broadcast %cst_25 : f32 to vector<8x384xf32>
    %32 = arith.addf %31, %30 : vector<8x384xf32>
    %33 = arith.divf %31, %32 : vector<8x384xf32>
    %34 = vector.extract_strided_slice %33 {offsets = [0, 0], sizes = [8, 128], strides = [1, 1]} : vector<8x384xf32> to vector<8x128xf32>
    %35 = vector.extract_strided_slice %33 {offsets = [0, 128], sizes = [8, 128], strides = [1, 1]} : vector<8x384xf32> to vector<8x128xf32>
    %36 = vector.extract_strided_slice %33 {offsets = [0, 256], sizes = [8, 128], strides = [1, 1]} : vector<8x384xf32> to vector<8x128xf32>
    %37 = vector.extract_strided_slice %27 {offsets = [0, 384], sizes = [8, 128], strides = [1, 1]} : vector<8x512xf32> to vector<8x128xf32>
    %38 = math.tanh %37 : vector<8x128xf32>
    %39 = arith.mulf %35, %20 : vector<8x128xf32>
    %40 = arith.mulf %34, %38 : vector<8x128xf32>
    %41 = arith.addf %39, %40 : vector<8x128xf32>
    %42 = math.tanh %41 : vector<8x128xf32>
    %43 = arith.mulf %36, %42 : vector<8x128xf32>
    %44 = arith.truncf %43 : vector<8x128xf32> to vector<8x128xbf16>
    %45 = arith.index_cast %c0_i32_21 : i32 to index
    %c0_26 = arith.constant 0 : index
    %c0_27 = arith.constant 0 : index
    %46 = vector.load %arg14[%45, %c0_26, %c0_27] : memref<8x8x128xbf16, #tpu.memory_space<vmem>>, vector<1x8x128xbf16>
    %47 = vector.shape_cast %46 : vector<1x8x128xbf16> to vector<8x128xbf16>
    %48 = vector.shape_cast %44 : vector<8x128xbf16> to vector<1x8x128xbf16>
    tpu.vector_store %arg14[%45, %c0_26, %c0_27], %48 {strides = array<i32>} : memref<8x8x128xbf16, #tpu.memory_space<vmem>>, vector<1x8x128xbf16>,
    %c1_i32 = arith.constant 1 : i32
    %49 = arith.index_cast %c1_i32 : i32 to index
    %c0_28 = arith.constant 0 : index
    %c0_29 = arith.constant 0 : index
    %50 = vector.load %arg13[%49, %c0_28, %c0_29] : memref<8x8x512xbf16, #tpu.memory_space<vmem>>, vector<1x8x512xbf16>
    %51 = vector.shape_cast %50 : vector<1x8x512xbf16> to vector<8x512xbf16>
    %52 = arith.extf %51 : vector<8x512xbf16> to vector<8x512xf32>
    %53 = arith.truncf %43 : vector<8x128xf32> to vector<8x128xbf16>
    %cst_30 = arith.constant dense<0.000000e+00> : vector<8x512xf32>
    %54 = tpu.matmul %53, %16, %cst_30 {dimension_numbers = #tpu.dot_dimension_numbers<[1], [0], [0], [1], [0, 0, 1, 1], [], []>} : vector<8x128xbf16>, vector<128x512xbf16>, vector<8x512xf32> -> vector<8x512xf32>
    %55 = arith.addf %52, %54 : vector<8x512xf32>
    %56 = vector.extract_strided_slice %55 {offsets = [0, 0], sizes = [8, 384], strides = [1, 1]} : vector<8x512xf32> to vector<8x384xf32>
    %57 = arith.negf %56 : vector<8x384xf32>
    %58 = math.exp %57 : vector<8x384xf32>
    %cst_31 = arith.constant 1.000000e+00 : f32
    %59 = vector.broadcast %cst_31 : f32 to vector<8x384xf32>
    %60 = arith.addf %59, %58 : vector<8x384xf32>
    %61 = arith.divf %59, %60 : vector<8x384xf32>
    %62 = vector.extract_strided_slice %61 {offsets = [0, 0], sizes = [8, 128], strides = [1, 1]} : vector<8x384xf32> to vector<8x128xf32>
    %63 = vector.extract_strided_slice %61 {offsets = [0, 128], sizes = [8, 128], strides = [1, 1]} : vector<8x384xf32> to vector<8x128xf32>
    %64 = vector.extract_strided_slice %61 {offsets = [0, 256], sizes = [8, 128], strides = [1, 1]} : vector<8x384xf32> to vector<8x128xf32>
    %65 = vector.extract_strided_slice %55 {offsets = [0, 384], sizes = [8, 128], strides = [1, 1]} : vector<8x512xf32> to vector<8x128xf32>
    %66 = math.tanh %65 : vector<8x128xf32>
    %67 = arith.mulf %63, %41 : vector<8x128xf32>
    %68 = arith.mulf %62, %66 : vector<8x128xf32>
    %69 = arith.addf %67, %68 : vector<8x128xf32>
    %70 = math.tanh %69 : vector<8x128xf32>
    %71 = arith.mulf %64, %70 : vector<8x128xf32>
    %72 = arith.truncf %71 : vector<8x128xf32> to vector<8x128xbf16>
    %73 = arith.index_cast %c1_i32 : i32 to index
    %c0_32 = arith.constant 0 : index
    %c0_33 = arith.constant 0 : index
    %74 = vector.load %arg14[%73, %c0_32, %c0_33] : memref<8x8x128xbf16, #tpu.memory_space<vmem>>, vector<1x8x128xbf16>
    %75 = vector.shape_cast %74 : vector<1x8x128xbf16> to vector<8x128xbf16>
    %76 = vector.shape_cast %72 : vector<8x128xbf16> to vector<1x8x128xbf16>
    tpu.vector_store %arg14[%73, %c0_32, %c0_33], %76 {strides = array<i32>} : memref<8x8x128xbf16, #tpu.memory_space<vmem>>, vector<1x8x128xbf16>,
    %c2_i32 = arith.constant 2 : i32
    %77 = arith.index_cast %c2_i32 : i32 to index
    %c0_34 = arith.constant 0 : index
    %c0_35 = arith.constant 0 : index
    %78 = vector.load %arg13[%77, %c0_34, %c0_35] : memref<8x8x512xbf16, #tpu.memory_space<vmem>>, vector<1x8x512xbf16>
    %79 = vector.shape_cast %78 : vector<1x8x512xbf16> to vector<8x512xbf16>
    %80 = arith.extf %79 : vector<8x512xbf16> to vector<8x512xf32>
    %81 = arith.truncf %71 : vector<8x128xf32> to vector<8x128xbf16>
    %cst_36 = arith.constant dense<0.000000e+00> : vector<8x512xf32>
    %82 = tpu.matmul %81, %16, %cst_36 {dimension_numbers = #tpu.dot_dimension_numbers<[1], [0], [0], [1], [0, 0, 1, 1], [], []>} : vector<8x128xbf16>, vector<128x512xbf16>, vector<8x512xf32> -> vector<8x512xf32>
    %83 = arith.addf %80, %82 : vector<8x512xf32>
    %84 = vector.extract_strided_slice %83 {offsets = [0, 0], sizes = [8, 384], strides = [1, 1]} : vector<8x512xf32> to vector<8x384xf32>
    %85 = arith.negf %84 : vector<8x384xf32>
    %86 = math.exp %85 : vector<8x384xf32>
    %cst_37 = arith.constant 1.000000e+00 : f32
    %87 = vector.broadcast %cst_37 : f32 to vector<8x384xf32>
    %88 = arith.addf %87, %86 : vector<8x384xf32>
    %89 = arith.divf %87, %88 : vector<8x384xf32>
    %90 = vector.extract_strided_slice %89 {offsets = [0, 0], sizes = [8, 128], strides = [1, 1]} : vector<8x384xf32> to vector<8x128xf32>
    %91 = vector.extract_strided_slice %89 {offsets = [0, 128], sizes = [8, 128], strides = [1, 1]} : vector<8x384xf32> to vector<8x128xf32>
    %92 = vector.extract_strided_slice %89 {offsets = [0, 256], sizes = [8, 128], strides = [1, 1]} : vector<8x384xf32> to vector<8x128xf32>
    %93 = vector.extract_strided_slice %83 {offsets = [0, 384], sizes = [8, 128], strides = [1, 1]} : vector<8x512xf32> to vector<8x128xf32>
    %94 = math.tanh %93 : vector<8x128xf32>
    %95 = arith.mulf %91, %69 : vector<8x128xf32>
    %96 = arith.mulf %90, %94 : vector<8x128xf32>
    %97 = arith.addf %95, %96 : vector<8x128xf32>
    %98 = math.tanh %97 : vector<8x128xf32>
    %99 = arith.mulf %92, %98 : vector<8x128xf32>
    %100 = arith.truncf %99 : vector<8x128xf32> to vector<8x128xbf16>
    %101 = arith.index_cast %c2_i32 : i32 to index
    %c0_38 = arith.constant 0 : index
    %c0_39 = arith.constant 0 : index
    %102 = vector.load %arg14[%101, %c0_38, %c0_39] : memref<8x8x128xbf16, #tpu.memory_space<vmem>>, vector<1x8x128xbf16>
    %103 = vector.shape_cast %102 : vector<1x8x128xbf16> to vector<8x128xbf16>
    %104 = vector.shape_cast %100 : vector<8x128xbf16> to vector<1x8x128xbf16>
    tpu.vector_store %arg14[%101, %c0_38, %c0_39], %104 {strides = array<i32>} : memref<8x8x128xbf16, #tpu.memory_space<vmem>>, vector<1x8x128xbf16>,
    %c3_i32 = arith.constant 3 : i32
    %105 = arith.index_cast %c3_i32 : i32 to index
    %c0_40 = arith.constant 0 : index
    %c0_41 = arith.constant 0 : index
    %106 = vector.load %arg13[%105, %c0_40, %c0_41] : memref<8x8x512xbf16, #tpu.memory_space<vmem>>, vector<1x8x512xbf16>
    %107 = vector.shape_cast %106 : vector<1x8x512xbf16> to vector<8x512xbf16>
    %108 = arith.extf %107 : vector<8x512xbf16> to vector<8x512xf32>
    %109 = arith.truncf %99 : vector<8x128xf32> to vector<8x128xbf16>
    %cst_42 = arith.constant dense<0.000000e+00> : vector<8x512xf32>
    %110 = tpu.matmul %109, %16, %cst_42 {dimension_numbers = #tpu.dot_dimension_numbers<[1], [0], [0], [1], [0, 0, 1, 1], [], []>} : vector<8x128xbf16>, vector<128x512xbf16>, vector<8x512xf32> -> vector<8x512xf32>
    %111 = arith.addf %108, %110 : vector<8x512xf32>
    %112 = vector.extract_strided_slice %111 {offsets = [0, 0], sizes = [8, 384], strides = [1, 1]} : vector<8x512xf32> to vector<8x384xf32>
    %113 = arith.negf %112 : vector<8x384xf32>
    %114 = math.exp %113 : vector<8x384xf32>
    %cst_43 = arith.constant 1.000000e+00 : f32
    %115 = vector.broadcast %cst_43 : f32 to vector<8x384xf32>
    %116 = arith.addf %115, %114 : vector<8x384xf32>
    %117 = arith.divf %115, %116 : vector<8x384xf32>
    %118 = vector.extract_strided_slice %117 {offsets = [0, 0], sizes = [8, 128], strides = [1, 1]} : vector<8x384xf32> to vector<8x128xf32>
    %119 = vector.extract_strided_slice %117 {offsets = [0, 128], sizes = [8, 128], strides = [1, 1]} : vector<8x384xf32> to vector<8x128xf32>
    %120 = vector.extract_strided_slice %117 {offsets = [0, 256], sizes = [8, 128], strides = [1, 1]} : vector<8x384xf32> to vector<8x128xf32>
    %121 = vector.extract_strided_slice %111 {offsets = [0, 384], sizes = [8, 128], strides = [1, 1]} : vector<8x512xf32> to vector<8x128xf32>
    %122 = math.tanh %121 : vector<8x128xf32>
    %123 = arith.mulf %119, %97 : vector<8x128xf32>
    %124 = arith.mulf %118, %122 : vector<8x128xf32>
    %125 = arith.addf %123, %124 : vector<8x128xf32>
    %126 = math.tanh %125 : vector<8x128xf32>
    %127 = arith.mulf %120, %126 : vector<8x128xf32>
    %128 = arith.truncf %127 : vector<8x128xf32> to vector<8x128xbf16>
    %129 = arith.index_cast %c3_i32 : i32 to index
    %c0_44 = arith.constant 0 : index
    %c0_45 = arith.constant 0 : index
    %130 = vector.load %arg14[%129, %c0_44, %c0_45] : memref<8x8x128xbf16, #tpu.memory_space<vmem>>, vector<1x8x128xbf16>
    %131 = vector.shape_cast %130 : vector<1x8x128xbf16> to vector<8x128xbf16>
    %132 = vector.shape_cast %128 : vector<8x128xbf16> to vector<1x8x128xbf16>
    tpu.vector_store %arg14[%129, %c0_44, %c0_45], %132 {strides = array<i32>} : memref<8x8x128xbf16, #tpu.memory_space<vmem>>, vector<1x8x128xbf16>,
    %c4_i32 = arith.constant 4 : i32
    %133 = arith.index_cast %c4_i32 : i32 to index
    %c0_46 = arith.constant 0 : index
    %c0_47 = arith.constant 0 : index
    %134 = vector.load %arg13[%133, %c0_46, %c0_47] : memref<8x8x512xbf16, #tpu.memory_space<vmem>>, vector<1x8x512xbf16>
    %135 = vector.shape_cast %134 : vector<1x8x512xbf16> to vector<8x512xbf16>
    %136 = arith.extf %135 : vector<8x512xbf16> to vector<8x512xf32>
    %137 = arith.truncf %127 : vector<8x128xf32> to vector<8x128xbf16>
    %cst_48 = arith.constant dense<0.000000e+00> : vector<8x512xf32>
    %138 = tpu.matmul %137, %16, %cst_48 {dimension_numbers = #tpu.dot_dimension_numbers<[1], [0], [0], [1], [0, 0, 1, 1], [], []>} : vector<8x128xbf16>, vector<128x512xbf16>, vector<8x512xf32> -> vector<8x512xf32>
    %139 = arith.addf %136, %138 : vector<8x512xf32>
    %140 = vector.extract_strided_slice %139 {offsets = [0, 0], sizes = [8, 384], strides = [1, 1]} : vector<8x512xf32> to vector<8x384xf32>
    %141 = arith.negf %140 : vector<8x384xf32>
    %142 = math.exp %141 : vector<8x384xf32>
    %cst_49 = arith.constant 1.000000e+00 : f32
    %143 = vector.broadcast %cst_49 : f32 to vector<8x384xf32>
    %144 = arith.addf %143, %142 : vector<8x384xf32>
    %145 = arith.divf %143, %144 : vector<8x384xf32>
    %146 = vector.extract_strided_slice %145 {offsets = [0, 0], sizes = [8, 128], strides = [1, 1]} : vector<8x384xf32> to vector<8x128xf32>
    %147 = vector.extract_strided_slice %145 {offsets = [0, 128], sizes = [8, 128], strides = [1, 1]} : vector<8x384xf32> to vector<8x128xf32>
    %148 = vector.extract_strided_slice %145 {offsets = [0, 256], sizes = [8, 128], strides = [1, 1]} : vector<8x384xf32> to vector<8x128xf32>
    %149 = vector.extract_strided_slice %139 {offsets = [0, 384], sizes = [8, 128], strides = [1, 1]} : vector<8x512xf32> to vector<8x128xf32>
    %150 = math.tanh %149 : vector<8x128xf32>
    %151 = arith.mulf %147, %125 : vector<8x128xf32>
    %152 = arith.mulf %146, %150 : vector<8x128xf32>
    %153 = arith.addf %151, %152 : vector<8x128xf32>
    %154 = math.tanh %153 : vector<8x128xf32>
    %155 = arith.mulf %148, %154 : vector<8x128xf32>
    %156 = arith.truncf %155 : vector<8x128xf32> to vector<8x128xbf16>
    %157 = arith.index_cast %c4_i32 : i32 to index
    %c0_50 = arith.constant 0 : index
    %c0_51 = arith.constant 0 : index
    %158 = vector.load %arg14[%157, %c0_50, %c0_51] : memref<8x8x128xbf16, #tpu.memory_space<vmem>>, vector<1x8x128xbf16>
    %159 = vector.shape_cast %158 : vector<1x8x128xbf16> to vector<8x128xbf16>
    %160 = vector.shape_cast %156 : vector<8x128xbf16> to vector<1x8x128xbf16>
    tpu.vector_store %arg14[%157, %c0_50, %c0_51], %160 {strides = array<i32>} : memref<8x8x128xbf16, #tpu.memory_space<vmem>>, vector<1x8x128xbf16>,
    %c5_i32 = arith.constant 5 : i32
    %161 = arith.index_cast %c5_i32 : i32 to index
    %c0_52 = arith.constant 0 : index
    %c0_53 = arith.constant 0 : index
    %162 = vector.load %arg13[%161, %c0_52, %c0_53] : memref<8x8x512xbf16, #tpu.memory_space<vmem>>, vector<1x8x512xbf16>
    %163 = vector.shape_cast %162 : vector<1x8x512xbf16> to vector<8x512xbf16>
    %164 = arith.extf %163 : vector<8x512xbf16> to vector<8x512xf32>
    %165 = arith.truncf %155 : vector<8x128xf32> to vector<8x128xbf16>
    %cst_54 = arith.constant dense<0.000000e+00> : vector<8x512xf32>
    %166 = tpu.matmul %165, %16, %cst_54 {dimension_numbers = #tpu.dot_dimension_numbers<[1], [0], [0], [1], [0, 0, 1, 1], [], []>} : vector<8x128xbf16>, vector<128x512xbf16>, vector<8x512xf32> -> vector<8x512xf32>
    %167 = arith.addf %164, %166 : vector<8x512xf32>
    %168 = vector.extract_strided_slice %167 {offsets = [0, 0], sizes = [8, 384], strides = [1, 1]} : vector<8x512xf32> to vector<8x384xf32>
    %169 = arith.negf %168 : vector<8x384xf32>
    %170 = math.exp %169 : vector<8x384xf32>
    %cst_55 = arith.constant 1.000000e+00 : f32
    %171 = vector.broadcast %cst_55 : f32 to vector<8x384xf32>
    %172 = arith.addf %171, %170 : vector<8x384xf32>
    %173 = arith.divf %171, %172 : vector<8x384xf32>
    %174 = vector.extract_strided_slice %173 {offsets = [0, 0], sizes = [8, 128], strides = [1, 1]} : vector<8x384xf32> to vector<8x128xf32>
    %175 = vector.extract_strided_slice %173 {offsets = [0, 128], sizes = [8, 128], strides = [1, 1]} : vector<8x384xf32> to vector<8x128xf32>
    %176 = vector.extract_strided_slice %173 {offsets = [0, 256], sizes = [8, 128], strides = [1, 1]} : vector<8x384xf32> to vector<8x128xf32>
    %177 = vector.extract_strided_slice %167 {offsets = [0, 384], sizes = [8, 128], strides = [1, 1]} : vector<8x512xf32> to vector<8x128xf32>
    %178 = math.tanh %177 : vector<8x128xf32>
    %179 = arith.mulf %175, %153 : vector<8x128xf32>
    %180 = arith.mulf %174, %178 : vector<8x128xf32>
    %181 = arith.addf %179, %180 : vector<8x128xf32>
    %182 = math.tanh %181 : vector<8x128xf32>
    %183 = arith.mulf %176, %182 : vector<8x128xf32>
    %184 = arith.truncf %183 : vector<8x128xf32> to vector<8x128xbf16>
    %185 = arith.index_cast %c5_i32 : i32 to index
    %c0_56 = arith.constant 0 : index
    %c0_57 = arith.constant 0 : index
    %186 = vector.load %arg14[%185, %c0_56, %c0_57] : memref<8x8x128xbf16, #tpu.memory_space<vmem>>, vector<1x8x128xbf16>
    %187 = vector.shape_cast %186 : vector<1x8x128xbf16> to vector<8x128xbf16>
    %188 = vector.shape_cast %184 : vector<8x128xbf16> to vector<1x8x128xbf16>
    tpu.vector_store %arg14[%185, %c0_56, %c0_57], %188 {strides = array<i32>} : memref<8x8x128xbf16, #tpu.memory_space<vmem>>, vector<1x8x128xbf16>,
    %c6_i32 = arith.constant 6 : i32
    %189 = arith.index_cast %c6_i32 : i32 to index
    %c0_58 = arith.constant 0 : index
    %c0_59 = arith.constant 0 : index
    %190 = vector.load %arg13[%189, %c0_58, %c0_59] : memref<8x8x512xbf16, #tpu.memory_space<vmem>>, vector<1x8x512xbf16>
    %191 = vector.shape_cast %190 : vector<1x8x512xbf16> to vector<8x512xbf16>
    %192 = arith.extf %191 : vector<8x512xbf16> to vector<8x512xf32>
    %193 = arith.truncf %183 : vector<8x128xf32> to vector<8x128xbf16>
    %cst_60 = arith.constant dense<0.000000e+00> : vector<8x512xf32>
    %194 = tpu.matmul %193, %16, %cst_60 {dimension_numbers = #tpu.dot_dimension_numbers<[1], [0], [0], [1], [0, 0, 1, 1], [], []>} : vector<8x128xbf16>, vector<128x512xbf16>, vector<8x512xf32> -> vector<8x512xf32>
    %195 = arith.addf %192, %194 : vector<8x512xf32>
    %196 = vector.extract_strided_slice %195 {offsets = [0, 0], sizes = [8, 384], strides = [1, 1]} : vector<8x512xf32> to vector<8x384xf32>
    %197 = arith.negf %196 : vector<8x384xf32>
    %198 = math.exp %197 : vector<8x384xf32>
    %cst_61 = arith.constant 1.000000e+00 : f32
    %199 = vector.broadcast %cst_61 : f32 to vector<8x384xf32>
    %200 = arith.addf %199, %198 : vector<8x384xf32>
    %201 = arith.divf %199, %200 : vector<8x384xf32>
    %202 = vector.extract_strided_slice %201 {offsets = [0, 0], sizes = [8, 128], strides = [1, 1]} : vector<8x384xf32> to vector<8x128xf32>
    %203 = vector.extract_strided_slice %201 {offsets = [0, 128], sizes = [8, 128], strides = [1, 1]} : vector<8x384xf32> to vector<8x128xf32>
    %204 = vector.extract_strided_slice %201 {offsets = [0, 256], sizes = [8, 128], strides = [1, 1]} : vector<8x384xf32> to vector<8x128xf32>
    %205 = vector.extract_strided_slice %195 {offsets = [0, 384], sizes = [8, 128], strides = [1, 1]} : vector<8x512xf32> to vector<8x128xf32>
    %206 = math.tanh %205 : vector<8x128xf32>
    %207 = arith.mulf %203, %181 : vector<8x128xf32>
    %208 = arith.mulf %202, %206 : vector<8x128xf32>
    %209 = arith.addf %207, %208 : vector<8x128xf32>
    %210 = math.tanh %209 : vector<8x128xf32>
    %211 = arith.mulf %204, %210 : vector<8x128xf32>
    %212 = arith.truncf %211 : vector<8x128xf32> to vector<8x128xbf16>
    %213 = arith.index_cast %c6_i32 : i32 to index
    %c0_62 = arith.constant 0 : index
    %c0_63 = arith.constant 0 : index
    %214 = vector.load %arg14[%213, %c0_62, %c0_63] : memref<8x8x128xbf16, #tpu.memory_space<vmem>>, vector<1x8x128xbf16>
    %215 = vector.shape_cast %214 : vector<1x8x128xbf16> to vector<8x128xbf16>
    %216 = vector.shape_cast %212 : vector<8x128xbf16> to vector<1x8x128xbf16>
    tpu.vector_store %arg14[%213, %c0_62, %c0_63], %216 {strides = array<i32>} : memref<8x8x128xbf16, #tpu.memory_space<vmem>>, vector<1x8x128xbf16>,
    %c7_i32 = arith.constant 7 : i32
    %217 = arith.index_cast %c7_i32 : i32 to index
    %c0_64 = arith.constant 0 : index
    %c0_65 = arith.constant 0 : index
    %218 = vector.load %arg13[%217, %c0_64, %c0_65] : memref<8x8x512xbf16, #tpu.memory_space<vmem>>, vector<1x8x512xbf16>
    %219 = vector.shape_cast %218 : vector<1x8x512xbf16> to vector<8x512xbf16>
    %220 = arith.extf %219 : vector<8x512xbf16> to vector<8x512xf32>
    %221 = arith.truncf %211 : vector<8x128xf32> to vector<8x128xbf16>
    %cst_66 = arith.constant dense<0.000000e+00> : vector<8x512xf32>
    %222 = tpu.matmul %221, %16, %cst_66 {dimension_numbers = #tpu.dot_dimension_numbers<[1], [0], [0], [1], [0, 0, 1, 1], [], []>} : vector<8x128xbf16>, vector<128x512xbf16>, vector<8x512xf32> -> vector<8x512xf32>
    %223 = arith.addf %220, %222 : vector<8x512xf32>
    %224 = vector.extract_strided_slice %223 {offsets = [0, 0], sizes = [8, 384], strides = [1, 1]} : vector<8x512xf32> to vector<8x384xf32>
    %225 = arith.negf %224 : vector<8x384xf32>
    %226 = math.exp %225 : vector<8x384xf32>
    %cst_67 = arith.constant 1.000000e+00 : f32
    %227 = vector.broadcast %cst_67 : f32 to vector<8x384xf32>
    %228 = arith.addf %227, %226 : vector<8x384xf32>
    %229 = arith.divf %227, %228 : vector<8x384xf32>
    %230 = vector.extract_strided_slice %229 {offsets = [0, 0], sizes = [8, 128], strides = [1, 1]} : vector<8x384xf32> to vector<8x128xf32>
    %231 = vector.extract_strided_slice %229 {offsets = [0, 128], sizes = [8, 128], strides = [1, 1]} : vector<8x384xf32> to vector<8x128xf32>
    %232 = vector.extract_strided_slice %229 {offsets = [0, 256], sizes = [8, 128], strides = [1, 1]} : vector<8x384xf32> to vector<8x128xf32>
    %233 = vector.extract_strided_slice %223 {offsets = [0, 384], sizes = [8, 128], strides = [1, 1]} : vector<8x512xf32> to vector<8x128xf32>
    %234 = math.tanh %233 : vector<8x128xf32>
    %235 = arith.mulf %231, %209 : vector<8x128xf32>
    %236 = arith.mulf %230, %234 : vector<8x128xf32>
    %237 = arith.addf %235, %236 : vector<8x128xf32>
    %238 = math.tanh %237 : vector<8x128xf32>
    %239 = arith.mulf %232, %238 : vector<8x128xf32>
    %240 = arith.truncf %239 : vector<8x128xf32> to vector<8x128xbf16>
    %241 = arith.index_cast %c7_i32 : i32 to index
    %c0_68 = arith.constant 0 : index
    %c0_69 = arith.constant 0 : index
    %242 = vector.load %arg14[%241, %c0_68, %c0_69] : memref<8x8x128xbf16, #tpu.memory_space<vmem>>, vector<1x8x128xbf16>
    %243 = vector.shape_cast %242 : vector<1x8x128xbf16> to vector<8x128xbf16>
    %244 = vector.shape_cast %240 : vector<8x128xbf16> to vector<1x8x128xbf16>
    tpu.vector_store %arg14[%241, %c0_68, %c0_69], %244 {strides = array<i32>} : memref<8x8x128xbf16, #tpu.memory_space<vmem>>, vector<1x8x128xbf16>,
    %c8_i32 = arith.constant 8 : i32
    %c0_70 = arith.constant 0 : index
    %c0_71 = arith.constant 0 : index
    %c0_72 = arith.constant 0 : index
    %245 = vector.load %arg11[%c0_70, %c0_71, %c0_72] : memref<3x8x128xf32, #tpu.memory_space<vmem>>, vector<1x8x128xf32>
    %246 = vector.shape_cast %245 : vector<1x8x128xf32> to vector<8x128xf32>
    %247 = vector.shape_cast %239 : vector<8x128xf32> to vector<1x8x128xf32>
    tpu.vector_store %arg11[%c0_70, %c0_71, %c0_72], %247 {strides = array<i32>} : memref<3x8x128xf32, #tpu.memory_space<vmem>>, vector<1x8x128xf32>,
    %c0_73 = arith.constant 0 : index
    %c0_74 = arith.constant 0 : index
    %c0_75 = arith.constant 0 : index
    %248 = vector.load %arg12[%c0_73, %c0_74, %c0_75] : memref<3x8x128xf32, #tpu.memory_space<vmem>>, vector<1x8x128xf32>
    %249 = vector.shape_cast %248 : vector<1x8x128xf32> to vector<8x128xf32>
    %250 = vector.shape_cast %237 : vector<8x128xf32> to vector<1x8x128xf32>
    tpu.vector_store %arg12[%c0_73, %c0_74, %c0_75], %250 {strides = array<i32>} : memref<3x8x128xf32, #tpu.memory_space<vmem>>, vector<1x8x128xf32>,
    %c0_76 = arith.constant 0 : index
    %c0_77 = arith.constant 0 : index
    %c0_78 = arith.constant 0 : index
    %251 = vector.load %arg14[%c0_76, %c0_77, %c0_78] : memref<8x8x128xbf16, #tpu.memory_space<vmem>>, vector<8x8x128xbf16>
    %252 = vector.shape_cast %251 : vector<8x8x128xbf16> to vector<64x128xbf16>
    %c1 = arith.constant 1 : index
    %c0_79 = arith.constant 0 : index
    %c0_80 = arith.constant 0 : index
    %253 = vector.load %arg5[%c1, %c0_79, %c0_80] : memref<3x128x512xbf16, #tpu.memory_space<vmem>>, vector<1x128x512xbf16>
    %254 = vector.shape_cast %253 : vector<1x128x512xbf16> to vector<128x512xbf16>
    %cst_81 = arith.constant dense<0.000000e+00> : vector<64x512xf32>
    %255 = tpu.matmul %252, %254, %cst_81 {dimension_numbers = #tpu.dot_dimension_numbers<[1], [0], [0], [1], [0, 0, 1, 1], [], []>} : vector<64x128xbf16>, vector<128x512xbf16>, vector<64x512xf32> -> vector<64x512xf32>
    %c1_82 = arith.constant 1 : index
    %c0_83 = arith.constant 0 : index
    %c0_84 = arith.constant 0 : index
    %256 = vector.load %arg7[%c1_82, %c0_83, %c0_84] : memref<3x1x512xf32, #tpu.memory_space<vmem>>, vector<1x1x512xf32>
    %257 = vector.shape_cast %256 : vector<1x1x512xf32> to vector<1x512xf32>
    %258 = vector.broadcast %257 : vector<1x512xf32> to vector<64x512xf32>
    %259 = arith.addf %255, %258 : vector<64x512xf32>
    %260 = vector.shape_cast %259 : vector<64x512xf32> to vector<8x8x512xf32>
    %261 = arith.truncf %260 : vector<8x8x512xf32> to vector<8x8x512xbf16>
    %c0_85 = arith.constant 0 : index
    %c0_86 = arith.constant 0 : index
    %c0_87 = arith.constant 0 : index
    %262 = vector.load %arg13[%c0_85, %c0_86, %c0_87] : memref<8x8x512xbf16, #tpu.memory_space<vmem>>, vector<8x8x512xbf16>
    tpu.vector_store %arg13[%c0_85, %c0_86, %c0_87], %261 {strides = array<i32>} : memref<8x8x512xbf16, #tpu.memory_space<vmem>>, vector<8x8x512xbf16>,
    %c1_88 = arith.constant 1 : index
    %c0_89 = arith.constant 0 : index
    %c0_90 = arith.constant 0 : index
    %263 = vector.load %arg6[%c1_88, %c0_89, %c0_90] : memref<3x128x512xbf16, #tpu.memory_space<vmem>>, vector<1x128x512xbf16>
    %264 = vector.shape_cast %263 : vector<1x128x512xbf16> to vector<128x512xbf16>
    %c1_91 = arith.constant 1 : index
    %c0_92 = arith.constant 0 : index
    %c0_93 = arith.constant 0 : index
    %265 = vector.load %arg11[%c1_91, %c0_92, %c0_93] : memref<3x8x128xf32, #tpu.memory_space<vmem>>, vector<1x8x128xf32>
    %266 = vector.shape_cast %265 : vector<1x8x128xf32> to vector<8x128xf32>
    %c1_94 = arith.constant 1 : index
    %c0_95 = arith.constant 0 : index
    %c0_96 = arith.constant 0 : index
    %267 = vector.load %arg12[%c1_94, %c0_95, %c0_96] : memref<3x8x128xf32, #tpu.memory_space<vmem>>, vector<1x8x128xf32>
    %268 = vector.shape_cast %267 : vector<1x8x128xf32> to vector<8x128xf32>
    %c0_i32_97 = arith.constant 0 : i32
    %269 = arith.index_cast %c0_i32_97 : i32 to index
    %c0_98 = arith.constant 0 : index
    %c0_99 = arith.constant 0 : index
    %270 = vector.load %arg13[%269, %c0_98, %c0_99] : memref<8x8x512xbf16, #tpu.memory_space<vmem>>, vector<1x8x512xbf16>
    %271 = vector.shape_cast %270 : vector<1x8x512xbf16> to vector<8x512xbf16>
    %272 = arith.extf %271 : vector<8x512xbf16> to vector<8x512xf32>
    %273 = arith.truncf %266 : vector<8x128xf32> to vector<8x128xbf16>
    %cst_100 = arith.constant dense<0.000000e+00> : vector<8x512xf32>
    %274 = tpu.matmul %273, %264, %cst_100 {dimension_numbers = #tpu.dot_dimension_numbers<[1], [0], [0], [1], [0, 0, 1, 1], [], []>} : vector<8x128xbf16>, vector<128x512xbf16>, vector<8x512xf32> -> vector<8x512xf32>
    %275 = arith.addf %272, %274 : vector<8x512xf32>
    %276 = vector.extract_strided_slice %275 {offsets = [0, 0], sizes = [8, 384], strides = [1, 1]} : vector<8x512xf32> to vector<8x384xf32>
    %277 = arith.negf %276 : vector<8x384xf32>
    %278 = math.exp %277 : vector<8x384xf32>
    %cst_101 = arith.constant 1.000000e+00 : f32
    %279 = vector.broadcast %cst_101 : f32 to vector<8x384xf32>
    %280 = arith.addf %279, %278 : vector<8x384xf32>
    %281 = arith.divf %279, %280 : vector<8x384xf32>
    %282 = vector.extract_strided_slice %281 {offsets = [0, 0], sizes = [8, 128], strides = [1, 1]} : vector<8x384xf32> to vector<8x128xf32>
    %283 = vector.extract_strided_slice %281 {offsets = [0, 128], sizes = [8, 128], strides = [1, 1]} : vector<8x384xf32> to vector<8x128xf32>
    %284 = vector.extract_strided_slice %281 {offsets = [0, 256], sizes = [8, 128], strides = [1, 1]} : vector<8x384xf32> to vector<8x128xf32>
    %285 = vector.extract_strided_slice %275 {offsets = [0, 384], sizes = [8, 128], strides = [1, 1]} : vector<8x512xf32> to vector<8x128xf32>
    %286 = math.tanh %285 : vector<8x128xf32>
    %287 = arith.mulf %283, %268 : vector<8x128xf32>
    %288 = arith.mulf %282, %286 : vector<8x128xf32>
    %289 = arith.addf %287, %288 : vector<8x128xf32>
    %290 = math.tanh %289 : vector<8x128xf32>
    %291 = arith.mulf %284, %290 : vector<8x128xf32>
    %292 = arith.truncf %291 : vector<8x128xf32> to vector<8x128xbf16>
    %293 = arith.index_cast %c0_i32_97 : i32 to index
    %c0_102 = arith.constant 0 : index
    %c0_103 = arith.constant 0 : index
    %294 = vector.load %arg14[%293, %c0_102, %c0_103] : memref<8x8x128xbf16, #tpu.memory_space<vmem>>, vector<1x8x128xbf16>
    %295 = vector.shape_cast %294 : vector<1x8x128xbf16> to vector<8x128xbf16>
    %296 = vector.shape_cast %292 : vector<8x128xbf16> to vector<1x8x128xbf16>
    tpu.vector_store %arg14[%293, %c0_102, %c0_103], %296 {strides = array<i32>} : memref<8x8x128xbf16, #tpu.memory_space<vmem>>, vector<1x8x128xbf16>,
    %c1_i32_104 = arith.constant 1 : i32
    %297 = arith.index_cast %c1_i32_104 : i32 to index
    %c0_105 = arith.constant 0 : index
    %c0_106 = arith.constant 0 : index
    %298 = vector.load %arg13[%297, %c0_105, %c0_106] : memref<8x8x512xbf16, #tpu.memory_space<vmem>>, vector<1x8x512xbf16>
    %299 = vector.shape_cast %298 : vector<1x8x512xbf16> to vector<8x512xbf16>
    %300 = arith.extf %299 : vector<8x512xbf16> to vector<8x512xf32>
    %301 = arith.truncf %291 : vector<8x128xf32> to vector<8x128xbf16>
    %cst_107 = arith.constant dense<0.000000e+00> : vector<8x512xf32>
    %302 = tpu.matmul %301, %264, %cst_107 {dimension_numbers = #tpu.dot_dimension_numbers<[1], [0], [0], [1], [0, 0, 1, 1], [], []>} : vector<8x128xbf16>, vector<128x512xbf16>, vector<8x512xf32> -> vector<8x512xf32>
    %303 = arith.addf %300, %302 : vector<8x512xf32>
    %304 = vector.extract_strided_slice %303 {offsets = [0, 0], sizes = [8, 384], strides = [1, 1]} : vector<8x512xf32> to vector<8x384xf32>
    %305 = arith.negf %304 : vector<8x384xf32>
    %306 = math.exp %305 : vector<8x384xf32>
    %cst_108 = arith.constant 1.000000e+00 : f32
    %307 = vector.broadcast %cst_108 : f32 to vector<8x384xf32>
    %308 = arith.addf %307, %306 : vector<8x384xf32>
    %309 = arith.divf %307, %308 : vector<8x384xf32>
    %310 = vector.extract_strided_slice %309 {offsets = [0, 0], sizes = [8, 128], strides = [1, 1]} : vector<8x384xf32> to vector<8x128xf32>
    %311 = vector.extract_strided_slice %309 {offsets = [0, 128], sizes = [8, 128], strides = [1, 1]} : vector<8x384xf32> to vector<8x128xf32>
    %312 = vector.extract_strided_slice %309 {offsets = [0, 256], sizes = [8, 128], strides = [1, 1]} : vector<8x384xf32> to vector<8x128xf32>
    %313 = vector.extract_strided_slice %303 {offsets = [0, 384], sizes = [8, 128], strides = [1, 1]} : vector<8x512xf32> to vector<8x128xf32>
    %314 = math.tanh %313 : vector<8x128xf32>
    %315 = arith.mulf %311, %289 : vector<8x128xf32>
    %316 = arith.mulf %310, %314 : vector<8x128xf32>
    %317 = arith.addf %315, %316 : vector<8x128xf32>
    %318 = math.tanh %317 : vector<8x128xf32>
    %319 = arith.mulf %312, %318 : vector<8x128xf32>
    %320 = arith.truncf %319 : vector<8x128xf32> to vector<8x128xbf16>
    %321 = arith.index_cast %c1_i32_104 : i32 to index
    %c0_109 = arith.constant 0 : index
    %c0_110 = arith.constant 0 : index
    %322 = vector.load %arg14[%321, %c0_109, %c0_110] : memref<8x8x128xbf16, #tpu.memory_space<vmem>>, vector<1x8x128xbf16>
    %323 = vector.shape_cast %322 : vector<1x8x128xbf16> to vector<8x128xbf16>
    %324 = vector.shape_cast %320 : vector<8x128xbf16> to vector<1x8x128xbf16>
    tpu.vector_store %arg14[%321, %c0_109, %c0_110], %324 {strides = array<i32>} : memref<8x8x128xbf16, #tpu.memory_space<vmem>>, vector<1x8x128xbf16>,
    %c2_i32_111 = arith.constant 2 : i32
    %325 = arith.index_cast %c2_i32_111 : i32 to index
    %c0_112 = arith.constant 0 : index
    %c0_113 = arith.constant 0 : index
    %326 = vector.load %arg13[%325, %c0_112, %c0_113] : memref<8x8x512xbf16, #tpu.memory_space<vmem>>, vector<1x8x512xbf16>
    %327 = vector.shape_cast %326 : vector<1x8x512xbf16> to vector<8x512xbf16>
    %328 = arith.extf %327 : vector<8x512xbf16> to vector<8x512xf32>
    %329 = arith.truncf %319 : vector<8x128xf32> to vector<8x128xbf16>
    %cst_114 = arith.constant dense<0.000000e+00> : vector<8x512xf32>
    %330 = tpu.matmul %329, %264, %cst_114 {dimension_numbers = #tpu.dot_dimension_numbers<[1], [0], [0], [1], [0, 0, 1, 1], [], []>} : vector<8x128xbf16>, vector<128x512xbf16>, vector<8x512xf32> -> vector<8x512xf32>
    %331 = arith.addf %328, %330 : vector<8x512xf32>
    %332 = vector.extract_strided_slice %331 {offsets = [0, 0], sizes = [8, 384], strides = [1, 1]} : vector<8x512xf32> to vector<8x384xf32>
    %333 = arith.negf %332 : vector<8x384xf32>
    %334 = math.exp %333 : vector<8x384xf32>
    %cst_115 = arith.constant 1.000000e+00 : f32
    %335 = vector.broadcast %cst_115 : f32 to vector<8x384xf32>
    %336 = arith.addf %335, %334 : vector<8x384xf32>
    %337 = arith.divf %335, %336 : vector<8x384xf32>
    %338 = vector.extract_strided_slice %337 {offsets = [0, 0], sizes = [8, 128], strides = [1, 1]} : vector<8x384xf32> to vector<8x128xf32>
    %339 = vector.extract_strided_slice %337 {offsets = [0, 128], sizes = [8, 128], strides = [1, 1]} : vector<8x384xf32> to vector<8x128xf32>
    %340 = vector.extract_strided_slice %337 {offsets = [0, 256], sizes = [8, 128], strides = [1, 1]} : vector<8x384xf32> to vector<8x128xf32>
    %341 = vector.extract_strided_slice %331 {offsets = [0, 384], sizes = [8, 128], strides = [1, 1]} : vector<8x512xf32> to vector<8x128xf32>
    %342 = math.tanh %341 : vector<8x128xf32>
    %343 = arith.mulf %339, %317 : vector<8x128xf32>
    %344 = arith.mulf %338, %342 : vector<8x128xf32>
    %345 = arith.addf %343, %344 : vector<8x128xf32>
    %346 = math.tanh %345 : vector<8x128xf32>
    %347 = arith.mulf %340, %346 : vector<8x128xf32>
    %348 = arith.truncf %347 : vector<8x128xf32> to vector<8x128xbf16>
    %349 = arith.index_cast %c2_i32_111 : i32 to index
    %c0_116 = arith.constant 0 : index
    %c0_117 = arith.constant 0 : index
    %350 = vector.load %arg14[%349, %c0_116, %c0_117] : memref<8x8x128xbf16, #tpu.memory_space<vmem>>, vector<1x8x128xbf16>
    %351 = vector.shape_cast %350 : vector<1x8x128xbf16> to vector<8x128xbf16>
    %352 = vector.shape_cast %348 : vector<8x128xbf16> to vector<1x8x128xbf16>
    tpu.vector_store %arg14[%349, %c0_116, %c0_117], %352 {strides = array<i32>} : memref<8x8x128xbf16, #tpu.memory_space<vmem>>, vector<1x8x128xbf16>,
    %c3_i32_118 = arith.constant 3 : i32
    %353 = arith.index_cast %c3_i32_118 : i32 to index
    %c0_119 = arith.constant 0 : index
    %c0_120 = arith.constant 0 : index
    %354 = vector.load %arg13[%353, %c0_119, %c0_120] : memref<8x8x512xbf16, #tpu.memory_space<vmem>>, vector<1x8x512xbf16>
    %355 = vector.shape_cast %354 : vector<1x8x512xbf16> to vector<8x512xbf16>
    %356 = arith.extf %355 : vector<8x512xbf16> to vector<8x512xf32>
    %357 = arith.truncf %347 : vector<8x128xf32> to vector<8x128xbf16>
    %cst_121 = arith.constant dense<0.000000e+00> : vector<8x512xf32>
    %358 = tpu.matmul %357, %264, %cst_121 {dimension_numbers = #tpu.dot_dimension_numbers<[1], [0], [0], [1], [0, 0, 1, 1], [], []>} : vector<8x128xbf16>, vector<128x512xbf16>, vector<8x512xf32> -> vector<8x512xf32>
    %359 = arith.addf %356, %358 : vector<8x512xf32>
    %360 = vector.extract_strided_slice %359 {offsets = [0, 0], sizes = [8, 384], strides = [1, 1]} : vector<8x512xf32> to vector<8x384xf32>
    %361 = arith.negf %360 : vector<8x384xf32>
    %362 = math.exp %361 : vector<8x384xf32>
    %cst_122 = arith.constant 1.000000e+00 : f32
    %363 = vector.broadcast %cst_122 : f32 to vector<8x384xf32>
    %364 = arith.addf %363, %362 : vector<8x384xf32>
    %365 = arith.divf %363, %364 : vector<8x384xf32>
    %366 = vector.extract_strided_slice %365 {offsets = [0, 0], sizes = [8, 128], strides = [1, 1]} : vector<8x384xf32> to vector<8x128xf32>
    %367 = vector.extract_strided_slice %365 {offsets = [0, 128], sizes = [8, 128], strides = [1, 1]} : vector<8x384xf32> to vector<8x128xf32>
    %368 = vector.extract_strided_slice %365 {offsets = [0, 256], sizes = [8, 128], strides = [1, 1]} : vector<8x384xf32> to vector<8x128xf32>
    %369 = vector.extract_strided_slice %359 {offsets = [0, 384], sizes = [8, 128], strides = [1, 1]} : vector<8x512xf32> to vector<8x128xf32>
    %370 = math.tanh %369 : vector<8x128xf32>
    %371 = arith.mulf %367, %345 : vector<8x128xf32>
    %372 = arith.mulf %366, %370 : vector<8x128xf32>
    %373 = arith.addf %371, %372 : vector<8x128xf32>
    %374 = math.tanh %373 : vector<8x128xf32>
    %375 = arith.mulf %368, %374 : vector<8x128xf32>
    %376 = arith.truncf %375 : vector<8x128xf32> to vector<8x128xbf16>
    %377 = arith.index_cast %c3_i32_118 : i32 to index
    %c0_123 = arith.constant 0 : index
    %c0_124 = arith.constant 0 : index
    %378 = vector.load %arg14[%377, %c0_123, %c0_124] : memref<8x8x128xbf16, #tpu.memory_space<vmem>>, vector<1x8x128xbf16>
    %379 = vector.shape_cast %378 : vector<1x8x128xbf16> to vector<8x128xbf16>
    %380 = vector.shape_cast %376 : vector<8x128xbf16> to vector<1x8x128xbf16>
    tpu.vector_store %arg14[%377, %c0_123, %c0_124], %380 {strides = array<i32>} : memref<8x8x128xbf16, #tpu.memory_space<vmem>>, vector<1x8x128xbf16>,
    %c4_i32_125 = arith.constant 4 : i32
    %381 = arith.index_cast %c4_i32_125 : i32 to index
    %c0_126 = arith.constant 0 : index
    %c0_127 = arith.constant 0 : index
    %382 = vector.load %arg13[%381, %c0_126, %c0_127] : memref<8x8x512xbf16, #tpu.memory_space<vmem>>, vector<1x8x512xbf16>
    %383 = vector.shape_cast %382 : vector<1x8x512xbf16> to vector<8x512xbf16>
    %384 = arith.extf %383 : vector<8x512xbf16> to vector<8x512xf32>
    %385 = arith.truncf %375 : vector<8x128xf32> to vector<8x128xbf16>
    %cst_128 = arith.constant dense<0.000000e+00> : vector<8x512xf32>
    %386 = tpu.matmul %385, %264, %cst_128 {dimension_numbers = #tpu.dot_dimension_numbers<[1], [0], [0], [1], [0, 0, 1, 1], [], []>} : vector<8x128xbf16>, vector<128x512xbf16>, vector<8x512xf32> -> vector<8x512xf32>
    %387 = arith.addf %384, %386 : vector<8x512xf32>
    %388 = vector.extract_strided_slice %387 {offsets = [0, 0], sizes = [8, 384], strides = [1, 1]} : vector<8x512xf32> to vector<8x384xf32>
    %389 = arith.negf %388 : vector<8x384xf32>
    %390 = math.exp %389 : vector<8x384xf32>
    %cst_129 = arith.constant 1.000000e+00 : f32
    %391 = vector.broadcast %cst_129 : f32 to vector<8x384xf32>
    %392 = arith.addf %391, %390 : vector<8x384xf32>
    %393 = arith.divf %391, %392 : vector<8x384xf32>
    %394 = vector.extract_strided_slice %393 {offsets = [0, 0], sizes = [8, 128], strides = [1, 1]} : vector<8x384xf32> to vector<8x128xf32>
    %395 = vector.extract_strided_slice %393 {offsets = [0, 128], sizes = [8, 128], strides = [1, 1]} : vector<8x384xf32> to vector<8x128xf32>
    %396 = vector.extract_strided_slice %393 {offsets = [0, 256], sizes = [8, 128], strides = [1, 1]} : vector<8x384xf32> to vector<8x128xf32>
    %397 = vector.extract_strided_slice %387 {offsets = [0, 384], sizes = [8, 128], strides = [1, 1]} : vector<8x512xf32> to vector<8x128xf32>
    %398 = math.tanh %397 : vector<8x128xf32>
    %399 = arith.mulf %395, %373 : vector<8x128xf32>
    %400 = arith.mulf %394, %398 : vector<8x128xf32>
    %401 = arith.addf %399, %400 : vector<8x128xf32>
    %402 = math.tanh %401 : vector<8x128xf32>
    %403 = arith.mulf %396, %402 : vector<8x128xf32>
    %404 = arith.truncf %403 : vector<8x128xf32> to vector<8x128xbf16>
    %405 = arith.index_cast %c4_i32_125 : i32 to index
    %c0_130 = arith.constant 0 : index
    %c0_131 = arith.constant 0 : index
    %406 = vector.load %arg14[%405, %c0_130, %c0_131] : memref<8x8x128xbf16, #tpu.memory_space<vmem>>, vector<1x8x128xbf16>
    %407 = vector.shape_cast %406 : vector<1x8x128xbf16> to vector<8x128xbf16>
    %408 = vector.shape_cast %404 : vector<8x128xbf16> to vector<1x8x128xbf16>
    tpu.vector_store %arg14[%405, %c0_130, %c0_131], %408 {strides = array<i32>} : memref<8x8x128xbf16, #tpu.memory_space<vmem>>, vector<1x8x128xbf16>,
    %c5_i32_132 = arith.constant 5 : i32
    %409 = arith.index_cast %c5_i32_132 : i32 to index
    %c0_133 = arith.constant 0 : index
    %c0_134 = arith.constant 0 : index
    %410 = vector.load %arg13[%409, %c0_133, %c0_134] : memref<8x8x512xbf16, #tpu.memory_space<vmem>>, vector<1x8x512xbf16>
    %411 = vector.shape_cast %410 : vector<1x8x512xbf16> to vector<8x512xbf16>
    %412 = arith.extf %411 : vector<8x512xbf16> to vector<8x512xf32>
    %413 = arith.truncf %403 : vector<8x128xf32> to vector<8x128xbf16>
    %cst_135 = arith.constant dense<0.000000e+00> : vector<8x512xf32>
    %414 = tpu.matmul %413, %264, %cst_135 {dimension_numbers = #tpu.dot_dimension_numbers<[1], [0], [0], [1], [0, 0, 1, 1], [], []>} : vector<8x128xbf16>, vector<128x512xbf16>, vector<8x512xf32> -> vector<8x512xf32>
    %415 = arith.addf %412, %414 : vector<8x512xf32>
    %416 = vector.extract_strided_slice %415 {offsets = [0, 0], sizes = [8, 384], strides = [1, 1]} : vector<8x512xf32> to vector<8x384xf32>
    %417 = arith.negf %416 : vector<8x384xf32>
    %418 = math.exp %417 : vector<8x384xf32>
    %cst_136 = arith.constant 1.000000e+00 : f32
    %419 = vector.broadcast %cst_136 : f32 to vector<8x384xf32>
    %420 = arith.addf %419, %418 : vector<8x384xf32>
    %421 = arith.divf %419, %420 : vector<8x384xf32>
    %422 = vector.extract_strided_slice %421 {offsets = [0, 0], sizes = [8, 128], strides = [1, 1]} : vector<8x384xf32> to vector<8x128xf32>
    %423 = vector.extract_strided_slice %421 {offsets = [0, 128], sizes = [8, 128], strides = [1, 1]} : vector<8x384xf32> to vector<8x128xf32>
    %424 = vector.extract_strided_slice %421 {offsets = [0, 256], sizes = [8, 128], strides = [1, 1]} : vector<8x384xf32> to vector<8x128xf32>
    %425 = vector.extract_strided_slice %415 {offsets = [0, 384], sizes = [8, 128], strides = [1, 1]} : vector<8x512xf32> to vector<8x128xf32>
    %426 = math.tanh %425 : vector<8x128xf32>
    %427 = arith.mulf %423, %401 : vector<8x128xf32>
    %428 = arith.mulf %422, %426 : vector<8x128xf32>
    %429 = arith.addf %427, %428 : vector<8x128xf32>
    %430 = math.tanh %429 : vector<8x128xf32>
    %431 = arith.mulf %424, %430 : vector<8x128xf32>
    %432 = arith.truncf %431 : vector<8x128xf32> to vector<8x128xbf16>
    %433 = arith.index_cast %c5_i32_132 : i32 to index
    %c0_137 = arith.constant 0 : index
    %c0_138 = arith.constant 0 : index
    %434 = vector.load %arg14[%433, %c0_137, %c0_138] : memref<8x8x128xbf16, #tpu.memory_space<vmem>>, vector<1x8x128xbf16>
    %435 = vector.shape_cast %434 : vector<1x8x128xbf16> to vector<8x128xbf16>
    %436 = vector.shape_cast %432 : vector<8x128xbf16> to vector<1x8x128xbf16>
    tpu.vector_store %arg14[%433, %c0_137, %c0_138], %436 {strides = array<i32>} : memref<8x8x128xbf16, #tpu.memory_space<vmem>>, vector<1x8x128xbf16>,
    %c6_i32_139 = arith.constant 6 : i32
    %437 = arith.index_cast %c6_i32_139 : i32 to index
    %c0_140 = arith.constant 0 : index
    %c0_141 = arith.constant 0 : index
    %438 = vector.load %arg13[%437, %c0_140, %c0_141] : memref<8x8x512xbf16, #tpu.memory_space<vmem>>, vector<1x8x512xbf16>
    %439 = vector.shape_cast %438 : vector<1x8x512xbf16> to vector<8x512xbf16>
    %440 = arith.extf %439 : vector<8x512xbf16> to vector<8x512xf32>
    %441 = arith.truncf %431 : vector<8x128xf32> to vector<8x128xbf16>
    %cst_142 = arith.constant dense<0.000000e+00> : vector<8x512xf32>
    %442 = tpu.matmul %441, %264, %cst_142 {dimension_numbers = #tpu.dot_dimension_numbers<[1], [0], [0], [1], [0, 0, 1, 1], [], []>} : vector<8x128xbf16>, vector<128x512xbf16>, vector<8x512xf32> -> vector<8x512xf32>
    %443 = arith.addf %440, %442 : vector<8x512xf32>
    %444 = vector.extract_strided_slice %443 {offsets = [0, 0], sizes = [8, 384], strides = [1, 1]} : vector<8x512xf32> to vector<8x384xf32>
    %445 = arith.negf %444 : vector<8x384xf32>
    %446 = math.exp %445 : vector<8x384xf32>
    %cst_143 = arith.constant 1.000000e+00 : f32
    %447 = vector.broadcast %cst_143 : f32 to vector<8x384xf32>
    %448 = arith.addf %447, %446 : vector<8x384xf32>
    %449 = arith.divf %447, %448 : vector<8x384xf32>
    %450 = vector.extract_strided_slice %449 {offsets = [0, 0], sizes = [8, 128], strides = [1, 1]} : vector<8x384xf32> to vector<8x128xf32>
    %451 = vector.extract_strided_slice %449 {offsets = [0, 128], sizes = [8, 128], strides = [1, 1]} : vector<8x384xf32> to vector<8x128xf32>
    %452 = vector.extract_strided_slice %449 {offsets = [0, 256], sizes = [8, 128], strides = [1, 1]} : vector<8x384xf32> to vector<8x128xf32>
    %453 = vector.extract_strided_slice %443 {offsets = [0, 384], sizes = [8, 128], strides = [1, 1]} : vector<8x512xf32> to vector<8x128xf32>
    %454 = math.tanh %453 : vector<8x128xf32>
    %455 = arith.mulf %451, %429 : vector<8x128xf32>
    %456 = arith.mulf %450, %454 : vector<8x128xf32>
    %457 = arith.addf %455, %456 : vector<8x128xf32>
    %458 = math.tanh %457 : vector<8x128xf32>
    %459 = arith.mulf %452, %458 : vector<8x128xf32>
    %460 = arith.truncf %459 : vector<8x128xf32> to vector<8x128xbf16>
    %461 = arith.index_cast %c6_i32_139 : i32 to index
    %c0_144 = arith.constant 0 : index
    %c0_145 = arith.constant 0 : index
    %462 = vector.load %arg14[%461, %c0_144, %c0_145] : memref<8x8x128xbf16, #tpu.memory_space<vmem>>, vector<1x8x128xbf16>
    %463 = vector.shape_cast %462 : vector<1x8x128xbf16> to vector<8x128xbf16>
    %464 = vector.shape_cast %460 : vector<8x128xbf16> to vector<1x8x128xbf16>
    tpu.vector_store %arg14[%461, %c0_144, %c0_145], %464 {strides = array<i32>} : memref<8x8x128xbf16, #tpu.memory_space<vmem>>, vector<1x8x128xbf16>,
    %c7_i32_146 = arith.constant 7 : i32
    %465 = arith.index_cast %c7_i32_146 : i32 to index
    %c0_147 = arith.constant 0 : index
    %c0_148 = arith.constant 0 : index
    %466 = vector.load %arg13[%465, %c0_147, %c0_148] : memref<8x8x512xbf16, #tpu.memory_space<vmem>>, vector<1x8x512xbf16>
    %467 = vector.shape_cast %466 : vector<1x8x512xbf16> to vector<8x512xbf16>
    %468 = arith.extf %467 : vector<8x512xbf16> to vector<8x512xf32>
    %469 = arith.truncf %459 : vector<8x128xf32> to vector<8x128xbf16>
    %cst_149 = arith.constant dense<0.000000e+00> : vector<8x512xf32>
    %470 = tpu.matmul %469, %264, %cst_149 {dimension_numbers = #tpu.dot_dimension_numbers<[1], [0], [0], [1], [0, 0, 1, 1], [], []>} : vector<8x128xbf16>, vector<128x512xbf16>, vector<8x512xf32> -> vector<8x512xf32>
    %471 = arith.addf %468, %470 : vector<8x512xf32>
    %472 = vector.extract_strided_slice %471 {offsets = [0, 0], sizes = [8, 384], strides = [1, 1]} : vector<8x512xf32> to vector<8x384xf32>
    %473 = arith.negf %472 : vector<8x384xf32>
    %474 = math.exp %473 : vector<8x384xf32>
    %cst_150 = arith.constant 1.000000e+00 : f32
    %475 = vector.broadcast %cst_150 : f32 to vector<8x384xf32>
    %476 = arith.addf %475, %474 : vector<8x384xf32>
    %477 = arith.divf %475, %476 : vector<8x384xf32>
    %478 = vector.extract_strided_slice %477 {offsets = [0, 0], sizes = [8, 128], strides = [1, 1]} : vector<8x384xf32> to vector<8x128xf32>
    %479 = vector.extract_strided_slice %477 {offsets = [0, 128], sizes = [8, 128], strides = [1, 1]} : vector<8x384xf32> to vector<8x128xf32>
    %480 = vector.extract_strided_slice %477 {offsets = [0, 256], sizes = [8, 128], strides = [1, 1]} : vector<8x384xf32> to vector<8x128xf32>
    %481 = vector.extract_strided_slice %471 {offsets = [0, 384], sizes = [8, 128], strides = [1, 1]} : vector<8x512xf32> to vector<8x128xf32>
    %482 = math.tanh %481 : vector<8x128xf32>
    %483 = arith.mulf %479, %457 : vector<8x128xf32>
    %484 = arith.mulf %478, %482 : vector<8x128xf32>
    %485 = arith.addf %483, %484 : vector<8x128xf32>
    %486 = math.tanh %485 : vector<8x128xf32>
    %487 = arith.mulf %480, %486 : vector<8x128xf32>
    %488 = arith.truncf %487 : vector<8x128xf32> to vector<8x128xbf16>
    %489 = arith.index_cast %c7_i32_146 : i32 to index
    %c0_151 = arith.constant 0 : index
    %c0_152 = arith.constant 0 : index
    %490 = vector.load %arg14[%489, %c0_151, %c0_152] : memref<8x8x128xbf16, #tpu.memory_space<vmem>>, vector<1x8x128xbf16>
    %491 = vector.shape_cast %490 : vector<1x8x128xbf16> to vector<8x128xbf16>
    %492 = vector.shape_cast %488 : vector<8x128xbf16> to vector<1x8x128xbf16>
    tpu.vector_store %arg14[%489, %c0_151, %c0_152], %492 {strides = array<i32>} : memref<8x8x128xbf16, #tpu.memory_space<vmem>>, vector<1x8x128xbf16>,
    %c8_i32_153 = arith.constant 8 : i32
    %c1_154 = arith.constant 1 : index
    %c0_155 = arith.constant 0 : index
    %c0_156 = arith.constant 0 : index
    %493 = vector.load %arg11[%c1_154, %c0_155, %c0_156] : memref<3x8x128xf32, #tpu.memory_space<vmem>>, vector<1x8x128xf32>
    %494 = vector.shape_cast %493 : vector<1x8x128xf32> to vector<8x128xf32>
    %495 = vector.shape_cast %487 : vector<8x128xf32> to vector<1x8x128xf32>
    tpu.vector_store %arg11[%c1_154, %c0_155, %c0_156], %495 {strides = array<i32>} : memref<3x8x128xf32, #tpu.memory_space<vmem>>, vector<1x8x128xf32>,
    %c1_157 = arith.constant 1 : index
    %c0_158 = arith.constant 0 : index
    %c0_159 = arith.constant 0 : index
    %496 = vector.load %arg12[%c1_157, %c0_158, %c0_159] : memref<3x8x128xf32, #tpu.memory_space<vmem>>, vector<1x8x128xf32>
    %497 = vector.shape_cast %496 : vector<1x8x128xf32> to vector<8x128xf32>
    %498 = vector.shape_cast %485 : vector<8x128xf32> to vector<1x8x128xf32>
    tpu.vector_store %arg12[%c1_157, %c0_158, %c0_159], %498 {strides = array<i32>} : memref<3x8x128xf32, #tpu.memory_space<vmem>>, vector<1x8x128xf32>,
    %c0_160 = arith.constant 0 : index
    %c0_161 = arith.constant 0 : index
    %c0_162 = arith.constant 0 : index
    %499 = vector.load %arg14[%c0_160, %c0_161, %c0_162] : memref<8x8x128xbf16, #tpu.memory_space<vmem>>, vector<8x8x128xbf16>
    %500 = vector.shape_cast %499 : vector<8x8x128xbf16> to vector<64x128xbf16>
    %c2 = arith.constant 2 : index
    %c0_163 = arith.constant 0 : index
    %c0_164 = arith.constant 0 : index
    %501 = vector.load %arg5[%c2, %c0_163, %c0_164] : memref<3x128x512xbf16, #tpu.memory_space<vmem>>, vector<1x128x512xbf16>
    %502 = vector.shape_cast %501 : vector<1x128x512xbf16> to vector<128x512xbf16>
    %cst_165 = arith.constant dense<0.000000e+00> : vector<64x512xf32>
    %503 = tpu.matmul %500, %502, %cst_165 {dimension_numbers = #tpu.dot_dimension_numbers<[1], [0], [0], [1], [0, 0, 1, 1], [], []>} : vector<64x128xbf16>, vector<128x512xbf16>, vector<64x512xf32> -> vector<64x512xf32>
    %c2_166 = arith.constant 2 : index
    %c0_167 = arith.constant 0 : index
    %c0_168 = arith.constant 0 : index
    %504 = vector.load %arg7[%c2_166, %c0_167, %c0_168] : memref<3x1x512xf32, #tpu.memory_space<vmem>>, vector<1x1x512xf32>
    %505 = vector.shape_cast %504 : vector<1x1x512xf32> to vector<1x512xf32>
    %506 = vector.broadcast %505 : vector<1x512xf32> to vector<64x512xf32>
    %507 = arith.addf %503, %506 : vector<64x512xf32>
    %508 = vector.shape_cast %507 : vector<64x512xf32> to vector<8x8x512xf32>
    %509 = arith.truncf %508 : vector<8x8x512xf32> to vector<8x8x512xbf16>
    %c0_169 = arith.constant 0 : index
    %c0_170 = arith.constant 0 : index
    %c0_171 = arith.constant 0 : index
    %510 = vector.load %arg13[%c0_169, %c0_170, %c0_171] : memref<8x8x512xbf16, #tpu.memory_space<vmem>>, vector<8x8x512xbf16>
    tpu.vector_store %arg13[%c0_169, %c0_170, %c0_171], %509 {strides = array<i32>} : memref<8x8x512xbf16, #tpu.memory_space<vmem>>, vector<8x8x512xbf16>,
    %c2_172 = arith.constant 2 : index
    %c0_173 = arith.constant 0 : index
    %c0_174 = arith.constant 0 : index
    %511 = vector.load %arg6[%c2_172, %c0_173, %c0_174] : memref<3x128x512xbf16, #tpu.memory_space<vmem>>, vector<1x128x512xbf16>
    %512 = vector.shape_cast %511 : vector<1x128x512xbf16> to vector<128x512xbf16>
    %c2_175 = arith.constant 2 : index
    %c0_176 = arith.constant 0 : index
    %c0_177 = arith.constant 0 : index
    %513 = vector.load %arg11[%c2_175, %c0_176, %c0_177] : memref<3x8x128xf32, #tpu.memory_space<vmem>>, vector<1x8x128xf32>
    %514 = vector.shape_cast %513 : vector<1x8x128xf32> to vector<8x128xf32>
    %c2_178 = arith.constant 2 : index
    %c0_179 = arith.constant 0 : index
    %c0_180 = arith.constant 0 : index
    %515 = vector.load %arg12[%c2_178, %c0_179, %c0_180] : memref<3x8x128xf32, #tpu.memory_space<vmem>>, vector<1x8x128xf32>
    %516 = vector.shape_cast %515 : vector<1x8x128xf32> to vector<8x128xf32>
    %c0_i32_181 = arith.constant 0 : i32
    %517 = arith.index_cast %c0_i32_181 : i32 to index
    %c0_182 = arith.constant 0 : index
    %c0_183 = arith.constant 0 : index
    %518 = vector.load %arg13[%517, %c0_182, %c0_183] : memref<8x8x512xbf16, #tpu.memory_space<vmem>>, vector<1x8x512xbf16>
    %519 = vector.shape_cast %518 : vector<1x8x512xbf16> to vector<8x512xbf16>
    %520 = arith.extf %519 : vector<8x512xbf16> to vector<8x512xf32>
    %521 = arith.truncf %514 : vector<8x128xf32> to vector<8x128xbf16>
    %cst_184 = arith.constant dense<0.000000e+00> : vector<8x512xf32>
    %522 = tpu.matmul %521, %512, %cst_184 {dimension_numbers = #tpu.dot_dimension_numbers<[1], [0], [0], [1], [0, 0, 1, 1], [], []>} : vector<8x128xbf16>, vector<128x512xbf16>, vector<8x512xf32> -> vector<8x512xf32>
    %523 = arith.addf %520, %522 : vector<8x512xf32>
    %524 = vector.extract_strided_slice %523 {offsets = [0, 0], sizes = [8, 384], strides = [1, 1]} : vector<8x512xf32> to vector<8x384xf32>
    %525 = arith.negf %524 : vector<8x384xf32>
    %526 = math.exp %525 : vector<8x384xf32>
    %cst_185 = arith.constant 1.000000e+00 : f32
    %527 = vector.broadcast %cst_185 : f32 to vector<8x384xf32>
    %528 = arith.addf %527, %526 : vector<8x384xf32>
    %529 = arith.divf %527, %528 : vector<8x384xf32>
    %530 = vector.extract_strided_slice %529 {offsets = [0, 0], sizes = [8, 128], strides = [1, 1]} : vector<8x384xf32> to vector<8x128xf32>
    %531 = vector.extract_strided_slice %529 {offsets = [0, 128], sizes = [8, 128], strides = [1, 1]} : vector<8x384xf32> to vector<8x128xf32>
    %532 = vector.extract_strided_slice %529 {offsets = [0, 256], sizes = [8, 128], strides = [1, 1]} : vector<8x384xf32> to vector<8x128xf32>
    %533 = vector.extract_strided_slice %523 {offsets = [0, 384], sizes = [8, 128], strides = [1, 1]} : vector<8x512xf32> to vector<8x128xf32>
    %534 = math.tanh %533 : vector<8x128xf32>
    %535 = arith.mulf %531, %516 : vector<8x128xf32>
    %536 = arith.mulf %530, %534 : vector<8x128xf32>
    %537 = arith.addf %535, %536 : vector<8x128xf32>
    %538 = math.tanh %537 : vector<8x128xf32>
    %539 = arith.mulf %532, %538 : vector<8x128xf32>
    %540 = arith.truncf %539 : vector<8x128xf32> to vector<8x128xbf16>
    %541 = arith.index_cast %c0_i32_181 : i32 to index
    %c0_186 = arith.constant 0 : index
    %c0_187 = arith.constant 0 : index
    %542 = vector.load %arg14[%541, %c0_186, %c0_187] : memref<8x8x128xbf16, #tpu.memory_space<vmem>>, vector<1x8x128xbf16>
    %543 = vector.shape_cast %542 : vector<1x8x128xbf16> to vector<8x128xbf16>
    %544 = vector.shape_cast %540 : vector<8x128xbf16> to vector<1x8x128xbf16>
    tpu.vector_store %arg14[%541, %c0_186, %c0_187], %544 {strides = array<i32>} : memref<8x8x128xbf16, #tpu.memory_space<vmem>>, vector<1x8x128xbf16>,
    %c1_i32_188 = arith.constant 1 : i32
    %545 = arith.index_cast %c1_i32_188 : i32 to index
    %c0_189 = arith.constant 0 : index
    %c0_190 = arith.constant 0 : index
    %546 = vector.load %arg13[%545, %c0_189, %c0_190] : memref<8x8x512xbf16, #tpu.memory_space<vmem>>, vector<1x8x512xbf16>
    %547 = vector.shape_cast %546 : vector<1x8x512xbf16> to vector<8x512xbf16>
    %548 = arith.extf %547 : vector<8x512xbf16> to vector<8x512xf32>
    %549 = arith.truncf %539 : vector<8x128xf32> to vector<8x128xbf16>
    %cst_191 = arith.constant dense<0.000000e+00> : vector<8x512xf32>
    %550 = tpu.matmul %549, %512, %cst_191 {dimension_numbers = #tpu.dot_dimension_numbers<[1], [0], [0], [1], [0, 0, 1, 1], [], []>} : vector<8x128xbf16>, vector<128x512xbf16>, vector<8x512xf32> -> vector<8x512xf32>
    %551 = arith.addf %548, %550 : vector<8x512xf32>
    %552 = vector.extract_strided_slice %551 {offsets = [0, 0], sizes = [8, 384], strides = [1, 1]} : vector<8x512xf32> to vector<8x384xf32>
    %553 = arith.negf %552 : vector<8x384xf32>
    %554 = math.exp %553 : vector<8x384xf32>
    %cst_192 = arith.constant 1.000000e+00 : f32
    %555 = vector.broadcast %cst_192 : f32 to vector<8x384xf32>
    %556 = arith.addf %555, %554 : vector<8x384xf32>
    %557 = arith.divf %555, %556 : vector<8x384xf32>
    %558 = vector.extract_strided_slice %557 {offsets = [0, 0], sizes = [8, 128], strides = [1, 1]} : vector<8x384xf32> to vector<8x128xf32>
    %559 = vector.extract_strided_slice %557 {offsets = [0, 128], sizes = [8, 128], strides = [1, 1]} : vector<8x384xf32> to vector<8x128xf32>
    %560 = vector.extract_strided_slice %557 {offsets = [0, 256], sizes = [8, 128], strides = [1, 1]} : vector<8x384xf32> to vector<8x128xf32>
    %561 = vector.extract_strided_slice %551 {offsets = [0, 384], sizes = [8, 128], strides = [1, 1]} : vector<8x512xf32> to vector<8x128xf32>
    %562 = math.tanh %561 : vector<8x128xf32>
    %563 = arith.mulf %559, %537 : vector<8x128xf32>
    %564 = arith.mulf %558, %562 : vector<8x128xf32>
    %565 = arith.addf %563, %564 : vector<8x128xf32>
    %566 = math.tanh %565 : vector<8x128xf32>
    %567 = arith.mulf %560, %566 : vector<8x128xf32>
    %568 = arith.truncf %567 : vector<8x128xf32> to vector<8x128xbf16>
    %569 = arith.index_cast %c1_i32_188 : i32 to index
    %c0_193 = arith.constant 0 : index
    %c0_194 = arith.constant 0 : index
    %570 = vector.load %arg14[%569, %c0_193, %c0_194] : memref<8x8x128xbf16, #tpu.memory_space<vmem>>, vector<1x8x128xbf16>
    %571 = vector.shape_cast %570 : vector<1x8x128xbf16> to vector<8x128xbf16>
    %572 = vector.shape_cast %568 : vector<8x128xbf16> to vector<1x8x128xbf16>
    tpu.vector_store %arg14[%569, %c0_193, %c0_194], %572 {strides = array<i32>} : memref<8x8x128xbf16, #tpu.memory_space<vmem>>, vector<1x8x128xbf16>,
    %c2_i32_195 = arith.constant 2 : i32
    %573 = arith.index_cast %c2_i32_195 : i32 to index
    %c0_196 = arith.constant 0 : index
    %c0_197 = arith.constant 0 : index
    %574 = vector.load %arg13[%573, %c0_196, %c0_197] : memref<8x8x512xbf16, #tpu.memory_space<vmem>>, vector<1x8x512xbf16>
    %575 = vector.shape_cast %574 : vector<1x8x512xbf16> to vector<8x512xbf16>
    %576 = arith.extf %575 : vector<8x512xbf16> to vector<8x512xf32>
    %577 = arith.truncf %567 : vector<8x128xf32> to vector<8x128xbf16>
    %cst_198 = arith.constant dense<0.000000e+00> : vector<8x512xf32>
    %578 = tpu.matmul %577, %512, %cst_198 {dimension_numbers = #tpu.dot_dimension_numbers<[1], [0], [0], [1], [0, 0, 1, 1], [], []>} : vector<8x128xbf16>, vector<128x512xbf16>, vector<8x512xf32> -> vector<8x512xf32>
    %579 = arith.addf %576, %578 : vector<8x512xf32>
    %580 = vector.extract_strided_slice %579 {offsets = [0, 0], sizes = [8, 384], strides = [1, 1]} : vector<8x512xf32> to vector<8x384xf32>
    %581 = arith.negf %580 : vector<8x384xf32>
    %582 = math.exp %581 : vector<8x384xf32>
    %cst_199 = arith.constant 1.000000e+00 : f32
    %583 = vector.broadcast %cst_199 : f32 to vector<8x384xf32>
    %584 = arith.addf %583, %582 : vector<8x384xf32>
    %585 = arith.divf %583, %584 : vector<8x384xf32>
    %586 = vector.extract_strided_slice %585 {offsets = [0, 0], sizes = [8, 128], strides = [1, 1]} : vector<8x384xf32> to vector<8x128xf32>
    %587 = vector.extract_strided_slice %585 {offsets = [0, 128], sizes = [8, 128], strides = [1, 1]} : vector<8x384xf32> to vector<8x128xf32>
    %588 = vector.extract_strided_slice %585 {offsets = [0, 256], sizes = [8, 128], strides = [1, 1]} : vector<8x384xf32> to vector<8x128xf32>
    %589 = vector.extract_strided_slice %579 {offsets = [0, 384], sizes = [8, 128], strides = [1, 1]} : vector<8x512xf32> to vector<8x128xf32>
    %590 = math.tanh %589 : vector<8x128xf32>
    %591 = arith.mulf %587, %565 : vector<8x128xf32>
    %592 = arith.mulf %586, %590 : vector<8x128xf32>
    %593 = arith.addf %591, %592 : vector<8x128xf32>
    %594 = math.tanh %593 : vector<8x128xf32>
    %595 = arith.mulf %588, %594 : vector<8x128xf32>
    %596 = arith.truncf %595 : vector<8x128xf32> to vector<8x128xbf16>
    %597 = arith.index_cast %c2_i32_195 : i32 to index
    %c0_200 = arith.constant 0 : index
    %c0_201 = arith.constant 0 : index
    %598 = vector.load %arg14[%597, %c0_200, %c0_201] : memref<8x8x128xbf16, #tpu.memory_space<vmem>>, vector<1x8x128xbf16>
    %599 = vector.shape_cast %598 : vector<1x8x128xbf16> to vector<8x128xbf16>
    %600 = vector.shape_cast %596 : vector<8x128xbf16> to vector<1x8x128xbf16>
    tpu.vector_store %arg14[%597, %c0_200, %c0_201], %600 {strides = array<i32>} : memref<8x8x128xbf16, #tpu.memory_space<vmem>>, vector<1x8x128xbf16>,
    %c3_i32_202 = arith.constant 3 : i32
    %601 = arith.index_cast %c3_i32_202 : i32 to index
    %c0_203 = arith.constant 0 : index
    %c0_204 = arith.constant 0 : index
    %602 = vector.load %arg13[%601, %c0_203, %c0_204] : memref<8x8x512xbf16, #tpu.memory_space<vmem>>, vector<1x8x512xbf16>
    %603 = vector.shape_cast %602 : vector<1x8x512xbf16> to vector<8x512xbf16>
    %604 = arith.extf %603 : vector<8x512xbf16> to vector<8x512xf32>
    %605 = arith.truncf %595 : vector<8x128xf32> to vector<8x128xbf16>
    %cst_205 = arith.constant dense<0.000000e+00> : vector<8x512xf32>
    %606 = tpu.matmul %605, %512, %cst_205 {dimension_numbers = #tpu.dot_dimension_numbers<[1], [0], [0], [1], [0, 0, 1, 1], [], []>} : vector<8x128xbf16>, vector<128x512xbf16>, vector<8x512xf32> -> vector<8x512xf32>
    %607 = arith.addf %604, %606 : vector<8x512xf32>
    %608 = vector.extract_strided_slice %607 {offsets = [0, 0], sizes = [8, 384], strides = [1, 1]} : vector<8x512xf32> to vector<8x384xf32>
    %609 = arith.negf %608 : vector<8x384xf32>
    %610 = math.exp %609 : vector<8x384xf32>
    %cst_206 = arith.constant 1.000000e+00 : f32
    %611 = vector.broadcast %cst_206 : f32 to vector<8x384xf32>
    %612 = arith.addf %611, %610 : vector<8x384xf32>
    %613 = arith.divf %611, %612 : vector<8x384xf32>
    %614 = vector.extract_strided_slice %613 {offsets = [0, 0], sizes = [8, 128], strides = [1, 1]} : vector<8x384xf32> to vector<8x128xf32>
    %615 = vector.extract_strided_slice %613 {offsets = [0, 128], sizes = [8, 128], strides = [1, 1]} : vector<8x384xf32> to vector<8x128xf32>
    %616 = vector.extract_strided_slice %613 {offsets = [0, 256], sizes = [8, 128], strides = [1, 1]} : vector<8x384xf32> to vector<8x128xf32>
    %617 = vector.extract_strided_slice %607 {offsets = [0, 384], sizes = [8, 128], strides = [1, 1]} : vector<8x512xf32> to vector<8x128xf32>
    %618 = math.tanh %617 : vector<8x128xf32>
    %619 = arith.mulf %615, %593 : vector<8x128xf32>
    %620 = arith.mulf %614, %618 : vector<8x128xf32>
    %621 = arith.addf %619, %620 : vector<8x128xf32>
    %622 = math.tanh %621 : vector<8x128xf32>
    %623 = arith.mulf %616, %622 : vector<8x128xf32>
    %624 = arith.truncf %623 : vector<8x128xf32> to vector<8x128xbf16>
    %625 = arith.index_cast %c3_i32_202 : i32 to index
    %c0_207 = arith.constant 0 : index
    %c0_208 = arith.constant 0 : index
    %626 = vector.load %arg14[%625, %c0_207, %c0_208] : memref<8x8x128xbf16, #tpu.memory_space<vmem>>, vector<1x8x128xbf16>
    %627 = vector.shape_cast %626 : vector<1x8x128xbf16> to vector<8x128xbf16>
    %628 = vector.shape_cast %624 : vector<8x128xbf16> to vector<1x8x128xbf16>
    tpu.vector_store %arg14[%625, %c0_207, %c0_208], %628 {strides = array<i32>} : memref<8x8x128xbf16, #tpu.memory_space<vmem>>, vector<1x8x128xbf16>,
    %c4_i32_209 = arith.constant 4 : i32
    %629 = arith.index_cast %c4_i32_209 : i32 to index
    %c0_210 = arith.constant 0 : index
    %c0_211 = arith.constant 0 : index
    %630 = vector.load %arg13[%629, %c0_210, %c0_211] : memref<8x8x512xbf16, #tpu.memory_space<vmem>>, vector<1x8x512xbf16>
    %631 = vector.shape_cast %630 : vector<1x8x512xbf16> to vector<8x512xbf16>
    %632 = arith.extf %631 : vector<8x512xbf16> to vector<8x512xf32>
    %633 = arith.truncf %623 : vector<8x128xf32> to vector<8x128xbf16>
    %cst_212 = arith.constant dense<0.000000e+00> : vector<8x512xf32>
    %634 = tpu.matmul %633, %512, %cst_212 {dimension_numbers = #tpu.dot_dimension_numbers<[1], [0], [0], [1], [0, 0, 1, 1], [], []>} : vector<8x128xbf16>, vector<128x512xbf16>, vector<8x512xf32> -> vector<8x512xf32>
    %635 = arith.addf %632, %634 : vector<8x512xf32>
    %636 = vector.extract_strided_slice %635 {offsets = [0, 0], sizes = [8, 384], strides = [1, 1]} : vector<8x512xf32> to vector<8x384xf32>
    %637 = arith.negf %636 : vector<8x384xf32>
    %638 = math.exp %637 : vector<8x384xf32>
    %cst_213 = arith.constant 1.000000e+00 : f32
    %639 = vector.broadcast %cst_213 : f32 to vector<8x384xf32>
    %640 = arith.addf %639, %638 : vector<8x384xf32>
    %641 = arith.divf %639, %640 : vector<8x384xf32>
    %642 = vector.extract_strided_slice %641 {offsets = [0, 0], sizes = [8, 128], strides = [1, 1]} : vector<8x384xf32> to vector<8x128xf32>
    %643 = vector.extract_strided_slice %641 {offsets = [0, 128], sizes = [8, 128], strides = [1, 1]} : vector<8x384xf32> to vector<8x128xf32>
    %644 = vector.extract_strided_slice %641 {offsets = [0, 256], sizes = [8, 128], strides = [1, 1]} : vector<8x384xf32> to vector<8x128xf32>
    %645 = vector.extract_strided_slice %635 {offsets = [0, 384], sizes = [8, 128], strides = [1, 1]} : vector<8x512xf32> to vector<8x128xf32>
    %646 = math.tanh %645 : vector<8x128xf32>
    %647 = arith.mulf %643, %621 : vector<8x128xf32>
    %648 = arith.mulf %642, %646 : vector<8x128xf32>
    %649 = arith.addf %647, %648 : vector<8x128xf32>
    %650 = math.tanh %649 : vector<8x128xf32>
    %651 = arith.mulf %644, %650 : vector<8x128xf32>
    %652 = arith.truncf %651 : vector<8x128xf32> to vector<8x128xbf16>
    %653 = arith.index_cast %c4_i32_209 : i32 to index
    %c0_214 = arith.constant 0 : index
    %c0_215 = arith.constant 0 : index
    %654 = vector.load %arg14[%653, %c0_214, %c0_215] : memref<8x8x128xbf16, #tpu.memory_space<vmem>>, vector<1x8x128xbf16>
    %655 = vector.shape_cast %654 : vector<1x8x128xbf16> to vector<8x128xbf16>
    %656 = vector.shape_cast %652 : vector<8x128xbf16> to vector<1x8x128xbf16>
    tpu.vector_store %arg14[%653, %c0_214, %c0_215], %656 {strides = array<i32>} : memref<8x8x128xbf16, #tpu.memory_space<vmem>>, vector<1x8x128xbf16>,
    %c5_i32_216 = arith.constant 5 : i32
    %657 = arith.index_cast %c5_i32_216 : i32 to index
    %c0_217 = arith.constant 0 : index
    %c0_218 = arith.constant 0 : index
    %658 = vector.load %arg13[%657, %c0_217, %c0_218] : memref<8x8x512xbf16, #tpu.memory_space<vmem>>, vector<1x8x512xbf16>
    %659 = vector.shape_cast %658 : vector<1x8x512xbf16> to vector<8x512xbf16>
    %660 = arith.extf %659 : vector<8x512xbf16> to vector<8x512xf32>
    %661 = arith.truncf %651 : vector<8x128xf32> to vector<8x128xbf16>
    %cst_219 = arith.constant dense<0.000000e+00> : vector<8x512xf32>
    %662 = tpu.matmul %661, %512, %cst_219 {dimension_numbers = #tpu.dot_dimension_numbers<[1], [0], [0], [1], [0, 0, 1, 1], [], []>} : vector<8x128xbf16>, vector<128x512xbf16>, vector<8x512xf32> -> vector<8x512xf32>
    %663 = arith.addf %660, %662 : vector<8x512xf32>
    %664 = vector.extract_strided_slice %663 {offsets = [0, 0], sizes = [8, 384], strides = [1, 1]} : vector<8x512xf32> to vector<8x384xf32>
    %665 = arith.negf %664 : vector<8x384xf32>
    %666 = math.exp %665 : vector<8x384xf32>
    %cst_220 = arith.constant 1.000000e+00 : f32
    %667 = vector.broadcast %cst_220 : f32 to vector<8x384xf32>
    %668 = arith.addf %667, %666 : vector<8x384xf32>
    %669 = arith.divf %667, %668 : vector<8x384xf32>
    %670 = vector.extract_strided_slice %669 {offsets = [0, 0], sizes = [8, 128], strides = [1, 1]} : vector<8x384xf32> to vector<8x128xf32>
    %671 = vector.extract_strided_slice %669 {offsets = [0, 128], sizes = [8, 128], strides = [1, 1]} : vector<8x384xf32> to vector<8x128xf32>
    %672 = vector.extract_strided_slice %669 {offsets = [0, 256], sizes = [8, 128], strides = [1, 1]} : vector<8x384xf32> to vector<8x128xf32>
    %673 = vector.extract_strided_slice %663 {offsets = [0, 384], sizes = [8, 128], strides = [1, 1]} : vector<8x512xf32> to vector<8x128xf32>
    %674 = math.tanh %673 : vector<8x128xf32>
    %675 = arith.mulf %671, %649 : vector<8x128xf32>
    %676 = arith.mulf %670, %674 : vector<8x128xf32>
    %677 = arith.addf %675, %676 : vector<8x128xf32>
    %678 = math.tanh %677 : vector<8x128xf32>
    %679 = arith.mulf %672, %678 : vector<8x128xf32>
    %680 = arith.truncf %679 : vector<8x128xf32> to vector<8x128xbf16>
    %681 = arith.index_cast %c5_i32_216 : i32 to index
    %c0_221 = arith.constant 0 : index
    %c0_222 = arith.constant 0 : index
    %682 = vector.load %arg14[%681, %c0_221, %c0_222] : memref<8x8x128xbf16, #tpu.memory_space<vmem>>, vector<1x8x128xbf16>
    %683 = vector.shape_cast %682 : vector<1x8x128xbf16> to vector<8x128xbf16>
    %684 = vector.shape_cast %680 : vector<8x128xbf16> to vector<1x8x128xbf16>
    tpu.vector_store %arg14[%681, %c0_221, %c0_222], %684 {strides = array<i32>} : memref<8x8x128xbf16, #tpu.memory_space<vmem>>, vector<1x8x128xbf16>,
    %c6_i32_223 = arith.constant 6 : i32
    %685 = arith.index_cast %c6_i32_223 : i32 to index
    %c0_224 = arith.constant 0 : index
    %c0_225 = arith.constant 0 : index
    %686 = vector.load %arg13[%685, %c0_224, %c0_225] : memref<8x8x512xbf16, #tpu.memory_space<vmem>>, vector<1x8x512xbf16>
    %687 = vector.shape_cast %686 : vector<1x8x512xbf16> to vector<8x512xbf16>
    %688 = arith.extf %687 : vector<8x512xbf16> to vector<8x512xf32>
    %689 = arith.truncf %679 : vector<8x128xf32> to vector<8x128xbf16>
    %cst_226 = arith.constant dense<0.000000e+00> : vector<8x512xf32>
    %690 = tpu.matmul %689, %512, %cst_226 {dimension_numbers = #tpu.dot_dimension_numbers<[1], [0], [0], [1], [0, 0, 1, 1], [], []>} : vector<8x128xbf16>, vector<128x512xbf16>, vector<8x512xf32> -> vector<8x512xf32>
    %691 = arith.addf %688, %690 : vector<8x512xf32>
    %692 = vector.extract_strided_slice %691 {offsets = [0, 0], sizes = [8, 384], strides = [1, 1]} : vector<8x512xf32> to vector<8x384xf32>
    %693 = arith.negf %692 : vector<8x384xf32>
    %694 = math.exp %693 : vector<8x384xf32>
    %cst_227 = arith.constant 1.000000e+00 : f32
    %695 = vector.broadcast %cst_227 : f32 to vector<8x384xf32>
    %696 = arith.addf %695, %694 : vector<8x384xf32>
    %697 = arith.divf %695, %696 : vector<8x384xf32>
    %698 = vector.extract_strided_slice %697 {offsets = [0, 0], sizes = [8, 128], strides = [1, 1]} : vector<8x384xf32> to vector<8x128xf32>
    %699 = vector.extract_strided_slice %697 {offsets = [0, 128], sizes = [8, 128], strides = [1, 1]} : vector<8x384xf32> to vector<8x128xf32>
    %700 = vector.extract_strided_slice %697 {offsets = [0, 256], sizes = [8, 128], strides = [1, 1]} : vector<8x384xf32> to vector<8x128xf32>
    %701 = vector.extract_strided_slice %691 {offsets = [0, 384], sizes = [8, 128], strides = [1, 1]} : vector<8x512xf32> to vector<8x128xf32>
    %702 = math.tanh %701 : vector<8x128xf32>
    %703 = arith.mulf %699, %677 : vector<8x128xf32>
    %704 = arith.mulf %698, %702 : vector<8x128xf32>
    %705 = arith.addf %703, %704 : vector<8x128xf32>
    %706 = math.tanh %705 : vector<8x128xf32>
    %707 = arith.mulf %700, %706 : vector<8x128xf32>
    %708 = arith.truncf %707 : vector<8x128xf32> to vector<8x128xbf16>
    %709 = arith.index_cast %c6_i32_223 : i32 to index
    %c0_228 = arith.constant 0 : index
    %c0_229 = arith.constant 0 : index
    %710 = vector.load %arg14[%709, %c0_228, %c0_229] : memref<8x8x128xbf16, #tpu.memory_space<vmem>>, vector<1x8x128xbf16>
    %711 = vector.shape_cast %710 : vector<1x8x128xbf16> to vector<8x128xbf16>
    %712 = vector.shape_cast %708 : vector<8x128xbf16> to vector<1x8x128xbf16>
    tpu.vector_store %arg14[%709, %c0_228, %c0_229], %712 {strides = array<i32>} : memref<8x8x128xbf16, #tpu.memory_space<vmem>>, vector<1x8x128xbf16>,
    %c7_i32_230 = arith.constant 7 : i32
    %713 = arith.index_cast %c7_i32_230 : i32 to index
    %c0_231 = arith.constant 0 : index
    %c0_232 = arith.constant 0 : index
    %714 = vector.load %arg13[%713, %c0_231, %c0_232] : memref<8x8x512xbf16, #tpu.memory_space<vmem>>, vector<1x8x512xbf16>
    %715 = vector.shape_cast %714 : vector<1x8x512xbf16> to vector<8x512xbf16>
    %716 = arith.extf %715 : vector<8x512xbf16> to vector<8x512xf32>
    %717 = arith.truncf %707 : vector<8x128xf32> to vector<8x128xbf16>
    %cst_233 = arith.constant dense<0.000000e+00> : vector<8x512xf32>
    %718 = tpu.matmul %717, %512, %cst_233 {dimension_numbers = #tpu.dot_dimension_numbers<[1], [0], [0], [1], [0, 0, 1, 1], [], []>} : vector<8x128xbf16>, vector<128x512xbf16>, vector<8x512xf32> -> vector<8x512xf32>
    %719 = arith.addf %716, %718 : vector<8x512xf32>
    %720 = vector.extract_strided_slice %719 {offsets = [0, 0], sizes = [8, 384], strides = [1, 1]} : vector<8x512xf32> to vector<8x384xf32>
    %721 = arith.negf %720 : vector<8x384xf32>
    %722 = math.exp %721 : vector<8x384xf32>
    %cst_234 = arith.constant 1.000000e+00 : f32
    %723 = vector.broadcast %cst_234 : f32 to vector<8x384xf32>
    %724 = arith.addf %723, %722 : vector<8x384xf32>
    %725 = arith.divf %723, %724 : vector<8x384xf32>
    %726 = vector.extract_strided_slice %725 {offsets = [0, 0], sizes = [8, 128], strides = [1, 1]} : vector<8x384xf32> to vector<8x128xf32>
    %727 = vector.extract_strided_slice %725 {offsets = [0, 128], sizes = [8, 128], strides = [1, 1]} : vector<8x384xf32> to vector<8x128xf32>
    %728 = vector.extract_strided_slice %725 {offsets = [0, 256], sizes = [8, 128], strides = [1, 1]} : vector<8x384xf32> to vector<8x128xf32>
    %729 = vector.extract_strided_slice %719 {offsets = [0, 384], sizes = [8, 128], strides = [1, 1]} : vector<8x512xf32> to vector<8x128xf32>
    %730 = math.tanh %729 : vector<8x128xf32>
    %731 = arith.mulf %727, %705 : vector<8x128xf32>
    %732 = arith.mulf %726, %730 : vector<8x128xf32>
    %733 = arith.addf %731, %732 : vector<8x128xf32>
    %734 = math.tanh %733 : vector<8x128xf32>
    %735 = arith.mulf %728, %734 : vector<8x128xf32>
    %736 = arith.truncf %735 : vector<8x128xf32> to vector<8x128xbf16>
    %737 = arith.index_cast %c7_i32_230 : i32 to index
    %c0_235 = arith.constant 0 : index
    %c0_236 = arith.constant 0 : index
    %738 = vector.load %arg14[%737, %c0_235, %c0_236] : memref<8x8x128xbf16, #tpu.memory_space<vmem>>, vector<1x8x128xbf16>
    %739 = vector.shape_cast %738 : vector<1x8x128xbf16> to vector<8x128xbf16>
    %740 = vector.shape_cast %736 : vector<8x128xbf16> to vector<1x8x128xbf16>
    tpu.vector_store %arg14[%737, %c0_235, %c0_236], %740 {strides = array<i32>} : memref<8x8x128xbf16, #tpu.memory_space<vmem>>, vector<1x8x128xbf16>,
    %c8_i32_237 = arith.constant 8 : i32
    %c2_238 = arith.constant 2 : index
    %c0_239 = arith.constant 0 : index
    %c0_240 = arith.constant 0 : index
    %741 = vector.load %arg11[%c2_238, %c0_239, %c0_240] : memref<3x8x128xf32, #tpu.memory_space<vmem>>, vector<1x8x128xf32>
    %742 = vector.shape_cast %741 : vector<1x8x128xf32> to vector<8x128xf32>
    %743 = vector.shape_cast %735 : vector<8x128xf32> to vector<1x8x128xf32>
    tpu.vector_store %arg11[%c2_238, %c0_239, %c0_240], %743 {strides = array<i32>} : memref<3x8x128xf32, #tpu.memory_space<vmem>>, vector<1x8x128xf32>,
    %c2_241 = arith.constant 2 : index
    %c0_242 = arith.constant 0 : index
    %c0_243 = arith.constant 0 : index
    %744 = vector.load %arg12[%c2_241, %c0_242, %c0_243] : memref<3x8x128xf32, #tpu.memory_space<vmem>>, vector<1x8x128xf32>
    %745 = vector.shape_cast %744 : vector<1x8x128xf32> to vector<8x128xf32>
    %746 = vector.shape_cast %733 : vector<8x128xf32> to vector<1x8x128xf32>
    tpu.vector_store %arg12[%c2_241, %c0_242, %c0_243], %746 {strides = array<i32>} : memref<3x8x128xf32, #tpu.memory_space<vmem>>, vector<1x8x128xf32>,
    %c0_244 = arith.constant 0 : index
    %c0_245 = arith.constant 0 : index
    %c0_246 = arith.constant 0 : index
    %747 = vector.load %arg14[%c0_244, %c0_245, %c0_246] : memref<8x8x128xbf16, #tpu.memory_space<vmem>>, vector<8x8x128xbf16>
    %748 = arith.extf %747 : vector<8x8x128xbf16> to vector<8x8x128xf32>
    %749 = tpu.transpose %748, [1, 0, 2] : vector<8x8x128xf32> -> vector<8x8x128xf32>
    %750 = arith.truncf %749 : vector<8x8x128xf32> to vector<8x8x128xbf16>
    %c0_247 = arith.constant 0 : index
    %c0_248 = arith.constant 0 : index
    %c0_249 = arith.constant 0 : index
    %751 = vector.load %arg8[%c0_247, %c0_248, %c0_249] : memref<8x8x128xbf16, #tpu.memory_space<vmem>>, vector<8x8x128xbf16>
    tpu.vector_store %arg8[%c0_247, %c0_248, %c0_249], %750 {strides = array<i32>} : memref<8x8x128xbf16, #tpu.memory_space<vmem>>, vector<8x8x128xbf16>,
    %c0_i32_250 = arith.constant 0 : i32
    %752 = arith.cmpi eq, %arg1, %c0_i32_250 : i32
    %753 = arith.extui %752 : i1 to i32
    %c0_i32_251 = arith.constant 0 : i32
    %754 = arith.cmpi ne, %753, %c0_i32_251 : i32
    scf.if %754 {
      %c0_252 = arith.constant 0 : index
      %c0_253 = arith.constant 0 : index
      %c0_254 = arith.constant 0 : index
      %755 = vector.load %arg11[%c0_252, %c0_253, %c0_254] : memref<3x8x128xf32, #tpu.memory_space<vmem>>, vector<3x8x128xf32>
      %c0_255 = arith.constant 0 : index
      %c0_256 = arith.constant 0 : index
      %c0_257 = arith.constant 0 : index
      %756 = vector.load %arg9[%c0_255, %c0_256, %c0_257] : memref<3x8x128xf32, #tpu.memory_space<vmem>>, vector<3x8x128xf32>
      tpu.vector_store %arg9[%c0_255, %c0_256, %c0_257], %755 {strides = array<i32>} : memref<3x8x128xf32, #tpu.memory_space<vmem>>, vector<3x8x128xf32>,
      %c0_258 = arith.constant 0 : index
      %c0_259 = arith.constant 0 : index
      %c0_260 = arith.constant 0 : index
      %757 = vector.load %arg12[%c0_258, %c0_259, %c0_260] : memref<3x8x128xf32, #tpu.memory_space<vmem>>, vector<3x8x128xf32>
      %c0_261 = arith.constant 0 : index
      %c0_262 = arith.constant 0 : index
      %c0_263 = arith.constant 0 : index
      %758 = vector.load %arg10[%c0_261, %c0_262, %c0_263] : memref<3x8x128xf32, #tpu.memory_space<vmem>>, vector<3x8x128xf32>
      tpu.vector_store %arg10[%c0_261, %c0_262, %c0_263], %757 {strides = array<i32>} : memref<3x8x128xf32, #tpu.memory_space<vmem>>, vector<3x8x128xf32>,
    } else {
    }
    return
  }
  func.func @transform_0(%arg0: i32, %arg1: i32) -> (i32, i32, i32) {
    %c0_i32 = arith.constant 0 : i32
    %c0_i32_0 = arith.constant 0 : i32
    return %arg1, %arg0, %c0_i32 : i32, i32, i32
  }
  func.func @transform_1(%arg0: i32, %arg1: i32) -> (i32, i32, i32) {
    %c0_i32 = arith.constant 0 : i32
    %c0_i32_0 = arith.constant 0 : i32
    %c0_i32_1 = arith.constant 0 : i32
    return %c0_i32, %arg0, %c0_i32_0 : i32, i32, i32
  }
  func.func @transform_2(%arg0: i32, %arg1: i32) -> (i32, i32, i32) {
    %c0_i32 = arith.constant 0 : i32
    %c0_i32_0 = arith.constant 0 : i32
    %c0_i32_1 = arith.constant 0 : i32
    return %c0_i32, %arg0, %c0_i32_0 : i32, i32, i32
  }
  func.func @transform_3(%arg0: i32, %arg1: i32) -> (i32, i32, i32) {
    %c0_i32 = arith.constant 0 : i32
    %c0_i32_0 = arith.constant 0 : i32
    %c0_i32_1 = arith.constant 0 : i32
    %c0_i32_2 = arith.constant 0 : i32
    return %c0_i32, %c0_i32_0, %c0_i32_1 : i32, i32, i32
  }
  func.func @transform_4(%arg0: i32, %arg1: i32) -> (i32, i32, i32) {
    %c0_i32 = arith.constant 0 : i32
    %c0_i32_0 = arith.constant 0 : i32
    %c0_i32_1 = arith.constant 0 : i32
    %c0_i32_2 = arith.constant 0 : i32
    return %c0_i32, %c0_i32_0, %c0_i32_1 : i32, i32, i32
  }
  func.func @transform_5(%arg0: i32, %arg1: i32) -> (i32, i32, i32) {
    %c0_i32 = arith.constant 0 : i32
    %c0_i32_0 = arith.constant 0 : i32
    %c0_i32_1 = arith.constant 0 : i32
    %c0_i32_2 = arith.constant 0 : i32
    return %c0_i32, %c0_i32_0, %c0_i32_1 : i32, i32, i32
  }
  func.func @transform_6(%arg0: i32, %arg1: i32) -> (i32, i32, i32) {
    %c0_i32 = arith.constant 0 : i32
    %c0_i32_0 = arith.constant 0 : i32
    return %arg0, %arg1, %c0_i32 : i32, i32, i32
  }
  func.func @transform_7(%arg0: i32, %arg1: i32) -> (i32, i32, i32) {
    %c0_i32 = arith.constant 0 : i32
    %c0_i32_0 = arith.constant 0 : i32
    %c0_i32_1 = arith.constant 0 : i32
    return %c0_i32, %arg0, %c0_i32_0 : i32, i32, i32
  }
  func.func @transform_8(%arg0: i32, %arg1: i32) -> (i32, i32, i32) {
    %c0_i32 = arith.constant 0 : i32
    %c0_i32_0 = arith.constant 0 : i32
    %c0_i32_1 = arith.constant 0 : i32
    return %c0_i32, %arg0, %c0_i32_0 : i32, i32, i32
  }
}

module attributes {stable_mosaic.version = 11 : i64} {
  func.func @_fc_kernel(%arg0: i32, %arg1: i32, %arg2: i32, %arg3: memref<1x8x128xbf16, #tpu.memory_space<vmem>>, %arg4: memref<128x256xbf16, #tpu.memory_space<vmem>>, %arg5: memref<1x256xf32, #tpu.memory_space<vmem>>, %arg6: memref<1x8x256xf32, #tpu.memory_space<vmem>>) attributes {dimension_semantics = [#tpu.dimension_semantics<parallel>, #tpu.dimension_semantics<parallel>, #tpu.dimension_semantics<parallel>], iteration_bounds = array<i64: 2, 1, 1>, scalar_prefetch = 0 : i64, scratch_operands = 0 : i64, tpu.core_type = #tpu.core_type<tc>, window_params = [{transform_indices = @transform_0, window_bounds = array<i64: 1, 8, 128>}, {transform_indices = @transform_1, window_bounds = array<i64: 128, 256>}, {transform_indices = @transform_2, window_bounds = array<i64: 1, 256>}, {transform_indices = @transform_3, window_bounds = array<i64: 1, 8, 256>}]} {
    %c0 = arith.constant 0 : index
    %c0_0 = arith.constant 0 : index
    %c0_1 = arith.constant 0 : index
    %0 = vector.load %arg3[%c0, %c0_0, %c0_1] : memref<1x8x128xbf16, #tpu.memory_space<vmem>>, vector<1x8x128xbf16>
    %1 = vector.shape_cast %0 : vector<1x8x128xbf16> to vector<8x128xbf16>
    %c0_2 = arith.constant 0 : index
    %c0_3 = arith.constant 0 : index
    %2 = vector.load %arg4[%c0_2, %c0_3] : memref<128x256xbf16, #tpu.memory_space<vmem>>, vector<128x256xbf16>
    %cst = arith.constant dense<0.000000e+00> : vector<8x256xf32>
    %3 = tpu.matmul %1, %2, %cst {dimension_numbers = #tpu.dot_dimension_numbers<[1], [0], [0], [1], [0, 0, 1, 1], [], []>} : vector<8x128xbf16>, vector<128x256xbf16>, vector<8x256xf32> -> vector<8x256xf32>
    %c0_4 = arith.constant 0 : index
    %c0_5 = arith.constant 0 : index
    %4 = vector.load %arg5[%c0_4, %c0_5] : memref<1x256xf32, #tpu.memory_space<vmem>>, vector<1x256xf32>
    %5 = vector.broadcast %4 : vector<1x256xf32> to vector<8x256xf32>
    %6 = arith.addf %3, %5 : vector<8x256xf32>
    %c0_6 = arith.constant 0 : index
    %c0_7 = arith.constant 0 : index
    %c0_8 = arith.constant 0 : index
    %7 = vector.load %arg6[%c0_6, %c0_7, %c0_8] : memref<1x8x256xf32, #tpu.memory_space<vmem>>, vector<1x8x256xf32>
    %8 = vector.shape_cast %7 : vector<1x8x256xf32> to vector<8x256xf32>
    %9 = vector.shape_cast %6 : vector<8x256xf32> to vector<1x8x256xf32>
    tpu.vector_store %arg6[%c0_6, %c0_7, %c0_8], %9 {strides = array<i32>} : memref<1x8x256xf32, #tpu.memory_space<vmem>>, vector<1x8x256xf32>,
    return
  }
  func.func @transform_0(%arg0: i32, %arg1: i32, %arg2: i32) -> (i32, i32, i32) {
    %c0_i32 = arith.constant 0 : i32
    %c0_i32_0 = arith.constant 0 : i32
    return %arg0, %arg1, %c0_i32 : i32, i32, i32
  }
  func.func @transform_1(%arg0: i32, %arg1: i32, %arg2: i32) -> (i32, i32) {
    %c0_i32 = arith.constant 0 : i32
    %c0_i32_0 = arith.constant 0 : i32
    return %c0_i32, %arg2 : i32, i32
  }
  func.func @transform_2(%arg0: i32, %arg1: i32, %arg2: i32) -> (i32, i32) {
    %c0_i32 = arith.constant 0 : i32
    %c0_i32_0 = arith.constant 0 : i32
    return %c0_i32, %arg2 : i32, i32
  }
  func.func @transform_3(%arg0: i32, %arg1: i32, %arg2: i32) -> (i32, i32, i32) {
    %c0_i32 = arith.constant 0 : i32
    return %arg0, %arg1, %arg2 : i32, i32, i32
  }
}

</mosaic_0001>

<llo_original>
// kernel: word_lstm_forward.3
$region0: #{word_lstm_forward.3}
  #allocation0 [shape = 'u32[]', space=smem, size = 0x4, offset = 0x4, fixed_abs, tag = 'smem constant byte address 0x4 - core index']
  #allocation1 [shape = 'u32[72,128]{1,0:T(1,128)}', space=vmem, size = 0x9000, scoped, tag = 'internal scratch']
  %s0 = inlined_call_operand.vmem [shape: bf16[8,8,128], index: 0, kind: input, shape index: {}]
  %s1 = inlined_call_operand.vmem [shape: bf16[128,256], index: 1, kind: input, shape index: {}]
  %s2 = inlined_call_operand.vmem [shape: f32[1,256], index: 2, kind: input, shape index: {}]
  %s3 = inlined_call_operand.hbm [shape: f32[2,8,256], index: 3, kind: output, shape index: {}]
  %s4 = sld [smem:[#allocation0]]
  $region45: #{word_lstm_forward.3} parent=0
    _
  %s6 = ssub.s32 1, %s4
  %s7 = scalar_select 0, %s6, %s4
  $region1: #{word_lstm_forward.3} parent=0
    #allocation2 [shape = 'u8[16384]{0}', space=vmem, size = 0x4000, scoped, tag = 'output window, operand 0']
    #allocation3 [shape = 's32[2]{0}', space=sflag, size = 0x8, scoped, tag = 'scoped memory for word_lstm_forward.3']
    %8 = vsyncpa [#allocation3], 0
    %s9 = scalar_lea.sflag [#allocation3], 1
    %10 = vsyncpa %s9, 0
    loop: start=0, step=1, limit=4
    $region2: #{word_lstm_forward.3} parent=1 // loop_pre_header
      _
    $region3: #{word_lstm_forward.3} parent=1 // loop_header
      %s12 = sphi 0, %s16
      %p13 = scmp.ge.s32.totalorder %s12, 4
      %s19 = sphi 0, %s38
      %s20 = sphi 0, %s34
      %s21 = sphi 0, %s30
      %s22 = sphi 0, %s19
      %s23 = sphi 0, %s20
      %s24 = sphi 0, %s21
      %s25 = sphi 0, %s22
      %s26 = sphi 0, %s23
      %s27 = sphi 0, %s24
      %s43 = sphi 0, %s45
      %s46 = sphi 0, %s43
      %s47 = sphi 0, %s46
      %s63 = sphi 0, %s47
      %s69 = sphi 0, %s71
      %s72 = sphi 0, %s69
      %s73 = sphi 0, %s72
      %s89 = sphi 0, %s73
      %s95 = sphi 0, %s97
      %s98 = sphi 0, %s95
      %s99 = sphi 0, %s98
      %s115 = sphi 0, %s99
      %s125 = sphi 0, %s127
      %s128 = sphi 0, %s125
      %s129 = sphi 0, %s128
      %s145 = sphi 0, %s129
    $region4: #{word_lstm_forward.3} parent=1 // loop_header_branch
      %15 = sbr.rel (%p13) target = $region8
    $region5: #{word_lstm_forward.3} parent=1 // loop_body
      %s17 = ssub.s32 %s12, 1
      %s18 = ssub.s32 %s12, 2
      %s28 = sadd.s32 1, %s21
      %p29 = scmp.ge.s32.totalorder %s28, 1
      %s30 = scalar_select %p29, 0, %s28
      %s31 = sadd.s32 1, %s20
      %s32 = scalar_select %p29, %s31, %s20
      %p33 = scmp.ge.s32.totalorder %s32, 1
      %s34 = scalar_select %p33, 0, %s32
      %s35 = sadd.s32 1, %s19
      %s36 = scalar_select %p33, %s35, %s19
      %p37 = scmp.ge.s32.totalorder %s36, 2
      %s38 = scalar_select %p37, 0, %s36
      %s39 = ssub.s32 %s19, %s38
      %s40 = ssub.s32 %s20, %s34
      %s41 = sor.u32 %s39, %s40
      %p42 = scmp.eq.s32.totalorder %s41, 0
      %s44 = sadd.s32 %s43, 1
      %s45 = scalar_select %p42, %s43, %s44
      %p48 = pneg %p42
      %p49 = scmp.eq.s32.totalorder %s12, 1
      %p50 = por %p48, %p49
      %p51 = scmp.ne.s32.totalorder %s43, %s46
      %p52 = scmp.eq.s32.totalorder %s12, 0
      %p53 = por %p51, %p52
      %p54 = scmp.ne.s32.totalorder %s43, %s46
      %p55 = scmp.eq.s32.totalorder %s17, 1
      %p56 = por %p54, %p55
      %p57 = scmp.ne.s32.totalorder %s46, %s47
      %p58 = scmp.eq.s32.totalorder %s17, 0
      %p59 = por %p57, %p58
      %p60 = scmp.ne.s32.totalorder %s46, %s47
      %p61 = scmp.eq.s32.totalorder %s18, 1
      %p62 = por %p60, %p61
      %p64 = scmp.ne.s32.totalorder %s47, %s63
      %p65 = scmp.eq.s32.totalorder %s18, 0
      %p66 = por %p64, %p65
      %s67 = ssub.s32 %s21, %s30
      %p68 = scmp.eq.s32.totalorder %s67, 0
      %s70 = sadd.s32 %s69, 1
      %s71 = scalar_select %p68, %s69, %s70
      %p74 = pneg %p68
      %p75 = scmp.eq.s32.totalorder %s12, 1
      %p76 = por %p74, %p75
      %p77 = scmp.ne.s32.totalorder %s69, %s72
      %p78 = scmp.eq.s32.totalorder %s12, 0
      %p79 = por %p77, %p78
      %p80 = scmp.ne.s32.totalorder %s69, %s72
      %p81 = scmp.eq.s32.totalorder %s17, 1
      %p82 = por %p80, %p81
      %p83 = scmp.ne.s32.totalorder %s72, %s73
      %p84 = scmp.eq.s32.totalorder %s17, 0
      %p85 = por %p83, %p84
      %p86 = scmp.ne.s32.totalorder %s72, %s73
      %p87 = scmp.eq.s32.totalorder %s18, 1
      %p88 = por %p86, %p87
      %p90 = scmp.ne.s32.totalorder %s73, %s89
      %p91 = scmp.eq.s32.totalorder %s18, 0
      %p92 = por %p90, %p91
      %s93 = ssub.s32 %s21, %s30
      %p94 = scmp.eq.s32.totalorder %s93, 0
      %s96 = sadd.s32 %s95, 1
      %s97 = scalar_select %p94, %s95, %s96
      %p100 = pneg %p94
      %p101 = scmp.eq.s32.totalorder %s12, 1
      %p102 = por %p100, %p101
      %p103 = scmp.ne.s32.totalorder %s95, %s98
      %p104 = scmp.eq.s32.totalorder %s12, 0
      %p105 = por %p103, %p104
      %p106 = scmp.ne.s32.totalorder %s95, %s98
      %p107 = scmp.eq.s32.totalorder %s17, 1
      %p108 = por %p106, %p107
      %p109 = scmp.ne.s32.totalorder %s98, %s99
      %p110 = scmp.eq.s32.totalorder %s17, 0
      %p111 = por %p109, %p110
      %p112 = scmp.ne.s32.totalorder %s98, %s99
      %p113 = scmp.eq.s32.totalorder %s18, 1
      %p114 = por %p112, %p113
      %p116 = scmp.ne.s32.totalorder %s99, %s115
      %p117 = scmp.eq.s32.totalorder %s18, 0
      %p118 = por %p116, %p117
      %s119 = ssub.s32 %s19, %s38
      %s120 = ssub.s32 %s20, %s34
      %s121 = sor.u32 %s119, %s120
      %s122 = ssub.s32 %s21, %s30
      %s123 = sor.u32 %s121, %s122
      %p124 = scmp.eq.s32.totalorder %s123, 0
      %s126 = sadd.s32 %s125, 1
      %s127 = scalar_select %p124, %s125, %s126
      %p130 = pneg %p124
      %p131 = scmp.eq.s32.totalorder %s12, 1
      %p132 = por %p130, %p131
      %p133 = scmp.ne.s32.totalorder %s125, %s128
      %p134 = scmp.eq.s32.totalorder %s12, 0
      %p135 = por %p133, %p134
      %p136 = scmp.ne.s32.totalorder %s125, %s128
      %p137 = scmp.eq.s32.totalorder %s17, 1
      %p138 = por %p136, %p137
      %p139 = scmp.ne.s32.totalorder %s128, %s129
      %p140 = scmp.eq.s32.totalorder %s17, 0
      %p141 = por %p139, %p140
      %p142 = scmp.ne.s32.totalorder %s128, %s129
      %p143 = scmp.eq.s32.totalorder %s18, 1
      %p144 = por %p142, %p143
      %p146 = scmp.ne.s32.totalorder %s129, %s145
      %p147 = scmp.eq.s32.totalorder %s18, 0
      %p148 = por %p146, %p147
      %p149 = scmp.le.s32.totalorder 1, %s12
      %p150 = scmp.lt.s32.totalorder %s12, 3
      %p151 = pnand %p149, %p150
      %p152 = pneg %p151
      // Predicated region
      $region9: #{word_lstm_forward.3} parent=5 // pred_check
        _
      $region10: #{word_lstm_forward.3} parent=5 // pred_check_branch
        %154 = sbr.rel (%p151) target = $region12
      $region11: #{word_lstm_forward.3} parent=5 // pred_region
        %s155 = ssub.s32 %s12, 1
        // Predicated region
        $region13: #{word_lstm_forward.3} parent=11 // pred_check
          %p156 = pneg %p85
        $region14: #{word_lstm_forward.3} parent=11 // pred_check_branch
          %158 = sbr.rel (%p156) target = $region16
        $region15: #{word_lstm_forward.3} parent=11 // pred_region
          %s159 = smul.u32 2, %s24
          %p160 = scmp.lt.s32.totalorder %s159, 1
          %s161 = scalar_select %p160, %s159, 1
          %s162 = smul.addr %s161, 4
          %s163 = scalar_lea.vmem %s1, %s162
          %s164 = smul.u32 2, %s24
        $region16: #{word_lstm_forward.3} parent=11 // pred_fallthru
          _
        // Predicated region
        $region17: #{word_lstm_forward.3} parent=11 // pred_check
          %p165 = pneg %p111
        $region18: #{word_lstm_forward.3} parent=11 // pred_check_branch
          %167 = sbr.rel (%p165) target = $region20
        $region19: #{word_lstm_forward.3} parent=11 // pred_region
          %s168 = smul.u32 2, %s24
          %p169 = scmp.lt.s32.totalorder %s168, 1
          %s170 = scalar_select %p169, %s168, 1
          %s171 = scalar_lea.vmem %s2, %s170
          %s172 = smul.u32 2, %s24
        $region20: #{word_lstm_forward.3} parent=11 // pred_fallthru
          _
      $region12: #{word_lstm_forward.3} parent=5 // pred_fallthru
        _
      %p173 = scmp.lt.s32.totalorder %s12, 2
      // Predicated region
      $region21: #{word_lstm_forward.3} parent=5 // pred_check
        %p174 = pneg %p173
      $region22: #{word_lstm_forward.3} parent=5 // pred_check_branch
        %176 = sbr.rel (%p174) target = $region24
      $region23: #{word_lstm_forward.3} parent=5 // pred_region
        // Predicated region
        $region25: #{word_lstm_forward.3} parent=23 // pred_check
          %p177 = pneg %p53
        $region26: #{word_lstm_forward.3} parent=23 // pred_check_branch
          %179 = sbr.rel (%p177) target = $region28
        $region27: #{word_lstm_forward.3} parent=23 // pred_region
          %p180 = scmp.lt.s32.totalorder %s19, 7
          %s181 = scalar_select %p180, %s19, 7
          %p182 = scmp.lt.s32.totalorder %s20, 0
          %s183 = scalar_select %p182, %s20, 0
          %s184 = sadd.s32 %s183, %s181
          %s185 = smul.addr %s184, 4
          %s186 = scalar_lea.vmem %s0, %s185
        $region28: #{word_lstm_forward.3} parent=23 // pred_fallthru
          _
      $region24: #{word_lstm_forward.3} parent=5 // pred_fallthru
        _
      %p187 = scmp.le.s32.totalorder 1, %s12
      %p188 = scmp.lt.s32.totalorder %s12, 3
      %p189 = pnand %p187, %p188
      %p190 = pneg %p189
      // Predicated region
      $region29: #{word_lstm_forward.3} parent=5 // pred_check
        _
      $region30: #{word_lstm_forward.3} parent=5 // pred_check_branch
        %192 = sbr.rel (%p189) target = $region32
      $region31: #{word_lstm_forward.3} parent=5 // pred_region
        %s193 = ssub.s32 %s12, 1
        %p194 = scmp.lt.s32.totalorder %s22, 7
        %s195 = scalar_select %p194, %s22, 7
        %p196 = scmp.lt.s32.totalorder %s23, 0
        %s197 = scalar_select %p196, %s23, 0
        %s198 = sadd.s32 %s197, %s195
        %s199 = smul.addr %s198, 4
        %s200 = scalar_lea.vmem %s0, %s199
        %p201 = pneg %p59
        %p202 = pneg %p56
        %s203 = smul.u32 2, %s24
        %p204 = scmp.lt.s32.totalorder %s203, 1
        %s205 = scalar_select %p204, %s203, 1
        %s206 = smul.addr %s205, 4
        %s207 = scalar_lea.vmem %s1, %s206
        %p208 = pneg %p85
        %p209 = pneg %p82
        %s210 = smul.u32 2, %s24
        %p211 = scmp.lt.s32.totalorder %s210, 1
        %s212 = scalar_select %p211, %s210, 1
        %s213 = scalar_lea.vmem %s2, %s212
        %p214 = pneg %p111
        %p215 = pneg %p108
        %p216 = pneg %p141
        %p217 = pneg %p138
        %s218 = sand.u32 %s128, 1
        %s219 = scalar_lea.sflag [#allocation3], %s218
        %s220 = sand.u32 %s128, 1
        %s221 = smul.addr %s220, 16
        %s222 = scalar_lea.vmem [#allocation2], %s221
        %p223 = scmp.lt.s32.totalorder %s22, 7
        %s224 = scalar_select %p223, %s22, 7
        %p225 = scmp.lt.s32.totalorder %s23, 0
        %s226 = scalar_select %p225, %s23, 0
        %s227 = sadd.s32 %s226, %s224
        %s228 = smul.addr %s227, 4
        %s229 = scalar_lea.vmem %s0, %s228
        %s230 = smul.u32 2, %s24
        %p231 = scmp.lt.s32.totalorder %s230, 1
        %s232 = scalar_select %p231, %s230, 1
        %s233 = smul.addr %s232, 4
        %s234 = scalar_lea.vmem %s1, %s233
        %s235 = smul.u32 2, %s24
        %s236 = smul.u32 2, %s24
        %p237 = scmp.lt.s32.totalorder %s236, 1
        %s238 = scalar_select %p237, %s236, 1
        %s239 = scalar_lea.vmem %s2, %s238
        %s240 = smul.u32 2, %s24
        %s241 = smul.u32 2, %s24
        %v242 = vld [vmem:[%s229] sm:$0xf]
        %v243 = vld [vmem:[%s234] sm:$0xff]
        %v244 = vld [vmem:[%s234 + $0x8] sm:$0xff]
        %v245 = vld [vmem:[%s234 + $0x10] sm:$0xff]
        %v246 = vld [vmem:[%s234 + $0x18] sm:$0xff]
        %v247 = vld [vmem:[%s234 + $0x20] sm:$0xff]
        %v248 = vld [vmem:[%s234 + $0x28] sm:$0xff]
        %v249 = vld [vmem:[%s234 + $0x30] sm:$0xff]
        %v250 = vld [vmem:[%s234 + $0x38] sm:$0xff]
        %v251 = vld [vmem:[%s234 + $0x40] sm:$0xff]
        %v252 = vld [vmem:[%s234 + $0x48] sm:$0xff]
        %v253 = vld [vmem:[%s234 + $0x50] sm:$0xff]
        %v254 = vld [vmem:[%s234 + $0x58] sm:$0xff]
        %v255 = vld [vmem:[%s234 + $0x60] sm:$0xff]
        %v256 = vld [vmem:[%s234 + $0x68] sm:$0xff]
        %v257 = vld [vmem:[%s234 + $0x70] sm:$0xff]
        %v258 = vld [vmem:[%s234 + $0x78] sm:$0xff]
        %v259 = vld [vmem:[%s239] sm:$0x3]
        %v261 = vperm.slane %v259, 0
        %v262 = vperm.slane %v259, 1
        %v281 = vunpack.c.l.b16 %v243
        %v282 = vunpack.c.h.b16 %v243
        %v283 = vunpack.c.l.b16 %v244
        %v284 = vunpack.c.h.b16 %v244
        %v285 = vunpack.c.l.b16 %v245
        %v286 = vunpack.c.h.b16 %v245
        %v287 = vunpack.c.l.b16 %v246
        %v288 = vunpack.c.h.b16 %v246
        %v289 = vunpack.c.l.b16 %v247
        %v290 = vunpack.c.h.b16 %v247
        %v291 = vunpack.c.l.b16 %v248
        %v292 = vunpack.c.h.b16 %v248
        %v293 = vunpack.c.l.b16 %v249
        %v294 = vunpack.c.h.b16 %v249
        %v295 = vunpack.c.l.b16 %v250
        %v296 = vunpack.c.h.b16 %v250
        %v297 = vunpack.c.l.b16 %v251
        %v298 = vunpack.c.h.b16 %v251
        %v299 = vunpack.c.l.b16 %v252
        %v300 = vunpack.c.h.b16 %v252
        %v301 = vunpack.c.l.b16 %v253
        %v302 = vunpack.c.h.b16 %v253
        %v303 = vunpack.c.l.b16 %v254
        %v304 = vunpack.c.h.b16 %v254
        %v305 = vunpack.c.l.b16 %v255
        %v306 = vunpack.c.h.b16 %v255
        %v307 = vunpack.c.l.b16 %v256
        %v308 = vunpack.c.h.b16 %v256
        %v309 = vunpack.c.l.b16 %v257
        %v310 = vunpack.c.h.b16 %v257
        %v311 = vunpack.c.l.b16 %v258
        %v312 = vunpack.c.h.b16 %v258
        %v313 = vpack.c.b16 %v283, %v281
        %v314 = vpack.c.b16 %v284, %v282
        %v315 = vpack.c.b16 %v287, %v285
        %v316 = vpack.c.b16 %v288, %v286
        %v317 = vpack.c.b16 %v291, %v289
        %v318 = vpack.c.b16 %v292, %v290
        %v319 = vpack.c.b16 %v295, %v293
        %v320 = vpack.c.b16 %v296, %v294
        %v321 = vpack.c.b16 %v299, %v297
        %v322 = vpack.c.b16 %v300, %v298
        %v323 = vpack.c.b16 %v303, %v301
        %v324 = vpack.c.b16 %v304, %v302
        %v325 = vpack.c.b16 %v307, %v305
        %v326 = vpack.c.b16 %v308, %v306
        %v327 = vpack.c.b16 %v311, %v309
        %v328 = vpack.c.b16 %v312, %v310
        %345 = vmatpush.bf16.msra.mxu0 %v327
        %346 = vmatpush.bf16.msra.mxu0 %v325
        %347 = vmatpush.bf16.msra.mxu0 %v323
        %348 = vmatpush.bf16.msra.mxu0 %v321
        %349 = vmatpush.bf16.msra.mxu0 %v319
        %350 = vmatpush.bf16.msra.mxu0 %v317
        %351 = vmatpush.bf16.msra.mxu0 %v315
        %352 = vmatpush.bf16.msra.mxu0 %v313
        %353 = vmatmul.bf16.gmra.mxu0 %v242
        %v354 = vpop.f32.mrf.mxu0
        %v355 = vadd.f32 %v261, %v354
        %v356 = vpop.f32.mrf.mxu0
        %357 = vdwg.mxu0
        %358 = vmatpush.bf16.msra.mxu0 %v328
        %359 = vmatpush.bf16.msra.mxu0 %v326
        %360 = vmatpush.bf16.msra.mxu0 %v324
        %361 = vmatpush.bf16.msra.mxu0 %v322
        %362 = vmatpush.bf16.msra.mxu0 %v320
        %363 = vmatpush.bf16.msra.mxu0 %v318
        %364 = vmatpush.bf16.msra.mxu0 %v316
        %365 = vmatpush.bf16.msra.mxu0 %v314
        %366 = vmatmul.bf16.gmra.mxu0 %v242
        %v367 = vpop.f32.mrf.mxu0
        %v368 = vadd.f32 %v262, %v367
        %v369 = vpop.f32.mrf.mxu0
        %370 = vdwg.mxu0
        %371 = vst [vmem:[%s222] sm:$0xff] %v355
        %372 = vst [vmem:[%s222 + $0x8] sm:$0xff] %v368
        %s373 = sand.u32 %s128, 1
        %s374 = scalar_lea.sflag [#allocation3], %s373
        %s375 = sand.u32 %s128, 1
        %s376 = smul.addr %s375, 16
        %s377 = scalar_lea.vmem [#allocation2], %s376
        // Predicated region
        $region33: #{word_lstm_forward.3} parent=31 // pred_check
          %p378 = pneg %p138
        $region34: #{word_lstm_forward.3} parent=31 // pred_check_branch
          %380 = sbr.rel (%p378) target = $region36
        $region35: #{word_lstm_forward.3} parent=31 // pred_region
          %s381 = smul.u32 2, %s24
          %383 = vsyncadd %s374, 0
          %s384 = smul.addr %s23, 2
          %s385 = sadd.s32 %s381, %s384
          %s386 = smul.addr %s22, 2
          %s387 = sadd.s32 %s385, %s386
          %s388 = smul.addr %s387, 8
          %s389 = scalar_lea.hbm %s3, %s388
          %s391 = sshll.u32 %s377, 4
          %s392 = int_to_ptr.vmem [resolvable:$true] %s391
          %s393 = sshll.u32 %s389, 4
          %s394 = int_to_ptr.hbm [resolvable:$true] %s393
          %396 = dma.vmem_to_hbm [thread:$0]  %s392, 256, %s394, %s374
        $region36: #{word_lstm_forward.3} parent=31 // pred_fallthru
          _
      $region32: #{word_lstm_forward.3} parent=5 // pred_fallthru
        _
      %p397 = scmp.le.s32.totalorder 2, %s12
      // Predicated region
      $region37: #{word_lstm_forward.3} parent=5 // pred_check
        %p398 = pneg %p397
      $region38: #{word_lstm_forward.3} parent=5 // pred_check_branch
        %400 = sbr.rel (%p398) target = $region40
      $region39: #{word_lstm_forward.3} parent=5 // pred_region
        %s401 = ssub.s32 %s12, 2
        // Predicated region
        $region41: #{word_lstm_forward.3} parent=39 // pred_check
          %p402 = pneg %p144
        $region42: #{word_lstm_forward.3} parent=39 // pred_check_branch
          %404 = sbr.rel (%p402) target = $region44
        $region43: #{word_lstm_forward.3} parent=39 // pred_region
          %s405 = sand.u32 %s129, 1
          %s406 = scalar_lea.sflag [#allocation3], %s405
          %s407 = sand.u32 %s129, 1
          %s408 = smul.addr %s407, 16
          %s409 = scalar_lea.vmem [#allocation2], %s408
          %411 = dma.done %s406, 256
        $region44: #{word_lstm_forward.3} parent=39 // pred_fallthru
          _
      $region40: #{word_lstm_forward.3} parent=5 // pred_fallthru
        _
    $region6: #{word_lstm_forward.3} parent=1 // loop_footer
      %s16 = sadd.s32 1, %s12
    $region7: #{word_lstm_forward.3} parent=1 // loop_footer_branch
      %11 = sbr.rel target = $region3
    $region8: #{word_lstm_forward.3} parent=1 // loop_exit
      _
    %412 = vsyncpa [#allocation3], 1
    %s413 = scalar_lea.sflag [#allocation3], 1
    %414 = vsyncpa %s413, 1

// kernel: word_lstm_forward.2
$region0: #{word_lstm_forward.2}
  #allocation0 [shape = 'u32[]', space=smem, size = 0x4, offset = 0x4, fixed_abs, tag = 'smem constant byte address 0x4 - core index']
  #allocation1 [shape = 'u32[72,128]{1,0:T(1,128)}', space=vmem, size = 0x9000, scoped, tag = 'internal scratch']
  #allocation2 [shape = 'f32[3,8,128]{2,1,0:T(8,128)}', space=vmem, size = 0x3000, scoped, tag = 'scratch operand']
  #allocation3 [shape = 'f32[3,8,128]{2,1,0:T(8,128)}', space=vmem, size = 0x3000, scoped, tag = 'scratch operand']
  #allocation4 [shape = 'bf16[8,8,512]{2,1,0:T(8,128)(2,1)}', space=vmem, size = 0x10000, scoped, tag = 'scratch operand']
  #allocation5 [shape = 'bf16[8,8,128]{2,1,0:T(8,128)(2,1)}', space=vmem, size = 0x4000, scoped, tag = 'scratch operand']
  %s0 = inlined_call_operand.vmem [shape: bf16[8,8,128], index: 0, kind: input, shape index: {}]
  %s1 = inlined_call_operand.vmem [shape: f32[3,8,128], index: 1, kind: input, shape index: {}]
  %s2 = inlined_call_operand.vmem [shape: f32[3,8,128], index: 2, kind: input, shape index: {}]
  %s3 = inlined_call_operand.hbm [shape: bf16[3,128,512], index: 3, kind: input, shape index: {}]
  %s4 = inlined_call_operand.hbm [shape: bf16[3,128,512], index: 4, kind: input, shape index: {}]
  %s5 = inlined_call_operand.vmem [shape: f32[3,1,512], index: 5, kind: input, shape index: {}]
  %s6 = inlined_call_operand.vmem [shape: bf16[8,8,128], index: 6, kind: output, shape index: {0}]
  %s7 = inlined_call_operand.vmem [shape: f32[3,8,128], index: 7, kind: output, shape index: {1}]
  %s8 = inlined_call_operand.vmem [shape: f32[3,8,128], index: 8, kind: output, shape index: {2}]
  %9 = xla_tuple %s6, %s7, %s8
  %s10 = sld [smem:[#allocation0]]
  $region66: #{word_lstm_forward.2} parent=0
    _
  %s12 = ssub.s32 1, %s10
  %s13 = scalar_select 0, %s12, %s10
  $region1: #{word_lstm_forward.2} parent=0
    #allocation6 [shape = 'u8[393216]{0}', space=vmem, size = 0x60000, scoped, tag = 'input window, operand 3, single buffered']
    #allocation7 [shape = 's32[1]{0}', space=sflag, size = 0x4, scoped, tag = 'scoped memory for word_lstm_forward.2']
    #allocation8 [shape = 'u8[393216]{0}', space=vmem, size = 0x60000, scoped, tag = 'input window, operand 4, single buffered']
    #allocation9 [shape = 's32[1]{0}', space=sflag, size = 0x4, scoped, tag = 'scoped memory for word_lstm_forward.2']
    %14 = vsyncpa [#allocation7], 0
    %15 = vsyncpa [#allocation9], 0
    // Predicated region
    $region2: #{word_lstm_forward.2} parent=1 // pred_check
      _
    $region3: #{word_lstm_forward.2} parent=1 // pred_check_branch
      %17 = sbr.rel (0) target = $region5
    $region4: #{word_lstm_forward.2} parent=1 // pred_region
      _
    $region5: #{word_lstm_forward.2} parent=1 // pred_fallthru
      _
    // Predicated region
    $region6: #{word_lstm_forward.2} parent=1 // pred_check
      _
    $region7: #{word_lstm_forward.2} parent=1 // pred_check_branch
      %19 = sbr.rel (0) target = $region9
    $region8: #{word_lstm_forward.2} parent=1 // pred_region
      _
    $region9: #{word_lstm_forward.2} parent=1 // pred_fallthru
      _
    // Predicated region
    $region10: #{word_lstm_forward.2} parent=1 // pred_check
      _
    $region11: #{word_lstm_forward.2} parent=1 // pred_check_branch
      %21 = sbr.rel (0) target = $region13
    $region12: #{word_lstm_forward.2} parent=1 // pred_region
      _
    $region13: #{word_lstm_forward.2} parent=1 // pred_fallthru
      _
    // Predicated region
    $region14: #{word_lstm_forward.2} parent=1 // pred_check
      _
    $region15: #{word_lstm_forward.2} parent=1 // pred_check_branch
      %23 = sbr.rel (0) target = $region17
    $region16: #{word_lstm_forward.2} parent=1 // pred_region
      %25 = vsyncadd [#allocation7], 0
      %s26 = sshll.u32 %s3, 4
      %s27 = int_to_ptr.hbm [resolvable:$true] %s26
      %s28 = sshll.u32 [#allocation6], 4
      %s29 = int_to_ptr.vmem [resolvable:$true] %s28
      %34 = dma.hbm_to_vmem [thread:$0]  %s27, 12288, %s29, [#allocation7], 256, 256, 16
    $region17: #{word_lstm_forward.2} parent=1 // pred_fallthru
      _
    // Predicated region
    $region18: #{word_lstm_forward.2} parent=1 // pred_check
      _
    $region19: #{word_lstm_forward.2} parent=1 // pred_check_branch
      %36 = sbr.rel (0) target = $region21
    $region20: #{word_lstm_forward.2} parent=1 // pred_region
      %38 = vsyncadd [#allocation9], 0
      %s39 = sshll.u32 %s4, 4
      %s40 = int_to_ptr.hbm [resolvable:$true] %s39
      %s41 = sshll.u32 [#allocation8], 4
      %s42 = int_to_ptr.vmem [resolvable:$true] %s41
      %47 = dma.hbm_to_vmem [thread:$0]  %s40, 12288, %s42, [#allocation9], 256, 256, 16
    $region21: #{word_lstm_forward.2} parent=1 // pred_fallthru
      _
    // Predicated region
    $region22: #{word_lstm_forward.2} parent=1 // pred_check
      _
    $region23: #{word_lstm_forward.2} parent=1 // pred_check_branch
      %49 = sbr.rel (0) target = $region25
    $region24: #{word_lstm_forward.2} parent=1 // pred_region
      _
    $region25: #{word_lstm_forward.2} parent=1 // pred_fallthru
      _
    // Predicated region
    $region26: #{word_lstm_forward.2} parent=1 // pred_check
      _
    $region27: #{word_lstm_forward.2} parent=1 // pred_check_branch
      %51 = sbr.rel (0) target = $region29
    $region28: #{word_lstm_forward.2} parent=1 // pred_region
      %53 = dma.done [#allocation7], 12288
    $region29: #{word_lstm_forward.2} parent=1 // pred_fallthru
      _
    // Predicated region
    $region30: #{word_lstm_forward.2} parent=1 // pred_check
      _
    $region31: #{word_lstm_forward.2} parent=1 // pred_check_branch
      %55 = sbr.rel (0) target = $region33
    $region32: #{word_lstm_forward.2} parent=1 // pred_region
      %57 = dma.done [#allocation9], 12288
    $region33: #{word_lstm_forward.2} parent=1 // pred_fallthru
      _
    %p58 = scmp.eq.s32.totalorder 0, 0
    // Predicated region
    $region34: #{word_lstm_forward.2} parent=1 // pred_check
      %p59 = pneg %p58
    $region35: #{word_lstm_forward.2} parent=1 // pred_check_branch
      %61 = sbr.rel (%p59) target = $region37
    $region36: #{word_lstm_forward.2} parent=1 // pred_region
      %v62 = vld [vmem:[%s1] sm:$0xff]
      %v63 = vld [vmem:[%s1 + $0x8] sm:$0xff]
      %v64 = vld [vmem:[%s1 + $0x10] sm:$0xff]
      %65 = vst [vmem:[#allocation2] sm:$0xff] %v62
      %66 = vst [vmem:[#allocation2 + $0x8] sm:$0xff] %v63
      %67 = vst [vmem:[#allocation2 + $0x10] sm:$0xff] %v64
      %v68 = vld [vmem:[%s2] sm:$0xff]
      %v69 = vld [vmem:[%s2 + $0x8] sm:$0xff]
      %v70 = vld [vmem:[%s2 + $0x10] sm:$0xff]
      %71 = vst [vmem:[#allocation3] sm:$0xff] %v68
      %72 = vst [vmem:[#allocation3 + $0x8] sm:$0xff] %v69
      %73 = vst [vmem:[#allocation3 + $0x10] sm:$0xff] %v70
    $region37: #{word_lstm_forward.2} parent=1 // pred_fallthru
      _
    %v74 = vld [vmem:[%s0] sm:$0xf]
    %v75 = vld [vmem:[%s0 + $0x4] sm:$0xf]
    %v76 = vld [vmem:[%s0 + $0x8] sm:$0xf]
    %v77 = vld [vmem:[%s0 + $0xc] sm:$0xf]
    %v78 = vld [vmem:[%s0 + $0x10] sm:$0xf]
    %v79 = vld [vmem:[%s0 + $0x14] sm:$0xf]
    %v80 = vld [vmem:[%s0 + $0x18] sm:$0xf]
    %v81 = vld [vmem:[%s0 + $0x1c] sm:$0xf]
    %v82 = vld [vmem:[#allocation6] sm:$0xff]
    %v83 = vld [vmem:[#allocation6 + $0x8] sm:$0xff]
    %v84 = vld [vmem:[#allocation6 + $0x10] sm:$0xff]
    %v85 = vld [vmem:[#allocation6 + $0x18] sm:$0xff]
    %v86 = vld [vmem:[#allocation6 + $0x20] sm:$0xff]
    %v87 = vld [vmem:[#allocation6 + $0x28] sm:$0xff]
    %v88 = vld [vmem:[#allocation6 + $0x30] sm:$0xff]
    %v89 = vld [vmem:[#allocation6 + $0x38] sm:$0xff]
    %v90 = vld [vmem:[#allocation6 + $0x40] sm:$0xff]
    %v91 = vld [vmem:[#allocation6 + $0x48] sm:$0xff]
    %v92 = vld [vmem:[#allocation6 + $0x50] sm:$0xff]
    %v93 = vld [vmem:[#allocation6 + $0x58] sm:$0xff]
    %v94 = vld [vmem:[#allocation6 + $0x60] sm:$0xff]
    %v95 = vld [vmem:[#allocation6 + $0x68] sm:$0xff]
    %v96 = vld [vmem:[#allocation6 + $0x70] sm:$0xff]
    %v97 = vld [vmem:[#allocation6 + $0x78] sm:$0xff]
    %v98 = vld [vmem:[#allocation6 + $0x80] sm:$0xff]
    %v99 = vld [vmem:[#allocation6 + $0x88] sm:$0xff]
    %v100 = vld [vmem:[#allocation6 + $0x90] sm:$0xff]
    %v101 = vld [vmem:[#allocation6 + $0x98] sm:$0xff]
    %v102 = vld [vmem:[#allocation6 + $0xa0] sm:$0xff]
    %v103 = vld [vmem:[#allocation6 + $0xa8] sm:$0xff]
    %v104 = vld [vmem:[#allocation6 + $0xb0] sm:$0xff]
    %v105 = vld [vmem:[#allocation6 + $0xb8] sm:$0xff]
    %v106 = vld [vmem:[#allocation6 + $0xc0] sm:$0xff]
    %v107 = vld [vmem:[#allocation6 + $0xc8] sm:$0xff]
    %v108 = vld [vmem:[#allocation6 + $0xd0] sm:$0xff]
    %v109 = vld [vmem:[#allocation6 + $0xd8] sm:$0xff]
    %v110 = vld [vmem:[#allocation6 + $0xe0] sm:$0xff]
    %v111 = vld [vmem:[#allocation6 + $0xe8] sm:$0xff]
    %v112 = vld [vmem:[#allocation6 + $0xf0] sm:$0xff]
    %v113 = vld [vmem:[#allocation6 + $0xf8] sm:$0xff]
    %v114 = vld [vmem:[%s5] sm:$0xf]
    %v116 = vperm.slane %v114, 0
    %v117 = vperm.slane %v114, 1
    %v118 = vperm.slane %v114, 2
    %v119 = vperm.slane %v114, 3
    %v132 = vunpack.c.l.b16 %v74
    %v133 = vunpack.c.l.b16 %v75
    %v134 = vunpack.c.l.b16 %v76
    %v135 = vunpack.c.l.b16 %v77
    %v136 = vunpack.c.l.b16 %v78
    %v137 = vunpack.c.l.b16 %v79
    %v138 = vunpack.c.l.b16 %v80
    %v139 = vunpack.c.l.b16 %v81
    %v140 = vpack.c.b16 %v133, %v132
    %v141 = vpack.c.b16 %v135, %v134
    %v142 = vpack.c.b16 %v137, %v136
    %v143 = vpack.c.b16 %v139, %v138
    %v180 = vunpack.c.l.b16 %v82
    %v181 = vunpack.c.h.b16 %v82
    %v182 = vunpack.c.l.b16 %v83
    %v183 = vunpack.c.h.b16 %v83
    %v184 = vunpack.c.l.b16 %v84
    %v185 = vunpack.c.h.b16 %v84
    %v186 = vunpack.c.l.b16 %v85
    %v187 = vunpack.c.h.b16 %v85
    %v188 = vunpack.c.l.b16 %v86
    %v189 = vunpack.c.h.b16 %v86
    %v190 = vunpack.c.l.b16 %v87
    %v191 = vunpack.c.h.b16 %v87
    %v192 = vunpack.c.l.b16 %v88
    %v193 = vunpack.c.h.b16 %v88
    %v194 = vunpack.c.l.b16 %v89
    %v195 = vunpack.c.h.b16 %v89
    %v196 = vunpack.c.l.b16 %v90
    %v197 = vunpack.c.h.b16 %v90
    %v198 = vunpack.c.l.b16 %v91
    %v199 = vunpack.c.h.b16 %v91
    %v200 = vunpack.c.l.b16 %v92
    %v201 = vunpack.c.h.b16 %v92
    %v202 = vunpack.c.l.b16 %v93
    %v203 = vunpack.c.h.b16 %v93
    %v204 = vunpack.c.l.b16 %v94
    %v205 = vunpack.c.h.b16 %v94
    %v206 = vunpack.c.l.b16 %v95
    %v207 = vunpack.c.h.b16 %v95
    %v208 = vunpack.c.l.b16 %v96
    %v209 = vunpack.c.h.b16 %v96
    %v210 = vunpack.c.l.b16 %v97
    %v211 = vunpack.c.h.b16 %v97
    %v212 = vunpack.c.l.b16 %v98
    %v213 = vunpack.c.h.b16 %v98
    %v214 = vunpack.c.l.b16 %v99
    %v215 = vunpack.c.h.b16 %v99
    %v216 = vunpack.c.l.b16 %v100
    %v217 = vunpack.c.h.b16 %v100
    %v218 = vunpack.c.l.b16 %v101
    %v219 = vunpack.c.h.b16 %v101
    %v220 = vunpack.c.l.b16 %v102
    %v221 = vunpack.c.h.b16 %v102
    %v222 = vunpack.c.l.b16 %v103
    %v223 = vunpack.c.h.b16 %v103
    %v224 = vunpack.c.l.b16 %v104
    %v225 = vunpack.c.h.b16 %v104
    %v226 = vunpack.c.l.b16 %v105
    %v227 = vunpack.c.h.b16 %v105
    %v228 = vunpack.c.l.b16 %v106
    %v229 = vunpack.c.h.b16 %v106
    %v230 = vunpack.c.l.b16 %v107
    %v231 = vunpack.c.h.b16 %v107
    %v232 = vunpack.c.l.b16 %v108
    %v233 = vunpack.c.h.b16 %v108
    %v234 = vunpack.c.l.b16 %v109
    %v235 = vunpack.c.h.b16 %v109
    %v236 = vunpack.c.l.b16 %v110
    %v237 = vunpack.c.h.b16 %v110
    %v238 = vunpack.c.l.b16 %v111
    %v239 = vunpack.c.h.b16 %v111
    %v240 = vunpack.c.l.b16 %v112
    %v241 = vunpack.c.h.b16 %v112
    %v242 = vunpack.c.l.b16 %v113
    %v243 = vunpack.c.h.b16 %v113
    %v244 = vpack.c.b16 %v184, %v180
    %v245 = vpack.c.b16 %v185, %v181
    %v246 = vpack.c.b16 %v186, %v182
    %v247 = vpack.c.b16 %v187, %v183
    %v248 = vpack.c.b16 %v192, %v188
    %v249 = vpack.c.b16 %v193, %v189
    %v250 = vpack.c.b16 %v194, %v190
    %v251 = vpack.c.b16 %v195, %v191
    %v252 = vpack.c.b16 %v200, %v196
    %v253 = vpack.c.b16 %v201, %v197
    %v254 = vpack.c.b16 %v202, %v198
    %v255 = vpack.c.b16 %v203, %v199
    %v256 = vpack.c.b16 %v208, %v204
    %v257 = vpack.c.b16 %v209, %v205
    %v258 = vpack.c.b16 %v210, %v206
    %v259 = vpack.c.b16 %v211, %v207
    %v260 = vpack.c.b16 %v216, %v212
    %v261 = vpack.c.b16 %v217, %v213
    %v262 = vpack.c.b16 %v218, %v214
    %v263 = vpack.c.b16 %v219, %v215
    %v264 = vpack.c.b16 %v224, %v220
    %v265 = vpack.c.b16 %v225, %v221
    %v266 = vpack.c.b16 %v226, %v222
    %v267 = vpack.c.b16 %v227, %v223
    %v268 = vpack.c.b16 %v232, %v228
    %v269 = vpack.c.b16 %v233, %v229
    %v270 = vpack.c.b16 %v234, %v230
    %v271 = vpack.c.b16 %v235, %v231
    %v272 = vpack.c.b16 %v240, %v236
    %v273 = vpack.c.b16 %v241, %v237
    %v274 = vpack.c.b16 %v242, %v238
    %v275 = vpack.c.b16 %v243, %v239
    %308 = vmatpush.bf16.msra.mxu0 %v272
    %309 = vmatpush.bf16.msra.mxu0 %v268
    %310 = vmatpush.bf16.msra.mxu0 %v264
    %311 = vmatpush.bf16.msra.mxu0 %v260
    %312 = vmatpush.bf16.msra.mxu0 %v256
    %313 = vmatpush.bf16.msra.mxu0 %v252
    %314 = vmatpush.bf16.msra.mxu0 %v248
    %315 = vmatpush.bf16.msra.mxu0 %v244
    %316 = vmatmul.bf16.gmra.mxu0 %v140
    %v317 = vpop.f32.mrf.mxu0
    %v318 = vadd.f32 %v116, %v317
    %v319 = vpop.f32.mrf.mxu0
    %v320 = vadd.f32 %v116, %v319
    %321 = vmatmul.bf16.gmra.mxu0 %v141
    %v322 = vpop.f32.mrf.mxu0
    %v323 = vadd.f32 %v116, %v322
    %v324 = vpop.f32.mrf.mxu0
    %v325 = vadd.f32 %v116, %v324
    %326 = vmatmul.bf16.gmra.mxu0 %v142
    %v327 = vpop.f32.mrf.mxu0
    %v328 = vadd.f32 %v116, %v327
    %v329 = vpop.f32.mrf.mxu0
    %v330 = vadd.f32 %v116, %v329
    %331 = vmatmul.bf16.gmra.mxu0 %v143
    %v332 = vpop.f32.mrf.mxu0
    %v333 = vadd.f32 %v116, %v332
    %v334 = vpop.f32.mrf.mxu0
    %v335 = vadd.f32 %v116, %v334
    %336 = vdwg.mxu0
    %337 = vmatpush.bf16.msra.mxu0 %v273
    %338 = vmatpush.bf16.msra.mxu0 %v269
    %339 = vmatpush.bf16.msra.mxu0 %v265
    %340 = vmatpush.bf16.msra.mxu0 %v261
    %341 = vmatpush.bf16.msra.mxu0 %v257
    %342 = vmatpush.bf16.msra.mxu0 %v253
    %343 = vmatpush.bf16.msra.mxu0 %v249
    %344 = vmatpush.bf16.msra.mxu0 %v245
    %345 = vmatmul.bf16.gmra.mxu0 %v140
    %v346 = vpop.f32.mrf.mxu0
    %v347 = vadd.f32 %v117, %v346
    %v348 = vpop.f32.mrf.mxu0
    %v349 = vadd.f32 %v117, %v348
    %350 = vmatmul.bf16.gmra.mxu0 %v141
    %v351 = vpop.f32.mrf.mxu0
    %v352 = vadd.f32 %v117, %v351
    %v353 = vpop.f32.mrf.mxu0
    %v354 = vadd.f32 %v117, %v353
    %355 = vmatmul.bf16.gmra.mxu0 %v142
    %v356 = vpop.f32.mrf.mxu0
    %v357 = vadd.f32 %v117, %v356
    %v358 = vpop.f32.mrf.mxu0
    %v359 = vadd.f32 %v117, %v358
    %360 = vmatmul.bf16.gmra.mxu0 %v143
    %v361 = vpop.f32.mrf.mxu0
    %v362 = vadd.f32 %v117, %v361
    %v363 = vpop.f32.mrf.mxu0
    %v364 = vadd.f32 %v117, %v363
    %365 = vdwg.mxu0
    %366 = vmatpush.bf16.msra.mxu0 %v274
    %367 = vmatpush.bf16.msra.mxu0 %v270
    %368 = vmatpush.bf16.msra.mxu0 %v266
    %369 = vmatpush.bf16.msra.mxu0 %v262
    %370 = vmatpush.bf16.msra.mxu0 %v258
    %371 = vmatpush.bf16.msra.mxu0 %v254
    %372 = vmatpush.bf16.msra.mxu0 %v250
    %373 = vmatpush.bf16.msra.mxu0 %v246
    %374 = vmatmul.bf16.gmra.mxu0 %v140
    %v375 = vpop.f32.mrf.mxu0
    %v376 = vadd.f32 %v118, %v375
    %v377 = vpop.f32.mrf.mxu0
    %v378 = vadd.f32 %v118, %v377
    %379 = vmatmul.bf16.gmra.mxu0 %v141
    %v380 = vpop.f32.mrf.mxu0
    %v381 = vadd.f32 %v118, %v380
    %v382 = vpop.f32.mrf.mxu0
    %v383 = vadd.f32 %v118, %v382
    %384 = vmatmul.bf16.gmra.mxu0 %v142
    %v385 = vpop.f32.mrf.mxu0
    %v386 = vadd.f32 %v118, %v385
    %v387 = vpop.f32.mrf.mxu0
    %v388 = vadd.f32 %v118, %v387
    %389 = vmatmul.bf16.gmra.mxu0 %v143
    %v390 = vpop.f32.mrf.mxu0
    %v391 = vadd.f32 %v118, %v390
    %v392 = vpop.f32.mrf.mxu0
    %v393 = vadd.f32 %v118, %v392
    %394 = vdwg.mxu0
    %395 = vmatpush.bf16.msra.mxu0 %v275
    %396 = vmatpush.bf16.msra.mxu0 %v271
    %397 = vmatpush.bf16.msra.mxu0 %v267
    %398 = vmatpush.bf16.msra.mxu0 %v263
    %399 = vmatpush.bf16.msra.mxu0 %v259
    %400 = vmatpush.bf16.msra.mxu0 %v255
    %401 = vmatpush.bf16.msra.mxu0 %v251
    %402 = vmatpush.bf16.msra.mxu0 %v247
    %403 = vmatmul.bf16.gmra.mxu0 %v140
    %v404 = vpop.f32.mrf.mxu0
    %v405 = vadd.f32 %v119, %v404
    %v406 = vpop.f32.mrf.mxu0
    %v407 = vadd.f32 %v119, %v406
    %408 = vmatmul.bf16.gmra.mxu0 %v141
    %v409 = vpop.f32.mrf.mxu0
    %v410 = vadd.f32 %v119, %v409
    %v411 = vpop.f32.mrf.mxu0
    %v412 = vadd.f32 %v119, %v411
    %413 = vmatmul.bf16.gmra.mxu0 %v142
    %v414 = vpop.f32.mrf.mxu0
    %v415 = vadd.f32 %v119, %v414
    %v416 = vpop.f32.mrf.mxu0
    %v417 = vadd.f32 %v119, %v416
    %418 = vmatmul.bf16.gmra.mxu0 %v143
    %v419 = vpop.f32.mrf.mxu0
    %v420 = vadd.f32 %v119, %v419
    %v421 = vpop.f32.mrf.mxu0
    %v422 = vadd.f32 %v119, %v421
    %423 = vdwg.mxu0
    %v424 = vpack.c.bf16 %v347, %v318
    %v425 = vpack.c.bf16 %v405, %v376
    %v426 = vpack.c.bf16 %v349, %v320
    %v427 = vpack.c.bf16 %v407, %v378
    %v428 = vpack.c.bf16 %v352, %v323
    %v429 = vpack.c.bf16 %v410, %v381
    %v430 = vpack.c.bf16 %v354, %v325
    %v431 = vpack.c.bf16 %v412, %v383
    %v432 = vpack.c.bf16 %v357, %v328
    %v433 = vpack.c.bf16 %v415, %v386
    %v434 = vpack.c.bf16 %v359, %v330
    %v435 = vpack.c.bf16 %v417, %v388
    %v436 = vpack.c.bf16 %v362, %v333
    %v437 = vpack.c.bf16 %v420, %v391
    %v438 = vpack.c.bf16 %v364, %v335
    %v439 = vpack.c.bf16 %v422, %v393
    %440 = vst [vmem:[#allocation4] sm:$0xff] %v424
    %441 = vst [vmem:[#allocation4 + $0x8] sm:$0xff] %v425
    %442 = vst [vmem:[#allocation4 + $0x10] sm:$0xff] %v426
    %443 = vst [vmem:[#allocation4 + $0x18] sm:$0xff] %v427
    %444 = vst [vmem:[#allocation4 + $0x20] sm:$0xff] %v428
    %445 = vst [vmem:[#allocation4 + $0x28] sm:$0xff] %v429
    %446 = vst [vmem:[#allocation4 + $0x30] sm:$0xff] %v430
    %447 = vst [vmem:[#allocation4 + $0x38] sm:$0xff] %v431
    %448 = vst [vmem:[#allocation4 + $0x40] sm:$0xff] %v432
    %449 = vst [vmem:[#allocation4 + $0x48] sm:$0xff] %v433
    %450 = vst [vmem:[#allocation4 + $0x50] sm:$0xff] %v434
    %451 = vst [vmem:[#allocation4 + $0x58] sm:$0xff] %v435
    %452 = vst [vmem:[#allocation4 + $0x60] sm:$0xff] %v436
    %453 = vst [vmem:[#allocation4 + $0x68] sm:$0xff] %v437
    %454 = vst [vmem:[#allocation4 + $0x70] sm:$0xff] %v438
    %455 = vst [vmem:[#allocation4 + $0x78] sm:$0xff] %v439
    %v456 = vld [vmem:[#allocation8] sm:$0xff]
    %v457 = vld [vmem:[#allocation8 + $0x8] sm:$0xff]
    %v458 = vld [vmem:[#allocation8 + $0x10] sm:$0xff]
    %v459 = vld [vmem:[#allocation8 + $0x18] sm:$0xff]
    %v460 = vld [vmem:[#allocation8 + $0x20] sm:$0xff]
    %v461 = vld [vmem:[#allocation8 + $0x28] sm:$0xff]
    %v462 = vld [vmem:[#allocation8 + $0x30] sm:$0xff]
    %v463 = vld [vmem:[#allocation8 + $0x38] sm:$0xff]
    %v464 = vld [vmem:[#allocation8 + $0x40] sm:$0xff]
    %v465 = vld [vmem:[#allocation8 + $0x48] sm:$0xff]
    %v466 = vld [vmem:[#allocation8 + $0x50] sm:$0xff]
    %v467 = vld [vmem:[#allocation8 + $0x58] sm:$0xff]
    %v468 = vld [vmem:[#allocation8 + $0x60] sm:$0xff]
    %v469 = vld [vmem:[#allocation8 + $0x68] sm:$0xff]
    %v470 = vld [vmem:[#allocation8 + $0x70] sm:$0xff]
    %v471 = vld [vmem:[#allocation8 + $0x78] sm:$0xff]
    %v472 = vld [vmem:[#allocation8 + $0x80] sm:$0xff]
    %v473 = vld [vmem:[#allocation8 + $0x88] sm:$0xff]
    %v474 = vld [vmem:[#allocation8 + $0x90] sm:$0xff]
    %v475 = vld [vmem:[#allocation8 + $0x98] sm:$0xff]
    %v476 = vld [vmem:[#allocation8 + $0xa0] sm:$0xff]
    %v477 = vld [vmem:[#allocation8 + $0xa8] sm:$0xff]
    %v478 = vld [vmem:[#allocation8 + $0xb0] sm:$0xff]
    %v479 = vld [vmem:[#allocation8 + $0xb8] sm:$0xff]
    %v480 = vld [vmem:[#allocation8 + $0xc0] sm:$0xff]
    %v481 = vld [vmem:[#allocation8 + $0xc8] sm:$0xff]
    %v482 = vld [vmem:[#allocation8 + $0xd0] sm:$0xff]
    %v483 = vld [vmem:[#allocation8 + $0xd8] sm:$0xff]
    %v484 = vld [vmem:[#allocation8 + $0xe0] sm:$0xff]
    %v485 = vld [vmem:[#allocation8 + $0xe8] sm:$0xff]
    %v486 = vld [vmem:[#allocation8 + $0xf0] sm:$0xff]
    %v487 = vld [vmem:[#allocation8 + $0xf8] sm:$0xff]
    %v488 = vld [vmem:[#allocation2] sm:$0xff]
    %v489 = vld [vmem:[#allocation3] sm:$0xff]
    %v490 = vld [vmem:[#allocation4] sm:$0xff]
    %v491 = vld [vmem:[#allocation4 + $0x8] sm:$0xff]
    %v492 = vunpack.c.l.bf16 %v490
    %v493 = vunpack.c.h.bf16 %v490
    %v494 = vunpack.c.l.bf16 %v491
    %v495 = vunpack.c.h.bf16 %v491
    %v496 = vpack.c.bf16 %v488, %v488
    %v529 = vunpack.c.l.b16 %v456
    %v530 = vunpack.c.h.b16 %v456
    %v531 = vunpack.c.l.b16 %v457
    %v532 = vunpack.c.h.b16 %v457
    %v533 = vunpack.c.l.b16 %v458
    %v534 = vunpack.c.h.b16 %v458
    %v535 = vunpack.c.l.b16 %v459
    %v536 = vunpack.c.h.b16 %v459
    %v537 = vunpack.c.l.b16 %v460
    %v538 = vunpack.c.h.b16 %v460
    %v539 = vunpack.c.l.b16 %v461
    %v540 = vunpack.c.h.b16 %v461
    %v541 = vunpack.c.l.b16 %v462
    %v542 = vunpack.c.h.b16 %v462
    %v543 = vunpack.c.l.b16 %v463
    %v544 = vunpack.c.h.b16 %v463
    %v545 = vunpack.c.l.b16 %v464
    %v546 = vunpack.c.h.b16 %v464
    %v547 = vunpack.c.l.b16 %v465
    %v548 = vunpack.c.h.b16 %v465
    %v549 = vunpack.c.l.b16 %v466
    %v550 = vunpack.c.h.b16 %v466
    %v551 = vunpack.c.l.b16 %v467
    %v552 = vunpack.c.h.b16 %v467
    %v553 = vunpack.c.l.b16 %v468
    %v554 = vunpack.c.h.b16 %v468
    %v555 = vunpack.c.l.b16 %v469
    %v556 = vunpack.c.h.b16 %v469
    %v557 = vunpack.c.l.b16 %v470
    %v558 = vunpack.c.h.b16 %v470
    %v559 = vunpack.c.l.b16 %v471
    %v560 = vunpack.c.h.b16 %v471
    %v561 = vunpack.c.l.b16 %v472
    %v562 = vunpack.c.h.b16 %v472
    %v563 = vunpack.c.l.b16 %v473
    %v564 = vunpack.c.h.b16 %v473
    %v565 = vunpack.c.l.b16 %v474
    %v566 = vunpack.c.h.b16 %v474
    %v567 = vunpack.c.l.b16 %v475
    %v568 = vunpack.c.h.b16 %v475
    %v569 = vunpack.c.l.b16 %v476
    %v570 = vunpack.c.h.b16 %v476
    %v571 = vunpack.c.l.b16 %v477
    %v572 = vunpack.c.h.b16 %v477
    %v573 = vunpack.c.l.b16 %v478
    %v574 = vunpack.c.h.b16 %v478
    %v575 = vunpack.c.l.b16 %v479
    %v576 = vunpack.c.h.b16 %v479
    %v577 = vunpack.c.l.b16 %v480
    %v578 = vunpack.c.h.b16 %v480
    %v579 = vunpack.c.l.b16 %v481
    %v580 = vunpack.c.h.b16 %v481
    %v581 = vunpack.c.l.b16 %v482
    %v582 = vunpack.c.h.b16 %v482
    %v583 = vunpack.c.l.b16 %v483
    %v584 = vunpack.c.h.b16 %v483
    %v585 = vunpack.c.l.b16 %v484
    %v586 = vunpack.c.h.b16 %v484
    %v587 = vunpack.c.l.b16 %v485
    %v588 = vunpack.c.h.b16 %v485
    %v589 = vunpack.c.l.b16 %v486
    %v590 = vunpack.c.h.b16 %v486
    %v591 = vunpack.c.l.b16 %v487
    %v592 = vunpack.c.h.b16 %v487
    %v593 = vpack.c.b16 %v533, %v529
    %v594 = vpack.c.b16 %v534, %v530
    %v595 = vpack.c.b16 %v535, %v531
    %v596 = vpack.c.b16 %v536, %v532
    %v597 = vpack.c.b16 %v541, %v537
    %v598 = vpack.c.b16 %v542, %v538
    %v599 = vpack.c.b16 %v543, %v539
    %v600 = vpack.c.b16 %v544, %v540
    %v601 = vpack.c.b16 %v549, %v545
    %v602 = vpack.c.b16 %v550, %v546
    %v603 = vpack.c.b16 %v551, %v547
    %v604 = vpack.c.b16 %v552, %v548
    %v605 = vpack.c.b16 %v557, %v553
    %v606 = vpack.c.b16 %v558, %v554
    %v607 = vpack.c.b16 %v559, %v555
    %v608 = vpack.c.b16 %v560, %v556
    %v609 = vpack.c.b16 %v565, %v561
    %v610 = vpack.c.b16 %v566, %v562
    %v611 = vpack.c.b16 %v567, %v563
    %v612 = vpack.c.b16 %v568, %v564
    %v613 = vpack.c.b16 %v573, %v569
    %v614 = vpack.c.b16 %v574, %v570
    %v615 = vpack.c.b16 %v575, %v571
    %v616 = vpack.c.b16 %v576, %v572
    %v617 = vpack.c.b16 %v581, %v577
    %v618 = vpack.c.b16 %v582, %v578
    %v619 = vpack.c.b16 %v583, %v579
    %v620 = vpack.c.b16 %v584, %v580
    %v621 = vpack.c.b16 %v589, %v585
    %v622 = vpack.c.b16 %v590, %v586
    %v623 = vpack.c.b16 %v591, %v587
    %v624 = vpack.c.b16 %v592, %v588
    %657 = vmatpush.bf16.msra.mxu0 %v621
    %658 = vmatpush.bf16.msra.mxu0 %v617
    %659 = vmatpush.bf16.msra.mxu0 %v613
    %660 = vmatpush.bf16.msra.mxu0 %v609
    %661 = vmatpush.bf16.msra.mxu0 %v605
    %662 = vmatpush.bf16.msra.mxu0 %v601
    %663 = vmatpush.bf16.msra.mxu0 %v597
    %664 = vmatpush.bf16.msra.mxu0 %v593
    %665 = vmatmul.bf16.gmra.mxu0 %v496
    %v666 = vpop.f32.mrf.mxu0
    %v667 = vadd.f32 0.0, %v666
    %v668 = vpop.f32.mrf.mxu0
    %669 = vdwg.mxu0
    %670 = vmatpush.bf16.msra.mxu0 %v622
    %671 = vmatpush.bf16.msra.mxu0 %v618
    %672 = vmatpush.bf16.msra.mxu0 %v614
    %673 = vmatpush.bf16.msra.mxu0 %v610
    %674 = vmatpush.bf16.msra.mxu0 %v606
    %675 = vmatpush.bf16.msra.mxu0 %v602
    %676 = vmatpush.bf16.msra.mxu0 %v598
    %677 = vmatpush.bf16.msra.mxu0 %v594
    %678 = vmatmul.bf16.gmra.mxu0 %v496
    %v679 = vpop.f32.mrf.mxu0
    %v680 = vadd.f32 0.0, %v679
    %v681 = vpop.f32.mrf.mxu0
    %682 = vdwg.mxu0
    %683 = vmatpush.bf16.msra.mxu0 %v623
    %684 = vmatpush.bf16.msra.mxu0 %v619
    %685 = vmatpush.bf16.msra.mxu0 %v615
    %686 = vmatpush.bf16.msra.mxu0 %v611
    %687 = vmatpush.bf16.msra.mxu0 %v607
    %688 = vmatpush.bf16.msra.mxu0 %v603
    %689 = vmatpush.bf16.msra.mxu0 %v599
    %690 = vmatpush.bf16.msra.mxu0 %v595
    %691 = vmatmul.bf16.gmra.mxu0 %v496
    %v692 = vpop.f32.mrf.mxu0
    %v693 = vadd.f32 0.0, %v692
    %v694 = vpop.f32.mrf.mxu0
    %695 = vdwg.mxu0
    %696 = vmatpush.bf16.msra.mxu0 %v624
    %697 = vmatpush.bf16.msra.mxu0 %v620
    %698 = vmatpush.bf16.msra.mxu0 %v616
    %699 = vmatpush.bf16.msra.mxu0 %v612
    %700 = vmatpush.bf16.msra.mxu0 %v608
    %701 = vmatpush.bf16.msra.mxu0 %v604
    %702 = vmatpush.bf16.msra.mxu0 %v600
    %703 = vmatpush.bf16.msra.mxu0 %v596
    %704 = vmatmul.bf16.gmra.mxu0 %v496
    %v705 = vpop.f32.mrf.mxu0
    %v706 = vadd.f32 0.0, %v705
    %v707 = vpop.f32.mrf.mxu0
    %708 = vdwg.mxu0
    %v709 = vadd.f32 %v492, %v667
    %v710 = vadd.f32 %v493, %v680
    %v711 = vadd.f32 %v494, %v693
    %v712 = vadd.f32 %v495, %v706
    %v713 = vxor.u32 %v709, 2147483648
    %v714 = vxor.u32 %v710, 2147483648
    %v715 = vxor.u32 %v711, 2147483648
    %v716 = vmul.f32 %v713, 1.442695
    %v717 = vpow.pop %v716
    %v718 = vmul.f32 %v714, 1.442695
    %v719 = vpow.pop %v718
    %v720 = vmul.f32 %v715, 1.442695
    %v721 = vpow.pop %v720
    %v722 = vadd.f32 %v717, 1.0
    %v723 = vadd.f32 %v719, 1.0
    %v724 = vadd.f32 %v721, 1.0
    %v725 = vrcp.pop %v722
    %v726 = vmul.f32 %v722, %v725
    %v727 = vsub.f32 1.0, %v726
    %v728 = vmul.f32 %v725, %v727
    %v729 = vadd.f32 %v725, %v728
    %vm730 = vweird.f32 %v722
    %vm731 = vweird.f32 %v725
    %vm732 = vmor %vm730, %vm731
    %v733 = vsel %vm732, %v725, %v729
    %v734 = vand.u32 2147483647, %v722
    %vm735 = vcmp.eq.f32.partialorder %v734, 8.507059e+37
    %v736 = vand.u32 %v722, 2147483648
    %v737 = vor.u32 1.1754944e-38, %v736
    %v738 = vsel %vm735, %v737, %v733
    %v739 = vmul.f32 1.0, %v738
    %v740 = vrcp.pop %v723
    %v741 = vmul.f32 %v723, %v740
    %v742 = vsub.f32 1.0, %v741
    %v743 = vmul.f32 %v740, %v742
    %v744 = vadd.f32 %v740, %v743
    %vm745 = vweird.f32 %v723
    %vm746 = vweird.f32 %v740
    %vm747 = vmor %vm745, %vm746
    %v748 = vsel %vm747, %v740, %v744
    %v749 = vand.u32 2147483647, %v723
    %vm750 = vcmp.eq.f32.partialorder %v749, 8.507059e+37
    %v751 = vand.u32 %v723, 2147483648
    %v752 = vor.u32 1.1754944e-38, %v751
    %v753 = vsel %vm750, %v752, %v748
    %v754 = vmul.f32 1.0, %v753
    %v755 = vrcp.pop %v724
    %v756 = vmul.f32 %v724, %v755
    %v757 = vsub.f32 1.0, %v756
    %v758 = vmul.f32 %v755, %v757
    %v759 = vadd.f32 %v755, %v758
    %vm760 = vweird.f32 %v724
    %vm761 = vweird.f32 %v755
    %vm762 = vmor %vm760, %vm761
    %v763 = vsel %vm762, %v755, %v759
    %v764 = vand.u32 2147483647, %v724
    %vm765 = vcmp.eq.f32.partialorder %v764, 8.507059e+37
    %v766 = vand.u32 %v724, 2147483648
    %v767 = vor.u32 1.1754944e-38, %v766
    %v768 = vsel %vm765, %v767, %v763
    %v769 = vmul.f32 1.0, %v768
    %v770 = vtanh.pop %v712
    %v771 = vmul.f32 %v754, %v489
    %v772 = vmul.f32 %v739, %v770
    %v773 = vadd.f32 %v771, %v772
    %v774 = vtanh.pop %v773
    %v775 = vmul.f32 %v769, %v774
    %v776 = vpack.c.bf16 %v775, %v775
    %777 = vst [vmem:[#allocation5] sm:$0xf] %v776
    %s778 = scalar_lea.vmem [#allocation4], 16
    %v779 = vld [vmem:[%s778] sm:$0xff]
    %v780 = vld [vmem:[%s778 + $0x8] sm:$0xff]
    %v781 = vunpack.c.l.bf16 %v779
    %v782 = vunpack.c.h.bf16 %v779
    %v783 = vunpack.c.l.bf16 %v780
    %v784 = vunpack.c.h.bf16 %v780
    %785 = vmatpush.bf16.msra.mxu0 %v621
    %786 = vmatpush.bf16.msra.mxu0 %v617
    %787 = vmatpush.bf16.msra.mxu0 %v613
    %788 = vmatpush.bf16.msra.mxu0 %v609
    %789 = vmatpush.bf16.msra.mxu0 %v605
    %790 = vmatpush.bf16.msra.mxu0 %v601
    %791 = vmatpush.bf16.msra.mxu0 %v597
    %792 = vmatpush.bf16.msra.mxu0 %v593
    %793 = vmatmul.bf16.gmra.mxu0 %v776
    %v794 = vpop.f32.mrf.mxu0
    %v795 = vadd.f32 0.0, %v794
    %v796 = vpop.f32.mrf.mxu0
    %797 = vdwg.mxu0
    %798 = vmatpush.bf16.msra.mxu0 %v622
    %799 = vmatpush.bf16.msra.mxu0 %v618
    %800 = vmatpush.bf16.msra.mxu0 %v614
    %801 = vmatpush.bf16.msra.mxu0 %v610
    %802 = vmatpush.bf16.msra.mxu0 %v606
    %803 = vmatpush.bf16.msra.mxu0 %v602
    %804 = vmatpush.bf16.msra.mxu0 %v598
    %805 = vmatpush.bf16.msra.mxu0 %v594
    %806 = vmatmul.bf16.gmra.mxu0 %v776
    %v807 = vpop.f32.mrf.mxu0
    %v808 = vadd.f32 0.0, %v807
    %v809 = vpop.f32.mrf.mxu0
    %810 = vdwg.mxu0
    %811 = vmatpush.bf16.msra.mxu0 %v623
    %812 = vmatpush.bf16.msra.mxu0 %v619
    %813 = vmatpush.bf16.msra.mxu0 %v615
    %814 = vmatpush.bf16.msra.mxu0 %v611
    %815 = vmatpush.bf16.msra.mxu0 %v607
    %816 = vmatpush.bf16.msra.mxu0 %v603
    %817 = vmatpush.bf16.msra.mxu0 %v599
    %818 = vmatpush.bf16.msra.mxu0 %v595
    %819 = vmatmul.bf16.gmra.mxu0 %v776
    %v820 = vpop.f32.mrf.mxu0
    %v821 = vadd.f32 0.0, %v820
    %v822 = vpop.f32.mrf.mxu0
    %823 = vdwg.mxu0
    %824 = vmatpush.bf16.msra.mxu0 %v624
    %825 = vmatpush.bf16.msra.mxu0 %v620
    %826 = vmatpush.bf16.msra.mxu0 %v616
    %827 = vmatpush.bf16.msra.mxu0 %v612
    %828 = vmatpush.bf16.msra.mxu0 %v608
    %829 = vmatpush.bf16.msra.mxu0 %v604
    %830 = vmatpush.bf16.msra.mxu0 %v600
    %831 = vmatpush.bf16.msra.mxu0 %v596
    %832 = vmatmul.bf16.gmra.mxu0 %v776
    %v833 = vpop.f32.mrf.mxu0
    %v834 = vadd.f32 0.0, %v833
    %v835 = vpop.f32.mrf.mxu0
    %836 = vdwg.mxu0
    %v837 = vadd.f32 %v781, %v795
    %v838 = vadd.f32 %v782, %v808
    %v839 = vadd.f32 %v783, %v821
    %v840 = vadd.f32 %v784, %v834
    %v841 = vxor.u32 %v837, 2147483648
    %v842 = vxor.u32 %v838, 2147483648
    %v843 = vxor.u32 %v839, 2147483648
    %v844 = vmul.f32 %v841, 1.442695
    %v845 = vpow.pop %v844
    %v846 = vmul.f32 %v842, 1.442695
    %v847 = vpow.pop %v846
    %v848 = vmul.f32 %v843, 1.442695
    %v849 = vpow.pop %v848
    %v850 = vadd.f32 %v845, 1.0
    %v851 = vadd.f32 %v847, 1.0
    %v852 = vadd.f32 %v849, 1.0
    %v853 = vrcp.pop %v850
    %v854 = vmul.f32 %v850, %v853
    %v855 = vsub.f32 1.0, %v854
    %v856 = vmul.f32 %v853, %v855
    %v857 = vadd.f32 %v853, %v856
    %vm858 = vweird.f32 %v850
    %vm859 = vweird.f32 %v853
    %vm860 = vmor %vm858, %vm859
    %v861 = vsel %vm860, %v853, %v857
    %v862 = vand.u32 2147483647, %v850
    %vm863 = vcmp.eq.f32.partialorder %v862, 8.507059e+37
    %v864 = vand.u32 %v850, 2147483648
    %v865 = vor.u32 1.1754944e-38, %v864
    %v866 = vsel %vm863, %v865, %v861
    %v867 = vmul.f32 1.0, %v866
    %v868 = vrcp.pop %v851
    %v869 = vmul.f32 %v851, %v868
    %v870 = vsub.f32 1.0, %v869
    %v871 = vmul.f32 %v868, %v870
    %v872 = vadd.f32 %v868, %v871
    %vm873 = vweird.f32 %v851
    %vm874 = vweird.f32 %v868
    %vm875 = vmor %vm873, %vm874
    %v876 = vsel %vm875, %v868, %v872
    %v877 = vand.u32 2147483647, %v851
    %vm878 = vcmp.eq.f32.partialorder %v877, 8.507059e+37
    %v879 = vand.u32 %v851, 2147483648
    %v880 = vor.u32 1.1754944e-38, %v879
    %v881 = vsel %vm878, %v880, %v876
    %v882 = vmul.f32 1.0, %v881
    %v883 = vrcp.pop %v852
    %v884 = vmul.f32 %v852, %v883
    %v885 = vsub.f32 1.0, %v884
    %v886 = vmul.f32 %v883, %v885
    %v887 = vadd.f32 %v883, %v886
    %vm888 = vweird.f32 %v852
    %vm889 = vweird.f32 %v883
    %vm890 = vmor %vm888, %vm889
    %v891 = vsel %vm890, %v883, %v887
    %v892 = vand.u32 2147483647, %v852
    %vm893 = vcmp.eq.f32.partialorder %v892, 8.507059e+37
    %v894 = vand.u32 %v852, 2147483648
    %v895 = vor.u32 1.1754944e-38, %v894
    %v896 = vsel %vm893, %v895, %v891
    %v897 = vmul.f32 1.0, %v896
    %v898 = vtanh.pop %v840
    %v899 = vmul.f32 %v882, %v773
    %v900 = vmul.f32 %v867, %v898
    %v901 = vadd.f32 %v899, %v900
    %v902 = vtanh.pop %v901
    %v903 = vmul.f32 %v897, %v902
    %v904 = vpack.c.bf16 %v903, %v903
    %s905 = scalar_lea.vmem [#allocation5], 4
    %906 = vst [vmem:[%s905] sm:$0xf] %v904
    %s907 = scalar_lea.vmem [#allocation4], 32
    %v908 = vld [vmem:[%s907] sm:$0xff]
    %v909 = vld [vmem:[%s907 + $0x8] sm:$0xff]
    %v910 = vunpack.c.l.bf16 %v908
    %v911 = vunpack.c.h.bf16 %v908
    %v912 = vunpack.c.l.bf16 %v909
    %v913 = vunpack.c.h.bf16 %v909
    %914 = vmatpush.bf16.msra.mxu0 %v621
    %915 = vmatpush.bf16.msra.mxu0 %v617
    %916 = vmatpush.bf16.msra.mxu0 %v613
    %917 = vmatpush.bf16.msra.mxu0 %v609
    %918 = vmatpush.bf16.msra.mxu0 %v605
    %919 = vmatpush.bf16.msra.mxu0 %v601
    %920 = vmatpush.bf16.msra.mxu0 %v597
    %921 = vmatpush.bf16.msra.mxu0 %v593
    %922 = vmatmul.bf16.gmra.mxu0 %v904
    %v923 = vpop.f32.mrf.mxu0
    %v924 = vadd.f32 0.0, %v923
    %v925 = vpop.f32.mrf.mxu0
    %926 = vdwg.mxu0
    %927 = vmatpush.bf16.msra.mxu0 %v622
    %928 = vmatpush.bf16.msra.mxu0 %v618
    %929 = vmatpush.bf16.msra.mxu0 %v614
    %930 = vmatpush.bf16.msra.mxu0 %v610
    %931 = vmatpush.bf16.msra.mxu0 %v606
    %932 = vmatpush.bf16.msra.mxu0 %v602
    %933 = vmatpush.bf16.msra.mxu0 %v598
    %934 = vmatpush.bf16.msra.mxu0 %v594
    %935 = vmatmul.bf16.gmra.mxu0 %v904
    %v936 = vpop.f32.mrf.mxu0
    %v937 = vadd.f32 0.0, %v936
    %v938 = vpop.f32.mrf.mxu0
    %939 = vdwg.mxu0
    %940 = vmatpush.bf16.msra.mxu0 %v623
    %941 = vmatpush.bf16.msra.mxu0 %v619
    %942 = vmatpush.bf16.msra.mxu0 %v615
    %943 = vmatpush.bf16.msra.mxu0 %v611
    %944 = vmatpush.bf16.msra.mxu0 %v607
    %945 = vmatpush.bf16.msra.mxu0 %v603
    %946 = vmatpush.bf16.msra.mxu0 %v599
    %947 = vmatpush.bf16.msra.mxu0 %v595
    %948 = vmatmul.bf16.gmra.mxu0 %v904
    %v949 = vpop.f32.mrf.mxu0
    %v950 = vadd.f32 0.0, %v949
    %v951 = vpop.f32.mrf.mxu0
    %952 = vdwg.mxu0
    %953 = vmatpush.bf16.msra.mxu0 %v624
    %954 = vmatpush.bf16.msra.mxu0 %v620
    %955 = vmatpush.bf16.msra.mxu0 %v616
    %956 = vmatpush.bf16.msra.mxu0 %v612
    %957 = vmatpush.bf16.msra.mxu0 %v608
    %958 = vmatpush.bf16.msra.mxu0 %v604
    %959 = vmatpush.bf16.msra.mxu0 %v600
    %960 = vmatpush.bf16.msra.mxu0 %v596
    %961 = vmatmul.bf16.gmra.mxu0 %v904
    %v962 = vpop.f32.mrf.mxu0
    %v963 = vadd.f32 0.0, %v962
    %v964 = vpop.f32.mrf.mxu0
    %965 = vdwg.mxu0
    %v966 = vadd.f32 %v910, %v924
    %v967 = vadd.f32 %v911, %v937
    %v968 = vadd.f32 %v912, %v950
    %v969 = vadd.f32 %v913, %v963
    %v970 = vxor.u32 %v966, 2147483648
    %v971 = vxor.u32 %v967, 2147483648
    %v972 = vxor.u32 %v968, 2147483648
    %v973 = vmul.f32 %v970, 1.442695
    %v974 = vpow.pop %v973
    %v975 = vmul.f32 %v971, 1.442695
    %v976 = vpow.pop %v975
    %v977 = vmul.f32 %v972, 1.442695
    %v978 = vpow.pop %v977
    %v979 = vadd.f32 %v974, 1.0
    %v980 = vadd.f32 %v976, 1.0
    %v981 = vadd.f32 %v978, 1.0
    %v982 = vrcp.pop %v979
    %v983 = vmul.f32 %v979, %v982
    %v984 = vsub.f32 1.0, %v983
    %v985 = vmul.f32 %v982, %v984
    %v986 = vadd.f32 %v982, %v985
    %vm987 = vweird.f32 %v979
    %vm988 = vweird.f32 %v982
    %vm989 = vmor %vm987, %vm988
    %v990 = vsel %vm989, %v982, %v986
    %v991 = vand.u32 2147483647, %v979
    %vm992 = vcmp.eq.f32.partialorder %v991, 8.507059e+37
    %v993 = vand.u32 %v979, 2147483648
    %v994 = vor.u32 1.1754944e-38, %v993
    %v995 = vsel %vm992, %v994, %v990
    %v996 = vmul.f32 1.0, %v995
    %v997 = vrcp.pop %v980
    %v998 = vmul.f32 %v980, %v997
    %v999 = vsub.f32 1.0, %v998
    %v1000 = vmul.f32 %v997, %v999
    %v1001 = vadd.f32 %v997, %v1000
    %vm1002 = vweird.f32 %v980
    %vm1003 = vweird.f32 %v997
    %vm1004 = vmor %vm1002, %vm1003
    %v1005 = vsel %vm1004, %v997, %v1001
    %v1006 = vand.u32 2147483647, %v980
    %vm1007 = vcmp.eq.f32.partialorder %v1006, 8.507059e+37
    %v1008 = vand.u32 %v980, 2147483648
    %v1009 = vor.u32 1.1754944e-38, %v1008
    %v1010 = vsel %vm1007, %v1009, %v1005
    %v1011 = vmul.f32 1.0, %v1010
    %v1012 = vrcp.pop %v981
    %v1013 = vmul.f32 %v981, %v1012
    %v1014 = vsub.f32 1.0, %v1013
    %v1015 = vmul.f32 %v1012, %v1014
    %v1016 = vadd.f32 %v1012, %v1015
    %vm1017 = vweird.f32 %v981
    %vm1018 = vweird.f32 %v1012
    %vm1019 = vmor %vm1017, %vm1018
    %v1020 = vsel %vm1019, %v1012, %v1016
    %v1021 = vand.u32 2147483647, %v981
    %vm1022 = vcmp.eq.f32.partialorder %v1021, 8.507059e+37
    %v1023 = vand.u32 %v981, 2147483648
    %v1024 = vor.u32 1.1754944e-38, %v1023
    %v1025 = vsel %vm1022, %v1024, %v1020
    %v1026 = vmul.f32 1.0, %v1025
    %v1027 = vtanh.pop %v969
    %v1028 = vmul.f32 %v1011, %v901
    %v1029 = vmul.f32 %v996, %v1027
    %v1030 = vadd.f32 %v1028, %v1029
    %v1031 = vtanh.pop %v1030
    %v1032 = vmul.f32 %v1026, %v1031
    %v1033 = vpack.c.bf16 %v1032, %v1032
    %s1034 = scalar_lea.vmem [#allocation5], 8
    %1035 = vst [vmem:[%s1034] sm:$0xf] %v1033
    %s1036 = scalar_lea.vmem [#allocation4], 48
    %v1037 = vld [vmem:[%s1036] sm:$0xff]
    %v1038 = vld [vmem:[%s1036 + $0x8] sm:$0xff]
    %v1039 = vunpack.c.l.bf16 %v1037
    %v1040 = vunpack.c.h.bf16 %v1037
    %v1041 = vunpack.c.l.bf16 %v1038
    %v1042 = vunpack.c.h.bf16 %v1038
    %1043 = vmatpush.bf16.msra.mxu0 %v621
    %1044 = vmatpush.bf16.msra.mxu0 %v617
    %1045 = vmatpush.bf16.msra.mxu0 %v613
    %1046 = vmatpush.bf16.msra.mxu0 %v609
    %1047 = vmatpush.bf16.msra.mxu0 %v605
    %1048 = vmatpush.bf16.msra.mxu0 %v601
    %1049 = vmatpush.bf16.msra.mxu0 %v597
    %1050 = vmatpush.bf16.msra.mxu0 %v593
    %1051 = vmatmul.bf16.gmra.mxu0 %v1033
    %v1052 = vpop.f32.mrf.mxu0
    %v1053 = vadd.f32 0.0, %v1052
    %v1054 = vpop.f32.mrf.mxu0
    %1055 = vdwg.mxu0
    %1056 = vmatpush.bf16.msra.mxu0 %v622
    %1057 = vmatpush.bf16.msra.mxu0 %v618
    %1058 = vmatpush.bf16.msra.mxu0 %v614
    %1059 = vmatpush.bf16.msra.mxu0 %v610
    %1060 = vmatpush.bf16.msra.mxu0 %v606
    %1061 = vmatpush.bf16.msra.mxu0 %v602
    %1062 = vmatpush.bf16.msra.mxu0 %v598
    %1063 = vmatpush.bf16.msra.mxu0 %v594
    %1064 = vmatmul.bf16.gmra.mxu0 %v1033
    %v1065 = vpop.f32.mrf.mxu0
    %v1066 = vadd.f32 0.0, %v1065
    %v1067 = vpop.f32.mrf.mxu0
    %1068 = vdwg.mxu0
    %1069 = vmatpush.bf16.msra.mxu0 %v623
    %1070 = vmatpush.bf16.msra.mxu0 %v619
    %1071 = vmatpush.bf16.msra.mxu0 %v615
    %1072 = vmatpush.bf16.msra.mxu0 %v611
    %1073 = vmatpush.bf16.msra.mxu0 %v607
    %1074 = vmatpush.bf16.msra.mxu0 %v603
    %1075 = vmatpush.bf16.msra.mxu0 %v599
    %1076 = vmatpush.bf16.msra.mxu0 %v595
    %1077 = vmatmul.bf16.gmra.mxu0 %v1033
    %v1078 = vpop.f32.mrf.mxu0
    %v1079 = vadd.f32 0.0, %v1078
    %v1080 = vpop.f32.mrf.mxu0
    %1081 = vdwg.mxu0
    %1082 = vmatpush.bf16.msra.mxu0 %v624
    %1083 = vmatpush.bf16.msra.mxu0 %v620
    %1084 = vmatpush.bf16.msra.mxu0 %v616
    %1085 = vmatpush.bf16.msra.mxu0 %v612
    %1086 = vmatpush.bf16.msra.mxu0 %v608
    %1087 = vmatpush.bf16.msra.mxu0 %v604
    %1088 = vmatpush.bf16.msra.mxu0 %v600
    %1089 = vmatpush.bf16.msra.mxu0 %v596
    %1090 = vmatmul.bf16.gmra.mxu0 %v1033
    %v1091 = vpop.f32.mrf.mxu0
    %v1092 = vadd.f32 0.0, %v1091
    %v1093 = vpop.f32.mrf.mxu0
    %1094 = vdwg.mxu0
    %v1095 = vadd.f32 %v1039, %v1053
    %v1096 = vadd.f32 %v1040, %v1066
    %v1097 = vadd.f32 %v1041, %v1079
    %v1098 = vadd.f32 %v1042, %v1092
    %v1099 = vxor.u32 %v1095, 2147483648
    %v1100 = vxor.u32 %v1096, 2147483648
    %v1101 = vxor.u32 %v1097, 2147483648
    %v1102 = vmul.f32 %v1099, 1.442695
    %v1103 = vpow.pop %v1102
    %v1104 = vmul.f32 %v1100, 1.442695
    %v1105 = vpow.pop %v1104
    %v1106 = vmul.f32 %v1101, 1.442695
    %v1107 = vpow.pop %v1106
    %v1108 = vadd.f32 %v1103, 1.0
    %v1109 = vadd.f32 %v1105, 1.0
    %v1110 = vadd.f32 %v1107, 1.0
    %v1111 = vrcp.pop %v1108
    %v1112 = vmul.f32 %v1108, %v1111
    %v1113 = vsub.f32 1.0, %v1112
    %v1114 = vmul.f32 %v1111, %v1113
    %v1115 = vadd.f32 %v1111, %v1114
    %vm1116 = vweird.f32 %v1108
    %vm1117 = vweird.f32 %v1111
    %vm1118 = vmor %vm1116, %vm1117
    %v1119 = vsel %vm1118, %v1111, %v1115
    %v1120 = vand.u32 2147483647, %v1108
    %vm1121 = vcmp.eq.f32.partialorder %v1120, 8.507059e+37
    %v1122 = vand.u32 %v1108, 2147483648
    %v1123 = vor.u32 1.1754944e-38, %v1122
    %v1124 = vsel %vm1121, %v1123, %v1119
    %v1125 = vmul.f32 1.0, %v1124
    %v1126 = vrcp.pop %v1109
    %v1127 = vmul.f32 %v1109, %v1126
    %v1128 = vsub.f32 1.0, %v1127
    %v1129 = vmul.f32 %v1126, %v1128
    %v1130 = vadd.f32 %v1126, %v1129
    %vm1131 = vweird.f32 %v1109
    %vm1132 = vweird.f32 %v1126
    %vm1133 = vmor %vm1131, %vm1132
    %v1134 = vsel %vm1133, %v1126, %v1130
    %v1135 = vand.u32 2147483647, %v1109
    %vm1136 = vcmp.eq.f32.partialorder %v1135, 8.507059e+37
    %v1137 = vand.u32 %v1109, 2147483648
    %v1138 = vor.u32 1.1754944e-38, %v1137
    %v1139 = vsel %vm1136, %v1138, %v1134
    %v1140 = vmul.f32 1.0, %v1139
    %v1141 = vrcp.pop %v1110
    %v1142 = vmul.f32 %v1110, %v1141
    %v1143 = vsub.f32 1.0, %v1142
    %v1144 = vmul.f32 %v1141, %v1143
    %v1145 = vadd.f32 %v1141, %v1144
    %vm1146 = vweird.f32 %v1110
    %vm1147 = vweird.f32 %v1141
    %vm1148 = vmor %vm1146, %vm1147
    %v1149 = vsel %vm1148, %v1141, %v1145
    %v1150 = vand.u32 2147483647, %v1110
    %vm1151 = vcmp.eq.f32.partialorder %v1150, 8.507059e+37
    %v1152 = vand.u32 %v1110, 2147483648
    %v1153 = vor.u32 1.1754944e-38, %v1152
    %v1154 = vsel %vm1151, %v1153, %v1149
    %v1155 = vmul.f32 1.0, %v1154
    %v1156 = vtanh.pop %v1098
    %v1157 = vmul.f32 %v1140, %v1030
    %v1158 = vmul.f32 %v1125, %v1156
    %v1159 = vadd.f32 %v1157, %v1158
    %v1160 = vtanh.pop %v1159
    %v1161 = vmul.f32 %v1155, %v1160
    %v1162 = vpack.c.bf16 %v1161, %v1161
    %s1163 = scalar_lea.vmem [#allocation5], 12
    %1164 = vst [vmem:[%s1163] sm:$0xf] %v1162
    %s1165 = scalar_lea.vmem [#allocation4], 64
    %v1166 = vld [vmem:[%s1165] sm:$0xff]
    %v1167 = vld [vmem:[%s1165 + $0x8] sm:$0xff]
    %v1168 = vunpack.c.l.bf16 %v1166
    %v1169 = vunpack.c.h.bf16 %v1166
    %v1170 = vunpack.c.l.bf16 %v1167
    %v1171 = vunpack.c.h.bf16 %v1167
    %1172 = vmatpush.bf16.msra.mxu0 %v621
    %1173 = vmatpush.bf16.msra.mxu0 %v617
    %1174 = vmatpush.bf16.msra.mxu0 %v613
    %1175 = vmatpush.bf16.msra.mxu0 %v609
    %1176 = vmatpush.bf16.msra.mxu0 %v605
    %1177 = vmatpush.bf16.msra.mxu0 %v601
    %1178 = vmatpush.bf16.msra.mxu0 %v597
    %1179 = vmatpush.bf16.msra.mxu0 %v593
    %1180 = vmatmul.bf16.gmra.mxu0 %v1162
    %v1181 = vpop.f32.mrf.mxu0
    %v1182 = vadd.f32 0.0, %v1181
    %v1183 = vpop.f32.mrf.mxu0
    %1184 = vdwg.mxu0
    %1185 = vmatpush.bf16.msra.mxu0 %v622
    %1186 = vmatpush.bf16.msra.mxu0 %v618
    %1187 = vmatpush.bf16.msra.mxu0 %v614
    %1188 = vmatpush.bf16.msra.mxu0 %v610
    %1189 = vmatpush.bf16.msra.mxu0 %v606
    %1190 = vmatpush.bf16.msra.mxu0 %v602
    %1191 = vmatpush.bf16.msra.mxu0 %v598
    %1192 = vmatpush.bf16.msra.mxu0 %v594
    %1193 = vmatmul.bf16.gmra.mxu0 %v1162
    %v1194 = vpop.f32.mrf.mxu0
    %v1195 = vadd.f32 0.0, %v1194
    %v1196 = vpop.f32.mrf.mxu0
    %1197 = vdwg.mxu0
    %1198 = vmatpush.bf16.msra.mxu0 %v623
    %1199 = vmatpush.bf16.msra.mxu0 %v619
    %1200 = vmatpush.bf16.msra.mxu0 %v615
    %1201 = vmatpush.bf16.msra.mxu0 %v611
    %1202 = vmatpush.bf16.msra.mxu0 %v607
    %1203 = vmatpush.bf16.msra.mxu0 %v603
    %1204 = vmatpush.bf16.msra.mxu0 %v599
    %1205 = vmatpush.bf16.msra.mxu0 %v595
    %1206 = vmatmul.bf16.gmra.mxu0 %v1162
    %v1207 = vpop.f32.mrf.mxu0
    %v1208 = vadd.f32 0.0, %v1207
    %v1209 = vpop.f32.mrf.mxu0
    %1210 = vdwg.mxu0
    %1211 = vmatpush.bf16.msra.mxu0 %v624
    %1212 = vmatpush.bf16.msra.mxu0 %v620
    %1213 = vmatpush.bf16.msra.mxu0 %v616
    %1214 = vmatpush.bf16.msra.mxu0 %v612
    %1215 = vmatpush.bf16.msra.mxu0 %v608
    %1216 = vmatpush.bf16.msra.mxu0 %v604
    %1217 = vmatpush.bf16.msra.mxu0 %v600
    %1218 = vmatpush.bf16.msra.mxu0 %v596
    %1219 = vmatmul.bf16.gmra.mxu0 %v1162
    %v1220 = vpop.f32.mrf.mxu0
    %v1221 = vadd.f32 0.0, %v1220
    %v1222 = vpop.f32.mrf.mxu0
    %1223 = vdwg.mxu0
    %v1224 = vadd.f32 %v1168, %v1182
    %v1225 = vadd.f32 %v1169, %v1195
    %v1226 = vadd.f32 %v1170, %v1208
    %v1227 = vadd.f32 %v1171, %v1221
    %v1228 = vxor.u32 %v1224, 2147483648
    %v1229 = vxor.u32 %v1225, 2147483648
    %v1230 = vxor.u32 %v1226, 2147483648
    %v1231 = vmul.f32 %v1228, 1.442695
    %v1232 = vpow.pop %v1231
    %v1233 = vmul.f32 %v1229, 1.442695
    %v1234 = vpow.pop %v1233
    %v1235 = vmul.f32 %v1230, 1.442695
    %v1236 = vpow.pop %v1235
    %v1237 = vadd.f32 %v1232, 1.0
    %v1238 = vadd.f32 %v1234, 1.0
    %v1239 = vadd.f32 %v1236, 1.0
    %v1240 = vrcp.pop %v1237
    %v1241 = vmul.f32 %v1237, %v1240
    %v1242 = vsub.f32 1.0, %v1241
    %v1243 = vmul.f32 %v1240, %v1242
    %v1244 = vadd.f32 %v1240, %v1243
    %vm1245 = vweird.f32 %v1237
    %vm1246 = vweird.f32 %v1240
    %vm1247 = vmor %vm1245, %vm1246
    %v1248 = vsel %vm1247, %v1240, %v1244
    %v1249 = vand.u32 2147483647, %v1237
    %vm1250 = vcmp.eq.f32.partialorder %v1249, 8.507059e+37
    %v1251 = vand.u32 %v1237, 2147483648
    %v1252 = vor.u32 1.1754944e-38, %v1251
    %v1253 = vsel %vm1250, %v1252, %v1248
    %v1254 = vmul.f32 1.0, %v1253
    %v1255 = vrcp.pop %v1238
    %v1256 = vmul.f32 %v1238, %v1255
    %v1257 = vsub.f32 1.0, %v1256
    %v1258 = vmul.f32 %v1255, %v1257
    %v1259 = vadd.f32 %v1255, %v1258
    %vm1260 = vweird.f32 %v1238
    %vm1261 = vweird.f32 %v1255
    %vm1262 = vmor %vm1260, %vm1261
    %v1263 = vsel %vm1262, %v1255, %v1259
    %v1264 = vand.u32 2147483647, %v1238
    %vm1265 = vcmp.eq.f32.partialorder %v1264, 8.507059e+37
    %v1266 = vand.u32 %v1238, 2147483648
    %v1267 = vor.u32 1.1754944e-38, %v1266
    %v1268 = vsel %vm1265, %v1267, %v1263
    %v1269 = vmul.f32 1.0, %v1268
    %v1270 = vrcp.pop %v1239
    %v1271 = vmul.f32 %v1239, %v1270
    %v1272 = vsub.f32 1.0, %v1271
    %v1273 = vmul.f32 %v1270, %v1272
    %v1274 = vadd.f32 %v1270, %v1273
    %vm1275 = vweird.f32 %v1239
    %vm1276 = vweird.f32 %v1270
    %vm1277 = vmor %vm1275, %vm1276
    %v1278 = vsel %vm1277, %v1270, %v1274
    %v1279 = vand.u32 2147483647, %v1239
    %vm1280 = vcmp.eq.f32.partialorder %v1279, 8.507059e+37
    %v1281 = vand.u32 %v1239, 2147483648
    %v1282 = vor.u32 1.1754944e-38, %v1281
    %v1283 = vsel %vm1280, %v1282, %v1278
    %v1284 = vmul.f32 1.0, %v1283
    %v1285 = vtanh.pop %v1227
    %v1286 = vmul.f32 %v1269, %v1159
    %v1287 = vmul.f32 %v1254, %v1285
    %v1288 = vadd.f32 %v1286, %v1287
    %v1289 = vtanh.pop %v1288
    %v1290 = vmul.f32 %v1284, %v1289
    %v1291 = vpack.c.bf16 %v1290, %v1290
    %s1292 = scalar_lea.vmem [#allocation5], 16
    %1293 = vst [vmem:[%s1292] sm:$0xf] %v1291
    %s1294 = scalar_lea.vmem [#allocation4], 80
    %v1295 = vld [vmem:[%s1294] sm:$0xff]
    %v1296 = vld [vmem:[%s1294 + $0x8] sm:$0xff]
    %v1297 = vunpack.c.l.bf16 %v1295
    %v1298 = vunpack.c.h.bf16 %v1295
    %v1299 = vunpack.c.l.bf16 %v1296
    %v1300 = vunpack.c.h.bf16 %v1296
    %1301 = vmatpush.bf16.msra.mxu0 %v621
    %1302 = vmatpush.bf16.msra.mxu0 %v617
    %1303 = vmatpush.bf16.msra.mxu0 %v613
    %1304 = vmatpush.bf16.msra.mxu0 %v609
    %1305 = vmatpush.bf16.msra.mxu0 %v605
    %1306 = vmatpush.bf16.msra.mxu0 %v601
    %1307 = vmatpush.bf16.msra.mxu0 %v597
    %1308 = vmatpush.bf16.msra.mxu0 %v593
    %1309 = vmatmul.bf16.gmra.mxu0 %v1291
    %v1310 = vpop.f32.mrf.mxu0
    %v1311 = vadd.f32 0.0, %v1310
    %v1312 = vpop.f32.mrf.mxu0
    %1313 = vdwg.mxu0
    %1314 = vmatpush.bf16.msra.mxu0 %v622
    %1315 = vmatpush.bf16.msra.mxu0 %v618
    %1316 = vmatpush.bf16.msra.mxu0 %v614
    %1317 = vmatpush.bf16.msra.mxu0 %v610
    %1318 = vmatpush.bf16.msra.mxu0 %v606
    %1319 = vmatpush.bf16.msra.mxu0 %v602
    %1320 = vmatpush.bf16.msra.mxu0 %v598
    %1321 = vmatpush.bf16.msra.mxu0 %v594
    %1322 = vmatmul.bf16.gmra.mxu0 %v1291
    %v1323 = vpop.f32.mrf.mxu0
    %v1324 = vadd.f32 0.0, %v1323
    %v1325 = vpop.f32.mrf.mxu0
    %1326 = vdwg.mxu0
    %1327 = vmatpush.bf16.msra.mxu0 %v623
    %1328 = vmatpush.bf16.msra.mxu0 %v619
    %1329 = vmatpush.bf16.msra.mxu0 %v615
    %1330 = vmatpush.bf16.msra.mxu0 %v611
    %1331 = vmatpush.bf16.msra.mxu0 %v607
    %1332 = vmatpush.bf16.msra.mxu0 %v603
    %1333 = vmatpush.bf16.msra.mxu0 %v599
    %1334 = vmatpush.bf16.msra.mxu0 %v595
    %1335 = vmatmul.bf16.gmra.mxu0 %v1291
    %v1336 = vpop.f32.mrf.mxu0
    %v1337 = vadd.f32 0.0, %v1336
    %v1338 = vpop.f32.mrf.mxu0
    %1339 = vdwg.mxu0
    %1340 = vmatpush.bf16.msra.mxu0 %v624
    %1341 = vmatpush.bf16.msra.mxu0 %v620
    %1342 = vmatpush.bf16.msra.mxu0 %v616
    %1343 = vmatpush.bf16.msra.mxu0 %v612
    %1344 = vmatpush.bf16.msra.mxu0 %v608
    %1345 = vmatpush.bf16.msra.mxu0 %v604
    %1346 = vmatpush.bf16.msra.mxu0 %v600
    %1347 = vmatpush.bf16.msra.mxu0 %v596
    %1348 = vmatmul.bf16.gmra.mxu0 %v1291
    %v1349 = vpop.f32.mrf.mxu0
    %v1350 = vadd.f32 0.0, %v1349
    %v1351 = vpop.f32.mrf.mxu0
    %1352 = vdwg.mxu0
    %v1353 = vadd.f32 %v1297, %v1311
    %v1354 = vadd.f32 %v1298, %v1324
    %v1355 = vadd.f32 %v1299, %v1337
    %v1356 = vadd.f32 %v1300, %v1350
    %v1357 = vxor.u32 %v1353, 2147483648
    %v1358 = vxor.u32 %v1354, 2147483648
    %v1359 = vxor.u32 %v1355, 2147483648
    %v1360 = vmul.f32 %v1357, 1.442695
    %v1361 = vpow.pop %v1360
    %v1362 = vmul.f32 %v1358, 1.442695
    %v1363 = vpow.pop %v1362
    %v1364 = vmul.f32 %v1359, 1.442695
    %v1365 = vpow.pop %v1364
    %v1366 = vadd.f32 %v1361, 1.0
    %v1367 = vadd.f32 %v1363, 1.0
    %v1368 = vadd.f32 %v1365, 1.0
    %v1369 = vrcp.pop %v1366
    %v1370 = vmul.f32 %v1366, %v1369
    %v1371 = vsub.f32 1.0, %v1370
    %v1372 = vmul.f32 %v1369, %v1371
    %v1373 = vadd.f32 %v1369, %v1372
    %vm1374 = vweird.f32 %v1366
    %vm1375 = vweird.f32 %v1369
    %vm1376 = vmor %vm1374, %vm1375
    %v1377 = vsel %vm1376, %v1369, %v1373
    %v1378 = vand.u32 2147483647, %v1366
    %vm1379 = vcmp.eq.f32.partialorder %v1378, 8.507059e+37
    %v1380 = vand.u32 %v1366, 2147483648
    %v1381 = vor.u32 1.1754944e-38, %v1380
    %v1382 = vsel %vm1379, %v1381, %v1377
    %v1383 = vmul.f32 1.0, %v1382
    %v1384 = vrcp.pop %v1367
    %v1385 = vmul.f32 %v1367, %v1384
    %v1386 = vsub.f32 1.0, %v1385
    %v1387 = vmul.f32 %v1384, %v1386
    %v1388 = vadd.f32 %v1384, %v1387
    %vm1389 = vweird.f32 %v1367
    %vm1390 = vweird.f32 %v1384
    %vm1391 = vmor %vm1389, %vm1390
    %v1392 = vsel %vm1391, %v1384, %v1388
    %v1393 = vand.u32 2147483647, %v1367
    %vm1394 = vcmp.eq.f32.partialorder %v1393, 8.507059e+37
    %v1395 = vand.u32 %v1367, 2147483648
    %v1396 = vor.u32 1.1754944e-38, %v1395
    %v1397 = vsel %vm1394, %v1396, %v1392
    %v1398 = vmul.f32 1.0, %v1397
    %v1399 = vrcp.pop %v1368
    %v1400 = vmul.f32 %v1368, %v1399
    %v1401 = vsub.f32 1.0, %v1400
    %v1402 = vmul.f32 %v1399, %v1401
    %v1403 = vadd.f32 %v1399, %v1402
    %vm1404 = vweird.f32 %v1368
    %vm1405 = vweird.f32 %v1399
    %vm1406 = vmor %vm1404, %vm1405
    %v1407 = vsel %vm1406, %v1399, %v1403
    %v1408 = vand.u32 2147483647, %v1368
    %vm1409 = vcmp.eq.f32.partialorder %v1408, 8.507059e+37
    %v1410 = vand.u32 %v1368, 2147483648
    %v1411 = vor.u32 1.1754944e-38, %v1410
    %v1412 = vsel %vm1409, %v1411, %v1407
    %v1413 = vmul.f32 1.0, %v1412
    %v1414 = vtanh.pop %v1356
    %v1415 = vmul.f32 %v1398, %v1288
    %v1416 = vmul.f32 %v1383, %v1414
    %v1417 = vadd.f32 %v1415, %v1416
    %v1418 = vtanh.pop %v1417
    %v1419 = vmul.f32 %v1413, %v1418
    %v1420 = vpack.c.bf16 %v1419, %v1419
    %s1421 = scalar_lea.vmem [#allocation5], 20
    %1422 = vst [vmem:[%s1421] sm:$0xf] %v1420
    %s1423 = scalar_lea.vmem [#allocation4], 96
    %v1424 = vld [vmem:[%s1423] sm:$0xff]
    %v1425 = vld [vmem:[%s1423 + $0x8] sm:$0xff]
    %v1426 = vunpack.c.l.bf16 %v1424
    %v1427 = vunpack.c.h.bf16 %v1424
    %v1428 = vunpack.c.l.bf16 %v1425
    %v1429 = vunpack.c.h.bf16 %v1425
    %1430 = vmatpush.bf16.msra.mxu0 %v621
    %1431 = vmatpush.bf16.msra.mxu0 %v617
    %1432 = vmatpush.bf16.msra.mxu0 %v613
    %1433 = vmatpush.bf16.msra.mxu0 %v609
    %1434 = vmatpush.bf16.msra.mxu0 %v605
    %1435 = vmatpush.bf16.msra.mxu0 %v601
    %1436 = vmatpush.bf16.msra.mxu0 %v597
    %1437 = vmatpush.bf16.msra.mxu0 %v593
    %1438 = vmatmul.bf16.gmra.mxu0 %v1420
    %v1439 = vpop.f32.mrf.mxu0
    %v1440 = vadd.f32 0.0, %v1439
    %v1441 = vpop.f32.mrf.mxu0
    %1442 = vdwg.mxu0
    %1443 = vmatpush.bf16.msra.mxu0 %v622
    %1444 = vmatpush.bf16.msra.mxu0 %v618
    %1445 = vmatpush.bf16.msra.mxu0 %v614
    %1446 = vmatpush.bf16.msra.mxu0 %v610
    %1447 = vmatpush.bf16.msra.mxu0 %v606
    %1448 = vmatpush.bf16.msra.mxu0 %v602
    %1449 = vmatpush.bf16.msra.mxu0 %v598
    %1450 = vmatpush.bf16.msra.mxu0 %v594
    %1451 = vmatmul.bf16.gmra.mxu0 %v1420
    %v1452 = vpop.f32.mrf.mxu0
    %v1453 = vadd.f32 0.0, %v1452
    %v1454 = vpop.f32.mrf.mxu0
    %1455 = vdwg.mxu0
    %1456 = vmatpush.bf16.msra.mxu0 %v623
    %1457 = vmatpush.bf16.msra.mxu0 %v619
    %1458 = vmatpush.bf16.msra.mxu0 %v615
    %1459 = vmatpush.bf16.msra.mxu0 %v611
    %1460 = vmatpush.bf16.msra.mxu0 %v607
    %1461 = vmatpush.bf16.msra.mxu0 %v603
    %1462 = vmatpush.bf16.msra.mxu0 %v599
    %1463 = vmatpush.bf16.msra.mxu0 %v595
    %1464 = vmatmul.bf16.gmra.mxu0 %v1420
    %v1465 = vpop.f32.mrf.mxu0
    %v1466 = vadd.f32 0.0, %v1465
    %v1467 = vpop.f32.mrf.mxu0
    %1468 = vdwg.mxu0
    %1469 = vmatpush.bf16.msra.mxu0 %v624
    %1470 = vmatpush.bf16.msra.mxu0 %v620
    %1471 = vmatpush.bf16.msra.mxu0 %v616
    %1472 = vmatpush.bf16.msra.mxu0 %v612
    %1473 = vmatpush.bf16.msra.mxu0 %v608
    %1474 = vmatpush.bf16.msra.mxu0 %v604
    %1475 = vmatpush.bf16.msra.mxu0 %v600
    %1476 = vmatpush.bf16.msra.mxu0 %v596
    %1477 = vmatmul.bf16.gmra.mxu0 %v1420
    %v1478 = vpop.f32.mrf.mxu0
    %v1479 = vadd.f32 0.0, %v1478
    %v1480 = vpop.f32.mrf.mxu0
    %1481 = vdwg.mxu0
    %v1482 = vadd.f32 %v1426, %v1440
    %v1483 = vadd.f32 %v1427, %v1453
    %v1484 = vadd.f32 %v1428, %v1466
    %v1485 = vadd.f32 %v1429, %v1479
    %v1486 = vxor.u32 %v1482, 2147483648
    %v1487 = vxor.u32 %v1483, 2147483648
    %v1488 = vxor.u32 %v1484, 2147483648
    %v1489 = vmul.f32 %v1486, 1.442695
    %v1490 = vpow.pop %v1489
    %v1491 = vmul.f32 %v1487, 1.442695
    %v1492 = vpow.pop %v1491
    %v1493 = vmul.f32 %v1488, 1.442695
    %v1494 = vpow.pop %v1493
    %v1495 = vadd.f32 %v1490, 1.0
    %v1496 = vadd.f32 %v1492, 1.0
    %v1497 = vadd.f32 %v1494, 1.0
    %v1498 = vrcp.pop %v1495
    %v1499 = vmul.f32 %v1495, %v1498
    %v1500 = vsub.f32 1.0, %v1499
    %v1501 = vmul.f32 %v1498, %v1500
    %v1502 = vadd.f32 %v1498, %v1501
    %vm1503 = vweird.f32 %v1495
    %vm1504 = vweird.f32 %v1498
    %vm1505 = vmor %vm1503, %vm1504
    %v1506 = vsel %vm1505, %v1498, %v1502
    %v1507 = vand.u32 2147483647, %v1495
    %vm1508 = vcmp.eq.f32.partialorder %v1507, 8.507059e+37
    %v1509 = vand.u32 %v1495, 2147483648
    %v1510 = vor.u32 1.1754944e-38, %v1509
    %v1511 = vsel %vm1508, %v1510, %v1506
    %v1512 = vmul.f32 1.0, %v1511
    %v1513 = vrcp.pop %v1496
    %v1514 = vmul.f32 %v1496, %v1513
    %v1515 = vsub.f32 1.0, %v1514
    %v1516 = vmul.f32 %v1513, %v1515
    %v1517 = vadd.f32 %v1513, %v1516
    %vm1518 = vweird.f32 %v1496
    %vm1519 = vweird.f32 %v1513
    %vm1520 = vmor %vm1518, %vm1519
    %v1521 = vsel %vm1520, %v1513, %v1517
    %v1522 = vand.u32 2147483647, %v1496
    %vm1523 = vcmp.eq.f32.partialorder %v1522, 8.507059e+37
    %v1524 = vand.u32 %v1496, 2147483648
    %v1525 = vor.u32 1.1754944e-38, %v1524
    %v1526 = vsel %vm1523, %v1525, %v1521
    %v1527 = vmul.f32 1.0, %v1526
    %v1528 = vrcp.pop %v1497
    %v1529 = vmul.f32 %v1497, %v1528
    %v1530 = vsub.f32 1.0, %v1529
    %v1531 = vmul.f32 %v1528, %v1530
    %v1532 = vadd.f32 %v1528, %v1531
    %vm1533 = vweird.f32 %v1497
    %vm1534 = vweird.f32 %v1528
    %vm1535 = vmor %vm1533, %vm1534
    %v1536 = vsel %vm1535, %v1528, %v1532
    %v1537 = vand.u32 2147483647, %v1497
    %vm1538 = vcmp.eq.f32.partialorder %v1537, 8.507059e+37
    %v1539 = vand.u32 %v1497, 2147483648
    %v1540 = vor.u32 1.1754944e-38, %v1539
    %v1541 = vsel %vm1538, %v1540, %v1536
    %v1542 = vmul.f32 1.0, %v1541
    %v1543 = vtanh.pop %v1485
    %v1544 = vmul.f32 %v1527, %v1417
    %v1545 = vmul.f32 %v1512, %v1543
    %v1546 = vadd.f32 %v1544, %v1545
    %v1547 = vtanh.pop %v1546
    %v1548 = vmul.f32 %v1542, %v1547
    %v1549 = vpack.c.bf16 %v1548, %v1548
    %s1550 = scalar_lea.vmem [#allocation5], 24
    %1551 = vst [vmem:[%s1550] sm:$0xf] %v1549
    %s1552 = scalar_lea.vmem [#allocation4], 112
    %v1553 = vld [vmem:[%s1552] sm:$0xff]
    %v1554 = vld [vmem:[%s1552 + $0x8] sm:$0xff]
    %v1555 = vunpack.c.l.bf16 %v1553
    %v1556 = vunpack.c.h.bf16 %v1553
    %v1557 = vunpack.c.l.bf16 %v1554
    %v1558 = vunpack.c.h.bf16 %v1554
    %1559 = vmatpush.bf16.msra.mxu0 %v621
    %1560 = vmatpush.bf16.msra.mxu0 %v617
    %1561 = vmatpush.bf16.msra.mxu0 %v613
    %1562 = vmatpush.bf16.msra.mxu0 %v609
    %1563 = vmatpush.bf16.msra.mxu0 %v605
    %1564 = vmatpush.bf16.msra.mxu0 %v601
    %1565 = vmatpush.bf16.msra.mxu0 %v597
    %1566 = vmatpush.bf16.msra.mxu0 %v593
    %1567 = vmatmul.bf16.gmra.mxu0 %v1549
    %v1568 = vpop.f32.mrf.mxu0
    %v1569 = vadd.f32 0.0, %v1568
    %v1570 = vpop.f32.mrf.mxu0
    %1571 = vdwg.mxu0
    %1572 = vmatpush.bf16.msra.mxu0 %v622
    %1573 = vmatpush.bf16.msra.mxu0 %v618
    %1574 = vmatpush.bf16.msra.mxu0 %v614
    %1575 = vmatpush.bf16.msra.mxu0 %v610
    %1576 = vmatpush.bf16.msra.mxu0 %v606
    %1577 = vmatpush.bf16.msra.mxu0 %v602
    %1578 = vmatpush.bf16.msra.mxu0 %v598
    %1579 = vmatpush.bf16.msra.mxu0 %v594
    %1580 = vmatmul.bf16.gmra.mxu0 %v1549
    %v1581 = vpop.f32.mrf.mxu0
    %v1582 = vadd.f32 0.0, %v1581
    %v1583 = vpop.f32.mrf.mxu0
    %1584 = vdwg.mxu0
    %1585 = vmatpush.bf16.msra.mxu0 %v623
    %1586 = vmatpush.bf16.msra.mxu0 %v619
    %1587 = vmatpush.bf16.msra.mxu0 %v615
    %1588 = vmatpush.bf16.msra.mxu0 %v611
    %1589 = vmatpush.bf16.msra.mxu0 %v607
    %1590 = vmatpush.bf16.msra.mxu0 %v603
    %1591 = vmatpush.bf16.msra.mxu0 %v599
    %1592 = vmatpush.bf16.msra.mxu0 %v595
    %1593 = vmatmul.bf16.gmra.mxu0 %v1549
    %v1594 = vpop.f32.mrf.mxu0
    %v1595 = vadd.f32 0.0, %v1594
    %v1596 = vpop.f32.mrf.mxu0
    %1597 = vdwg.mxu0
    %1598 = vmatpush.bf16.msra.mxu0 %v624
    %1599 = vmatpush.bf16.msra.mxu0 %v620
    %1600 = vmatpush.bf16.msra.mxu0 %v616
    %1601 = vmatpush.bf16.msra.mxu0 %v612
    %1602 = vmatpush.bf16.msra.mxu0 %v608
    %1603 = vmatpush.bf16.msra.mxu0 %v604
    %1604 = vmatpush.bf16.msra.mxu0 %v600
    %1605 = vmatpush.bf16.msra.mxu0 %v596
    %1606 = vmatmul.bf16.gmra.mxu0 %v1549
    %v1607 = vpop.f32.mrf.mxu0
    %v1608 = vadd.f32 0.0, %v1607
    %v1609 = vpop.f32.mrf.mxu0
    %1610 = vdwg.mxu0
    %v1611 = vadd.f32 %v1555, %v1569
    %v1612 = vadd.f32 %v1556, %v1582
    %v1613 = vadd.f32 %v1557, %v1595
    %v1614 = vadd.f32 %v1558, %v1608
    %v1615 = vxor.u32 %v1611, 2147483648
    %v1616 = vxor.u32 %v1612, 2147483648
    %v1617 = vxor.u32 %v1613, 2147483648
    %v1618 = vmul.f32 %v1615, 1.442695
    %v1619 = vpow.pop %v1618
    %v1620 = vmul.f32 %v1616, 1.442695
    %v1621 = vpow.pop %v1620
    %v1622 = vmul.f32 %v1617, 1.442695
    %v1623 = vpow.pop %v1622
    %v1624 = vadd.f32 %v1619, 1.0
    %v1625 = vadd.f32 %v1621, 1.0
    %v1626 = vadd.f32 %v1623, 1.0
    %v1627 = vrcp.pop %v1624
    %v1628 = vmul.f32 %v1624, %v1627
    %v1629 = vsub.f32 1.0, %v1628
    %v1630 = vmul.f32 %v1627, %v1629
    %v1631 = vadd.f32 %v1627, %v1630
    %vm1632 = vweird.f32 %v1624
    %vm1633 = vweird.f32 %v1627
    %vm1634 = vmor %vm1632, %vm1633
    %v1635 = vsel %vm1634, %v1627, %v1631
    %v1636 = vand.u32 2147483647, %v1624
    %vm1637 = vcmp.eq.f32.partialorder %v1636, 8.507059e+37
    %v1638 = vand.u32 %v1624, 2147483648
    %v1639 = vor.u32 1.1754944e-38, %v1638
    %v1640 = vsel %vm1637, %v1639, %v1635
    %v1641 = vmul.f32 1.0, %v1640
    %v1642 = vrcp.pop %v1625
    %v1643 = vmul.f32 %v1625, %v1642
    %v1644 = vsub.f32 1.0, %v1643
    %v1645 = vmul.f32 %v1642, %v1644
    %v1646 = vadd.f32 %v1642, %v1645
    %vm1647 = vweird.f32 %v1625
    %vm1648 = vweird.f32 %v1642
    %vm1649 = vmor %vm1647, %vm1648
    %v1650 = vsel %vm1649, %v1642, %v1646
    %v1651 = vand.u32 2147483647, %v1625
    %vm1652 = vcmp.eq.f32.partialorder %v1651, 8.507059e+37
    %v1653 = vand.u32 %v1625, 2147483648
    %v1654 = vor.u32 1.1754944e-38, %v1653
    %v1655 = vsel %vm1652, %v1654, %v1650
    %v1656 = vmul.f32 1.0, %v1655
    %v1657 = vrcp.pop %v1626
    %v1658 = vmul.f32 %v1626, %v1657
    %v1659 = vsub.f32 1.0, %v1658
    %v1660 = vmul.f32 %v1657, %v1659
    %v1661 = vadd.f32 %v1657, %v1660
    %vm1662 = vweird.f32 %v1626
    %vm1663 = vweird.f32 %v1657
    %vm1664 = vmor %vm1662, %vm1663
    %v1665 = vsel %vm1664, %v1657, %v1661
    %v1666 = vand.u32 2147483647, %v1626
    %vm1667 = vcmp.eq.f32.partialorder %v1666, 8.507059e+37
    %v1668 = vand.u32 %v1626, 2147483648
    %v1669 = vor.u32 1.1754944e-38, %v1668
    %v1670 = vsel %vm1667, %v1669, %v1665
    %v1671 = vmul.f32 1.0, %v1670
    %v1672 = vtanh.pop %v1614
    %v1673 = vmul.f32 %v1656, %v1546
    %v1674 = vmul.f32 %v1641, %v1672
    %v1675 = vadd.f32 %v1673, %v1674
    %v1676 = vtanh.pop %v1675
    %v1677 = vmul.f32 %v1671, %v1676
    %v1678 = vpack.c.bf16 %v1677, %v1677
    %s1679 = scalar_lea.vmem [#allocation5], 28
    %1680 = vst [vmem:[%s1679] sm:$0xf] %v1678
    %1681 = vst [vmem:[#allocation2] sm:$0xff] %v1677
    %1682 = vst [vmem:[#allocation3] sm:$0xff] %v1675
    %v1683 = vld [vmem:[#allocation5] sm:$0xf]
    %v1684 = vld [vmem:[#allocation5 + $0x4] sm:$0xf]
    %v1685 = vld [vmem:[#allocation5 + $0x8] sm:$0xf]
    %v1686 = vld [vmem:[#allocation5 + $0xc] sm:$0xf]
    %v1687 = vld [vmem:[#allocation5 + $0x10] sm:$0xf]
    %v1688 = vld [vmem:[#allocation5 + $0x14] sm:$0xf]
    %v1689 = vld [vmem:[#allocation5 + $0x18] sm:$0xf]
    %v1690 = vld [vmem:[#allocation5 + $0x1c] sm:$0xf]
    %s1691 = scalar_lea.vmem [#allocation6], 256
    %v1692 = vld [vmem:[%s1691] sm:$0xff]
    %v1693 = vld [vmem:[%s1691 + $0x8] sm:$0xff]
    %v1694 = vld [vmem:[%s1691 + $0x10] sm:$0xff]
    %v1695 = vld [vmem:[%s1691 + $0x18] sm:$0xff]
    %v1696 = vld [vmem:[%s1691 + $0x20] sm:$0xff]
    %v1697 = vld [vmem:[%s1691 + $0x28] sm:$0xff]
    %v1698 = vld [vmem:[%s1691 + $0x30] sm:$0xff]
    %v1699 = vld [vmem:[%s1691 + $0x38] sm:$0xff]
    %v1700 = vld [vmem:[%s1691 + $0x40] sm:$0xff]
    %v1701 = vld [vmem:[%s1691 + $0x48] sm:$0xff]
    %v1702 = vld [vmem:[%s1691 + $0x50] sm:$0xff]
    %v1703 = vld [vmem:[%s1691 + $0x58] sm:$0xff]
    %v1704 = vld [vmem:[%s1691 + $0x60] sm:$0xff]
    %v1705 = vld [vmem:[%s1691 + $0x68] sm:$0xff]
    %v1706 = vld [vmem:[%s1691 + $0x70] sm:$0xff]
    %v1707 = vld [vmem:[%s1691 + $0x78] sm:$0xff]
    %v1708 = vld [vmem:[%s1691 + $0x80] sm:$0xff]
    %v1709 = vld [vmem:[%s1691 + $0x88] sm:$0xff]
    %v1710 = vld [vmem:[%s1691 + $0x90] sm:$0xff]
    %v1711 = vld [vmem:[%s1691 + $0x98] sm:$0xff]
    %v1712 = vld [vmem:[%s1691 + $0xa0] sm:$0xff]
    %v1713 = vld [vmem:[%s1691 + $0xa8] sm:$0xff]
    %v1714 = vld [vmem:[%s1691 + $0xb0] sm:$0xff]
    %v1715 = vld [vmem:[%s1691 + $0xb8] sm:$0xff]
    %v1716 = vld [vmem:[%s1691 + $0xc0] sm:$0xff]
    %v1717 = vld [vmem:[%s1691 + $0xc8] sm:$0xff]
    %v1718 = vld [vmem:[%s1691 + $0xd0] sm:$0xff]
    %v1719 = vld [vmem:[%s1691 + $0xd8] sm:$0xff]
    %v1720 = vld [vmem:[%s1691 + $0xe0] sm:$0xff]
    %v1721 = vld [vmem:[%s1691 + $0xe8] sm:$0xff]
    %v1722 = vld [vmem:[%s1691 + $0xf0] sm:$0xff]
    %v1723 = vld [vmem:[%s1691 + $0xf8] sm:$0xff]
    %s1724 = scalar_lea.vmem %s5, 4
    %v1725 = vld [vmem:[%s1724] sm:$0xf]
    %v1727 = vperm.slane %v1725, 0
    %v1728 = vperm.slane %v1725, 1
    %v1729 = vperm.slane %v1725, 2
    %v1730 = vperm.slane %v1725, 3
    %v1743 = vunpack.c.l.b16 %v1683
    %v1744 = vunpack.c.l.b16 %v1684
    %v1745 = vunpack.c.l.b16 %v1685
    %v1746 = vunpack.c.l.b16 %v1686
    %v1747 = vunpack.c.l.b16 %v1687
    %v1748 = vunpack.c.l.b16 %v1688
    %v1749 = vunpack.c.l.b16 %v1689
    %v1750 = vunpack.c.l.b16 %v1690
    %v1751 = vpack.c.b16 %v1744, %v1743
    %v1752 = vpack.c.b16 %v1746, %v1745
    %v1753 = vpack.c.b16 %v1748, %v1747
    %v1754 = vpack.c.b16 %v1750, %v1749
    %v1791 = vunpack.c.l.b16 %v1692
    %v1792 = vunpack.c.h.b16 %v1692
    %v1793 = vunpack.c.l.b16 %v1693
    %v1794 = vunpack.c.h.b16 %v1693
    %v1795 = vunpack.c.l.b16 %v1694
    %v1796 = vunpack.c.h.b16 %v1694
    %v1797 = vunpack.c.l.b16 %v1695
    %v1798 = vunpack.c.h.b16 %v1695
    %v1799 = vunpack.c.l.b16 %v1696
    %v1800 = vunpack.c.h.b16 %v1696
    %v1801 = vunpack.c.l.b16 %v1697
    %v1802 = vunpack.c.h.b16 %v1697
    %v1803 = vunpack.c.l.b16 %v1698
    %v1804 = vunpack.c.h.b16 %v1698
    %v1805 = vunpack.c.l.b16 %v1699
    %v1806 = vunpack.c.h.b16 %v1699
    %v1807 = vunpack.c.l.b16 %v1700
    %v1808 = vunpack.c.h.b16 %v1700
    %v1809 = vunpack.c.l.b16 %v1701
    %v1810 = vunpack.c.h.b16 %v1701
    %v1811 = vunpack.c.l.b16 %v1702
    %v1812 = vunpack.c.h.b16 %v1702
    %v1813 = vunpack.c.l.b16 %v1703
    %v1814 = vunpack.c.h.b16 %v1703
    %v1815 = vunpack.c.l.b16 %v1704
    %v1816 = vunpack.c.h.b16 %v1704
    %v1817 = vunpack.c.l.b16 %v1705
    %v1818 = vunpack.c.h.b16 %v1705
    %v1819 = vunpack.c.l.b16 %v1706
    %v1820 = vunpack.c.h.b16 %v1706
    %v1821 = vunpack.c.l.b16 %v1707
    %v1822 = vunpack.c.h.b16 %v1707
    %v1823 = vunpack.c.l.b16 %v1708
    %v1824 = vunpack.c.h.b16 %v1708
    %v1825 = vunpack.c.l.b16 %v1709
    %v1826 = vunpack.c.h.b16 %v1709
    %v1827 = vunpack.c.l.b16 %v1710
    %v1828 = vunpack.c.h.b16 %v1710
    %v1829 = vunpack.c.l.b16 %v1711
    %v1830 = vunpack.c.h.b16 %v1711
    %v1831 = vunpack.c.l.b16 %v1712
    %v1832 = vunpack.c.h.b16 %v1712
    %v1833 = vunpack.c.l.b16 %v1713
    %v1834 = vunpack.c.h.b16 %v1713
    %v1835 = vunpack.c.l.b16 %v1714
    %v1836 = vunpack.c.h.b16 %v1714
    %v1837 = vunpack.c.l.b16 %v1715
    %v1838 = vunpack.c.h.b16 %v1715
    %v1839 = vunpack.c.l.b16 %v1716
    %v1840 = vunpack.c.h.b16 %v1716
    %v1841 = vunpack.c.l.b16 %v1717
    %v1842 = vunpack.c.h.b16 %v1717
    %v1843 = vunpack.c.l.b16 %v1718
    %v1844 = vunpack.c.h.b16 %v1718
    %v1845 = vunpack.c.l.b16 %v1719
    %v1846 = vunpack.c.h.b16 %v1719
    %v1847 = vunpack.c.l.b16 %v1720
    %v1848 = vunpack.c.h.b16 %v1720
    %v1849 = vunpack.c.l.b16 %v1721
    %v1850 = vunpack.c.h.b16 %v1721
    %v1851 = vunpack.c.l.b16 %v1722
    %v1852 = vunpack.c.h.b16 %v1722
    %v1853 = vunpack.c.l.b16 %v1723
    %v1854 = vunpack.c.h.b16 %v1723
    %v1855 = vpack.c.b16 %v1795, %v1791
    %v1856 = vpack.c.b16 %v1796, %v1792
    %v1857 = vpack.c.b16 %v1797, %v1793
    %v1858 = vpack.c.b16 %v1798, %v1794
    %v1859 = vpack.c.b16 %v1803, %v1799
    %v1860 = vpack.c.b16 %v1804, %v1800
    %v1861 = vpack.c.b16 %v1805, %v1801
    %v1862 = vpack.c.b16 %v1806, %v1802
    %v1863 = vpack.c.b16 %v1811, %v1807
    %v1864 = vpack.c.b16 %v1812, %v1808
    %v1865 = vpack.c.b16 %v1813, %v1809
    %v1866 = vpack.c.b16 %v1814, %v1810
    %v1867 = vpack.c.b16 %v1819, %v1815
    %v1868 = vpack.c.b16 %v1820, %v1816
    %v1869 = vpack.c.b16 %v1821, %v1817
    %v1870 = vpack.c.b16 %v1822, %v1818
    %v1871 = vpack.c.b16 %v1827, %v1823
    %v1872 = vpack.c.b16 %v1828, %v1824
    %v1873 = vpack.c.b16 %v1829, %v1825
    %v1874 = vpack.c.b16 %v1830, %v1826
    %v1875 = vpack.c.b16 %v1835, %v1831
    %v1876 = vpack.c.b16 %v1836, %v1832
    %v1877 = vpack.c.b16 %v1837, %v1833
    %v1878 = vpack.c.b16 %v1838, %v1834
    %v1879 = vpack.c.b16 %v1843, %v1839
    %v1880 = vpack.c.b16 %v1844, %v1840
    %v1881 = vpack.c.b16 %v1845, %v1841
    %v1882 = vpack.c.b16 %v1846, %v1842
    %v1883 = vpack.c.b16 %v1851, %v1847
    %v1884 = vpack.c.b16 %v1852, %v1848
    %v1885 = vpack.c.b16 %v1853, %v1849
    %v1886 = vpack.c.b16 %v1854, %v1850
    %1919 = vmatpush.bf16.msra.mxu0 %v1883
    %1920 = vmatpush.bf16.msra.mxu0 %v1879
    %1921 = vmatpush.bf16.msra.mxu0 %v1875
    %1922 = vmatpush.bf16.msra.mxu0 %v1871
    %1923 = vmatpush.bf16.msra.mxu0 %v1867
    %1924 = vmatpush.bf16.msra.mxu0 %v1863
    %1925 = vmatpush.bf16.msra.mxu0 %v1859
    %1926 = vmatpush.bf16.msra.mxu0 %v1855
    %1927 = vmatmul.bf16.gmra.mxu0 %v1751
    %v1928 = vpop.f32.mrf.mxu0
    %v1929 = vadd.f32 %v1727, %v1928
    %v1930 = vpop.f32.mrf.mxu0
    %v1931 = vadd.f32 %v1727, %v1930
    %1932 = vmatmul.bf16.gmra.mxu0 %v1752
    %v1933 = vpop.f32.mrf.mxu0
    %v1934 = vadd.f32 %v1727, %v1933
    %v1935 = vpop.f32.mrf.mxu0
    %v1936 = vadd.f32 %v1727, %v1935
    %1937 = vmatmul.bf16.gmra.mxu0 %v1753
    %v1938 = vpop.f32.mrf.mxu0
    %v1939 = vadd.f32 %v1727, %v1938
    %v1940 = vpop.f32.mrf.mxu0
    %v1941 = vadd.f32 %v1727, %v1940
    %1942 = vmatmul.bf16.gmra.mxu0 %v1754
    %v1943 = vpop.f32.mrf.mxu0
    %v1944 = vadd.f32 %v1727, %v1943
    %v1945 = vpop.f32.mrf.mxu0
    %v1946 = vadd.f32 %v1727, %v1945
    %1947 = vdwg.mxu0
    %1948 = vmatpush.bf16.msra.mxu0 %v1884
    %1949 = vmatpush.bf16.msra.mxu0 %v1880
    %1950 = vmatpush.bf16.msra.mxu0 %v1876
    %1951 = vmatpush.bf16.msra.mxu0 %v1872
    %1952 = vmatpush.bf16.msra.mxu0 %v1868
    %1953 = vmatpush.bf16.msra.mxu0 %v1864
    %1954 = vmatpush.bf16.msra.mxu0 %v1860
    %1955 = vmatpush.bf16.msra.mxu0 %v1856
    %1956 = vmatmul.bf16.gmra.mxu0 %v1751
    %v1957 = vpop.f32.mrf.mxu0
    %v1958 = vadd.f32 %v1728, %v1957
    %v1959 = vpop.f32.mrf.mxu0
    %v1960 = vadd.f32 %v1728, %v1959
    %1961 = vmatmul.bf16.gmra.mxu0 %v1752
    %v1962 = vpop.f32.mrf.mxu0
    %v1963 = vadd.f32 %v1728, %v1962
    %v1964 = vpop.f32.mrf.mxu0
    %v1965 = vadd.f32 %v1728, %v1964
    %1966 = vmatmul.bf16.gmra.mxu0 %v1753
    %v1967 = vpop.f32.mrf.mxu0
    %v1968 = vadd.f32 %v1728, %v1967
    %v1969 = vpop.f32.mrf.mxu0
    %v1970 = vadd.f32 %v1728, %v1969
    %1971 = vmatmul.bf16.gmra.mxu0 %v1754
    %v1972 = vpop.f32.mrf.mxu0
    %v1973 = vadd.f32 %v1728, %v1972
    %v1974 = vpop.f32.mrf.mxu0
    %v1975 = vadd.f32 %v1728, %v1974
    %1976 = vdwg.mxu0
    %1977 = vmatpush.bf16.msra.mxu0 %v1885
    %1978 = vmatpush.bf16.msra.mxu0 %v1881
    %1979 = vmatpush.bf16.msra.mxu0 %v1877
    %1980 = vmatpush.bf16.msra.mxu0 %v1873
    %1981 = vmatpush.bf16.msra.mxu0 %v1869
    %1982 = vmatpush.bf16.msra.mxu0 %v1865
    %1983 = vmatpush.bf16.msra.mxu0 %v1861
    %1984 = vmatpush.bf16.msra.mxu0 %v1857
    %1985 = vmatmul.bf16.gmra.mxu0 %v1751
    %v1986 = vpop.f32.mrf.mxu0
    %v1987 = vadd.f32 %v1729, %v1986
    %v1988 = vpop.f32.mrf.mxu0
    %v1989 = vadd.f32 %v1729, %v1988
    %1990 = vmatmul.bf16.gmra.mxu0 %v1752
    %v1991 = vpop.f32.mrf.mxu0
    %v1992 = vadd.f32 %v1729, %v1991
    %v1993 = vpop.f32.mrf.mxu0
    %v1994 = vadd.f32 %v1729, %v1993
    %1995 = vmatmul.bf16.gmra.mxu0 %v1753
    %v1996 = vpop.f32.mrf.mxu0
    %v1997 = vadd.f32 %v1729, %v1996
    %v1998 = vpop.f32.mrf.mxu0
    %v1999 = vadd.f32 %v1729, %v1998
    %2000 = vmatmul.bf16.gmra.mxu0 %v1754
    %v2001 = vpop.f32.mrf.mxu0
    %v2002 = vadd.f32 %v1729, %v2001
    %v2003 = vpop.f32.mrf.mxu0
    %v2004 = vadd.f32 %v1729, %v2003
    %2005 = vdwg.mxu0
    %2006 = vmatpush.bf16.msra.mxu0 %v1886
    %2007 = vmatpush.bf16.msra.mxu0 %v1882
    %2008 = vmatpush.bf16.msra.mxu0 %v1878
    %2009 = vmatpush.bf16.msra.mxu0 %v1874
    %2010 = vmatpush.bf16.msra.mxu0 %v1870
    %2011 = vmatpush.bf16.msra.mxu0 %v1866
    %2012 = vmatpush.bf16.msra.mxu0 %v1862
    %2013 = vmatpush.bf16.msra.mxu0 %v1858
    %2014 = vmatmul.bf16.gmra.mxu0 %v1751
    %v2015 = vpop.f32.mrf.mxu0
    %v2016 = vadd.f32 %v1730, %v2015
    %v2017 = vpop.f32.mrf.mxu0
    %v2018 = vadd.f32 %v1730, %v2017
    %2019 = vmatmul.bf16.gmra.mxu0 %v1752
    %v2020 = vpop.f32.mrf.mxu0
    %v2021 = vadd.f32 %v1730, %v2020
    %v2022 = vpop.f32.mrf.mxu0
    %v2023 = vadd.f32 %v1730, %v2022
    %2024 = vmatmul.bf16.gmra.mxu0 %v1753
    %v2025 = vpop.f32.mrf.mxu0
    %v2026 = vadd.f32 %v1730, %v2025
    %v2027 = vpop.f32.mrf.mxu0
    %v2028 = vadd.f32 %v1730, %v2027
    %2029 = vmatmul.bf16.gmra.mxu0 %v1754
    %v2030 = vpop.f32.mrf.mxu0
    %v2031 = vadd.f32 %v1730, %v2030
    %v2032 = vpop.f32.mrf.mxu0
    %v2033 = vadd.f32 %v1730, %v2032
    %2034 = vdwg.mxu0
    %v2035 = vpack.c.bf16 %v1958, %v1929
    %v2036 = vpack.c.bf16 %v2016, %v1987
    %v2037 = vpack.c.bf16 %v1960, %v1931
    %v2038 = vpack.c.bf16 %v2018, %v1989
    %v2039 = vpack.c.bf16 %v1963, %v1934
    %v2040 = vpack.c.bf16 %v2021, %v1992
    %v2041 = vpack.c.bf16 %v1965, %v1936
    %v2042 = vpack.c.bf16 %v2023, %v1994
    %v2043 = vpack.c.bf16 %v1968, %v1939
    %v2044 = vpack.c.bf16 %v2026, %v1997
    %v2045 = vpack.c.bf16 %v1970, %v1941
    %v2046 = vpack.c.bf16 %v2028, %v1999
    %v2047 = vpack.c.bf16 %v1973, %v1944
    %v2048 = vpack.c.bf16 %v2031, %v2002
    %v2049 = vpack.c.bf16 %v1975, %v1946
    %v2050 = vpack.c.bf16 %v2033, %v2004
    %2051 = vst [vmem:[#allocation4] sm:$0xff] %v2035
    %2052 = vst [vmem:[#allocation4 + $0x8] sm:$0xff] %v2036
    %2053 = vst [vmem:[#allocation4 + $0x10] sm:$0xff] %v2037
    %2054 = vst [vmem:[#allocation4 + $0x18] sm:$0xff] %v2038
    %2055 = vst [vmem:[#allocation4 + $0x20] sm:$0xff] %v2039
    %2056 = vst [vmem:[#allocation4 + $0x28] sm:$0xff] %v2040
    %2057 = vst [vmem:[#allocation4 + $0x30] sm:$0xff] %v2041
    %2058 = vst [vmem:[#allocation4 + $0x38] sm:$0xff] %v2042
    %2059 = vst [vmem:[#allocation4 + $0x40] sm:$0xff] %v2043
    %2060 = vst [vmem:[#allocation4 + $0x48] sm:$0xff] %v2044
    %2061 = vst [vmem:[#allocation4 + $0x50] sm:$0xff] %v2045
    %2062 = vst [vmem:[#allocation4 + $0x58] sm:$0xff] %v2046
    %2063 = vst [vmem:[#allocation4 + $0x60] sm:$0xff] %v2047
    %2064 = vst [vmem:[#allocation4 + $0x68] sm:$0xff] %v2048
    %2065 = vst [vmem:[#allocation4 + $0x70] sm:$0xff] %v2049
    %2066 = vst [vmem:[#allocation4 + $0x78] sm:$0xff] %v2050
    %s2067 = scalar_lea.vmem [#allocation8], 256
    %v2068 = vld [vmem:[%s2067] sm:$0xff]
    %v2069 = vld [vmem:[%s2067 + $0x8] sm:$0xff]
    %v2070 = vld [vmem:[%s2067 + $0x10] sm:$0xff]
    %v2071 = vld [vmem:[%s2067 + $0x18] sm:$0xff]
    %v2072 = vld [vmem:[%s2067 + $0x20] sm:$0xff]
    %v2073 = vld [vmem:[%s2067 + $0x28] sm:$0xff]
    %v2074 = vld [vmem:[%s2067 + $0x30] sm:$0xff]
    %v2075 = vld [vmem:[%s2067 + $0x38] sm:$0xff]
    %v2076 = vld [vmem:[%s2067 + $0x40] sm:$0xff]
    %v2077 = vld [vmem:[%s2067 + $0x48] sm:$0xff]
    %v2078 = vld [vmem:[%s2067 + $0x50] sm:$0xff]
    %v2079 = vld [vmem:[%s2067 + $0x58] sm:$0xff]
    %v2080 = vld [vmem:[%s2067 + $0x60] sm:$0xff]
    %v2081 = vld [vmem:[%s2067 + $0x68] sm:$0xff]
    %v2082 = vld [vmem:[%s2067 + $0x70] sm:$0xff]
    %v2083 = vld [vmem:[%s2067 + $0x78] sm:$0xff]
    %v2084 = vld [vmem:[%s2067 + $0x80] sm:$0xff]
    %v2085 = vld [vmem:[%s2067 + $0x88] sm:$0xff]
    %v2086 = vld [vmem:[%s2067 + $0x90] sm:$0xff]
    %v2087 = vld [vmem:[%s2067 + $0x98] sm:$0xff]
    %v2088 = vld [vmem:[%s2067 + $0xa0] sm:$0xff]
    %v2089 = vld [vmem:[%s2067 + $0xa8] sm:$0xff]
    %v2090 = vld [vmem:[%s2067 + $0xb0] sm:$0xff]
    %v2091 = vld [vmem:[%s2067 + $0xb8] sm:$0xff]
    %v2092 = vld [vmem:[%s2067 + $0xc0] sm:$0xff]
    %v2093 = vld [vmem:[%s2067 + $0xc8] sm:$0xff]
    %v2094 = vld [vmem:[%s2067 + $0xd0] sm:$0xff]
    %v2095 = vld [vmem:[%s2067 + $0xd8] sm:$0xff]
    %v2096 = vld [vmem:[%s2067 + $0xe0] sm:$0xff]
    %v2097 = vld [vmem:[%s2067 + $0xe8] sm:$0xff]
    %v2098 = vld [vmem:[%s2067 + $0xf0] sm:$0xff]
    %v2099 = vld [vmem:[%s2067 + $0xf8] sm:$0xff]
    %s2100 = scalar_lea.vmem [#allocation2], 8
    %v2101 = vld [vmem:[%s2100] sm:$0xff]
    %s2102 = scalar_lea.vmem [#allocation3], 8
    %v2103 = vld [vmem:[%s2102] sm:$0xff]
    %v2104 = vld [vmem:[#allocation4] sm:$0xff]
    %v2105 = vld [vmem:[#allocation4 + $0x8] sm:$0xff]
    %v2106 = vunpack.c.l.bf16 %v2104
    %v2107 = vunpack.c.h.bf16 %v2104
    %v2108 = vunpack.c.l.bf16 %v2105
    %v2109 = vunpack.c.h.bf16 %v2105
    %v2110 = vpack.c.bf16 %v2101, %v2101
    %v2143 = vunpack.c.l.b16 %v2068
    %v2144 = vunpack.c.h.b16 %v2068
    %v2145 = vunpack.c.l.b16 %v2069
    %v2146 = vunpack.c.h.b16 %v2069
    %v2147 = vunpack.c.l.b16 %v2070
    %v2148 = vunpack.c.h.b16 %v2070
    %v2149 = vunpack.c.l.b16 %v2071
    %v2150 = vunpack.c.h.b16 %v2071
    %v2151 = vunpack.c.l.b16 %v2072
    %v2152 = vunpack.c.h.b16 %v2072
    %v2153 = vunpack.c.l.b16 %v2073
    %v2154 = vunpack.c.h.b16 %v2073
    %v2155 = vunpack.c.l.b16 %v2074
    %v2156 = vunpack.c.h.b16 %v2074
    %v2157 = vunpack.c.l.b16 %v2075
    %v2158 = vunpack.c.h.b16 %v2075
    %v2159 = vunpack.c.l.b16 %v2076
    %v2160 = vunpack.c.h.b16 %v2076
    %v2161 = vunpack.c.l.b16 %v2077
    %v2162 = vunpack.c.h.b16 %v2077
    %v2163 = vunpack.c.l.b16 %v2078
    %v2164 = vunpack.c.h.b16 %v2078
    %v2165 = vunpack.c.l.b16 %v2079
    %v2166 = vunpack.c.h.b16 %v2079
    %v2167 = vunpack.c.l.b16 %v2080
    %v2168 = vunpack.c.h.b16 %v2080
    %v2169 = vunpack.c.l.b16 %v2081
    %v2170 = vunpack.c.h.b16 %v2081
    %v2171 = vunpack.c.l.b16 %v2082
    %v2172 = vunpack.c.h.b16 %v2082
    %v2173 = vunpack.c.l.b16 %v2083
    %v2174 = vunpack.c.h.b16 %v2083
    %v2175 = vunpack.c.l.b16 %v2084
    %v2176 = vunpack.c.h.b16 %v2084
    %v2177 = vunpack.c.l.b16 %v2085
    %v2178 = vunpack.c.h.b16 %v2085
    %v2179 = vunpack.c.l.b16 %v2086
    %v2180 = vunpack.c.h.b16 %v2086
    %v2181 = vunpack.c.l.b16 %v2087
    %v2182 = vunpack.c.h.b16 %v2087
    %v2183 = vunpack.c.l.b16 %v2088
    %v2184 = vunpack.c.h.b16 %v2088
    %v2185 = vunpack.c.l.b16 %v2089
    %v2186 = vunpack.c.h.b16 %v2089
    %v2187 = vunpack.c.l.b16 %v2090
    %v2188 = vunpack.c.h.b16 %v2090
    %v2189 = vunpack.c.l.b16 %v2091
    %v2190 = vunpack.c.h.b16 %v2091
    %v2191 = vunpack.c.l.b16 %v2092
    %v2192 = vunpack.c.h.b16 %v2092
    %v2193 = vunpack.c.l.b16 %v2093
    %v2194 = vunpack.c.h.b16 %v2093
    %v2195 = vunpack.c.l.b16 %v2094
    %v2196 = vunpack.c.h.b16 %v2094
    %v2197 = vunpack.c.l.b16 %v2095
    %v2198 = vunpack.c.h.b16 %v2095
    %v2199 = vunpack.c.l.b16 %v2096
    %v2200 = vunpack.c.h.b16 %v2096
    %v2201 = vunpack.c.l.b16 %v2097
    %v2202 = vunpack.c.h.b16 %v2097
    %v2203 = vunpack.c.l.b16 %v2098
    %v2204 = vunpack.c.h.b16 %v2098
    %v2205 = vunpack.c.l.b16 %v2099
    %v2206 = vunpack.c.h.b16 %v2099
    %v2207 = vpack.c.b16 %v2147, %v2143
    %v2208 = vpack.c.b16 %v2148, %v2144
    %v2209 = vpack.c.b16 %v2149, %v2145
    %v2210 = vpack.c.b16 %v2150, %v2146
    %v2211 = vpack.c.b16 %v2155, %v2151
    %v2212 = vpack.c.b16 %v2156, %v2152
    %v2213 = vpack.c.b16 %v2157, %v2153
    %v2214 = vpack.c.b16 %v2158, %v2154
    %v2215 = vpack.c.b16 %v2163, %v2159
    %v2216 = vpack.c.b16 %v2164, %v2160
    %v2217 = vpack.c.b16 %v2165, %v2161
    %v2218 = vpack.c.b16 %v2166, %v2162
    %v2219 = vpack.c.b16 %v2171, %v2167
    %v2220 = vpack.c.b16 %v2172, %v2168
    %v2221 = vpack.c.b16 %v2173, %v2169
    %v2222 = vpack.c.b16 %v2174, %v2170
    %v2223 = vpack.c.b16 %v2179, %v2175
    %v2224 = vpack.c.b16 %v2180, %v2176
    %v2225 = vpack.c.b16 %v2181, %v2177
    %v2226 = vpack.c.b16 %v2182, %v2178
    %v2227 = vpack.c.b16 %v2187, %v2183
    %v2228 = vpack.c.b16 %v2188, %v2184
    %v2229 = vpack.c.b16 %v2189, %v2185
    %v2230 = vpack.c.b16 %v2190, %v2186
    %v2231 = vpack.c.b16 %v2195, %v2191
    %v2232 = vpack.c.b16 %v2196, %v2192
    %v2233 = vpack.c.b16 %v2197, %v2193
    %v2234 = vpack.c.b16 %v2198, %v2194
    %v2235 = vpack.c.b16 %v2203, %v2199
    %v2236 = vpack.c.b16 %v2204, %v2200
    %v2237 = vpack.c.b16 %v2205, %v2201
    %v2238 = vpack.c.b16 %v2206, %v2202
    %2271 = vmatpush.bf16.msra.mxu0 %v2235
    %2272 = vmatpush.bf16.msra.mxu0 %v2231
    %2273 = vmatpush.bf16.msra.mxu0 %v2227
    %2274 = vmatpush.bf16.msra.mxu0 %v2223
    %2275 = vmatpush.bf16.msra.mxu0 %v2219
    %2276 = vmatpush.bf16.msra.mxu0 %v2215
    %2277 = vmatpush.bf16.msra.mxu0 %v2211
    %2278 = vmatpush.bf16.msra.mxu0 %v2207
    %2279 = vmatmul.bf16.gmra.mxu0 %v2110
    %v2280 = vpop.f32.mrf.mxu0
    %v2281 = vadd.f32 0.0, %v2280
    %v2282 = vpop.f32.mrf.mxu0
    %2283 = vdwg.mxu0
    %2284 = vmatpush.bf16.msra.mxu0 %v2236
    %2285 = vmatpush.bf16.msra.mxu0 %v2232
    %2286 = vmatpush.bf16.msra.mxu0 %v2228
    %2287 = vmatpush.bf16.msra.mxu0 %v2224
    %2288 = vmatpush.bf16.msra.mxu0 %v2220
    %2289 = vmatpush.bf16.msra.mxu0 %v2216
    %2290 = vmatpush.bf16.msra.mxu0 %v2212
    %2291 = vmatpush.bf16.msra.mxu0 %v2208
    %2292 = vmatmul.bf16.gmra.mxu0 %v2110
    %v2293 = vpop.f32.mrf.mxu0
    %v2294 = vadd.f32 0.0, %v2293
    %v2295 = vpop.f32.mrf.mxu0
    %2296 = vdwg.mxu0
    %2297 = vmatpush.bf16.msra.mxu0 %v2237
    %2298 = vmatpush.bf16.msra.mxu0 %v2233
    %2299 = vmatpush.bf16.msra.mxu0 %v2229
    %2300 = vmatpush.bf16.msra.mxu0 %v2225
    %2301 = vmatpush.bf16.msra.mxu0 %v2221
    %2302 = vmatpush.bf16.msra.mxu0 %v2217
    %2303 = vmatpush.bf16.msra.mxu0 %v2213
    %2304 = vmatpush.bf16.msra.mxu0 %v2209
    %2305 = vmatmul.bf16.gmra.mxu0 %v2110
    %v2306 = vpop.f32.mrf.mxu0
    %v2307 = vadd.f32 0.0, %v2306
    %v2308 = vpop.f32.mrf.mxu0
    %2309 = vdwg.mxu0
    %2310 = vmatpush.bf16.msra.mxu0 %v2238
    %2311 = vmatpush.bf16.msra.mxu0 %v2234
    %2312 = vmatpush.bf16.msra.mxu0 %v2230
    %2313 = vmatpush.bf16.msra.mxu0 %v2226
    %2314 = vmatpush.bf16.msra.mxu0 %v2222
    %2315 = vmatpush.bf16.msra.mxu0 %v2218
    %2316 = vmatpush.bf16.msra.mxu0 %v2214
    %2317 = vmatpush.bf16.msra.mxu0 %v2210
    %2318 = vmatmul.bf16.gmra.mxu0 %v2110
    %v2319 = vpop.f32.mrf.mxu0
    %v2320 = vadd.f32 0.0, %v2319
    %v2321 = vpop.f32.mrf.mxu0
    %2322 = vdwg.mxu0
    %v2323 = vadd.f32 %v2106, %v2281
    %v2324 = vadd.f32 %v2107, %v2294
    %v2325 = vadd.f32 %v2108, %v2307
    %v2326 = vadd.f32 %v2109, %v2320
    %v2327 = vxor.u32 %v2323, 2147483648
    %v2328 = vxor.u32 %v2324, 2147483648
    %v2329 = vxor.u32 %v2325, 2147483648
    %v2330 = vmul.f32 %v2327, 1.442695
    %v2331 = vpow.pop %v2330
    %v2332 = vmul.f32 %v2328, 1.442695
    %v2333 = vpow.pop %v2332
    %v2334 = vmul.f32 %v2329, 1.442695
    %v2335 = vpow.pop %v2334
    %v2336 = vadd.f32 %v2331, 1.0
    %v2337 = vadd.f32 %v2333, 1.0
    %v2338 = vadd.f32 %v2335, 1.0
    %v2339 = vrcp.pop %v2336
    %v2340 = vmul.f32 %v2336, %v2339
    %v2341 = vsub.f32 1.0, %v2340
    %v2342 = vmul.f32 %v2339, %v2341
    %v2343 = vadd.f32 %v2339, %v2342
    %vm2344 = vweird.f32 %v2336
    %vm2345 = vweird.f32 %v2339
    %vm2346 = vmor %vm2344, %vm2345
    %v2347 = vsel %vm2346, %v2339, %v2343
    %v2348 = vand.u32 2147483647, %v2336
    %vm2349 = vcmp.eq.f32.partialorder %v2348, 8.507059e+37
    %v2350 = vand.u32 %v2336, 2147483648
    %v2351 = vor.u32 1.1754944e-38, %v2350
    %v2352 = vsel %vm2349, %v2351, %v2347
    %v2353 = vmul.f32 1.0, %v2352
    %v2354 = vrcp.pop %v2337
    %v2355 = vmul.f32 %v2337, %v2354
    %v2356 = vsub.f32 1.0, %v2355
    %v2357 = vmul.f32 %v2354, %v2356
    %v2358 = vadd.f32 %v2354, %v2357
    %vm2359 = vweird.f32 %v2337
    %vm2360 = vweird.f32 %v2354
    %vm2361 = vmor %vm2359, %vm2360
    %v2362 = vsel %vm2361, %v2354, %v2358
    %v2363 = vand.u32 2147483647, %v2337
    %vm2364 = vcmp.eq.f32.partialorder %v2363, 8.507059e+37
    %v2365 = vand.u32 %v2337, 2147483648
    %v2366 = vor.u32 1.1754944e-38, %v2365
    %v2367 = vsel %vm2364, %v2366, %v2362
    %v2368 = vmul.f32 1.0, %v2367
    %v2369 = vrcp.pop %v2338
    %v2370 = vmul.f32 %v2338, %v2369
    %v2371 = vsub.f32 1.0, %v2370
    %v2372 = vmul.f32 %v2369, %v2371
    %v2373 = vadd.f32 %v2369, %v2372
    %vm2374 = vweird.f32 %v2338
    %vm2375 = vweird.f32 %v2369
    %vm2376 = vmor %vm2374, %vm2375
    %v2377 = vsel %vm2376, %v2369, %v2373
    %v2378 = vand.u32 2147483647, %v2338
    %vm2379 = vcmp.eq.f32.partialorder %v2378, 8.507059e+37
    %v2380 = vand.u32 %v2338, 2147483648
    %v2381 = vor.u32 1.1754944e-38, %v2380
    %v2382 = vsel %vm2379, %v2381, %v2377
    %v2383 = vmul.f32 1.0, %v2382
    %v2384 = vtanh.pop %v2326
    %v2385 = vmul.f32 %v2368, %v2103
    %v2386 = vmul.f32 %v2353, %v2384
    %v2387 = vadd.f32 %v2385, %v2386
    %v2388 = vtanh.pop %v2387
    %v2389 = vmul.f32 %v2383, %v2388
    %v2390 = vpack.c.bf16 %v2389, %v2389
    %2391 = vst [vmem:[#allocation5] sm:$0xf] %v2390
    %v2392 = vld [vmem:[%s778] sm:$0xff]
    %v2393 = vld [vmem:[%s778 + $0x8] sm:$0xff]
    %v2394 = vunpack.c.l.bf16 %v2392
    %v2395 = vunpack.c.h.bf16 %v2392
    %v2396 = vunpack.c.l.bf16 %v2393
    %v2397 = vunpack.c.h.bf16 %v2393
    %2398 = vmatpush.bf16.msra.mxu0 %v2235
    %2399 = vmatpush.bf16.msra.mxu0 %v2231
    %2400 = vmatpush.bf16.msra.mxu0 %v2227
    %2401 = vmatpush.bf16.msra.mxu0 %v2223
    %2402 = vmatpush.bf16.msra.mxu0 %v2219
    %2403 = vmatpush.bf16.msra.mxu0 %v2215
    %2404 = vmatpush.bf16.msra.mxu0 %v2211
    %2405 = vmatpush.bf16.msra.mxu0 %v2207
    %2406 = vmatmul.bf16.gmra.mxu0 %v2390
    %v2407 = vpop.f32.mrf.mxu0
    %v2408 = vadd.f32 0.0, %v2407
    %v2409 = vpop.f32.mrf.mxu0
    %2410 = vdwg.mxu0
    %2411 = vmatpush.bf16.msra.mxu0 %v2236
    %2412 = vmatpush.bf16.msra.mxu0 %v2232
    %2413 = vmatpush.bf16.msra.mxu0 %v2228
    %2414 = vmatpush.bf16.msra.mxu0 %v2224
    %2415 = vmatpush.bf16.msra.mxu0 %v2220
    %2416 = vmatpush.bf16.msra.mxu0 %v2216
    %2417 = vmatpush.bf16.msra.mxu0 %v2212
    %2418 = vmatpush.bf16.msra.mxu0 %v2208
    %2419 = vmatmul.bf16.gmra.mxu0 %v2390
    %v2420 = vpop.f32.mrf.mxu0
    %v2421 = vadd.f32 0.0, %v2420
    %v2422 = vpop.f32.mrf.mxu0
    %2423 = vdwg.mxu0
    %2424 = vmatpush.bf16.msra.mxu0 %v2237
    %2425 = vmatpush.bf16.msra.mxu0 %v2233
    %2426 = vmatpush.bf16.msra.mxu0 %v2229
    %2427 = vmatpush.bf16.msra.mxu0 %v2225
    %2428 = vmatpush.bf16.msra.mxu0 %v2221
    %2429 = vmatpush.bf16.msra.mxu0 %v2217
    %2430 = vmatpush.bf16.msra.mxu0 %v2213
    %2431 = vmatpush.bf16.msra.mxu0 %v2209
    %2432 = vmatmul.bf16.gmra.mxu0 %v2390
    %v2433 = vpop.f32.mrf.mxu0
    %v2434 = vadd.f32 0.0, %v2433
    %v2435 = vpop.f32.mrf.mxu0
    %2436 = vdwg.mxu0
    %2437 = vmatpush.bf16.msra.mxu0 %v2238
    %2438 = vmatpush.bf16.msra.mxu0 %v2234
    %2439 = vmatpush.bf16.msra.mxu0 %v2230
    %2440 = vmatpush.bf16.msra.mxu0 %v2226
    %2441 = vmatpush.bf16.msra.mxu0 %v2222
    %2442 = vmatpush.bf16.msra.mxu0 %v2218
    %2443 = vmatpush.bf16.msra.mxu0 %v2214
    %2444 = vmatpush.bf16.msra.mxu0 %v2210
    %2445 = vmatmul.bf16.gmra.mxu0 %v2390
    %v2446 = vpop.f32.mrf.mxu0
    %v2447 = vadd.f32 0.0, %v2446
    %v2448 = vpop.f32.mrf.mxu0
    %2449 = vdwg.mxu0
    %v2450 = vadd.f32 %v2394, %v2408
    %v2451 = vadd.f32 %v2395, %v2421
    %v2452 = vadd.f32 %v2396, %v2434
    %v2453 = vadd.f32 %v2397, %v2447
    %v2454 = vxor.u32 %v2450, 2147483648
    %v2455 = vxor.u32 %v2451, 2147483648
    %v2456 = vxor.u32 %v2452, 2147483648
    %v2457 = vmul.f32 %v2454, 1.442695
    %v2458 = vpow.pop %v2457
    %v2459 = vmul.f32 %v2455, 1.442695
    %v2460 = vpow.pop %v2459
    %v2461 = vmul.f32 %v2456, 1.442695
    %v2462 = vpow.pop %v2461
    %v2463 = vadd.f32 %v2458, 1.0
    %v2464 = vadd.f32 %v2460, 1.0
    %v2465 = vadd.f32 %v2462, 1.0
    %v2466 = vrcp.pop %v2463
    %v2467 = vmul.f32 %v2463, %v2466
    %v2468 = vsub.f32 1.0, %v2467
    %v2469 = vmul.f32 %v2466, %v2468
    %v2470 = vadd.f32 %v2466, %v2469
    %vm2471 = vweird.f32 %v2463
    %vm2472 = vweird.f32 %v2466
    %vm2473 = vmor %vm2471, %vm2472
    %v2474 = vsel %vm2473, %v2466, %v2470
    %v2475 = vand.u32 2147483647, %v2463
    %vm2476 = vcmp.eq.f32.partialorder %v2475, 8.507059e+37
    %v2477 = vand.u32 %v2463, 2147483648
    %v2478 = vor.u32 1.1754944e-38, %v2477
    %v2479 = vsel %vm2476, %v2478, %v2474
    %v2480 = vmul.f32 1.0, %v2479
    %v2481 = vrcp.pop %v2464
    %v2482 = vmul.f32 %v2464, %v2481
    %v2483 = vsub.f32 1.0, %v2482
    %v2484 = vmul.f32 %v2481, %v2483
    %v2485 = vadd.f32 %v2481, %v2484
    %vm2486 = vweird.f32 %v2464
    %vm2487 = vweird.f32 %v2481
    %vm2488 = vmor %vm2486, %vm2487
    %v2489 = vsel %vm2488, %v2481, %v2485
    %v2490 = vand.u32 2147483647, %v2464
    %vm2491 = vcmp.eq.f32.partialorder %v2490, 8.507059e+37
    %v2492 = vand.u32 %v2464, 2147483648
    %v2493 = vor.u32 1.1754944e-38, %v2492
    %v2494 = vsel %vm2491, %v2493, %v2489
    %v2495 = vmul.f32 1.0, %v2494
    %v2496 = vrcp.pop %v2465
    %v2497 = vmul.f32 %v2465, %v2496
    %v2498 = vsub.f32 1.0, %v2497
    %v2499 = vmul.f32 %v2496, %v2498
    %v2500 = vadd.f32 %v2496, %v2499
    %vm2501 = vweird.f32 %v2465
    %vm2502 = vweird.f32 %v2496
    %vm2503 = vmor %vm2501, %vm2502
    %v2504 = vsel %vm2503, %v2496, %v2500
    %v2505 = vand.u32 2147483647, %v2465
    %vm2506 = vcmp.eq.f32.partialorder %v2505, 8.507059e+37
    %v2507 = vand.u32 %v2465, 2147483648
    %v2508 = vor.u32 1.1754944e-38, %v2507
    %v2509 = vsel %vm2506, %v2508, %v2504
    %v2510 = vmul.f32 1.0, %v2509
    %v2511 = vtanh.pop %v2453
    %v2512 = vmul.f32 %v2495, %v2387
    %v2513 = vmul.f32 %v2480, %v2511
    %v2514 = vadd.f32 %v2512, %v2513
    %v2515 = vtanh.pop %v2514
    %v2516 = vmul.f32 %v2510, %v2515
    %v2517 = vpack.c.bf16 %v2516, %v2516
    %2518 = vst [vmem:[%s905] sm:$0xf] %v2517
    %v2519 = vld [vmem:[%s907] sm:$0xff]
    %v2520 = vld [vmem:[%s907 + $0x8] sm:$0xff]
    %v2521 = vunpack.c.l.bf16 %v2519
    %v2522 = vunpack.c.h.bf16 %v2519
    %v2523 = vunpack.c.l.bf16 %v2520
    %v2524 = vunpack.c.h.bf16 %v2520
    %2525 = vmatpush.bf16.msra.mxu0 %v2235
    %2526 = vmatpush.bf16.msra.mxu0 %v2231
    %2527 = vmatpush.bf16.msra.mxu0 %v2227
    %2528 = vmatpush.bf16.msra.mxu0 %v2223
    %2529 = vmatpush.bf16.msra.mxu0 %v2219
    %2530 = vmatpush.bf16.msra.mxu0 %v2215
    %2531 = vmatpush.bf16.msra.mxu0 %v2211
    %2532 = vmatpush.bf16.msra.mxu0 %v2207
    %2533 = vmatmul.bf16.gmra.mxu0 %v2517
    %v2534 = vpop.f32.mrf.mxu0
    %v2535 = vadd.f32 0.0, %v2534
    %v2536 = vpop.f32.mrf.mxu0
    %2537 = vdwg.mxu0
    %2538 = vmatpush.bf16.msra.mxu0 %v2236
    %2539 = vmatpush.bf16.msra.mxu0 %v2232
    %2540 = vmatpush.bf16.msra.mxu0 %v2228
    %2541 = vmatpush.bf16.msra.mxu0 %v2224
    %2542 = vmatpush.bf16.msra.mxu0 %v2220
    %2543 = vmatpush.bf16.msra.mxu0 %v2216
    %2544 = vmatpush.bf16.msra.mxu0 %v2212
    %2545 = vmatpush.bf16.msra.mxu0 %v2208
    %2546 = vmatmul.bf16.gmra.mxu0 %v2517
    %v2547 = vpop.f32.mrf.mxu0
    %v2548 = vadd.f32 0.0, %v2547
    %v2549 = vpop.f32.mrf.mxu0
    %2550 = vdwg.mxu0
    %2551 = vmatpush.bf16.msra.mxu0 %v2237
    %2552 = vmatpush.bf16.msra.mxu0 %v2233
    %2553 = vmatpush.bf16.msra.mxu0 %v2229
    %2554 = vmatpush.bf16.msra.mxu0 %v2225
    %2555 = vmatpush.bf16.msra.mxu0 %v2221
    %2556 = vmatpush.bf16.msra.mxu0 %v2217
    %2557 = vmatpush.bf16.msra.mxu0 %v2213
    %2558 = vmatpush.bf16.msra.mxu0 %v2209
    %2559 = vmatmul.bf16.gmra.mxu0 %v2517
    %v2560 = vpop.f32.mrf.mxu0
    %v2561 = vadd.f32 0.0, %v2560
    %v2562 = vpop.f32.mrf.mxu0
    %2563 = vdwg.mxu0
    %2564 = vmatpush.bf16.msra.mxu0 %v2238
    %2565 = vmatpush.bf16.msra.mxu0 %v2234
    %2566 = vmatpush.bf16.msra.mxu0 %v2230
    %2567 = vmatpush.bf16.msra.mxu0 %v2226
    %2568 = vmatpush.bf16.msra.mxu0 %v2222
    %2569 = vmatpush.bf16.msra.mxu0 %v2218
    %2570 = vmatpush.bf16.msra.mxu0 %v2214
    %2571 = vmatpush.bf16.msra.mxu0 %v2210
    %2572 = vmatmul.bf16.gmra.mxu0 %v2517
    %v2573 = vpop.f32.mrf.mxu0
    %v2574 = vadd.f32 0.0, %v2573
    %v2575 = vpop.f32.mrf.mxu0
    %2576 = vdwg.mxu0
    %v2577 = vadd.f32 %v2521, %v2535
    %v2578 = vadd.f32 %v2522, %v2548
    %v2579 = vadd.f32 %v2523, %v2561
    %v2580 = vadd.f32 %v2524, %v2574
    %v2581 = vxor.u32 %v2577, 2147483648
    %v2582 = vxor.u32 %v2578, 2147483648
    %v2583 = vxor.u32 %v2579, 2147483648
    %v2584 = vmul.f32 %v2581, 1.442695
    %v2585 = vpow.pop %v2584
    %v2586 = vmul.f32 %v2582, 1.442695
    %v2587 = vpow.pop %v2586
    %v2588 = vmul.f32 %v2583, 1.442695
    %v2589 = vpow.pop %v2588
    %v2590 = vadd.f32 %v2585, 1.0
    %v2591 = vadd.f32 %v2587, 1.0
    %v2592 = vadd.f32 %v2589, 1.0
    %v2593 = vrcp.pop %v2590
    %v2594 = vmul.f32 %v2590, %v2593
    %v2595 = vsub.f32 1.0, %v2594
    %v2596 = vmul.f32 %v2593, %v2595
    %v2597 = vadd.f32 %v2593, %v2596
    %vm2598 = vweird.f32 %v2590
    %vm2599 = vweird.f32 %v2593
    %vm2600 = vmor %vm2598, %vm2599
    %v2601 = vsel %vm2600, %v2593, %v2597
    %v2602 = vand.u32 2147483647, %v2590
    %vm2603 = vcmp.eq.f32.partialorder %v2602, 8.507059e+37
    %v2604 = vand.u32 %v2590, 2147483648
    %v2605 = vor.u32 1.1754944e-38, %v2604
    %v2606 = vsel %vm2603, %v2605, %v2601
    %v2607 = vmul.f32 1.0, %v2606
    %v2608 = vrcp.pop %v2591
    %v2609 = vmul.f32 %v2591, %v2608
    %v2610 = vsub.f32 1.0, %v2609
    %v2611 = vmul.f32 %v2608, %v2610
    %v2612 = vadd.f32 %v2608, %v2611
    %vm2613 = vweird.f32 %v2591
    %vm2614 = vweird.f32 %v2608
    %vm2615 = vmor %vm2613, %vm2614
    %v2616 = vsel %vm2615, %v2608, %v2612
    %v2617 = vand.u32 2147483647, %v2591
    %vm2618 = vcmp.eq.f32.partialorder %v2617, 8.507059e+37
    %v2619 = vand.u32 %v2591, 2147483648
    %v2620 = vor.u32 1.1754944e-38, %v2619
    %v2621 = vsel %vm2618, %v2620, %v2616
    %v2622 = vmul.f32 1.0, %v2621
    %v2623 = vrcp.pop %v2592
    %v2624 = vmul.f32 %v2592, %v2623
    %v2625 = vsub.f32 1.0, %v2624
    %v2626 = vmul.f32 %v2623, %v2625
    %v2627 = vadd.f32 %v2623, %v2626
    %vm2628 = vweird.f32 %v2592
    %vm2629 = vweird.f32 %v2623
    %vm2630 = vmor %vm2628, %vm2629
    %v2631 = vsel %vm2630, %v2623, %v2627
    %v2632 = vand.u32 2147483647, %v2592
    %vm2633 = vcmp.eq.f32.partialorder %v2632, 8.507059e+37
    %v2634 = vand.u32 %v2592, 2147483648
    %v2635 = vor.u32 1.1754944e-38, %v2634
    %v2636 = vsel %vm2633, %v2635, %v2631
    %v2637 = vmul.f32 1.0, %v2636
    %v2638 = vtanh.pop %v2580
    %v2639 = vmul.f32 %v2622, %v2514
    %v2640 = vmul.f32 %v2607, %v2638
    %v2641 = vadd.f32 %v2639, %v2640
    %v2642 = vtanh.pop %v2641
    %v2643 = vmul.f32 %v2637, %v2642
    %v2644 = vpack.c.bf16 %v2643, %v2643
    %2645 = vst [vmem:[%s1034] sm:$0xf] %v2644
    %v2646 = vld [vmem:[%s1036] sm:$0xff]
    %v2647 = vld [vmem:[%s1036 + $0x8] sm:$0xff]
    %v2648 = vunpack.c.l.bf16 %v2646
    %v2649 = vunpack.c.h.bf16 %v2646
    %v2650 = vunpack.c.l.bf16 %v2647
    %v2651 = vunpack.c.h.bf16 %v2647
    %2652 = vmatpush.bf16.msra.mxu0 %v2235
    %2653 = vmatpush.bf16.msra.mxu0 %v2231
    %2654 = vmatpush.bf16.msra.mxu0 %v2227
    %2655 = vmatpush.bf16.msra.mxu0 %v2223
    %2656 = vmatpush.bf16.msra.mxu0 %v2219
    %2657 = vmatpush.bf16.msra.mxu0 %v2215
    %2658 = vmatpush.bf16.msra.mxu0 %v2211
    %2659 = vmatpush.bf16.msra.mxu0 %v2207
    %2660 = vmatmul.bf16.gmra.mxu0 %v2644
    %v2661 = vpop.f32.mrf.mxu0
    %v2662 = vadd.f32 0.0, %v2661
    %v2663 = vpop.f32.mrf.mxu0
    %2664 = vdwg.mxu0
    %2665 = vmatpush.bf16.msra.mxu0 %v2236
    %2666 = vmatpush.bf16.msra.mxu0 %v2232
    %2667 = vmatpush.bf16.msra.mxu0 %v2228
    %2668 = vmatpush.bf16.msra.mxu0 %v2224
    %2669 = vmatpush.bf16.msra.mxu0 %v2220
    %2670 = vmatpush.bf16.msra.mxu0 %v2216
    %2671 = vmatpush.bf16.msra.mxu0 %v2212
    %2672 = vmatpush.bf16.msra.mxu0 %v2208
    %2673 = vmatmul.bf16.gmra.mxu0 %v2644
    %v2674 = vpop.f32.mrf.mxu0
    %v2675 = vadd.f32 0.0, %v2674
    %v2676 = vpop.f32.mrf.mxu0
    %2677 = vdwg.mxu0
    %2678 = vmatpush.bf16.msra.mxu0 %v2237
    %2679 = vmatpush.bf16.msra.mxu0 %v2233
    %2680 = vmatpush.bf16.msra.mxu0 %v2229
    %2681 = vmatpush.bf16.msra.mxu0 %v2225
    %2682 = vmatpush.bf16.msra.mxu0 %v2221
    %2683 = vmatpush.bf16.msra.mxu0 %v2217
    %2684 = vmatpush.bf16.msra.mxu0 %v2213
    %2685 = vmatpush.bf16.msra.mxu0 %v2209
    %2686 = vmatmul.bf16.gmra.mxu0 %v2644
    %v2687 = vpop.f32.mrf.mxu0
    %v2688 = vadd.f32 0.0, %v2687
    %v2689 = vpop.f32.mrf.mxu0
    %2690 = vdwg.mxu0
    %2691 = vmatpush.bf16.msra.mxu0 %v2238
    %2692 = vmatpush.bf16.msra.mxu0 %v2234
    %2693 = vmatpush.bf16.msra.mxu0 %v2230
    %2694 = vmatpush.bf16.msra.mxu0 %v2226
    %2695 = vmatpush.bf16.msra.mxu0 %v2222
    %2696 = vmatpush.bf16.msra.mxu0 %v2218
    %2697 = vmatpush.bf16.msra.mxu0 %v2214
    %2698 = vmatpush.bf16.msra.mxu0 %v2210
    %2699 = vmatmul.bf16.gmra.mxu0 %v2644
    %v2700 = vpop.f32.mrf.mxu0
    %v2701 = vadd.f32 0.0, %v2700
    %v2702 = vpop.f32.mrf.mxu0
    %2703 = vdwg.mxu0
    %v2704 = vadd.f32 %v2648, %v2662
    %v2705 = vadd.f32 %v2649, %v2675
    %v2706 = vadd.f32 %v2650, %v2688
    %v2707 = vadd.f32 %v2651, %v2701
    %v2708 = vxor.u32 %v2704, 2147483648
    %v2709 = vxor.u32 %v2705, 2147483648
    %v2710 = vxor.u32 %v2706, 2147483648
    %v2711 = vmul.f32 %v2708, 1.442695
    %v2712 = vpow.pop %v2711
    %v2713 = vmul.f32 %v2709, 1.442695
    %v2714 = vpow.pop %v2713
    %v2715 = vmul.f32 %v2710, 1.442695
    %v2716 = vpow.pop %v2715
    %v2717 = vadd.f32 %v2712, 1.0
    %v2718 = vadd.f32 %v2714, 1.0
    %v2719 = vadd.f32 %v2716, 1.0
    %v2720 = vrcp.pop %v2717
    %v2721 = vmul.f32 %v2717, %v2720
    %v2722 = vsub.f32 1.0, %v2721
    %v2723 = vmul.f32 %v2720, %v2722
    %v2724 = vadd.f32 %v2720, %v2723
    %vm2725 = vweird.f32 %v2717
    %vm2726 = vweird.f32 %v2720
    %vm2727 = vmor %vm2725, %vm2726
    %v2728 = vsel %vm2727, %v2720, %v2724
    %v2729 = vand.u32 2147483647, %v2717
    %vm2730 = vcmp.eq.f32.partialorder %v2729, 8.507059e+37
    %v2731 = vand.u32 %v2717, 2147483648
    %v2732 = vor.u32 1.1754944e-38, %v2731
    %v2733 = vsel %vm2730, %v2732, %v2728
    %v2734 = vmul.f32 1.0, %v2733
    %v2735 = vrcp.pop %v2718
    %v2736 = vmul.f32 %v2718, %v2735
    %v2737 = vsub.f32 1.0, %v2736
    %v2738 = vmul.f32 %v2735, %v2737
    %v2739 = vadd.f32 %v2735, %v2738
    %vm2740 = vweird.f32 %v2718
    %vm2741 = vweird.f32 %v2735
    %vm2742 = vmor %vm2740, %vm2741
    %v2743 = vsel %vm2742, %v2735, %v2739
    %v2744 = vand.u32 2147483647, %v2718
    %vm2745 = vcmp.eq.f32.partialorder %v2744, 8.507059e+37
    %v2746 = vand.u32 %v2718, 2147483648
    %v2747 = vor.u32 1.1754944e-38, %v2746
    %v2748 = vsel %vm2745, %v2747, %v2743
    %v2749 = vmul.f32 1.0, %v2748
    %v2750 = vrcp.pop %v2719
    %v2751 = vmul.f32 %v2719, %v2750
    %v2752 = vsub.f32 1.0, %v2751
    %v2753 = vmul.f32 %v2750, %v2752
    %v2754 = vadd.f32 %v2750, %v2753
    %vm2755 = vweird.f32 %v2719
    %vm2756 = vweird.f32 %v2750
    %vm2757 = vmor %vm2755, %vm2756
    %v2758 = vsel %vm2757, %v2750, %v2754
    %v2759 = vand.u32 2147483647, %v2719
    %vm2760 = vcmp.eq.f32.partialorder %v2759, 8.507059e+37
    %v2761 = vand.u32 %v2719, 2147483648
    %v2762 = vor.u32 1.1754944e-38, %v2761
    %v2763 = vsel %vm2760, %v2762, %v2758
    %v2764 = vmul.f32 1.0, %v2763
    %v2765 = vtanh.pop %v2707
    %v2766 = vmul.f32 %v2749, %v2641
    %v2767 = vmul.f32 %v2734, %v2765
    %v2768 = vadd.f32 %v2766, %v2767
    %v2769 = vtanh.pop %v2768
    %v2770 = vmul.f32 %v2764, %v2769
    %v2771 = vpack.c.bf16 %v2770, %v2770
    %2772 = vst [vmem:[%s1163] sm:$0xf] %v2771
    %v2773 = vld [vmem:[%s1165] sm:$0xff]
    %v2774 = vld [vmem:[%s1165 + $0x8] sm:$0xff]
    %v2775 = vunpack.c.l.bf16 %v2773
    %v2776 = vunpack.c.h.bf16 %v2773
    %v2777 = vunpack.c.l.bf16 %v2774
    %v2778 = vunpack.c.h.bf16 %v2774
    %2779 = vmatpush.bf16.msra.mxu0 %v2235
    %2780 = vmatpush.bf16.msra.mxu0 %v2231
    %2781 = vmatpush.bf16.msra.mxu0 %v2227
    %2782 = vmatpush.bf16.msra.mxu0 %v2223
    %2783 = vmatpush.bf16.msra.mxu0 %v2219
    %2784 = vmatpush.bf16.msra.mxu0 %v2215
    %2785 = vmatpush.bf16.msra.mxu0 %v2211
    %2786 = vmatpush.bf16.msra.mxu0 %v2207
    %2787 = vmatmul.bf16.gmra.mxu0 %v2771
    %v2788 = vpop.f32.mrf.mxu0
    %v2789 = vadd.f32 0.0, %v2788
    %v2790 = vpop.f32.mrf.mxu0
    %2791 = vdwg.mxu0
    %2792 = vmatpush.bf16.msra.mxu0 %v2236
    %2793 = vmatpush.bf16.msra.mxu0 %v2232
    %2794 = vmatpush.bf16.msra.mxu0 %v2228
    %2795 = vmatpush.bf16.msra.mxu0 %v2224
    %2796 = vmatpush.bf16.msra.mxu0 %v2220
    %2797 = vmatpush.bf16.msra.mxu0 %v2216
    %2798 = vmatpush.bf16.msra.mxu0 %v2212
    %2799 = vmatpush.bf16.msra.mxu0 %v2208
    %2800 = vmatmul.bf16.gmra.mxu0 %v2771
    %v2801 = vpop.f32.mrf.mxu0
    %v2802 = vadd.f32 0.0, %v2801
    %v2803 = vpop.f32.mrf.mxu0
    %2804 = vdwg.mxu0
    %2805 = vmatpush.bf16.msra.mxu0 %v2237
    %2806 = vmatpush.bf16.msra.mxu0 %v2233
    %2807 = vmatpush.bf16.msra.mxu0 %v2229
    %2808 = vmatpush.bf16.msra.mxu0 %v2225
    %2809 = vmatpush.bf16.msra.mxu0 %v2221
    %2810 = vmatpush.bf16.msra.mxu0 %v2217
    %2811 = vmatpush.bf16.msra.mxu0 %v2213
    %2812 = vmatpush.bf16.msra.mxu0 %v2209
    %2813 = vmatmul.bf16.gmra.mxu0 %v2771
    %v2814 = vpop.f32.mrf.mxu0
    %v2815 = vadd.f32 0.0, %v2814
    %v2816 = vpop.f32.mrf.mxu0
    %2817 = vdwg.mxu0
    %2818 = vmatpush.bf16.msra.mxu0 %v2238
    %2819 = vmatpush.bf16.msra.mxu0 %v2234
    %2820 = vmatpush.bf16.msra.mxu0 %v2230
    %2821 = vmatpush.bf16.msra.mxu0 %v2226
    %2822 = vmatpush.bf16.msra.mxu0 %v2222
    %2823 = vmatpush.bf16.msra.mxu0 %v2218
    %2824 = vmatpush.bf16.msra.mxu0 %v2214
    %2825 = vmatpush.bf16.msra.mxu0 %v2210
    %2826 = vmatmul.bf16.gmra.mxu0 %v2771
    %v2827 = vpop.f32.mrf.mxu0
    %v2828 = vadd.f32 0.0, %v2827
    %v2829 = vpop.f32.mrf.mxu0
    %2830 = vdwg.mxu0
    %v2831 = vadd.f32 %v2775, %v2789
    %v2832 = vadd.f32 %v2776, %v2802
    %v2833 = vadd.f32 %v2777, %v2815
    %v2834 = vadd.f32 %v2778, %v2828
    %v2835 = vxor.u32 %v2831, 2147483648
    %v2836 = vxor.u32 %v2832, 2147483648
    %v2837 = vxor.u32 %v2833, 2147483648
    %v2838 = vmul.f32 %v2835, 1.442695
    %v2839 = vpow.pop %v2838
    %v2840 = vmul.f32 %v2836, 1.442695
    %v2841 = vpow.pop %v2840
    %v2842 = vmul.f32 %v2837, 1.442695
    %v2843 = vpow.pop %v2842
    %v2844 = vadd.f32 %v2839, 1.0
    %v2845 = vadd.f32 %v2841, 1.0
    %v2846 = vadd.f32 %v2843, 1.0
    %v2847 = vrcp.pop %v2844
    %v2848 = vmul.f32 %v2844, %v2847
    %v2849 = vsub.f32 1.0, %v2848
    %v2850 = vmul.f32 %v2847, %v2849
    %v2851 = vadd.f32 %v2847, %v2850
    %vm2852 = vweird.f32 %v2844
    %vm2853 = vweird.f32 %v2847
    %vm2854 = vmor %vm2852, %vm2853
    %v2855 = vsel %vm2854, %v2847, %v2851
    %v2856 = vand.u32 2147483647, %v2844
    %vm2857 = vcmp.eq.f32.partialorder %v2856, 8.507059e+37
    %v2858 = vand.u32 %v2844, 2147483648
    %v2859 = vor.u32 1.1754944e-38, %v2858
    %v2860 = vsel %vm2857, %v2859, %v2855
    %v2861 = vmul.f32 1.0, %v2860
    %v2862 = vrcp.pop %v2845
    %v2863 = vmul.f32 %v2845, %v2862
    %v2864 = vsub.f32 1.0, %v2863
    %v2865 = vmul.f32 %v2862, %v2864
    %v2866 = vadd.f32 %v2862, %v2865
    %vm2867 = vweird.f32 %v2845
    %vm2868 = vweird.f32 %v2862
    %vm2869 = vmor %vm2867, %vm2868
    %v2870 = vsel %vm2869, %v2862, %v2866
    %v2871 = vand.u32 2147483647, %v2845
    %vm2872 = vcmp.eq.f32.partialorder %v2871, 8.507059e+37
    %v2873 = vand.u32 %v2845, 2147483648
    %v2874 = vor.u32 1.1754944e-38, %v2873
    %v2875 = vsel %vm2872, %v2874, %v2870
    %v2876 = vmul.f32 1.0, %v2875
    %v2877 = vrcp.pop %v2846
    %v2878 = vmul.f32 %v2846, %v2877
    %v2879 = vsub.f32 1.0, %v2878
    %v2880 = vmul.f32 %v2877, %v2879
    %v2881 = vadd.f32 %v2877, %v2880
    %vm2882 = vweird.f32 %v2846
    %vm2883 = vweird.f32 %v2877
    %vm2884 = vmor %vm2882, %vm2883
    %v2885 = vsel %vm2884, %v2877, %v2881
    %v2886 = vand.u32 2147483647, %v2846
    %vm2887 = vcmp.eq.f32.partialorder %v2886, 8.507059e+37
    %v2888 = vand.u32 %v2846, 2147483648
    %v2889 = vor.u32 1.1754944e-38, %v2888
    %v2890 = vsel %vm2887, %v2889, %v2885
    %v2891 = vmul.f32 1.0, %v2890
    %v2892 = vtanh.pop %v2834
    %v2893 = vmul.f32 %v2876, %v2768
    %v2894 = vmul.f32 %v2861, %v2892
    %v2895 = vadd.f32 %v2893, %v2894
    %v2896 = vtanh.pop %v2895
    %v2897 = vmul.f32 %v2891, %v2896
    %v2898 = vpack.c.bf16 %v2897, %v2897
    %2899 = vst [vmem:[%s1292] sm:$0xf] %v2898
    %v2900 = vld [vmem:[%s1294] sm:$0xff]
    %v2901 = vld [vmem:[%s1294 + $0x8] sm:$0xff]
    %v2902 = vunpack.c.l.bf16 %v2900
    %v2903 = vunpack.c.h.bf16 %v2900
    %v2904 = vunpack.c.l.bf16 %v2901
    %v2905 = vunpack.c.h.bf16 %v2901
    %2906 = vmatpush.bf16.msra.mxu0 %v2235
    %2907 = vmatpush.bf16.msra.mxu0 %v2231
    %2908 = vmatpush.bf16.msra.mxu0 %v2227
    %2909 = vmatpush.bf16.msra.mxu0 %v2223
    %2910 = vmatpush.bf16.msra.mxu0 %v2219
    %2911 = vmatpush.bf16.msra.mxu0 %v2215
    %2912 = vmatpush.bf16.msra.mxu0 %v2211
    %2913 = vmatpush.bf16.msra.mxu0 %v2207
    %2914 = vmatmul.bf16.gmra.mxu0 %v2898
    %v2915 = vpop.f32.mrf.mxu0
    %v2916 = vadd.f32 0.0, %v2915
    %v2917 = vpop.f32.mrf.mxu0
    %2918 = vdwg.mxu0
    %2919 = vmatpush.bf16.msra.mxu0 %v2236
    %2920 = vmatpush.bf16.msra.mxu0 %v2232
    %2921 = vmatpush.bf16.msra.mxu0 %v2228
    %2922 = vmatpush.bf16.msra.mxu0 %v2224
    %2923 = vmatpush.bf16.msra.mxu0 %v2220
    %2924 = vmatpush.bf16.msra.mxu0 %v2216
    %2925 = vmatpush.bf16.msra.mxu0 %v2212
    %2926 = vmatpush.bf16.msra.mxu0 %v2208
    %2927 = vmatmul.bf16.gmra.mxu0 %v2898
    %v2928 = vpop.f32.mrf.mxu0
    %v2929 = vadd.f32 0.0, %v2928
    %v2930 = vpop.f32.mrf.mxu0
    %2931 = vdwg.mxu0
    %2932 = vmatpush.bf16.msra.mxu0 %v2237
    %2933 = vmatpush.bf16.msra.mxu0 %v2233
    %2934 = vmatpush.bf16.msra.mxu0 %v2229
    %2935 = vmatpush.bf16.msra.mxu0 %v2225
    %2936 = vmatpush.bf16.msra.mxu0 %v2221
    %2937 = vmatpush.bf16.msra.mxu0 %v2217
    %2938 = vmatpush.bf16.msra.mxu0 %v2213
    %2939 = vmatpush.bf16.msra.mxu0 %v2209
    %2940 = vmatmul.bf16.gmra.mxu0 %v2898
    %v2941 = vpop.f32.mrf.mxu0
    %v2942 = vadd.f32 0.0, %v2941
    %v2943 = vpop.f32.mrf.mxu0
    %2944 = vdwg.mxu0
    %2945 = vmatpush.bf16.msra.mxu0 %v2238
    %2946 = vmatpush.bf16.msra.mxu0 %v2234
    %2947 = vmatpush.bf16.msra.mxu0 %v2230
    %2948 = vmatpush.bf16.msra.mxu0 %v2226
    %2949 = vmatpush.bf16.msra.mxu0 %v2222
    %2950 = vmatpush.bf16.msra.mxu0 %v2218
    %2951 = vmatpush.bf16.msra.mxu0 %v2214
    %2952 = vmatpush.bf16.msra.mxu0 %v2210
    %2953 = vmatmul.bf16.gmra.mxu0 %v2898
    %v2954 = vpop.f32.mrf.mxu0
    %v2955 = vadd.f32 0.0, %v2954
    %v2956 = vpop.f32.mrf.mxu0
    %2957 = vdwg.mxu0
    %v2958 = vadd.f32 %v2902, %v2916
    %v2959 = vadd.f32 %v2903, %v2929
    %v2960 = vadd.f32 %v2904, %v2942
    %v2961 = vadd.f32 %v2905, %v2955
    %v2962 = vxor.u32 %v2958, 2147483648
    %v2963 = vxor.u32 %v2959, 2147483648
    %v2964 = vxor.u32 %v2960, 2147483648
    %v2965 = vmul.f32 %v2962, 1.442695
    %v2966 = vpow.pop %v2965
    %v2967 = vmul.f32 %v2963, 1.442695
    %v2968 = vpow.pop %v2967
    %v2969 = vmul.f32 %v2964, 1.442695
    %v2970 = vpow.pop %v2969
    %v2971 = vadd.f32 %v2966, 1.0
    %v2972 = vadd.f32 %v2968, 1.0
    %v2973 = vadd.f32 %v2970, 1.0
    %v2974 = vrcp.pop %v2971
    %v2975 = vmul.f32 %v2971, %v2974
    %v2976 = vsub.f32 1.0, %v2975
    %v2977 = vmul.f32 %v2974, %v2976
    %v2978 = vadd.f32 %v2974, %v2977
    %vm2979 = vweird.f32 %v2971
    %vm2980 = vweird.f32 %v2974
    %vm2981 = vmor %vm2979, %vm2980
    %v2982 = vsel %vm2981, %v2974, %v2978
    %v2983 = vand.u32 2147483647, %v2971
    %vm2984 = vcmp.eq.f32.partialorder %v2983, 8.507059e+37
    %v2985 = vand.u32 %v2971, 2147483648
    %v2986 = vor.u32 1.1754944e-38, %v2985
    %v2987 = vsel %vm2984, %v2986, %v2982
    %v2988 = vmul.f32 1.0, %v2987
    %v2989 = vrcp.pop %v2972
    %v2990 = vmul.f32 %v2972, %v2989
    %v2991 = vsub.f32 1.0, %v2990
    %v2992 = vmul.f32 %v2989, %v2991
    %v2993 = vadd.f32 %v2989, %v2992
    %vm2994 = vweird.f32 %v2972
    %vm2995 = vweird.f32 %v2989
    %vm2996 = vmor %vm2994, %vm2995
    %v2997 = vsel %vm2996, %v2989, %v2993
    %v2998 = vand.u32 2147483647, %v2972
    %vm2999 = vcmp.eq.f32.partialorder %v2998, 8.507059e+37
    %v3000 = vand.u32 %v2972, 2147483648
    %v3001 = vor.u32 1.1754944e-38, %v3000
    %v3002 = vsel %vm2999, %v3001, %v2997
    %v3003 = vmul.f32 1.0, %v3002
    %v3004 = vrcp.pop %v2973
    %v3005 = vmul.f32 %v2973, %v3004
    %v3006 = vsub.f32 1.0, %v3005
    %v3007 = vmul.f32 %v3004, %v3006
    %v3008 = vadd.f32 %v3004, %v3007
    %vm3009 = vweird.f32 %v2973
    %vm3010 = vweird.f32 %v3004
    %vm3011 = vmor %vm3009, %vm3010
    %v3012 = vsel %vm3011, %v3004, %v3008
    %v3013 = vand.u32 2147483647, %v2973
    %vm3014 = vcmp.eq.f32.partialorder %v3013, 8.507059e+37
    %v3015 = vand.u32 %v2973, 2147483648
    %v3016 = vor.u32 1.1754944e-38, %v3015
    %v3017 = vsel %vm3014, %v3016, %v3012
    %v3018 = vmul.f32 1.0, %v3017
    %v3019 = vtanh.pop %v2961
    %v3020 = vmul.f32 %v3003, %v2895
    %v3021 = vmul.f32 %v2988, %v3019
    %v3022 = vadd.f32 %v3020, %v3021
    %v3023 = vtanh.pop %v3022
    %v3024 = vmul.f32 %v3018, %v3023
    %v3025 = vpack.c.bf16 %v3024, %v3024
    %3026 = vst [vmem:[%s1421] sm:$0xf] %v3025
    %v3027 = vld [vmem:[%s1423] sm:$0xff]
    %v3028 = vld [vmem:[%s1423 + $0x8] sm:$0xff]
    %v3029 = vunpack.c.l.bf16 %v3027
    %v3030 = vunpack.c.h.bf16 %v3027
    %v3031 = vunpack.c.l.bf16 %v3028
    %v3032 = vunpack.c.h.bf16 %v3028
    %3033 = vmatpush.bf16.msra.mxu0 %v2235
    %3034 = vmatpush.bf16.msra.mxu0 %v2231
    %3035 = vmatpush.bf16.msra.mxu0 %v2227
    %3036 = vmatpush.bf16.msra.mxu0 %v2223
    %3037 = vmatpush.bf16.msra.mxu0 %v2219
    %3038 = vmatpush.bf16.msra.mxu0 %v2215
    %3039 = vmatpush.bf16.msra.mxu0 %v2211
    %3040 = vmatpush.bf16.msra.mxu0 %v2207
    %3041 = vmatmul.bf16.gmra.mxu0 %v3025
    %v3042 = vpop.f32.mrf.mxu0
    %v3043 = vadd.f32 0.0, %v3042
    %v3044 = vpop.f32.mrf.mxu0
    %3045 = vdwg.mxu0
    %3046 = vmatpush.bf16.msra.mxu0 %v2236
    %3047 = vmatpush.bf16.msra.mxu0 %v2232
    %3048 = vmatpush.bf16.msra.mxu0 %v2228
    %3049 = vmatpush.bf16.msra.mxu0 %v2224
    %3050 = vmatpush.bf16.msra.mxu0 %v2220
    %3051 = vmatpush.bf16.msra.mxu0 %v2216
    %3052 = vmatpush.bf16.msra.mxu0 %v2212
    %3053 = vmatpush.bf16.msra.mxu0 %v2208
    %3054 = vmatmul.bf16.gmra.mxu0 %v3025
    %v3055 = vpop.f32.mrf.mxu0
    %v3056 = vadd.f32 0.0, %v3055
    %v3057 = vpop.f32.mrf.mxu0
    %3058 = vdwg.mxu0
    %3059 = vmatpush.bf16.msra.mxu0 %v2237
    %3060 = vmatpush.bf16.msra.mxu0 %v2233
    %3061 = vmatpush.bf16.msra.mxu0 %v2229
    %3062 = vmatpush.bf16.msra.mxu0 %v2225
    %3063 = vmatpush.bf16.msra.mxu0 %v2221
    %3064 = vmatpush.bf16.msra.mxu0 %v2217
    %3065 = vmatpush.bf16.msra.mxu0 %v2213
    %3066 = vmatpush.bf16.msra.mxu0 %v2209
    %3067 = vmatmul.bf16.gmra.mxu0 %v3025
    %v3068 = vpop.f32.mrf.mxu0
    %v3069 = vadd.f32 0.0, %v3068
    %v3070 = vpop.f32.mrf.mxu0
    %3071 = vdwg.mxu0
    %3072 = vmatpush.bf16.msra.mxu0 %v2238
    %3073 = vmatpush.bf16.msra.mxu0 %v2234
    %3074 = vmatpush.bf16.msra.mxu0 %v2230
    %3075 = vmatpush.bf16.msra.mxu0 %v2226
    %3076 = vmatpush.bf16.msra.mxu0 %v2222
    %3077 = vmatpush.bf16.msra.mxu0 %v2218
    %3078 = vmatpush.bf16.msra.mxu0 %v2214
    %3079 = vmatpush.bf16.msra.mxu0 %v2210
    %3080 = vmatmul.bf16.gmra.mxu0 %v3025
    %v3081 = vpop.f32.mrf.mxu0
    %v3082 = vadd.f32 0.0, %v3081
    %v3083 = vpop.f32.mrf.mxu0
    %3084 = vdwg.mxu0
    %v3085 = vadd.f32 %v3029, %v3043
    %v3086 = vadd.f32 %v3030, %v3056
    %v3087 = vadd.f32 %v3031, %v3069
    %v3088 = vadd.f32 %v3032, %v3082
    %v3089 = vxor.u32 %v3085, 2147483648
    %v3090 = vxor.u32 %v3086, 2147483648
    %v3091 = vxor.u32 %v3087, 2147483648
    %v3092 = vmul.f32 %v3089, 1.442695
    %v3093 = vpow.pop %v3092
    %v3094 = vmul.f32 %v3090, 1.442695
    %v3095 = vpow.pop %v3094
    %v3096 = vmul.f32 %v3091, 1.442695
    %v3097 = vpow.pop %v3096
    %v3098 = vadd.f32 %v3093, 1.0
    %v3099 = vadd.f32 %v3095, 1.0
    %v3100 = vadd.f32 %v3097, 1.0
    %v3101 = vrcp.pop %v3098
    %v3102 = vmul.f32 %v3098, %v3101
    %v3103 = vsub.f32 1.0, %v3102
    %v3104 = vmul.f32 %v3101, %v3103
    %v3105 = vadd.f32 %v3101, %v3104
    %vm3106 = vweird.f32 %v3098
    %vm3107 = vweird.f32 %v3101
    %vm3108 = vmor %vm3106, %vm3107
    %v3109 = vsel %vm3108, %v3101, %v3105
    %v3110 = vand.u32 2147483647, %v3098
    %vm3111 = vcmp.eq.f32.partialorder %v3110, 8.507059e+37
    %v3112 = vand.u32 %v3098, 2147483648
    %v3113 = vor.u32 1.1754944e-38, %v3112
    %v3114 = vsel %vm3111, %v3113, %v3109
    %v3115 = vmul.f32 1.0, %v3114
    %v3116 = vrcp.pop %v3099
    %v3117 = vmul.f32 %v3099, %v3116
    %v3118 = vsub.f32 1.0, %v3117
    %v3119 = vmul.f32 %v3116, %v3118
    %v3120 = vadd.f32 %v3116, %v3119
    %vm3121 = vweird.f32 %v3099
    %vm3122 = vweird.f32 %v3116
    %vm3123 = vmor %vm3121, %vm3122
    %v3124 = vsel %vm3123, %v3116, %v3120
    %v3125 = vand.u32 2147483647, %v3099
    %vm3126 = vcmp.eq.f32.partialorder %v3125, 8.507059e+37
    %v3127 = vand.u32 %v3099, 2147483648
    %v3128 = vor.u32 1.1754944e-38, %v3127
    %v3129 = vsel %vm3126, %v3128, %v3124
    %v3130 = vmul.f32 1.0, %v3129
    %v3131 = vrcp.pop %v3100
    %v3132 = vmul.f32 %v3100, %v3131
    %v3133 = vsub.f32 1.0, %v3132
    %v3134 = vmul.f32 %v3131, %v3133
    %v3135 = vadd.f32 %v3131, %v3134
    %vm3136 = vweird.f32 %v3100
    %vm3137 = vweird.f32 %v3131
    %vm3138 = vmor %vm3136, %vm3137
    %v3139 = vsel %vm3138, %v3131, %v3135
    %v3140 = vand.u32 2147483647, %v3100
    %vm3141 = vcmp.eq.f32.partialorder %v3140, 8.507059e+37
    %v3142 = vand.u32 %v3100, 2147483648
    %v3143 = vor.u32 1.1754944e-38, %v3142
    %v3144 = vsel %vm3141, %v3143, %v3139
    %v3145 = vmul.f32 1.0, %v3144
    %v3146 = vtanh.pop %v3088
    %v3147 = vmul.f32 %v3130, %v3022
    %v3148 = vmul.f32 %v3115, %v3146
    %v3149 = vadd.f32 %v3147, %v3148
    %v3150 = vtanh.pop %v3149
    %v3151 = vmul.f32 %v3145, %v3150
    %v3152 = vpack.c.bf16 %v3151, %v3151
    %3153 = vst [vmem:[%s1550] sm:$0xf] %v3152
    %v3154 = vld [vmem:[%s1552] sm:$0xff]
    %v3155 = vld [vmem:[%s1552 + $0x8] sm:$0xff]
    %v3156 = vunpack.c.l.bf16 %v3154
    %v3157 = vunpack.c.h.bf16 %v3154
    %v3158 = vunpack.c.l.bf16 %v3155
    %v3159 = vunpack.c.h.bf16 %v3155
    %3160 = vmatpush.bf16.msra.mxu0 %v2235
    %3161 = vmatpush.bf16.msra.mxu0 %v2231
    %3162 = vmatpush.bf16.msra.mxu0 %v2227
    %3163 = vmatpush.bf16.msra.mxu0 %v2223
    %3164 = vmatpush.bf16.msra.mxu0 %v2219
    %3165 = vmatpush.bf16.msra.mxu0 %v2215
    %3166 = vmatpush.bf16.msra.mxu0 %v2211
    %3167 = vmatpush.bf16.msra.mxu0 %v2207
    %3168 = vmatmul.bf16.gmra.mxu0 %v3152
    %v3169 = vpop.f32.mrf.mxu0
    %v3170 = vadd.f32 0.0, %v3169
    %v3171 = vpop.f32.mrf.mxu0
    %3172 = vdwg.mxu0
    %3173 = vmatpush.bf16.msra.mxu0 %v2236
    %3174 = vmatpush.bf16.msra.mxu0 %v2232
    %3175 = vmatpush.bf16.msra.mxu0 %v2228
    %3176 = vmatpush.bf16.msra.mxu0 %v2224
    %3177 = vmatpush.bf16.msra.mxu0 %v2220
    %3178 = vmatpush.bf16.msra.mxu0 %v2216
    %3179 = vmatpush.bf16.msra.mxu0 %v2212
    %3180 = vmatpush.bf16.msra.mxu0 %v2208
    %3181 = vmatmul.bf16.gmra.mxu0 %v3152
    %v3182 = vpop.f32.mrf.mxu0
    %v3183 = vadd.f32 0.0, %v3182
    %v3184 = vpop.f32.mrf.mxu0
    %3185 = vdwg.mxu0
    %3186 = vmatpush.bf16.msra.mxu0 %v2237
    %3187 = vmatpush.bf16.msra.mxu0 %v2233
    %3188 = vmatpush.bf16.msra.mxu0 %v2229
    %3189 = vmatpush.bf16.msra.mxu0 %v2225
    %3190 = vmatpush.bf16.msra.mxu0 %v2221
    %3191 = vmatpush.bf16.msra.mxu0 %v2217
    %3192 = vmatpush.bf16.msra.mxu0 %v2213
    %3193 = vmatpush.bf16.msra.mxu0 %v2209
    %3194 = vmatmul.bf16.gmra.mxu0 %v3152
    %v3195 = vpop.f32.mrf.mxu0
    %v3196 = vadd.f32 0.0, %v3195
    %v3197 = vpop.f32.mrf.mxu0
    %3198 = vdwg.mxu0
    %3199 = vmatpush.bf16.msra.mxu0 %v2238
    %3200 = vmatpush.bf16.msra.mxu0 %v2234
    %3201 = vmatpush.bf16.msra.mxu0 %v2230
    %3202 = vmatpush.bf16.msra.mxu0 %v2226
    %3203 = vmatpush.bf16.msra.mxu0 %v2222
    %3204 = vmatpush.bf16.msra.mxu0 %v2218
    %3205 = vmatpush.bf16.msra.mxu0 %v2214
    %3206 = vmatpush.bf16.msra.mxu0 %v2210
    %3207 = vmatmul.bf16.gmra.mxu0 %v3152
    %v3208 = vpop.f32.mrf.mxu0
    %v3209 = vadd.f32 0.0, %v3208
    %v3210 = vpop.f32.mrf.mxu0
    %3211 = vdwg.mxu0
    %v3212 = vadd.f32 %v3156, %v3170
    %v3213 = vadd.f32 %v3157, %v3183
    %v3214 = vadd.f32 %v3158, %v3196
    %v3215 = vadd.f32 %v3159, %v3209
    %v3216 = vxor.u32 %v3212, 2147483648
    %v3217 = vxor.u32 %v3213, 2147483648
    %v3218 = vxor.u32 %v3214, 2147483648
    %v3219 = vmul.f32 %v3216, 1.442695
    %v3220 = vpow.pop %v3219
    %v3221 = vmul.f32 %v3217, 1.442695
    %v3222 = vpow.pop %v3221
    %v3223 = vmul.f32 %v3218, 1.442695
    %v3224 = vpow.pop %v3223
    %v3225 = vadd.f32 %v3220, 1.0
    %v3226 = vadd.f32 %v3222, 1.0
    %v3227 = vadd.f32 %v3224, 1.0
    %v3228 = vrcp.pop %v3225
    %v3229 = vmul.f32 %v3225, %v3228
    %v3230 = vsub.f32 1.0, %v3229
    %v3231 = vmul.f32 %v3228, %v3230
    %v3232 = vadd.f32 %v3228, %v3231
    %vm3233 = vweird.f32 %v3225
    %vm3234 = vweird.f32 %v3228
    %vm3235 = vmor %vm3233, %vm3234
    %v3236 = vsel %vm3235, %v3228, %v3232
    %v3237 = vand.u32 2147483647, %v3225
    %vm3238 = vcmp.eq.f32.partialorder %v3237, 8.507059e+37
    %v3239 = vand.u32 %v3225, 2147483648
    %v3240 = vor.u32 1.1754944e-38, %v3239
    %v3241 = vsel %vm3238, %v3240, %v3236
    %v3242 = vmul.f32 1.0, %v3241
    %v3243 = vrcp.pop %v3226
    %v3244 = vmul.f32 %v3226, %v3243
    %v3245 = vsub.f32 1.0, %v3244
    %v3246 = vmul.f32 %v3243, %v3245
    %v3247 = vadd.f32 %v3243, %v3246
    %vm3248 = vweird.f32 %v3226
    %vm3249 = vweird.f32 %v3243
    %vm3250 = vmor %vm3248, %vm3249
    %v3251 = vsel %vm3250, %v3243, %v3247
    %v3252 = vand.u32 2147483647, %v3226
    %vm3253 = vcmp.eq.f32.partialorder %v3252, 8.507059e+37
    %v3254 = vand.u32 %v3226, 2147483648
    %v3255 = vor.u32 1.1754944e-38, %v3254
    %v3256 = vsel %vm3253, %v3255, %v3251
    %v3257 = vmul.f32 1.0, %v3256
    %v3258 = vrcp.pop %v3227
    %v3259 = vmul.f32 %v3227, %v3258
    %v3260 = vsub.f32 1.0, %v3259
    %v3261 = vmul.f32 %v3258, %v3260
    %v3262 = vadd.f32 %v3258, %v3261
    %vm3263 = vweird.f32 %v3227
    %vm3264 = vweird.f32 %v3258
    %vm3265 = vmor %vm3263, %vm3264
    %v3266 = vsel %vm3265, %v3258, %v3262
    %v3267 = vand.u32 2147483647, %v3227
    %vm3268 = vcmp.eq.f32.partialorder %v3267, 8.507059e+37
    %v3269 = vand.u32 %v3227, 2147483648
    %v3270 = vor.u32 1.1754944e-38, %v3269
    %v3271 = vsel %vm3268, %v3270, %v3266
    %v3272 = vmul.f32 1.0, %v3271
    %v3273 = vtanh.pop %v3215
    %v3274 = vmul.f32 %v3257, %v3149
    %v3275 = vmul.f32 %v3242, %v3273
    %v3276 = vadd.f32 %v3274, %v3275
    %v3277 = vtanh.pop %v3276
    %v3278 = vmul.f32 %v3272, %v3277
    %v3279 = vpack.c.bf16 %v3278, %v3278
    %3280 = vst [vmem:[%s1679] sm:$0xf] %v3279
    %3281 = vst [vmem:[%s2100] sm:$0xff] %v3278
    %3282 = vst [vmem:[%s2102] sm:$0xff] %v3276
    %v3283 = vld [vmem:[#allocation5] sm:$0xf]
    %v3284 = vld [vmem:[#allocation5 + $0x4] sm:$0xf]
    %v3285 = vld [vmem:[#allocation5 + $0x8] sm:$0xf]
    %v3286 = vld [vmem:[#allocation5 + $0xc] sm:$0xf]
    %v3287 = vld [vmem:[#allocation5 + $0x10] sm:$0xf]
    %v3288 = vld [vmem:[#allocation5 + $0x14] sm:$0xf]
    %v3289 = vld [vmem:[#allocation5 + $0x18] sm:$0xf]
    %v3290 = vld [vmem:[#allocation5 + $0x1c] sm:$0xf]
    %s3291 = scalar_lea.vmem [#allocation6], 512
    %v3292 = vld [vmem:[%s3291] sm:$0xff]
    %v3293 = vld [vmem:[%s3291 + $0x8] sm:$0xff]
    %v3294 = vld [vmem:[%s3291 + $0x10] sm:$0xff]
    %v3295 = vld [vmem:[%s3291 + $0x18] sm:$0xff]
    %v3296 = vld [vmem:[%s3291 + $0x20] sm:$0xff]
    %v3297 = vld [vmem:[%s3291 + $0x28] sm:$0xff]
    %v3298 = vld [vmem:[%s3291 + $0x30] sm:$0xff]
    %v3299 = vld [vmem:[%s3291 + $0x38] sm:$0xff]
    %v3300 = vld [vmem:[%s3291 + $0x40] sm:$0xff]
    %v3301 = vld [vmem:[%s3291 + $0x48] sm:$0xff]
    %v3302 = vld [vmem:[%s3291 + $0x50] sm:$0xff]
    %v3303 = vld [vmem:[%s3291 + $0x58] sm:$0xff]
    %v3304 = vld [vmem:[%s3291 + $0x60] sm:$0xff]
    %v3305 = vld [vmem:[%s3291 + $0x68] sm:$0xff]
    %v3306 = vld [vmem:[%s3291 + $0x70] sm:$0xff]
    %v3307 = vld [vmem:[%s3291 + $0x78] sm:$0xff]
    %v3308 = vld [vmem:[%s3291 + $0x80] sm:$0xff]
    %v3309 = vld [vmem:[%s3291 + $0x88] sm:$0xff]
    %v3310 = vld [vmem:[%s3291 + $0x90] sm:$0xff]
    %v3311 = vld [vmem:[%s3291 + $0x98] sm:$0xff]
    %v3312 = vld [vmem:[%s3291 + $0xa0] sm:$0xff]
    %v3313 = vld [vmem:[%s3291 + $0xa8] sm:$0xff]
    %v3314 = vld [vmem:[%s3291 + $0xb0] sm:$0xff]
    %v3315 = vld [vmem:[%s3291 + $0xb8] sm:$0xff]
    %v3316 = vld [vmem:[%s3291 + $0xc0] sm:$0xff]
    %v3317 = vld [vmem:[%s3291 + $0xc8] sm:$0xff]
    %v3318 = vld [vmem:[%s3291 + $0xd0] sm:$0xff]
    %v3319 = vld [vmem:[%s3291 + $0xd8] sm:$0xff]
    %v3320 = vld [vmem:[%s3291 + $0xe0] sm:$0xff]
    %v3321 = vld [vmem:[%s3291 + $0xe8] sm:$0xff]
    %v3322 = vld [vmem:[%s3291 + $0xf0] sm:$0xff]
    %v3323 = vld [vmem:[%s3291 + $0xf8] sm:$0xff]
    %s3324 = scalar_lea.vmem %s5, 8
    %v3325 = vld [vmem:[%s3324] sm:$0xf]
    %v3327 = vperm.slane %v3325, 0
    %v3328 = vperm.slane %v3325, 1
    %v3329 = vperm.slane %v3325, 2
    %v3330 = vperm.slane %v3325, 3
    %v3343 = vunpack.c.l.b16 %v3283
    %v3344 = vunpack.c.l.b16 %v3284
    %v3345 = vunpack.c.l.b16 %v3285
    %v3346 = vunpack.c.l.b16 %v3286
    %v3347 = vunpack.c.l.b16 %v3287
    %v3348 = vunpack.c.l.b16 %v3288
    %v3349 = vunpack.c.l.b16 %v3289
    %v3350 = vunpack.c.l.b16 %v3290
    %v3351 = vpack.c.b16 %v3344, %v3343
    %v3352 = vpack.c.b16 %v3346, %v3345
    %v3353 = vpack.c.b16 %v3348, %v3347
    %v3354 = vpack.c.b16 %v3350, %v3349
    %v3391 = vunpack.c.l.b16 %v3292
    %v3392 = vunpack.c.h.b16 %v3292
    %v3393 = vunpack.c.l.b16 %v3293
    %v3394 = vunpack.c.h.b16 %v3293
    %v3395 = vunpack.c.l.b16 %v3294
    %v3396 = vunpack.c.h.b16 %v3294
    %v3397 = vunpack.c.l.b16 %v3295
    %v3398 = vunpack.c.h.b16 %v3295
    %v3399 = vunpack.c.l.b16 %v3296
    %v3400 = vunpack.c.h.b16 %v3296
    %v3401 = vunpack.c.l.b16 %v3297
    %v3402 = vunpack.c.h.b16 %v3297
    %v3403 = vunpack.c.l.b16 %v3298
    %v3404 = vunpack.c.h.b16 %v3298
    %v3405 = vunpack.c.l.b16 %v3299
    %v3406 = vunpack.c.h.b16 %v3299
    %v3407 = vunpack.c.l.b16 %v3300
    %v3408 = vunpack.c.h.b16 %v3300
    %v3409 = vunpack.c.l.b16 %v3301
    %v3410 = vunpack.c.h.b16 %v3301
    %v3411 = vunpack.c.l.b16 %v3302
    %v3412 = vunpack.c.h.b16 %v3302
    %v3413 = vunpack.c.l.b16 %v3303
    %v3414 = vunpack.c.h.b16 %v3303
    %v3415 = vunpack.c.l.b16 %v3304
    %v3416 = vunpack.c.h.b16 %v3304
    %v3417 = vunpack.c.l.b16 %v3305
    %v3418 = vunpack.c.h.b16 %v3305
    %v3419 = vunpack.c.l.b16 %v3306
    %v3420 = vunpack.c.h.b16 %v3306
    %v3421 = vunpack.c.l.b16 %v3307
    %v3422 = vunpack.c.h.b16 %v3307
    %v3423 = vunpack.c.l.b16 %v3308
    %v3424 = vunpack.c.h.b16 %v3308
    %v3425 = vunpack.c.l.b16 %v3309
    %v3426 = vunpack.c.h.b16 %v3309
    %v3427 = vunpack.c.l.b16 %v3310
    %v3428 = vunpack.c.h.b16 %v3310
    %v3429 = vunpack.c.l.b16 %v3311
    %v3430 = vunpack.c.h.b16 %v3311
    %v3431 = vunpack.c.l.b16 %v3312
    %v3432 = vunpack.c.h.b16 %v3312
    %v3433 = vunpack.c.l.b16 %v3313
    %v3434 = vunpack.c.h.b16 %v3313
    %v3435 = vunpack.c.l.b16 %v3314
    %v3436 = vunpack.c.h.b16 %v3314
    %v3437 = vunpack.c.l.b16 %v3315
    %v3438 = vunpack.c.h.b16 %v3315
    %v3439 = vunpack.c.l.b16 %v3316
    %v3440 = vunpack.c.h.b16 %v3316
    %v3441 = vunpack.c.l.b16 %v3317
    %v3442 = vunpack.c.h.b16 %v3317
    %v3443 = vunpack.c.l.b16 %v3318
    %v3444 = vunpack.c.h.b16 %v3318
    %v3445 = vunpack.c.l.b16 %v3319
    %v3446 = vunpack.c.h.b16 %v3319
    %v3447 = vunpack.c.l.b16 %v3320
    %v3448 = vunpack.c.h.b16 %v3320
    %v3449 = vunpack.c.l.b16 %v3321
    %v3450 = vunpack.c.h.b16 %v3321
    %v3451 = vunpack.c.l.b16 %v3322
    %v3452 = vunpack.c.h.b16 %v3322
    %v3453 = vunpack.c.l.b16 %v3323
    %v3454 = vunpack.c.h.b16 %v3323
    %v3455 = vpack.c.b16 %v3395, %v3391
    %v3456 = vpack.c.b16 %v3396, %v3392
    %v3457 = vpack.c.b16 %v3397, %v3393
    %v3458 = vpack.c.b16 %v3398, %v3394
    %v3459 = vpack.c.b16 %v3403, %v3399
    %v3460 = vpack.c.b16 %v3404, %v3400
    %v3461 = vpack.c.b16 %v3405, %v3401
    %v3462 = vpack.c.b16 %v3406, %v3402
    %v3463 = vpack.c.b16 %v3411, %v3407
    %v3464 = vpack.c.b16 %v3412, %v3408
    %v3465 = vpack.c.b16 %v3413, %v3409
    %v3466 = vpack.c.b16 %v3414, %v3410
    %v3467 = vpack.c.b16 %v3419, %v3415
    %v3468 = vpack.c.b16 %v3420, %v3416
    %v3469 = vpack.c.b16 %v3421, %v3417
    %v3470 = vpack.c.b16 %v3422, %v3418
    %v3471 = vpack.c.b16 %v3427, %v3423
    %v3472 = vpack.c.b16 %v3428, %v3424
    %v3473 = vpack.c.b16 %v3429, %v3425
    %v3474 = vpack.c.b16 %v3430, %v3426
    %v3475 = vpack.c.b16 %v3435, %v3431
    %v3476 = vpack.c.b16 %v3436, %v3432
    %v3477 = vpack.c.b16 %v3437, %v3433
    %v3478 = vpack.c.b16 %v3438, %v3434
    %v3479 = vpack.c.b16 %v3443, %v3439
    %v3480 = vpack.c.b16 %v3444, %v3440
    %v3481 = vpack.c.b16 %v3445, %v3441
    %v3482 = vpack.c.b16 %v3446, %v3442
    %v3483 = vpack.c.b16 %v3451, %v3447
    %v3484 = vpack.c.b16 %v3452, %v3448
    %v3485 = vpack.c.b16 %v3453, %v3449
    %v3486 = vpack.c.b16 %v3454, %v3450
    %3519 = vmatpush.bf16.msra.mxu0 %v3483
    %3520 = vmatpush.bf16.msra.mxu0 %v3479
    %3521 = vmatpush.bf16.msra.mxu0 %v3475
    %3522 = vmatpush.bf16.msra.mxu0 %v3471
    %3523 = vmatpush.bf16.msra.mxu0 %v3467
    %3524 = vmatpush.bf16.msra.mxu0 %v3463
    %3525 = vmatpush.bf16.msra.mxu0 %v3459
    %3526 = vmatpush.bf16.msra.mxu0 %v3455
    %3527 = vmatmul.bf16.gmra.mxu0 %v3351
    %v3528 = vpop.f32.mrf.mxu0
    %v3529 = vadd.f32 %v3327, %v3528
    %v3530 = vpop.f32.mrf.mxu0
    %v3531 = vadd.f32 %v3327, %v3530
    %3532 = vmatmul.bf16.gmra.mxu0 %v3352
    %v3533 = vpop.f32.mrf.mxu0
    %v3534 = vadd.f32 %v3327, %v3533
    %v3535 = vpop.f32.mrf.mxu0
    %v3536 = vadd.f32 %v3327, %v3535
    %3537 = vmatmul.bf16.gmra.mxu0 %v3353
    %v3538 = vpop.f32.mrf.mxu0
    %v3539 = vadd.f32 %v3327, %v3538
    %v3540 = vpop.f32.mrf.mxu0
    %v3541 = vadd.f32 %v3327, %v3540
    %3542 = vmatmul.bf16.gmra.mxu0 %v3354
    %v3543 = vpop.f32.mrf.mxu0
    %v3544 = vadd.f32 %v3327, %v3543
    %v3545 = vpop.f32.mrf.mxu0
    %v3546 = vadd.f32 %v3327, %v3545
    %3547 = vdwg.mxu0
    %3548 = vmatpush.bf16.msra.mxu0 %v3484
    %3549 = vmatpush.bf16.msra.mxu0 %v3480
    %3550 = vmatpush.bf16.msra.mxu0 %v3476
    %3551 = vmatpush.bf16.msra.mxu0 %v3472
    %3552 = vmatpush.bf16.msra.mxu0 %v3468
    %3553 = vmatpush.bf16.msra.mxu0 %v3464
    %3554 = vmatpush.bf16.msra.mxu0 %v3460
    %3555 = vmatpush.bf16.msra.mxu0 %v3456
    %3556 = vmatmul.bf16.gmra.mxu0 %v3351
    %v3557 = vpop.f32.mrf.mxu0
    %v3558 = vadd.f32 %v3328, %v3557
    %v3559 = vpop.f32.mrf.mxu0
    %v3560 = vadd.f32 %v3328, %v3559
    %3561 = vmatmul.bf16.gmra.mxu0 %v3352
    %v3562 = vpop.f32.mrf.mxu0
    %v3563 = vadd.f32 %v3328, %v3562
    %v3564 = vpop.f32.mrf.mxu0
    %v3565 = vadd.f32 %v3328, %v3564
    %3566 = vmatmul.bf16.gmra.mxu0 %v3353
    %v3567 = vpop.f32.mrf.mxu0
    %v3568 = vadd.f32 %v3328, %v3567
    %v3569 = vpop.f32.mrf.mxu0
    %v3570 = vadd.f32 %v3328, %v3569
    %3571 = vmatmul.bf16.gmra.mxu0 %v3354
    %v3572 = vpop.f32.mrf.mxu0
    %v3573 = vadd.f32 %v3328, %v3572
    %v3574 = vpop.f32.mrf.mxu0
    %v3575 = vadd.f32 %v3328, %v3574
    %3576 = vdwg.mxu0
    %3577 = vmatpush.bf16.msra.mxu0 %v3485
    %3578 = vmatpush.bf16.msra.mxu0 %v3481
    %3579 = vmatpush.bf16.msra.mxu0 %v3477
    %3580 = vmatpush.bf16.msra.mxu0 %v3473
    %3581 = vmatpush.bf16.msra.mxu0 %v3469
    %3582 = vmatpush.bf16.msra.mxu0 %v3465
    %3583 = vmatpush.bf16.msra.mxu0 %v3461
    %3584 = vmatpush.bf16.msra.mxu0 %v3457
    %3585 = vmatmul.bf16.gmra.mxu0 %v3351
    %v3586 = vpop.f32.mrf.mxu0
    %v3587 = vadd.f32 %v3329, %v3586
    %v3588 = vpop.f32.mrf.mxu0
    %v3589 = vadd.f32 %v3329, %v3588
    %3590 = vmatmul.bf16.gmra.mxu0 %v3352
    %v3591 = vpop.f32.mrf.mxu0
    %v3592 = vadd.f32 %v3329, %v3591
    %v3593 = vpop.f32.mrf.mxu0
    %v3594 = vadd.f32 %v3329, %v3593
    %3595 = vmatmul.bf16.gmra.mxu0 %v3353
    %v3596 = vpop.f32.mrf.mxu0
    %v3597 = vadd.f32 %v3329, %v3596
    %v3598 = vpop.f32.mrf.mxu0
    %v3599 = vadd.f32 %v3329, %v3598
    %3600 = vmatmul.bf16.gmra.mxu0 %v3354
    %v3601 = vpop.f32.mrf.mxu0
    %v3602 = vadd.f32 %v3329, %v3601
    %v3603 = vpop.f32.mrf.mxu0
    %v3604 = vadd.f32 %v3329, %v3603
    %3605 = vdwg.mxu0
    %3606 = vmatpush.bf16.msra.mxu0 %v3486
    %3607 = vmatpush.bf16.msra.mxu0 %v3482
    %3608 = vmatpush.bf16.msra.mxu0 %v3478
    %3609 = vmatpush.bf16.msra.mxu0 %v3474
    %3610 = vmatpush.bf16.msra.mxu0 %v3470
    %3611 = vmatpush.bf16.msra.mxu0 %v3466
    %3612 = vmatpush.bf16.msra.mxu0 %v3462
    %3613 = vmatpush.bf16.msra.mxu0 %v3458
    %3614 = vmatmul.bf16.gmra.mxu0 %v3351
    %v3615 = vpop.f32.mrf.mxu0
    %v3616 = vadd.f32 %v3330, %v3615
    %v3617 = vpop.f32.mrf.mxu0
    %v3618 = vadd.f32 %v3330, %v3617
    %3619 = vmatmul.bf16.gmra.mxu0 %v3352
    %v3620 = vpop.f32.mrf.mxu0
    %v3621 = vadd.f32 %v3330, %v3620
    %v3622 = vpop.f32.mrf.mxu0
    %v3623 = vadd.f32 %v3330, %v3622
    %3624 = vmatmul.bf16.gmra.mxu0 %v3353
    %v3625 = vpop.f32.mrf.mxu0
    %v3626 = vadd.f32 %v3330, %v3625
    %v3627 = vpop.f32.mrf.mxu0
    %v3628 = vadd.f32 %v3330, %v3627
    %3629 = vmatmul.bf16.gmra.mxu0 %v3354
    %v3630 = vpop.f32.mrf.mxu0
    %v3631 = vadd.f32 %v3330, %v3630
    %v3632 = vpop.f32.mrf.mxu0
    %v3633 = vadd.f32 %v3330, %v3632
    %3634 = vdwg.mxu0
    %v3635 = vpack.c.bf16 %v3558, %v3529
    %v3636 = vpack.c.bf16 %v3616, %v3587
    %v3637 = vpack.c.bf16 %v3560, %v3531
    %v3638 = vpack.c.bf16 %v3618, %v3589
    %v3639 = vpack.c.bf16 %v3563, %v3534
    %v3640 = vpack.c.bf16 %v3621, %v3592
    %v3641 = vpack.c.bf16 %v3565, %v3536
    %v3642 = vpack.c.bf16 %v3623, %v3594
    %v3643 = vpack.c.bf16 %v3568, %v3539
    %v3644 = vpack.c.bf16 %v3626, %v3597
    %v3645 = vpack.c.bf16 %v3570, %v3541
    %v3646 = vpack.c.bf16 %v3628, %v3599
    %v3647 = vpack.c.bf16 %v3573, %v3544
    %v3648 = vpack.c.bf16 %v3631, %v3602
    %v3649 = vpack.c.bf16 %v3575, %v3546
    %v3650 = vpack.c.bf16 %v3633, %v3604
    %3651 = vst [vmem:[#allocation4] sm:$0xff] %v3635
    %3652 = vst [vmem:[#allocation4 + $0x8] sm:$0xff] %v3636
    %3653 = vst [vmem:[#allocation4 + $0x10] sm:$0xff] %v3637
    %3654 = vst [vmem:[#allocation4 + $0x18] sm:$0xff] %v3638
    %3655 = vst [vmem:[#allocation4 + $0x20] sm:$0xff] %v3639
    %3656 = vst [vmem:[#allocation4 + $0x28] sm:$0xff] %v3640
    %3657 = vst [vmem:[#allocation4 + $0x30] sm:$0xff] %v3641
    %3658 = vst [vmem:[#allocation4 + $0x38] sm:$0xff] %v3642
    %3659 = vst [vmem:[#allocation4 + $0x40] sm:$0xff] %v3643
    %3660 = vst [vmem:[#allocation4 + $0x48] sm:$0xff] %v3644
    %3661 = vst [vmem:[#allocation4 + $0x50] sm:$0xff] %v3645
    %3662 = vst [vmem:[#allocation4 + $0x58] sm:$0xff] %v3646
    %3663 = vst [vmem:[#allocation4 + $0x60] sm:$0xff] %v3647
    %3664 = vst [vmem:[#allocation4 + $0x68] sm:$0xff] %v3648
    %3665 = vst [vmem:[#allocation4 + $0x70] sm:$0xff] %v3649
    %3666 = vst [vmem:[#allocation4 + $0x78] sm:$0xff] %v3650
    %s3667 = scalar_lea.vmem [#allocation8], 512
    %v3668 = vld [vmem:[%s3667] sm:$0xff]
    %v3669 = vld [vmem:[%s3667 + $0x8] sm:$0xff]
    %v3670 = vld [vmem:[%s3667 + $0x10] sm:$0xff]
    %v3671 = vld [vmem:[%s3667 + $0x18] sm:$0xff]
    %v3672 = vld [vmem:[%s3667 + $0x20] sm:$0xff]
    %v3673 = vld [vmem:[%s3667 + $0x28] sm:$0xff]
    %v3674 = vld [vmem:[%s3667 + $0x30] sm:$0xff]
    %v3675 = vld [vmem:[%s3667 + $0x38] sm:$0xff]
    %v3676 = vld [vmem:[%s3667 + $0x40] sm:$0xff]
    %v3677 = vld [vmem:[%s3667 + $0x48] sm:$0xff]
    %v3678 = vld [vmem:[%s3667 + $0x50] sm:$0xff]
    %v3679 = vld [vmem:[%s3667 + $0x58] sm:$0xff]
    %v3680 = vld [vmem:[%s3667 + $0x60] sm:$0xff]
    %v3681 = vld [vmem:[%s3667 + $0x68] sm:$0xff]
    %v3682 = vld [vmem:[%s3667 + $0x70] sm:$0xff]
    %v3683 = vld [vmem:[%s3667 + $0x78] sm:$0xff]
    %v3684 = vld [vmem:[%s3667 + $0x80] sm:$0xff]
    %v3685 = vld [vmem:[%s3667 + $0x88] sm:$0xff]
    %v3686 = vld [vmem:[%s3667 + $0x90] sm:$0xff]
    %v3687 = vld [vmem:[%s3667 + $0x98] sm:$0xff]
    %v3688 = vld [vmem:[%s3667 + $0xa0] sm:$0xff]
    %v3689 = vld [vmem:[%s3667 + $0xa8] sm:$0xff]
    %v3690 = vld [vmem:[%s3667 + $0xb0] sm:$0xff]
    %v3691 = vld [vmem:[%s3667 + $0xb8] sm:$0xff]
    %v3692 = vld [vmem:[%s3667 + $0xc0] sm:$0xff]
    %v3693 = vld [vmem:[%s3667 + $0xc8] sm:$0xff]
    %v3694 = vld [vmem:[%s3667 + $0xd0] sm:$0xff]
    %v3695 = vld [vmem:[%s3667 + $0xd8] sm:$0xff]
    %v3696 = vld [vmem:[%s3667 + $0xe0] sm:$0xff]
    %v3697 = vld [vmem:[%s3667 + $0xe8] sm:$0xff]
    %v3698 = vld [vmem:[%s3667 + $0xf0] sm:$0xff]
    %v3699 = vld [vmem:[%s3667 + $0xf8] sm:$0xff]
    %s3700 = scalar_lea.vmem [#allocation2], 16
    %v3701 = vld [vmem:[%s3700] sm:$0xff]
    %s3702 = scalar_lea.vmem [#allocation3], 16
    %v3703 = vld [vmem:[%s3702] sm:$0xff]
    %v3704 = vld [vmem:[#allocation4] sm:$0xff]
    %v3705 = vld [vmem:[#allocation4 + $0x8] sm:$0xff]
    %v3706 = vunpack.c.l.bf16 %v3704
    %v3707 = vunpack.c.h.bf16 %v3704
    %v3708 = vunpack.c.l.bf16 %v3705
    %v3709 = vunpack.c.h.bf16 %v3705
    %v3710 = vpack.c.bf16 %v3701, %v3701
    %v3743 = vunpack.c.l.b16 %v3668
    %v3744 = vunpack.c.h.b16 %v3668
    %v3745 = vunpack.c.l.b16 %v3669
    %v3746 = vunpack.c.h.b16 %v3669
    %v3747 = vunpack.c.l.b16 %v3670
    %v3748 = vunpack.c.h.b16 %v3670
    %v3749 = vunpack.c.l.b16 %v3671
    %v3750 = vunpack.c.h.b16 %v3671
    %v3751 = vunpack.c.l.b16 %v3672
    %v3752 = vunpack.c.h.b16 %v3672
    %v3753 = vunpack.c.l.b16 %v3673
    %v3754 = vunpack.c.h.b16 %v3673
    %v3755 = vunpack.c.l.b16 %v3674
    %v3756 = vunpack.c.h.b16 %v3674
    %v3757 = vunpack.c.l.b16 %v3675
    %v3758 = vunpack.c.h.b16 %v3675
    %v3759 = vunpack.c.l.b16 %v3676
    %v3760 = vunpack.c.h.b16 %v3676
    %v3761 = vunpack.c.l.b16 %v3677
    %v3762 = vunpack.c.h.b16 %v3677
    %v3763 = vunpack.c.l.b16 %v3678
    %v3764 = vunpack.c.h.b16 %v3678
    %v3765 = vunpack.c.l.b16 %v3679
    %v3766 = vunpack.c.h.b16 %v3679
    %v3767 = vunpack.c.l.b16 %v3680
    %v3768 = vunpack.c.h.b16 %v3680
    %v3769 = vunpack.c.l.b16 %v3681
    %v3770 = vunpack.c.h.b16 %v3681
    %v3771 = vunpack.c.l.b16 %v3682
    %v3772 = vunpack.c.h.b16 %v3682
    %v3773 = vunpack.c.l.b16 %v3683
    %v3774 = vunpack.c.h.b16 %v3683
    %v3775 = vunpack.c.l.b16 %v3684
    %v3776 = vunpack.c.h.b16 %v3684
    %v3777 = vunpack.c.l.b16 %v3685
    %v3778 = vunpack.c.h.b16 %v3685
    %v3779 = vunpack.c.l.b16 %v3686
    %v3780 = vunpack.c.h.b16 %v3686
    %v3781 = vunpack.c.l.b16 %v3687
    %v3782 = vunpack.c.h.b16 %v3687
    %v3783 = vunpack.c.l.b16 %v3688
    %v3784 = vunpack.c.h.b16 %v3688
    %v3785 = vunpack.c.l.b16 %v3689
    %v3786 = vunpack.c.h.b16 %v3689
    %v3787 = vunpack.c.l.b16 %v3690
    %v3788 = vunpack.c.h.b16 %v3690
    %v3789 = vunpack.c.l.b16 %v3691
    %v3790 = vunpack.c.h.b16 %v3691
    %v3791 = vunpack.c.l.b16 %v3692
    %v3792 = vunpack.c.h.b16 %v3692
    %v3793 = vunpack.c.l.b16 %v3693
    %v3794 = vunpack.c.h.b16 %v3693
    %v3795 = vunpack.c.l.b16 %v3694
    %v3796 = vunpack.c.h.b16 %v3694
    %v3797 = vunpack.c.l.b16 %v3695
    %v3798 = vunpack.c.h.b16 %v3695
    %v3799 = vunpack.c.l.b16 %v3696
    %v3800 = vunpack.c.h.b16 %v3696
    %v3801 = vunpack.c.l.b16 %v3697
    %v3802 = vunpack.c.h.b16 %v3697
    %v3803 = vunpack.c.l.b16 %v3698
    %v3804 = vunpack.c.h.b16 %v3698
    %v3805 = vunpack.c.l.b16 %v3699
    %v3806 = vunpack.c.h.b16 %v3699
    %v3807 = vpack.c.b16 %v3747, %v3743
    %v3808 = vpack.c.b16 %v3748, %v3744
    %v3809 = vpack.c.b16 %v3749, %v3745
    %v3810 = vpack.c.b16 %v3750, %v3746
    %v3811 = vpack.c.b16 %v3755, %v3751
    %v3812 = vpack.c.b16 %v3756, %v3752
    %v3813 = vpack.c.b16 %v3757, %v3753
    %v3814 = vpack.c.b16 %v3758, %v3754
    %v3815 = vpack.c.b16 %v3763, %v3759
    %v3816 = vpack.c.b16 %v3764, %v3760
    %v3817 = vpack.c.b16 %v3765, %v3761
    %v3818 = vpack.c.b16 %v3766, %v3762
    %v3819 = vpack.c.b16 %v3771, %v3767
    %v3820 = vpack.c.b16 %v3772, %v3768
    %v3821 = vpack.c.b16 %v3773, %v3769
    %v3822 = vpack.c.b16 %v3774, %v3770
    %v3823 = vpack.c.b16 %v3779, %v3775
    %v3824 = vpack.c.b16 %v3780, %v3776
    %v3825 = vpack.c.b16 %v3781, %v3777
    %v3826 = vpack.c.b16 %v3782, %v3778
    %v3827 = vpack.c.b16 %v3787, %v3783
    %v3828 = vpack.c.b16 %v3788, %v3784
    %v3829 = vpack.c.b16 %v3789, %v3785
    %v3830 = vpack.c.b16 %v3790, %v3786
    %v3831 = vpack.c.b16 %v3795, %v3791
    %v3832 = vpack.c.b16 %v3796, %v3792
    %v3833 = vpack.c.b16 %v3797, %v3793
    %v3834 = vpack.c.b16 %v3798, %v3794
    %v3835 = vpack.c.b16 %v3803, %v3799
    %v3836 = vpack.c.b16 %v3804, %v3800
    %v3837 = vpack.c.b16 %v3805, %v3801
    %v3838 = vpack.c.b16 %v3806, %v3802
    %3871 = vmatpush.bf16.msra.mxu0 %v3835
    %3872 = vmatpush.bf16.msra.mxu0 %v3831
    %3873 = vmatpush.bf16.msra.mxu0 %v3827
    %3874 = vmatpush.bf16.msra.mxu0 %v3823
    %3875 = vmatpush.bf16.msra.mxu0 %v3819
    %3876 = vmatpush.bf16.msra.mxu0 %v3815
    %3877 = vmatpush.bf16.msra.mxu0 %v3811
    %3878 = vmatpush.bf16.msra.mxu0 %v3807
    %3879 = vmatmul.bf16.gmra.mxu0 %v3710
    %v3880 = vpop.f32.mrf.mxu0
    %v3881 = vadd.f32 0.0, %v3880
    %v3882 = vpop.f32.mrf.mxu0
    %3883 = vdwg.mxu0
    %3884 = vmatpush.bf16.msra.mxu0 %v3836
    %3885 = vmatpush.bf16.msra.mxu0 %v3832
    %3886 = vmatpush.bf16.msra.mxu0 %v3828
    %3887 = vmatpush.bf16.msra.mxu0 %v3824
    %3888 = vmatpush.bf16.msra.mxu0 %v3820
    %3889 = vmatpush.bf16.msra.mxu0 %v3816
    %3890 = vmatpush.bf16.msra.mxu0 %v3812
    %3891 = vmatpush.bf16.msra.mxu0 %v3808
    %3892 = vmatmul.bf16.gmra.mxu0 %v3710
    %v3893 = vpop.f32.mrf.mxu0
    %v3894 = vadd.f32 0.0, %v3893
    %v3895 = vpop.f32.mrf.mxu0
    %3896 = vdwg.mxu0
    %3897 = vmatpush.bf16.msra.mxu0 %v3837
    %3898 = vmatpush.bf16.msra.mxu0 %v3833
    %3899 = vmatpush.bf16.msra.mxu0 %v3829
    %3900 = vmatpush.bf16.msra.mxu0 %v3825
    %3901 = vmatpush.bf16.msra.mxu0 %v3821
    %3902 = vmatpush.bf16.msra.mxu0 %v3817
    %3903 = vmatpush.bf16.msra.mxu0 %v3813
    %3904 = vmatpush.bf16.msra.mxu0 %v3809
    %3905 = vmatmul.bf16.gmra.mxu0 %v3710
    %v3906 = vpop.f32.mrf.mxu0
    %v3907 = vadd.f32 0.0, %v3906
    %v3908 = vpop.f32.mrf.mxu0
    %3909 = vdwg.mxu0
    %3910 = vmatpush.bf16.msra.mxu0 %v3838
    %3911 = vmatpush.bf16.msra.mxu0 %v3834
    %3912 = vmatpush.bf16.msra.mxu0 %v3830
    %3913 = vmatpush.bf16.msra.mxu0 %v3826
    %3914 = vmatpush.bf16.msra.mxu0 %v3822
    %3915 = vmatpush.bf16.msra.mxu0 %v3818
    %3916 = vmatpush.bf16.msra.mxu0 %v3814
    %3917 = vmatpush.bf16.msra.mxu0 %v3810
    %3918 = vmatmul.bf16.gmra.mxu0 %v3710
    %v3919 = vpop.f32.mrf.mxu0
    %v3920 = vadd.f32 0.0, %v3919
    %v3921 = vpop.f32.mrf.mxu0
    %3922 = vdwg.mxu0
    %v3923 = vadd.f32 %v3706, %v3881
    %v3924 = vadd.f32 %v3707, %v3894
    %v3925 = vadd.f32 %v3708, %v3907
    %v3926 = vadd.f32 %v3709, %v3920
    %v3927 = vxor.u32 %v3923, 2147483648
    %v3928 = vxor.u32 %v3924, 2147483648
    %v3929 = vxor.u32 %v3925, 2147483648
    %v3930 = vmul.f32 %v3927, 1.442695
    %v3931 = vpow.pop %v3930
    %v3932 = vmul.f32 %v3928, 1.442695
    %v3933 = vpow.pop %v3932
    %v3934 = vmul.f32 %v3929, 1.442695
    %v3935 = vpow.pop %v3934
    %v3936 = vadd.f32 %v3931, 1.0
    %v3937 = vadd.f32 %v3933, 1.0
    %v3938 = vadd.f32 %v3935, 1.0
    %v3939 = vrcp.pop %v3936
    %v3940 = vmul.f32 %v3936, %v3939
    %v3941 = vsub.f32 1.0, %v3940
    %v3942 = vmul.f32 %v3939, %v3941
    %v3943 = vadd.f32 %v3939, %v3942
    %vm3944 = vweird.f32 %v3936
    %vm3945 = vweird.f32 %v3939
    %vm3946 = vmor %vm3944, %vm3945
    %v3947 = vsel %vm3946, %v3939, %v3943
    %v3948 = vand.u32 2147483647, %v3936
    %vm3949 = vcmp.eq.f32.partialorder %v3948, 8.507059e+37
    %v3950 = vand.u32 %v3936, 2147483648
    %v3951 = vor.u32 1.1754944e-38, %v3950
    %v3952 = vsel %vm3949, %v3951, %v3947
    %v3953 = vmul.f32 1.0, %v3952
    %v3954 = vrcp.pop %v3937
    %v3955 = vmul.f32 %v3937, %v3954
    %v3956 = vsub.f32 1.0, %v3955
    %v3957 = vmul.f32 %v3954, %v3956
    %v3958 = vadd.f32 %v3954, %v3957
    %vm3959 = vweird.f32 %v3937
    %vm3960 = vweird.f32 %v3954
    %vm3961 = vmor %vm3959, %vm3960
    %v3962 = vsel %vm3961, %v3954, %v3958
    %v3963 = vand.u32 2147483647, %v3937
    %vm3964 = vcmp.eq.f32.partialorder %v3963, 8.507059e+37
    %v3965 = vand.u32 %v3937, 2147483648
    %v3966 = vor.u32 1.1754944e-38, %v3965
    %v3967 = vsel %vm3964, %v3966, %v3962
    %v3968 = vmul.f32 1.0, %v3967
    %v3969 = vrcp.pop %v3938
    %v3970 = vmul.f32 %v3938, %v3969
    %v3971 = vsub.f32 1.0, %v3970
    %v3972 = vmul.f32 %v3969, %v3971
    %v3973 = vadd.f32 %v3969, %v3972
    %vm3974 = vweird.f32 %v3938
    %vm3975 = vweird.f32 %v3969
    %vm3976 = vmor %vm3974, %vm3975
    %v3977 = vsel %vm3976, %v3969, %v3973
    %v3978 = vand.u32 2147483647, %v3938
    %vm3979 = vcmp.eq.f32.partialorder %v3978, 8.507059e+37
    %v3980 = vand.u32 %v3938, 2147483648
    %v3981 = vor.u32 1.1754944e-38, %v3980
    %v3982 = vsel %vm3979, %v3981, %v3977
    %v3983 = vmul.f32 1.0, %v3982
    %v3984 = vtanh.pop %v3926
    %v3985 = vmul.f32 %v3968, %v3703
    %v3986 = vmul.f32 %v3953, %v3984
    %v3987 = vadd.f32 %v3985, %v3986
    %v3988 = vtanh.pop %v3987
    %v3989 = vmul.f32 %v3983, %v3988
    %v3990 = vpack.c.bf16 %v3989, %v3989
    %3991 = vst [vmem:[#allocation5] sm:$0xf] %v3990
    %v3992 = vld [vmem:[%s778] sm:$0xff]
    %v3993 = vld [vmem:[%s778 + $0x8] sm:$0xff]
    %v3994 = vunpack.c.l.bf16 %v3992
    %v3995 = vunpack.c.h.bf16 %v3992
    %v3996 = vunpack.c.l.bf16 %v3993
    %v3997 = vunpack.c.h.bf16 %v3993
    %3998 = vmatpush.bf16.msra.mxu0 %v3835
    %3999 = vmatpush.bf16.msra.mxu0 %v3831
    %4000 = vmatpush.bf16.msra.mxu0 %v3827
    %4001 = vmatpush.bf16.msra.mxu0 %v3823
    %4002 = vmatpush.bf16.msra.mxu0 %v3819
    %4003 = vmatpush.bf16.msra.mxu0 %v3815
    %4004 = vmatpush.bf16.msra.mxu0 %v3811
    %4005 = vmatpush.bf16.msra.mxu0 %v3807
    %4006 = vmatmul.bf16.gmra.mxu0 %v3990
    %v4007 = vpop.f32.mrf.mxu0
    %v4008 = vadd.f32 0.0, %v4007
    %v4009 = vpop.f32.mrf.mxu0
    %4010 = vdwg.mxu0
    %4011 = vmatpush.bf16.msra.mxu0 %v3836
    %4012 = vmatpush.bf16.msra.mxu0 %v3832
    %4013 = vmatpush.bf16.msra.mxu0 %v3828
    %4014 = vmatpush.bf16.msra.mxu0 %v3824
    %4015 = vmatpush.bf16.msra.mxu0 %v3820
    %4016 = vmatpush.bf16.msra.mxu0 %v3816
    %4017 = vmatpush.bf16.msra.mxu0 %v3812
    %4018 = vmatpush.bf16.msra.mxu0 %v3808
    %4019 = vmatmul.bf16.gmra.mxu0 %v3990
    %v4020 = vpop.f32.mrf.mxu0
    %v4021 = vadd.f32 0.0, %v4020
    %v4022 = vpop.f32.mrf.mxu0
    %4023 = vdwg.mxu0
    %4024 = vmatpush.bf16.msra.mxu0 %v3837
    %4025 = vmatpush.bf16.msra.mxu0 %v3833
    %4026 = vmatpush.bf16.msra.mxu0 %v3829
    %4027 = vmatpush.bf16.msra.mxu0 %v3825
    %4028 = vmatpush.bf16.msra.mxu0 %v3821
    %4029 = vmatpush.bf16.msra.mxu0 %v3817
    %4030 = vmatpush.bf16.msra.mxu0 %v3813
    %4031 = vmatpush.bf16.msra.mxu0 %v3809
    %4032 = vmatmul.bf16.gmra.mxu0 %v3990
    %v4033 = vpop.f32.mrf.mxu0
    %v4034 = vadd.f32 0.0, %v4033
    %v4035 = vpop.f32.mrf.mxu0
    %4036 = vdwg.mxu0
    %4037 = vmatpush.bf16.msra.mxu0 %v3838
    %4038 = vmatpush.bf16.msra.mxu0 %v3834
    %4039 = vmatpush.bf16.msra.mxu0 %v3830
    %4040 = vmatpush.bf16.msra.mxu0 %v3826
    %4041 = vmatpush.bf16.msra.mxu0 %v3822
    %4042 = vmatpush.bf16.msra.mxu0 %v3818
    %4043 = vmatpush.bf16.msra.mxu0 %v3814
    %4044 = vmatpush.bf16.msra.mxu0 %v3810
    %4045 = vmatmul.bf16.gmra.mxu0 %v3990
    %v4046 = vpop.f32.mrf.mxu0
    %v4047 = vadd.f32 0.0, %v4046
    %v4048 = vpop.f32.mrf.mxu0
    %4049 = vdwg.mxu0
    %v4050 = vadd.f32 %v3994, %v4008
    %v4051 = vadd.f32 %v3995, %v4021
    %v4052 = vadd.f32 %v3996, %v4034
    %v4053 = vadd.f32 %v3997, %v4047
    %v4054 = vxor.u32 %v4050, 2147483648
    %v4055 = vxor.u32 %v4051, 2147483648
    %v4056 = vxor.u32 %v4052, 2147483648
    %v4057 = vmul.f32 %v4054, 1.442695
    %v4058 = vpow.pop %v4057
    %v4059 = vmul.f32 %v4055, 1.442695
    %v4060 = vpow.pop %v4059
    %v4061 = vmul.f32 %v4056, 1.442695
    %v4062 = vpow.pop %v4061
    %v4063 = vadd.f32 %v4058, 1.0
    %v4064 = vadd.f32 %v4060, 1.0
    %v4065 = vadd.f32 %v4062, 1.0
    %v4066 = vrcp.pop %v4063
    %v4067 = vmul.f32 %v4063, %v4066
    %v4068 = vsub.f32 1.0, %v4067
    %v4069 = vmul.f32 %v4066, %v4068
    %v4070 = vadd.f32 %v4066, %v4069
    %vm4071 = vweird.f32 %v4063
    %vm4072 = vweird.f32 %v4066
    %vm4073 = vmor %vm4071, %vm4072
    %v4074 = vsel %vm4073, %v4066, %v4070
    %v4075 = vand.u32 2147483647, %v4063
    %vm4076 = vcmp.eq.f32.partialorder %v4075, 8.507059e+37
    %v4077 = vand.u32 %v4063, 2147483648
    %v4078 = vor.u32 1.1754944e-38, %v4077
    %v4079 = vsel %vm4076, %v4078, %v4074
    %v4080 = vmul.f32 1.0, %v4079
    %v4081 = vrcp.pop %v4064
    %v4082 = vmul.f32 %v4064, %v4081
    %v4083 = vsub.f32 1.0, %v4082
    %v4084 = vmul.f32 %v4081, %v4083
    %v4085 = vadd.f32 %v4081, %v4084
    %vm4086 = vweird.f32 %v4064
    %vm4087 = vweird.f32 %v4081
    %vm4088 = vmor %vm4086, %vm4087
    %v4089 = vsel %vm4088, %v4081, %v4085
    %v4090 = vand.u32 2147483647, %v4064
    %vm4091 = vcmp.eq.f32.partialorder %v4090, 8.507059e+37
    %v4092 = vand.u32 %v4064, 2147483648
    %v4093 = vor.u32 1.1754944e-38, %v4092
    %v4094 = vsel %vm4091, %v4093, %v4089
    %v4095 = vmul.f32 1.0, %v4094
    %v4096 = vrcp.pop %v4065
    %v4097 = vmul.f32 %v4065, %v4096
    %v4098 = vsub.f32 1.0, %v4097
    %v4099 = vmul.f32 %v4096, %v4098
    %v4100 = vadd.f32 %v4096, %v4099
    %vm4101 = vweird.f32 %v4065
    %vm4102 = vweird.f32 %v4096
    %vm4103 = vmor %vm4101, %vm4102
    %v4104 = vsel %vm4103, %v4096, %v4100
    %v4105 = vand.u32 2147483647, %v4065
    %vm4106 = vcmp.eq.f32.partialorder %v4105, 8.507059e+37
    %v4107 = vand.u32 %v4065, 2147483648
    %v4108 = vor.u32 1.1754944e-38, %v4107
    %v4109 = vsel %vm4106, %v4108, %v4104
    %v4110 = vmul.f32 1.0, %v4109
    %v4111 = vtanh.pop %v4053
    %v4112 = vmul.f32 %v4095, %v3987
    %v4113 = vmul.f32 %v4080, %v4111
    %v4114 = vadd.f32 %v4112, %v4113
    %v4115 = vtanh.pop %v4114
    %v4116 = vmul.f32 %v4110, %v4115
    %v4117 = vpack.c.bf16 %v4116, %v4116
    %4118 = vst [vmem:[%s905] sm:$0xf] %v4117
    %v4119 = vld [vmem:[%s907] sm:$0xff]
    %v4120 = vld [vmem:[%s907 + $0x8] sm:$0xff]
    %v4121 = vunpack.c.l.bf16 %v4119
    %v4122 = vunpack.c.h.bf16 %v4119
    %v4123 = vunpack.c.l.bf16 %v4120
    %v4124 = vunpack.c.h.bf16 %v4120
    %4125 = vmatpush.bf16.msra.mxu0 %v3835
    %4126 = vmatpush.bf16.msra.mxu0 %v3831
    %4127 = vmatpush.bf16.msra.mxu0 %v3827
    %4128 = vmatpush.bf16.msra.mxu0 %v3823
    %4129 = vmatpush.bf16.msra.mxu0 %v3819
    %4130 = vmatpush.bf16.msra.mxu0 %v3815
    %4131 = vmatpush.bf16.msra.mxu0 %v3811
    %4132 = vmatpush.bf16.msra.mxu0 %v3807
    %4133 = vmatmul.bf16.gmra.mxu0 %v4117
    %v4134 = vpop.f32.mrf.mxu0
    %v4135 = vadd.f32 0.0, %v4134
    %v4136 = vpop.f32.mrf.mxu0
    %4137 = vdwg.mxu0
    %4138 = vmatpush.bf16.msra.mxu0 %v3836
    %4139 = vmatpush.bf16.msra.mxu0 %v3832
    %4140 = vmatpush.bf16.msra.mxu0 %v3828
    %4141 = vmatpush.bf16.msra.mxu0 %v3824
    %4142 = vmatpush.bf16.msra.mxu0 %v3820
    %4143 = vmatpush.bf16.msra.mxu0 %v3816
    %4144 = vmatpush.bf16.msra.mxu0 %v3812
    %4145 = vmatpush.bf16.msra.mxu0 %v3808
    %4146 = vmatmul.bf16.gmra.mxu0 %v4117
    %v4147 = vpop.f32.mrf.mxu0
    %v4148 = vadd.f32 0.0, %v4147
    %v4149 = vpop.f32.mrf.mxu0
    %4150 = vdwg.mxu0
    %4151 = vmatpush.bf16.msra.mxu0 %v3837
    %4152 = vmatpush.bf16.msra.mxu0 %v3833
    %4153 = vmatpush.bf16.msra.mxu0 %v3829
    %4154 = vmatpush.bf16.msra.mxu0 %v3825
    %4155 = vmatpush.bf16.msra.mxu0 %v3821
    %4156 = vmatpush.bf16.msra.mxu0 %v3817
    %4157 = vmatpush.bf16.msra.mxu0 %v3813
    %4158 = vmatpush.bf16.msra.mxu0 %v3809
    %4159 = vmatmul.bf16.gmra.mxu0 %v4117
    %v4160 = vpop.f32.mrf.mxu0
    %v4161 = vadd.f32 0.0, %v4160
    %v4162 = vpop.f32.mrf.mxu0
    %4163 = vdwg.mxu0
    %4164 = vmatpush.bf16.msra.mxu0 %v3838
    %4165 = vmatpush.bf16.msra.mxu0 %v3834
    %4166 = vmatpush.bf16.msra.mxu0 %v3830
    %4167 = vmatpush.bf16.msra.mxu0 %v3826
    %4168 = vmatpush.bf16.msra.mxu0 %v3822
    %4169 = vmatpush.bf16.msra.mxu0 %v3818
    %4170 = vmatpush.bf16.msra.mxu0 %v3814
    %4171 = vmatpush.bf16.msra.mxu0 %v3810
    %4172 = vmatmul.bf16.gmra.mxu0 %v4117
    %v4173 = vpop.f32.mrf.mxu0
    %v4174 = vadd.f32 0.0, %v4173
    %v4175 = vpop.f32.mrf.mxu0
    %4176 = vdwg.mxu0
    %v4177 = vadd.f32 %v4121, %v4135
    %v4178 = vadd.f32 %v4122, %v4148
    %v4179 = vadd.f32 %v4123, %v4161
    %v4180 = vadd.f32 %v4124, %v4174
    %v4181 = vxor.u32 %v4177, 2147483648
    %v4182 = vxor.u32 %v4178, 2147483648
    %v4183 = vxor.u32 %v4179, 2147483648
    %v4184 = vmul.f32 %v4181, 1.442695
    %v4185 = vpow.pop %v4184
    %v4186 = vmul.f32 %v4182, 1.442695
    %v4187 = vpow.pop %v4186
    %v4188 = vmul.f32 %v4183, 1.442695
    %v4189 = vpow.pop %v4188
    %v4190 = vadd.f32 %v4185, 1.0
    %v4191 = vadd.f32 %v4187, 1.0
    %v4192 = vadd.f32 %v4189, 1.0
    %v4193 = vrcp.pop %v4190
    %v4194 = vmul.f32 %v4190, %v4193
    %v4195 = vsub.f32 1.0, %v4194
    %v4196 = vmul.f32 %v4193, %v4195
    %v4197 = vadd.f32 %v4193, %v4196
    %vm4198 = vweird.f32 %v4190
    %vm4199 = vweird.f32 %v4193
    %vm4200 = vmor %vm4198, %vm4199
    %v4201 = vsel %vm4200, %v4193, %v4197
    %v4202 = vand.u32 2147483647, %v4190
    %vm4203 = vcmp.eq.f32.partialorder %v4202, 8.507059e+37
    %v4204 = vand.u32 %v4190, 2147483648
    %v4205 = vor.u32 1.1754944e-38, %v4204
    %v4206 = vsel %vm4203, %v4205, %v4201
    %v4207 = vmul.f32 1.0, %v4206
    %v4208 = vrcp.pop %v4191
    %v4209 = vmul.f32 %v4191, %v4208
    %v4210 = vsub.f32 1.0, %v4209
    %v4211 = vmul.f32 %v4208, %v4210
    %v4212 = vadd.f32 %v4208, %v4211
    %vm4213 = vweird.f32 %v4191
    %vm4214 = vweird.f32 %v4208
    %vm4215 = vmor %vm4213, %vm4214
    %v4216 = vsel %vm4215, %v4208, %v4212
    %v4217 = vand.u32 2147483647, %v4191
    %vm4218 = vcmp.eq.f32.partialorder %v4217, 8.507059e+37
    %v4219 = vand.u32 %v4191, 2147483648
    %v4220 = vor.u32 1.1754944e-38, %v4219
    %v4221 = vsel %vm4218, %v4220, %v4216
    %v4222 = vmul.f32 1.0, %v4221
    %v4223 = vrcp.pop %v4192
    %v4224 = vmul.f32 %v4192, %v4223
    %v4225 = vsub.f32 1.0, %v4224
    %v4226 = vmul.f32 %v4223, %v4225
    %v4227 = vadd.f32 %v4223, %v4226
    %vm4228 = vweird.f32 %v4192
    %vm4229 = vweird.f32 %v4223
    %vm4230 = vmor %vm4228, %vm4229
    %v4231 = vsel %vm4230, %v4223, %v4227
    %v4232 = vand.u32 2147483647, %v4192
    %vm4233 = vcmp.eq.f32.partialorder %v4232, 8.507059e+37
    %v4234 = vand.u32 %v4192, 2147483648
    %v4235 = vor.u32 1.1754944e-38, %v4234
    %v4236 = vsel %vm4233, %v4235, %v4231
    %v4237 = vmul.f32 1.0, %v4236
    %v4238 = vtanh.pop %v4180
    %v4239 = vmul.f32 %v4222, %v4114
    %v4240 = vmul.f32 %v4207, %v4238
    %v4241 = vadd.f32 %v4239, %v4240
    %v4242 = vtanh.pop %v4241
    %v4243 = vmul.f32 %v4237, %v4242
    %v4244 = vpack.c.bf16 %v4243, %v4243
    %4245 = vst [vmem:[%s1034] sm:$0xf] %v4244
    %v4246 = vld [vmem:[%s1036] sm:$0xff]
    %v4247 = vld [vmem:[%s1036 + $0x8] sm:$0xff]
    %v4248 = vunpack.c.l.bf16 %v4246
    %v4249 = vunpack.c.h.bf16 %v4246
    %v4250 = vunpack.c.l.bf16 %v4247
    %v4251 = vunpack.c.h.bf16 %v4247
    %4252 = vmatpush.bf16.msra.mxu0 %v3835
    %4253 = vmatpush.bf16.msra.mxu0 %v3831
    %4254 = vmatpush.bf16.msra.mxu0 %v3827
    %4255 = vmatpush.bf16.msra.mxu0 %v3823
    %4256 = vmatpush.bf16.msra.mxu0 %v3819
    %4257 = vmatpush.bf16.msra.mxu0 %v3815
    %4258 = vmatpush.bf16.msra.mxu0 %v3811
    %4259 = vmatpush.bf16.msra.mxu0 %v3807
    %4260 = vmatmul.bf16.gmra.mxu0 %v4244
    %v4261 = vpop.f32.mrf.mxu0
    %v4262 = vadd.f32 0.0, %v4261
    %v4263 = vpop.f32.mrf.mxu0
    %4264 = vdwg.mxu0
    %4265 = vmatpush.bf16.msra.mxu0 %v3836
    %4266 = vmatpush.bf16.msra.mxu0 %v3832
    %4267 = vmatpush.bf16.msra.mxu0 %v3828
    %4268 = vmatpush.bf16.msra.mxu0 %v3824
    %4269 = vmatpush.bf16.msra.mxu0 %v3820
    %4270 = vmatpush.bf16.msra.mxu0 %v3816
    %4271 = vmatpush.bf16.msra.mxu0 %v3812
    %4272 = vmatpush.bf16.msra.mxu0 %v3808
    %4273 = vmatmul.bf16.gmra.mxu0 %v4244
    %v4274 = vpop.f32.mrf.mxu0
    %v4275 = vadd.f32 0.0, %v4274
    %v4276 = vpop.f32.mrf.mxu0
    %4277 = vdwg.mxu0
    %4278 = vmatpush.bf16.msra.mxu0 %v3837
    %4279 = vmatpush.bf16.msra.mxu0 %v3833
    %4280 = vmatpush.bf16.msra.mxu0 %v3829
    %4281 = vmatpush.bf16.msra.mxu0 %v3825
    %4282 = vmatpush.bf16.msra.mxu0 %v3821
    %4283 = vmatpush.bf16.msra.mxu0 %v3817
    %4284 = vmatpush.bf16.msra.mxu0 %v3813
    %4285 = vmatpush.bf16.msra.mxu0 %v3809
    %4286 = vmatmul.bf16.gmra.mxu0 %v4244
    %v4287 = vpop.f32.mrf.mxu0
    %v4288 = vadd.f32 0.0, %v4287
    %v4289 = vpop.f32.mrf.mxu0
    %4290 = vdwg.mxu0
    %4291 = vmatpush.bf16.msra.mxu0 %v3838
    %4292 = vmatpush.bf16.msra.mxu0 %v3834
    %4293 = vmatpush.bf16.msra.mxu0 %v3830
    %4294 = vmatpush.bf16.msra.mxu0 %v3826
    %4295 = vmatpush.bf16.msra.mxu0 %v3822
    %4296 = vmatpush.bf16.msra.mxu0 %v3818
    %4297 = vmatpush.bf16.msra.mxu0 %v3814
    %4298 = vmatpush.bf16.msra.mxu0 %v3810
    %4299 = vmatmul.bf16.gmra.mxu0 %v4244
    %v4300 = vpop.f32.mrf.mxu0
    %v4301 = vadd.f32 0.0, %v4300
    %v4302 = vpop.f32.mrf.mxu0
    %4303 = vdwg.mxu0
    %v4304 = vadd.f32 %v4248, %v4262
    %v4305 = vadd.f32 %v4249, %v4275
    %v4306 = vadd.f32 %v4250, %v4288
    %v4307 = vadd.f32 %v4251, %v4301
    %v4308 = vxor.u32 %v4304, 2147483648
    %v4309 = vxor.u32 %v4305, 2147483648
    %v4310 = vxor.u32 %v4306, 2147483648
    %v4311 = vmul.f32 %v4308, 1.442695
    %v4312 = vpow.pop %v4311
    %v4313 = vmul.f32 %v4309, 1.442695
    %v4314 = vpow.pop %v4313
    %v4315 = vmul.f32 %v4310, 1.442695
    %v4316 = vpow.pop %v4315
    %v4317 = vadd.f32 %v4312, 1.0
    %v4318 = vadd.f32 %v4314, 1.0
    %v4319 = vadd.f32 %v4316, 1.0
    %v4320 = vrcp.pop %v4317
    %v4321 = vmul.f32 %v4317, %v4320
    %v4322 = vsub.f32 1.0, %v4321
    %v4323 = vmul.f32 %v4320, %v4322
    %v4324 = vadd.f32 %v4320, %v4323
    %vm4325 = vweird.f32 %v4317
    %vm4326 = vweird.f32 %v4320
    %vm4327 = vmor %vm4325, %vm4326
    %v4328 = vsel %vm4327, %v4320, %v4324
    %v4329 = vand.u32 2147483647, %v4317
    %vm4330 = vcmp.eq.f32.partialorder %v4329, 8.507059e+37
    %v4331 = vand.u32 %v4317, 2147483648
    %v4332 = vor.u32 1.1754944e-38, %v4331
    %v4333 = vsel %vm4330, %v4332, %v4328
    %v4334 = vmul.f32 1.0, %v4333
    %v4335 = vrcp.pop %v4318
    %v4336 = vmul.f32 %v4318, %v4335
    %v4337 = vsub.f32 1.0, %v4336
    %v4338 = vmul.f32 %v4335, %v4337
    %v4339 = vadd.f32 %v4335, %v4338
    %vm4340 = vweird.f32 %v4318
    %vm4341 = vweird.f32 %v4335
    %vm4342 = vmor %vm4340, %vm4341
    %v4343 = vsel %vm4342, %v4335, %v4339
    %v4344 = vand.u32 2147483647, %v4318
    %vm4345 = vcmp.eq.f32.partialorder %v4344, 8.507059e+37
    %v4346 = vand.u32 %v4318, 2147483648
    %v4347 = vor.u32 1.1754944e-38, %v4346
    %v4348 = vsel %vm4345, %v4347, %v4343
    %v4349 = vmul.f32 1.0, %v4348
    %v4350 = vrcp.pop %v4319
    %v4351 = vmul.f32 %v4319, %v4350
    %v4352 = vsub.f32 1.0, %v4351
    %v4353 = vmul.f32 %v4350, %v4352
    %v4354 = vadd.f32 %v4350, %v4353
    %vm4355 = vweird.f32 %v4319
    %vm4356 = vweird.f32 %v4350
    %vm4357 = vmor %vm4355, %vm4356
    %v4358 = vsel %vm4357, %v4350, %v4354
    %v4359 = vand.u32 2147483647, %v4319
    %vm4360 = vcmp.eq.f32.partialorder %v4359, 8.507059e+37
    %v4361 = vand.u32 %v4319, 2147483648
    %v4362 = vor.u32 1.1754944e-38, %v4361
    %v4363 = vsel %vm4360, %v4362, %v4358
    %v4364 = vmul.f32 1.0, %v4363
    %v4365 = vtanh.pop %v4307
    %v4366 = vmul.f32 %v4349, %v4241
    %v4367 = vmul.f32 %v4334, %v4365
    %v4368 = vadd.f32 %v4366, %v4367
    %v4369 = vtanh.pop %v4368
    %v4370 = vmul.f32 %v4364, %v4369
    %v4371 = vpack.c.bf16 %v4370, %v4370
    %4372 = vst [vmem:[%s1163] sm:$0xf] %v4371
    %v4373 = vld [vmem:[%s1165] sm:$0xff]
    %v4374 = vld [vmem:[%s1165 + $0x8] sm:$0xff]
    %v4375 = vunpack.c.l.bf16 %v4373
    %v4376 = vunpack.c.h.bf16 %v4373
    %v4377 = vunpack.c.l.bf16 %v4374
    %v4378 = vunpack.c.h.bf16 %v4374
    %4379 = vmatpush.bf16.msra.mxu0 %v3835
    %4380 = vmatpush.bf16.msra.mxu0 %v3831
    %4381 = vmatpush.bf16.msra.mxu0 %v3827
    %4382 = vmatpush.bf16.msra.mxu0 %v3823
    %4383 = vmatpush.bf16.msra.mxu0 %v3819
    %4384 = vmatpush.bf16.msra.mxu0 %v3815
    %4385 = vmatpush.bf16.msra.mxu0 %v3811
    %4386 = vmatpush.bf16.msra.mxu0 %v3807
    %4387 = vmatmul.bf16.gmra.mxu0 %v4371
    %v4388 = vpop.f32.mrf.mxu0
    %v4389 = vadd.f32 0.0, %v4388
    %v4390 = vpop.f32.mrf.mxu0
    %4391 = vdwg.mxu0
    %4392 = vmatpush.bf16.msra.mxu0 %v3836
    %4393 = vmatpush.bf16.msra.mxu0 %v3832
    %4394 = vmatpush.bf16.msra.mxu0 %v3828
    %4395 = vmatpush.bf16.msra.mxu0 %v3824
    %4396 = vmatpush.bf16.msra.mxu0 %v3820
    %4397 = vmatpush.bf16.msra.mxu0 %v3816
    %4398 = vmatpush.bf16.msra.mxu0 %v3812
    %4399 = vmatpush.bf16.msra.mxu0 %v3808
    %4400 = vmatmul.bf16.gmra.mxu0 %v4371
    %v4401 = vpop.f32.mrf.mxu0
    %v4402 = vadd.f32 0.0, %v4401
    %v4403 = vpop.f32.mrf.mxu0
    %4404 = vdwg.mxu0
    %4405 = vmatpush.bf16.msra.mxu0 %v3837
    %4406 = vmatpush.bf16.msra.mxu0 %v3833
    %4407 = vmatpush.bf16.msra.mxu0 %v3829
    %4408 = vmatpush.bf16.msra.mxu0 %v3825
    %4409 = vmatpush.bf16.msra.mxu0 %v3821
    %4410 = vmatpush.bf16.msra.mxu0 %v3817
    %4411 = vmatpush.bf16.msra.mxu0 %v3813
    %4412 = vmatpush.bf16.msra.mxu0 %v3809
    %4413 = vmatmul.bf16.gmra.mxu0 %v4371
    %v4414 = vpop.f32.mrf.mxu0
    %v4415 = vadd.f32 0.0, %v4414
    %v4416 = vpop.f32.mrf.mxu0
    %4417 = vdwg.mxu0
    %4418 = vmatpush.bf16.msra.mxu0 %v3838
    %4419 = vmatpush.bf16.msra.mxu0 %v3834
    %4420 = vmatpush.bf16.msra.mxu0 %v3830
    %4421 = vmatpush.bf16.msra.mxu0 %v3826
    %4422 = vmatpush.bf16.msra.mxu0 %v3822
    %4423 = vmatpush.bf16.msra.mxu0 %v3818
    %4424 = vmatpush.bf16.msra.mxu0 %v3814
    %4425 = vmatpush.bf16.msra.mxu0 %v3810
    %4426 = vmatmul.bf16.gmra.mxu0 %v4371
    %v4427 = vpop.f32.mrf.mxu0
    %v4428 = vadd.f32 0.0, %v4427
    %v4429 = vpop.f32.mrf.mxu0
    %4430 = vdwg.mxu0
    %v4431 = vadd.f32 %v4375, %v4389
    %v4432 = vadd.f32 %v4376, %v4402
    %v4433 = vadd.f32 %v4377, %v4415
    %v4434 = vadd.f32 %v4378, %v4428
    %v4435 = vxor.u32 %v4431, 2147483648
    %v4436 = vxor.u32 %v4432, 2147483648
    %v4437 = vxor.u32 %v4433, 2147483648
    %v4438 = vmul.f32 %v4435, 1.442695
    %v4439 = vpow.pop %v4438
    %v4440 = vmul.f32 %v4436, 1.442695
    %v4441 = vpow.pop %v4440
    %v4442 = vmul.f32 %v4437, 1.442695
    %v4443 = vpow.pop %v4442
    %v4444 = vadd.f32 %v4439, 1.0
    %v4445 = vadd.f32 %v4441, 1.0
    %v4446 = vadd.f32 %v4443, 1.0
    %v4447 = vrcp.pop %v4444
    %v4448 = vmul.f32 %v4444, %v4447
    %v4449 = vsub.f32 1.0, %v4448
    %v4450 = vmul.f32 %v4447, %v4449
    %v4451 = vadd.f32 %v4447, %v4450
    %vm4452 = vweird.f32 %v4444
    %vm4453 = vweird.f32 %v4447
    %vm4454 = vmor %vm4452, %vm4453
    %v4455 = vsel %vm4454, %v4447, %v4451
    %v4456 = vand.u32 2147483647, %v4444
    %vm4457 = vcmp.eq.f32.partialorder %v4456, 8.507059e+37
    %v4458 = vand.u32 %v4444, 2147483648
    %v4459 = vor.u32 1.1754944e-38, %v4458
    %v4460 = vsel %vm4457, %v4459, %v4455
    %v4461 = vmul.f32 1.0, %v4460
    %v4462 = vrcp.pop %v4445
    %v4463 = vmul.f32 %v4445, %v4462
    %v4464 = vsub.f32 1.0, %v4463
    %v4465 = vmul.f32 %v4462, %v4464
    %v4466 = vadd.f32 %v4462, %v4465
    %vm4467 = vweird.f32 %v4445
    %vm4468 = vweird.f32 %v4462
    %vm4469 = vmor %vm4467, %vm4468
    %v4470 = vsel %vm4469, %v4462, %v4466
    %v4471 = vand.u32 2147483647, %v4445
    %vm4472 = vcmp.eq.f32.partialorder %v4471, 8.507059e+37
    %v4473 = vand.u32 %v4445, 2147483648
    %v4474 = vor.u32 1.1754944e-38, %v4473
    %v4475 = vsel %vm4472, %v4474, %v4470
    %v4476 = vmul.f32 1.0, %v4475
    %v4477 = vrcp.pop %v4446
    %v4478 = vmul.f32 %v4446, %v4477
    %v4479 = vsub.f32 1.0, %v4478
    %v4480 = vmul.f32 %v4477, %v4479
    %v4481 = vadd.f32 %v4477, %v4480
    %vm4482 = vweird.f32 %v4446
    %vm4483 = vweird.f32 %v4477
    %vm4484 = vmor %vm4482, %vm4483
    %v4485 = vsel %vm4484, %v4477, %v4481
    %v4486 = vand.u32 2147483647, %v4446
    %vm4487 = vcmp.eq.f32.partialorder %v4486, 8.507059e+37
    %v4488 = vand.u32 %v4446, 2147483648
    %v4489 = vor.u32 1.1754944e-38, %v4488
    %v4490 = vsel %vm4487, %v4489, %v4485
    %v4491 = vmul.f32 1.0, %v4490
    %v4492 = vtanh.pop %v4434
    %v4493 = vmul.f32 %v4476, %v4368
    %v4494 = vmul.f32 %v4461, %v4492
    %v4495 = vadd.f32 %v4493, %v4494
    %v4496 = vtanh.pop %v4495
    %v4497 = vmul.f32 %v4491, %v4496
    %v4498 = vpack.c.bf16 %v4497, %v4497
    %4499 = vst [vmem:[%s1292] sm:$0xf] %v4498
    %v4500 = vld [vmem:[%s1294] sm:$0xff]
    %v4501 = vld [vmem:[%s1294 + $0x8] sm:$0xff]
    %v4502 = vunpack.c.l.bf16 %v4500
    %v4503 = vunpack.c.h.bf16 %v4500
    %v4504 = vunpack.c.l.bf16 %v4501
    %v4505 = vunpack.c.h.bf16 %v4501
    %4506 = vmatpush.bf16.msra.mxu0 %v3835
    %4507 = vmatpush.bf16.msra.mxu0 %v3831
    %4508 = vmatpush.bf16.msra.mxu0 %v3827
    %4509 = vmatpush.bf16.msra.mxu0 %v3823
    %4510 = vmatpush.bf16.msra.mxu0 %v3819
    %4511 = vmatpush.bf16.msra.mxu0 %v3815
    %4512 = vmatpush.bf16.msra.mxu0 %v3811
    %4513 = vmatpush.bf16.msra.mxu0 %v3807
    %4514 = vmatmul.bf16.gmra.mxu0 %v4498
    %v4515 = vpop.f32.mrf.mxu0
    %v4516 = vadd.f32 0.0, %v4515
    %v4517 = vpop.f32.mrf.mxu0
    %4518 = vdwg.mxu0
    %4519 = vmatpush.bf16.msra.mxu0 %v3836
    %4520 = vmatpush.bf16.msra.mxu0 %v3832
    %4521 = vmatpush.bf16.msra.mxu0 %v3828
    %4522 = vmatpush.bf16.msra.mxu0 %v3824
    %4523 = vmatpush.bf16.msra.mxu0 %v3820
    %4524 = vmatpush.bf16.msra.mxu0 %v3816
    %4525 = vmatpush.bf16.msra.mxu0 %v3812
    %4526 = vmatpush.bf16.msra.mxu0 %v3808
    %4527 = vmatmul.bf16.gmra.mxu0 %v4498
    %v4528 = vpop.f32.mrf.mxu0
    %v4529 = vadd.f32 0.0, %v4528
    %v4530 = vpop.f32.mrf.mxu0
    %4531 = vdwg.mxu0
    %4532 = vmatpush.bf16.msra.mxu0 %v3837
    %4533 = vmatpush.bf16.msra.mxu0 %v3833
    %4534 = vmatpush.bf16.msra.mxu0 %v3829
    %4535 = vmatpush.bf16.msra.mxu0 %v3825
    %4536 = vmatpush.bf16.msra.mxu0 %v3821
    %4537 = vmatpush.bf16.msra.mxu0 %v3817
    %4538 = vmatpush.bf16.msra.mxu0 %v3813
    %4539 = vmatpush.bf16.msra.mxu0 %v3809
    %4540 = vmatmul.bf16.gmra.mxu0 %v4498
    %v4541 = vpop.f32.mrf.mxu0
    %v4542 = vadd.f32 0.0, %v4541
    %v4543 = vpop.f32.mrf.mxu0
    %4544 = vdwg.mxu0
    %4545 = vmatpush.bf16.msra.mxu0 %v3838
    %4546 = vmatpush.bf16.msra.mxu0 %v3834
    %4547 = vmatpush.bf16.msra.mxu0 %v3830
    %4548 = vmatpush.bf16.msra.mxu0 %v3826
    %4549 = vmatpush.bf16.msra.mxu0 %v3822
    %4550 = vmatpush.bf16.msra.mxu0 %v3818
    %4551 = vmatpush.bf16.msra.mxu0 %v3814
    %4552 = vmatpush.bf16.msra.mxu0 %v3810
    %4553 = vmatmul.bf16.gmra.mxu0 %v4498
    %v4554 = vpop.f32.mrf.mxu0
    %v4555 = vadd.f32 0.0, %v4554
    %v4556 = vpop.f32.mrf.mxu0
    %4557 = vdwg.mxu0
    %v4558 = vadd.f32 %v4502, %v4516
    %v4559 = vadd.f32 %v4503, %v4529
    %v4560 = vadd.f32 %v4504, %v4542
    %v4561 = vadd.f32 %v4505, %v4555
    %v4562 = vxor.u32 %v4558, 2147483648
    %v4563 = vxor.u32 %v4559, 2147483648
    %v4564 = vxor.u32 %v4560, 2147483648
    %v4565 = vmul.f32 %v4562, 1.442695
    %v4566 = vpow.pop %v4565
    %v4567 = vmul.f32 %v4563, 1.442695
    %v4568 = vpow.pop %v4567
    %v4569 = vmul.f32 %v4564, 1.442695
    %v4570 = vpow.pop %v4569
    %v4571 = vadd.f32 %v4566, 1.0
    %v4572 = vadd.f32 %v4568, 1.0
    %v4573 = vadd.f32 %v4570, 1.0
    %v4574 = vrcp.pop %v4571
    %v4575 = vmul.f32 %v4571, %v4574
    %v4576 = vsub.f32 1.0, %v4575
    %v4577 = vmul.f32 %v4574, %v4576
    %v4578 = vadd.f32 %v4574, %v4577
    %vm4579 = vweird.f32 %v4571
    %vm4580 = vweird.f32 %v4574
    %vm4581 = vmor %vm4579, %vm4580
    %v4582 = vsel %vm4581, %v4574, %v4578
    %v4583 = vand.u32 2147483647, %v4571
    %vm4584 = vcmp.eq.f32.partialorder %v4583, 8.507059e+37
    %v4585 = vand.u32 %v4571, 2147483648
    %v4586 = vor.u32 1.1754944e-38, %v4585
    %v4587 = vsel %vm4584, %v4586, %v4582
    %v4588 = vmul.f32 1.0, %v4587
    %v4589 = vrcp.pop %v4572
    %v4590 = vmul.f32 %v4572, %v4589
    %v4591 = vsub.f32 1.0, %v4590
    %v4592 = vmul.f32 %v4589, %v4591
    %v4593 = vadd.f32 %v4589, %v4592
    %vm4594 = vweird.f32 %v4572
    %vm4595 = vweird.f32 %v4589
    %vm4596 = vmor %vm4594, %vm4595
    %v4597 = vsel %vm4596, %v4589, %v4593
    %v4598 = vand.u32 2147483647, %v4572
    %vm4599 = vcmp.eq.f32.partialorder %v4598, 8.507059e+37
    %v4600 = vand.u32 %v4572, 2147483648
    %v4601 = vor.u32 1.1754944e-38, %v4600
    %v4602 = vsel %vm4599, %v4601, %v4597
    %v4603 = vmul.f32 1.0, %v4602
    %v4604 = vrcp.pop %v4573
    %v4605 = vmul.f32 %v4573, %v4604
    %v4606 = vsub.f32 1.0, %v4605
    %v4607 = vmul.f32 %v4604, %v4606
    %v4608 = vadd.f32 %v4604, %v4607
    %vm4609 = vweird.f32 %v4573
    %vm4610 = vweird.f32 %v4604
    %vm4611 = vmor %vm4609, %vm4610
    %v4612 = vsel %vm4611, %v4604, %v4608
    %v4613 = vand.u32 2147483647, %v4573
    %vm4614 = vcmp.eq.f32.partialorder %v4613, 8.507059e+37
    %v4615 = vand.u32 %v4573, 2147483648
    %v4616 = vor.u32 1.1754944e-38, %v4615
    %v4617 = vsel %vm4614, %v4616, %v4612
    %v4618 = vmul.f32 1.0, %v4617
    %v4619 = vtanh.pop %v4561
    %v4620 = vmul.f32 %v4603, %v4495
    %v4621 = vmul.f32 %v4588, %v4619
    %v4622 = vadd.f32 %v4620, %v4621
    %v4623 = vtanh.pop %v4622
    %v4624 = vmul.f32 %v4618, %v4623
    %v4625 = vpack.c.bf16 %v4624, %v4624
    %4626 = vst [vmem:[%s1421] sm:$0xf] %v4625
    %v4627 = vld [vmem:[%s1423] sm:$0xff]
    %v4628 = vld [vmem:[%s1423 + $0x8] sm:$0xff]
    %v4629 = vunpack.c.l.bf16 %v4627
    %v4630 = vunpack.c.h.bf16 %v4627
    %v4631 = vunpack.c.l.bf16 %v4628
    %v4632 = vunpack.c.h.bf16 %v4628
    %4633 = vmatpush.bf16.msra.mxu0 %v3835
    %4634 = vmatpush.bf16.msra.mxu0 %v3831
    %4635 = vmatpush.bf16.msra.mxu0 %v3827
    %4636 = vmatpush.bf16.msra.mxu0 %v3823
    %4637 = vmatpush.bf16.msra.mxu0 %v3819
    %4638 = vmatpush.bf16.msra.mxu0 %v3815
    %4639 = vmatpush.bf16.msra.mxu0 %v3811
    %4640 = vmatpush.bf16.msra.mxu0 %v3807
    %4641 = vmatmul.bf16.gmra.mxu0 %v4625
    %v4642 = vpop.f32.mrf.mxu0
    %v4643 = vadd.f32 0.0, %v4642
    %v4644 = vpop.f32.mrf.mxu0
    %4645 = vdwg.mxu0
    %4646 = vmatpush.bf16.msra.mxu0 %v3836
    %4647 = vmatpush.bf16.msra.mxu0 %v3832
    %4648 = vmatpush.bf16.msra.mxu0 %v3828
    %4649 = vmatpush.bf16.msra.mxu0 %v3824
    %4650 = vmatpush.bf16.msra.mxu0 %v3820
    %4651 = vmatpush.bf16.msra.mxu0 %v3816
    %4652 = vmatpush.bf16.msra.mxu0 %v3812
    %4653 = vmatpush.bf16.msra.mxu0 %v3808
    %4654 = vmatmul.bf16.gmra.mxu0 %v4625
    %v4655 = vpop.f32.mrf.mxu0
    %v4656 = vadd.f32 0.0, %v4655
    %v4657 = vpop.f32.mrf.mxu0
    %4658 = vdwg.mxu0
    %4659 = vmatpush.bf16.msra.mxu0 %v3837
    %4660 = vmatpush.bf16.msra.mxu0 %v3833
    %4661 = vmatpush.bf16.msra.mxu0 %v3829
    %4662 = vmatpush.bf16.msra.mxu0 %v3825
    %4663 = vmatpush.bf16.msra.mxu0 %v3821
    %4664 = vmatpush.bf16.msra.mxu0 %v3817
    %4665 = vmatpush.bf16.msra.mxu0 %v3813
    %4666 = vmatpush.bf16.msra.mxu0 %v3809
    %4667 = vmatmul.bf16.gmra.mxu0 %v4625
    %v4668 = vpop.f32.mrf.mxu0
    %v4669 = vadd.f32 0.0, %v4668
    %v4670 = vpop.f32.mrf.mxu0
    %4671 = vdwg.mxu0
    %4672 = vmatpush.bf16.msra.mxu0 %v3838
    %4673 = vmatpush.bf16.msra.mxu0 %v3834
    %4674 = vmatpush.bf16.msra.mxu0 %v3830
    %4675 = vmatpush.bf16.msra.mxu0 %v3826
    %4676 = vmatpush.bf16.msra.mxu0 %v3822
    %4677 = vmatpush.bf16.msra.mxu0 %v3818
    %4678 = vmatpush.bf16.msra.mxu0 %v3814
    %4679 = vmatpush.bf16.msra.mxu0 %v3810
    %4680 = vmatmul.bf16.gmra.mxu0 %v4625
    %v4681 = vpop.f32.mrf.mxu0
    %v4682 = vadd.f32 0.0, %v4681
    %v4683 = vpop.f32.mrf.mxu0
    %4684 = vdwg.mxu0
    %v4685 = vadd.f32 %v4629, %v4643
    %v4686 = vadd.f32 %v4630, %v4656
    %v4687 = vadd.f32 %v4631, %v4669
    %v4688 = vadd.f32 %v4632, %v4682
    %v4689 = vxor.u32 %v4685, 2147483648
    %v4690 = vxor.u32 %v4686, 2147483648
    %v4691 = vxor.u32 %v4687, 2147483648
    %v4692 = vmul.f32 %v4689, 1.442695
    %v4693 = vpow.pop %v4692
    %v4694 = vmul.f32 %v4690, 1.442695
    %v4695 = vpow.pop %v4694
    %v4696 = vmul.f32 %v4691, 1.442695
    %v4697 = vpow.pop %v4696
    %v4698 = vadd.f32 %v4693, 1.0
    %v4699 = vadd.f32 %v4695, 1.0
    %v4700 = vadd.f32 %v4697, 1.0
    %v4701 = vrcp.pop %v4698
    %v4702 = vmul.f32 %v4698, %v4701
    %v4703 = vsub.f32 1.0, %v4702
    %v4704 = vmul.f32 %v4701, %v4703
    %v4705 = vadd.f32 %v4701, %v4704
    %vm4706 = vweird.f32 %v4698
    %vm4707 = vweird.f32 %v4701
    %vm4708 = vmor %vm4706, %vm4707
    %v4709 = vsel %vm4708, %v4701, %v4705
    %v4710 = vand.u32 2147483647, %v4698
    %vm4711 = vcmp.eq.f32.partialorder %v4710, 8.507059e+37
    %v4712 = vand.u32 %v4698, 2147483648
    %v4713 = vor.u32 1.1754944e-38, %v4712
    %v4714 = vsel %vm4711, %v4713, %v4709
    %v4715 = vmul.f32 1.0, %v4714
    %v4716 = vrcp.pop %v4699
    %v4717 = vmul.f32 %v4699, %v4716
    %v4718 = vsub.f32 1.0, %v4717
    %v4719 = vmul.f32 %v4716, %v4718
    %v4720 = vadd.f32 %v4716, %v4719
    %vm4721 = vweird.f32 %v4699
    %vm4722 = vweird.f32 %v4716
    %vm4723 = vmor %vm4721, %vm4722
    %v4724 = vsel %vm4723, %v4716, %v4720
    %v4725 = vand.u32 2147483647, %v4699
    %vm4726 = vcmp.eq.f32.partialorder %v4725, 8.507059e+37
    %v4727 = vand.u32 %v4699, 2147483648
    %v4728 = vor.u32 1.1754944e-38, %v4727
    %v4729 = vsel %vm4726, %v4728, %v4724
    %v4730 = vmul.f32 1.0, %v4729
    %v4731 = vrcp.pop %v4700
    %v4732 = vmul.f32 %v4700, %v4731
    %v4733 = vsub.f32 1.0, %v4732
    %v4734 = vmul.f32 %v4731, %v4733
    %v4735 = vadd.f32 %v4731, %v4734
    %vm4736 = vweird.f32 %v4700
    %vm4737 = vweird.f32 %v4731
    %vm4738 = vmor %vm4736, %vm4737
    %v4739 = vsel %vm4738, %v4731, %v4735
    %v4740 = vand.u32 2147483647, %v4700
    %vm4741 = vcmp.eq.f32.partialorder %v4740, 8.507059e+37
    %v4742 = vand.u32 %v4700, 2147483648
    %v4743 = vor.u32 1.1754944e-38, %v4742
    %v4744 = vsel %vm4741, %v4743, %v4739
    %v4745 = vmul.f32 1.0, %v4744
    %v4746 = vtanh.pop %v4688
    %v4747 = vmul.f32 %v4730, %v4622
    %v4748 = vmul.f32 %v4715, %v4746
    %v4749 = vadd.f32 %v4747, %v4748
    %v4750 = vtanh.pop %v4749
    %v4751 = vmul.f32 %v4745, %v4750
    %v4752 = vpack.c.bf16 %v4751, %v4751
    %4753 = vst [vmem:[%s1550] sm:$0xf] %v4752
    %v4754 = vld [vmem:[%s1552] sm:$0xff]
    %v4755 = vld [vmem:[%s1552 + $0x8] sm:$0xff]
    %v4756 = vunpack.c.l.bf16 %v4754
    %v4757 = vunpack.c.h.bf16 %v4754
    %v4758 = vunpack.c.l.bf16 %v4755
    %v4759 = vunpack.c.h.bf16 %v4755
    %4760 = vmatpush.bf16.msra.mxu0 %v3835
    %4761 = vmatpush.bf16.msra.mxu0 %v3831
    %4762 = vmatpush.bf16.msra.mxu0 %v3827
    %4763 = vmatpush.bf16.msra.mxu0 %v3823
    %4764 = vmatpush.bf16.msra.mxu0 %v3819
    %4765 = vmatpush.bf16.msra.mxu0 %v3815
    %4766 = vmatpush.bf16.msra.mxu0 %v3811
    %4767 = vmatpush.bf16.msra.mxu0 %v3807
    %4768 = vmatmul.bf16.gmra.mxu0 %v4752
    %v4769 = vpop.f32.mrf.mxu0
    %v4770 = vadd.f32 0.0, %v4769
    %v4771 = vpop.f32.mrf.mxu0
    %4772 = vdwg.mxu0
    %4773 = vmatpush.bf16.msra.mxu0 %v3836
    %4774 = vmatpush.bf16.msra.mxu0 %v3832
    %4775 = vmatpush.bf16.msra.mxu0 %v3828
    %4776 = vmatpush.bf16.msra.mxu0 %v3824
    %4777 = vmatpush.bf16.msra.mxu0 %v3820
    %4778 = vmatpush.bf16.msra.mxu0 %v3816
    %4779 = vmatpush.bf16.msra.mxu0 %v3812
    %4780 = vmatpush.bf16.msra.mxu0 %v3808
    %4781 = vmatmul.bf16.gmra.mxu0 %v4752
    %v4782 = vpop.f32.mrf.mxu0
    %v4783 = vadd.f32 0.0, %v4782
    %v4784 = vpop.f32.mrf.mxu0
    %4785 = vdwg.mxu0
    %4786 = vmatpush.bf16.msra.mxu0 %v3837
    %4787 = vmatpush.bf16.msra.mxu0 %v3833
    %4788 = vmatpush.bf16.msra.mxu0 %v3829
    %4789 = vmatpush.bf16.msra.mxu0 %v3825
    %4790 = vmatpush.bf16.msra.mxu0 %v3821
    %4791 = vmatpush.bf16.msra.mxu0 %v3817
    %4792 = vmatpush.bf16.msra.mxu0 %v3813
    %4793 = vmatpush.bf16.msra.mxu0 %v3809
    %4794 = vmatmul.bf16.gmra.mxu0 %v4752
    %v4795 = vpop.f32.mrf.mxu0
    %v4796 = vadd.f32 0.0, %v4795
    %v4797 = vpop.f32.mrf.mxu0
    %4798 = vdwg.mxu0
    %4799 = vmatpush.bf16.msra.mxu0 %v3838
    %4800 = vmatpush.bf16.msra.mxu0 %v3834
    %4801 = vmatpush.bf16.msra.mxu0 %v3830
    %4802 = vmatpush.bf16.msra.mxu0 %v3826
    %4803 = vmatpush.bf16.msra.mxu0 %v3822
    %4804 = vmatpush.bf16.msra.mxu0 %v3818
    %4805 = vmatpush.bf16.msra.mxu0 %v3814
    %4806 = vmatpush.bf16.msra.mxu0 %v3810
    %4807 = vmatmul.bf16.gmra.mxu0 %v4752
    %v4808 = vpop.f32.mrf.mxu0
    %v4809 = vadd.f32 0.0, %v4808
    %v4810 = vpop.f32.mrf.mxu0
    %4811 = vdwg.mxu0
    %v4812 = vadd.f32 %v4756, %v4770
    %v4813 = vadd.f32 %v4757, %v4783
    %v4814 = vadd.f32 %v4758, %v4796
    %v4815 = vadd.f32 %v4759, %v4809
    %v4816 = vxor.u32 %v4812, 2147483648
    %v4817 = vxor.u32 %v4813, 2147483648
    %v4818 = vxor.u32 %v4814, 2147483648
    %v4819 = vmul.f32 %v4816, 1.442695
    %v4820 = vpow.pop %v4819
    %v4821 = vmul.f32 %v4817, 1.442695
    %v4822 = vpow.pop %v4821
    %v4823 = vmul.f32 %v4818, 1.442695
    %v4824 = vpow.pop %v4823
    %v4825 = vadd.f32 %v4820, 1.0
    %v4826 = vadd.f32 %v4822, 1.0
    %v4827 = vadd.f32 %v4824, 1.0
    %v4828 = vrcp.pop %v4825
    %v4829 = vmul.f32 %v4825, %v4828
    %v4830 = vsub.f32 1.0, %v4829
    %v4831 = vmul.f32 %v4828, %v4830
    %v4832 = vadd.f32 %v4828, %v4831
    %vm4833 = vweird.f32 %v4825
    %vm4834 = vweird.f32 %v4828
    %vm4835 = vmor %vm4833, %vm4834
    %v4836 = vsel %vm4835, %v4828, %v4832
    %v4837 = vand.u32 2147483647, %v4825
    %vm4838 = vcmp.eq.f32.partialorder %v4837, 8.507059e+37
    %v4839 = vand.u32 %v4825, 2147483648
    %v4840 = vor.u32 1.1754944e-38, %v4839
    %v4841 = vsel %vm4838, %v4840, %v4836
    %v4842 = vmul.f32 1.0, %v4841
    %v4843 = vrcp.pop %v4826
    %v4844 = vmul.f32 %v4826, %v4843
    %v4845 = vsub.f32 1.0, %v4844
    %v4846 = vmul.f32 %v4843, %v4845
    %v4847 = vadd.f32 %v4843, %v4846
    %vm4848 = vweird.f32 %v4826
    %vm4849 = vweird.f32 %v4843
    %vm4850 = vmor %vm4848, %vm4849
    %v4851 = vsel %vm4850, %v4843, %v4847
    %v4852 = vand.u32 2147483647, %v4826
    %vm4853 = vcmp.eq.f32.partialorder %v4852, 8.507059e+37
    %v4854 = vand.u32 %v4826, 2147483648
    %v4855 = vor.u32 1.1754944e-38, %v4854
    %v4856 = vsel %vm4853, %v4855, %v4851
    %v4857 = vmul.f32 1.0, %v4856
    %v4858 = vrcp.pop %v4827
    %v4859 = vmul.f32 %v4827, %v4858
    %v4860 = vsub.f32 1.0, %v4859
    %v4861 = vmul.f32 %v4858, %v4860
    %v4862 = vadd.f32 %v4858, %v4861
    %vm4863 = vweird.f32 %v4827
    %vm4864 = vweird.f32 %v4858
    %vm4865 = vmor %vm4863, %vm4864
    %v4866 = vsel %vm4865, %v4858, %v4862
    %v4867 = vand.u32 2147483647, %v4827
    %vm4868 = vcmp.eq.f32.partialorder %v4867, 8.507059e+37
    %v4869 = vand.u32 %v4827, 2147483648
    %v4870 = vor.u32 1.1754944e-38, %v4869
    %v4871 = vsel %vm4868, %v4870, %v4866
    %v4872 = vmul.f32 1.0, %v4871
    %v4873 = vtanh.pop %v4815
    %v4874 = vmul.f32 %v4857, %v4749
    %v4875 = vmul.f32 %v4842, %v4873
    %v4876 = vadd.f32 %v4874, %v4875
    %v4877 = vtanh.pop %v4876
    %v4878 = vmul.f32 %v4872, %v4877
    %v4879 = vpack.c.bf16 %v4878, %v4878
    %4880 = vst [vmem:[%s1679] sm:$0xf] %v4879
    %4881 = vst [vmem:[%s3700] sm:$0xff] %v4878
    %4882 = vst [vmem:[%s3702] sm:$0xff] %v4876
    %v4883 = vld [vmem:[#allocation5] sm:$0xf]
    %v4884 = vld [vmem:[#allocation5 + $0x4] sm:$0xf]
    %v4885 = vld [vmem:[#allocation5 + $0x8] sm:$0xf]
    %v4886 = vld [vmem:[#allocation5 + $0xc] sm:$0xf]
    %v4887 = vld [vmem:[#allocation5 + $0x10] sm:$0xf]
    %v4888 = vld [vmem:[#allocation5 + $0x14] sm:$0xf]
    %v4889 = vld [vmem:[#allocation5 + $0x18] sm:$0xf]
    %v4890 = vld [vmem:[#allocation5 + $0x1c] sm:$0xf]
    %v4891 = vunpack.c.l.bf16 %v4883
    %v4892 = vunpack.c.l.bf16 %v4884
    %v4893 = vunpack.c.l.bf16 %v4885
    %v4894 = vunpack.c.l.bf16 %v4886
    %v4895 = vunpack.c.l.bf16 %v4887
    %v4896 = vunpack.c.l.bf16 %v4888
    %v4897 = vunpack.c.l.bf16 %v4889
    %v4898 = vunpack.c.l.bf16 %v4890
    %v4899 = vrot.slane %v4893, 4
    %vm4900 = vcmask 1047556
    %v4901 = vsel %vm4900, %v4899, %v4891
    %v4902 = vrot.slane %v4891, 4
    %v4903 = vsel %vm4900, %v4893, %v4902
    %v4905 = vunpack.c.l.s4 1983009808
    %v4906 = vunpack.c.0.s8 %v4905
    %v4907 = vperm.slane %v4901, %v4906
    %v4909 = vunpack.c.l.s4 1983009808
    %v4910 = vunpack.c.0.s8 %v4909
    %v4911 = vperm.slane %v4903, %v4910
    %v4912 = vrot.slane %v4894, 4
    %v4913 = vsel %vm4900, %v4912, %v4892
    %v4914 = vrot.slane %v4892, 4
    %v4915 = vsel %vm4900, %v4894, %v4914
    %v4917 = vunpack.c.l.s4 1983009808
    %v4918 = vunpack.c.0.s8 %v4917
    %v4919 = vperm.slane %v4913, %v4918
    %v4921 = vunpack.c.l.s4 1983009808
    %v4922 = vunpack.c.0.s8 %v4921
    %v4923 = vperm.slane %v4915, %v4922
    %v4924 = vrot.slane %v4897, 4
    %v4925 = vsel %vm4900, %v4924, %v4895
    %v4926 = vrot.slane %v4895, 4
    %v4927 = vsel %vm4900, %v4897, %v4926
    %v4929 = vunpack.c.l.s4 1983009808
    %v4930 = vunpack.c.0.s8 %v4929
    %v4931 = vperm.slane %v4925, %v4930
    %v4933 = vunpack.c.l.s4 1983009808
    %v4934 = vunpack.c.0.s8 %v4933
    %v4935 = vperm.slane %v4927, %v4934
    %v4936 = vrot.slane %v4898, 4
    %v4937 = vsel %vm4900, %v4936, %v4896
    %v4938 = vrot.slane %v4896, 4
    %v4939 = vsel %vm4900, %v4898, %v4938
    %v4941 = vunpack.c.l.s4 1983009808
    %v4942 = vunpack.c.0.s8 %v4941
    %v4943 = vperm.slane %v4937, %v4942
    %v4945 = vunpack.c.l.s4 1983009808
    %v4946 = vunpack.c.0.s8 %v4945
    %v4947 = vperm.slane %v4939, %v4946
    %v4948 = vrot.slane %v4919, 4
    %v4949 = vsel %vm4900, %v4948, %v4907
    %v4950 = vrot.slane %v4907, 4
    %v4951 = vsel %vm4900, %v4919, %v4950
    %v4953 = vunpack.c.l.s4 1934713408
    %v4954 = vunpack.c.0.s8 %v4953
    %v4955 = vperm.slane %v4949, %v4954
    %v4957 = vunpack.c.l.s4 1934713408
    %v4958 = vunpack.c.0.s8 %v4957
    %v4959 = vperm.slane %v4951, %v4958
    %v4960 = vrot.slane %v4923, 4
    %v4961 = vsel %vm4900, %v4960, %v4911
    %v4962 = vrot.slane %v4911, 4
    %v4963 = vsel %vm4900, %v4923, %v4962
    %v4965 = vunpack.c.l.s4 1934713408
    %v4966 = vunpack.c.0.s8 %v4965
    %v4967 = vperm.slane %v4961, %v4966
    %v4969 = vunpack.c.l.s4 1934713408
    %v4970 = vunpack.c.0.s8 %v4969
    %v4971 = vperm.slane %v4963, %v4970
    %v4972 = vrot.slane %v4943, 4
    %v4973 = vsel %vm4900, %v4972, %v4931
    %v4974 = vrot.slane %v4931, 4
    %v4975 = vsel %vm4900, %v4943, %v4974
    %v4977 = vunpack.c.l.s4 1934713408
    %v4978 = vunpack.c.0.s8 %v4977
    %v4979 = vperm.slane %v4973, %v4978
    %v4981 = vunpack.c.l.s4 1934713408
    %v4982 = vunpack.c.0.s8 %v4981
    %v4983 = vperm.slane %v4975, %v4982
    %v4984 = vrot.slane %v4947, 4
    %v4985 = vsel %vm4900, %v4984, %v4935
    %v4986 = vrot.slane %v4935, 4
    %v4987 = vsel %vm4900, %v4947, %v4986
    %v4989 = vunpack.c.l.s4 1934713408
    %v4990 = vunpack.c.0.s8 %v4989
    %v4991 = vperm.slane %v4985, %v4990
    %v4993 = vunpack.c.l.s4 1934713408
    %v4994 = vunpack.c.0.s8 %v4993
    %v4995 = vperm.slane %v4987, %v4994
    %v4996 = vrot.slane %v4979, 4
    %v4997 = vsel %vm4900, %v4996, %v4955
    %v4998 = vrot.slane %v4955, 4
    %v4999 = vsel %vm4900, %v4979, %v4998
    %v5000 = vrot.slane %v4983, 4
    %v5001 = vsel %vm4900, %v5000, %v4959
    %v5002 = vrot.slane %v4959, 4
    %v5003 = vsel %vm4900, %v4983, %v5002
    %v5004 = vrot.slane %v4991, 4
    %v5005 = vsel %vm4900, %v5004, %v4967
    %v5006 = vrot.slane %v4967, 4
    %v5007 = vsel %vm4900, %v4991, %v5006
    %v5008 = vrot.slane %v4995, 4
    %v5009 = vsel %vm4900, %v5008, %v4971
    %v5010 = vrot.slane %v4971, 4
    %v5011 = vsel %vm4900, %v4995, %v5010
    %v5012 = vpack.c.bf16 %v4997, %v4997
    %v5013 = vpack.c.bf16 %v4999, %v4999
    %v5014 = vpack.c.bf16 %v5001, %v5001
    %v5015 = vpack.c.bf16 %v5003, %v5003
    %v5016 = vpack.c.bf16 %v5005, %v5005
    %v5017 = vpack.c.bf16 %v5007, %v5007
    %v5018 = vpack.c.bf16 %v5009, %v5009
    %v5019 = vpack.c.bf16 %v5011, %v5011
    %5020 = vst [vmem:[%s6] sm:$0xf] %v5012
    %5021 = vst [vmem:[%s6 + $0x4] sm:$0xf] %v5013
    %5022 = vst [vmem:[%s6 + $0x8] sm:$0xf] %v5014
    %5023 = vst [vmem:[%s6 + $0xc] sm:$0xf] %v5015
    %5024 = vst [vmem:[%s6 + $0x10] sm:$0xf] %v5016
    %5025 = vst [vmem:[%s6 + $0x14] sm:$0xf] %v5017
    %5026 = vst [vmem:[%s6 + $0x18] sm:$0xf] %v5018
    %5027 = vst [vmem:[%s6 + $0x1c] sm:$0xf] %v5019
    // Predicated region
    $region38: #{word_lstm_forward.2} parent=1 // pred_check
      %p5028 = pneg %p58
    $region39: #{word_lstm_forward.2} parent=1 // pred_check_branch
      %5030 = sbr.rel (%p5028) target = $region41
    $region40: #{word_lstm_forward.2} parent=1 // pred_region
      %v5031 = vld [vmem:[#allocation2] sm:$0xff]
      %v5032 = vld [vmem:[#allocation2 + $0x8] sm:$0xff]
      %v5033 = vld [vmem:[#allocation2 + $0x10] sm:$0xff]
      %5034 = vst [vmem:[%s7] sm:$0xff] %v5031
      %5035 = vst [vmem:[%s7 + $0x8] sm:$0xff] %v5032
      %5036 = vst [vmem:[%s7 + $0x10] sm:$0xff] %v5033
      %v5037 = vld [vmem:[#allocation3] sm:$0xff]
      %v5038 = vld [vmem:[#allocation3 + $0x8] sm:$0xff]
      %v5039 = vld [vmem:[#allocation3 + $0x10] sm:$0xff]
      %5040 = vst [vmem:[%s8] sm:$0xff] %v5037
      %5041 = vst [vmem:[%s8 + $0x8] sm:$0xff] %v5038
      %5042 = vst [vmem:[%s8 + $0x10] sm:$0xff] %v5039
    $region41: #{word_lstm_forward.2} parent=1 // pred_fallthru
      _
    // Predicated region
    $region42: #{word_lstm_forward.2} parent=1 // pred_check
      _
    $region43: #{word_lstm_forward.2} parent=1 // pred_check_branch
      %5044 = sbr.rel (0) target = $region45
    $region44: #{word_lstm_forward.2} parent=1 // pred_region
      _
    $region45: #{word_lstm_forward.2} parent=1 // pred_fallthru
      _
    // Predicated region
    $region46: #{word_lstm_forward.2} parent=1 // pred_check
      _
    $region47: #{word_lstm_forward.2} parent=1 // pred_check_branch
      %5046 = sbr.rel (0) target = $region49
    $region48: #{word_lstm_forward.2} parent=1 // pred_region
      _
    $region49: #{word_lstm_forward.2} parent=1 // pred_fallthru
      _
    // Predicated region
    $region50: #{word_lstm_forward.2} parent=1 // pred_check
      _
    $region51: #{word_lstm_forward.2} parent=1 // pred_check_branch
      %5048 = sbr.rel (0) target = $region53
    $region52: #{word_lstm_forward.2} parent=1 // pred_region
      _
    $region53: #{word_lstm_forward.2} parent=1 // pred_fallthru
      _
    // Predicated region
    $region54: #{word_lstm_forward.2} parent=1 // pred_check
      _
    $region55: #{word_lstm_forward.2} parent=1 // pred_check_branch
      %5050 = sbr.rel (0) target = $region57
    $region56: #{word_lstm_forward.2} parent=1 // pred_region
      _
    $region57: #{word_lstm_forward.2} parent=1 // pred_fallthru
      _
    // Predicated region
    $region58: #{word_lstm_forward.2} parent=1 // pred_check
      _
    $region59: #{word_lstm_forward.2} parent=1 // pred_check_branch
      %5052 = sbr.rel (0) target = $region61
    $region60: #{word_lstm_forward.2} parent=1 // pred_region
      _
    $region61: #{word_lstm_forward.2} parent=1 // pred_fallthru
      _
    // Predicated region
    $region62: #{word_lstm_forward.2} parent=1 // pred_check
      _
    $region63: #{word_lstm_forward.2} parent=1 // pred_check_branch
      %5054 = sbr.rel (0) target = $region65
    $region64: #{word_lstm_forward.2} parent=1 // pred_region
      _
    $region65: #{word_lstm_forward.2} parent=1 // pred_fallthru
      _
    %5055 = vsyncpa [#allocation7], 1
    %5056 = vsyncpa [#allocation9], 1

</llo_original>
